<compile_context>
chip_gen: v6e
topology: v6e:2x2x1
jax: 0.10.0
libtpu: 0.0.40
codegen_flags: <defaults>
</compile_context>

<pallas_src>
import jax
import jax.numpy as jnp
from jax.experimental import pallas as pl
from jax.experimental.pallas import tpu as pltpu


_ROW_TILE_CAP = 1024   # rows (sublane axis) per grid step


def _row_tile(M, cap=_ROW_TILE_CAP):
    """Row-tile size and padded row count (multiple of the tile)."""
    tm = M if M <= cap else cap
    Mp = -(-M // tm) * tm
    return tm, Mp


def _pad_rows(x, Mp):
    M = x.shape[0]
    if Mp == M:
        return x
    return jnp.pad(x, ((0, Mp - M), (0, 0)))


# ----------------------------- Pallas kernels ------------------------------

def _mm_kernel(x_ref, w_ref, o_ref):
    """Plain matmul tile (bf16 inputs, f32 accumulation)."""
    o_ref[...] = jnp.dot(x_ref[...], w_ref[...],
                         preferred_element_type=jnp.float32)


def _bn_relu_mm_kernel(x_ref, sc_ref, sh_ref, w_ref, o_ref):
    """Previous layer's BatchNorm affine + ReLU fused into the matmul prologue:
       o = relu(x * scale + shift) @ W, f32 accumulation on the MXU."""
    x = x_ref[...].astype(jnp.float32)
    x = jnp.maximum(x * sc_ref[...] + sh_ref[...], 0.0)
    o_ref[...] = jnp.dot(x.astype(jnp.bfloat16), w_ref[...],
                         preferred_element_type=jnp.float32)


def _stats_kernel(y_ref, s_ref, q_ref):
    """Per-tile partial per-channel sum / sum-of-squares (for BatchNorm)."""
    y = y_ref[...].astype(jnp.float32)
    s_ref[...] = jnp.sum(y, axis=0, keepdims=True)[None]
    q_ref[...] = jnp.sum(y * y, axis=0, keepdims=True)[None]


def _tanh_kernel(x_ref, o_ref):
    o_ref[...] = jnp.tanh(x_ref[...])


# --------------------------- Pallas call wrappers ---------------------------

def _convT_cols(x2, w_mat, tm):
    Mp, Ci = x2.shape
    Cp = w_mat.shape[1]
    return pl.pallas_call(
        _mm_kernel,
        out_shape=jax.ShapeDtypeStruct((Mp, Cp), jnp.float32),
        grid=(Mp // tm,),
        in_specs=[pl.BlockSpec((tm, Ci), lambda i: (i, 0)),
                  pl.BlockSpec((Ci, Cp), lambda i: (0, 0))],
        out_specs=pl.BlockSpec((tm, Cp), lambda i: (i, 0)),
        compiler_params=pltpu.CompilerParams(
            dimension_semantics=("parallel",)),
    )(x2, w_mat)


def _convT_cols_bn_relu(x2, scale, shift, w_mat, tm):
    Mp, Ci = x2.shape
    Cp = w_mat.shape[1]
    return pl.pallas_call(
        _bn_relu_mm_kernel,
        out_shape=jax.ShapeDtypeStruct((Mp, Cp), jnp.float32),
        grid=(Mp // tm,),
        in_specs=[pl.BlockSpec((tm, Ci), lambda i: (i, 0)),
                  pl.BlockSpec((1, Ci), lambda i: (0, 0)),
                  pl.BlockSpec((1, Ci), lambda i: (0, 0)),
                  pl.BlockSpec((Ci, Cp), lambda i: (0, 0))],
        out_specs=pl.BlockSpec((tm, Cp), lambda i: (i, 0)),
        compiler_params=pltpu.CompilerParams(
            dimension_semantics=("parallel",)),
    )(x2, scale, shift, w_mat)


def _batch_stats(y2, count):
    """Per-channel mean / biased var of y2[:count].  Emits per-tile partial
    sums (no resident accumulator -> grid stays 'parallel'); zero-padded rows
    past `count` contribute nothing to the sums."""
    Mp, C = y2.shape
    tm = Mp if Mp <= _ROW_TILE_CAP else _ROW_TILE_CAP
    nt = Mp // tm
    s, q = pl.pallas_call(
        _stats_kernel,
        out_shape=(jax.ShapeDtypeStruct((nt, 1, C), jnp.float32),
                   jax.ShapeDtypeStruct((nt, 1, C), jnp.float32)),
        grid=(nt,),
        in_specs=[pl.BlockSpec((tm, C), lambda i: (i, 0))],
        out_specs=(pl.BlockSpec((1, 1, C), lambda i: (i, 0, 0)),
                   pl.BlockSpec((1, 1, C), lambda i: (i, 0, 0))),
        compiler_params=pltpu.CompilerParams(
            dimension_semantics=("parallel",)),
    )(y2)
    s = jnp.sum(s, axis=(0, 1))
    q = jnp.sum(q, axis=(0, 1))
    mean = s / count
    var = jnp.maximum(q / count - mean * mean, 0.0)
    return mean, var


def tanh_lane_dense(y):
    """Elementwise tanh over a lane-dense (rows, 128) reshaped view."""
    shape = y.shape
    total = y.size
    if total % 128 == 0:
        flat = y.reshape(total // 128, 128)
    else:
        flat = y.reshape(-1, shape[-1])           # fallback: full-dim lane axis
    R, C = flat.shape
    tm, Rp = _row_tile(R)
    flat = _pad_rows(flat, Rp)
    out = pl.pallas_call(
        _tanh_kernel,
        out_shape=jax.ShapeDtypeStruct((Rp, C), jnp.float32),
        grid=(Rp // tm,),
        in_specs=[pl.BlockSpec((tm, C), lambda i: (i, 0))],
        out_specs=pl.BlockSpec((tm, C), lambda i: (i, 0)),
        compiler_params=pltpu.CompilerParams(
            dimension_semantics=("parallel",)),
    )(flat)
    return out[:R].reshape(shape)


# ------------------------------- layer glue ---------------------------------

def convT_layer(x, weight, stride, padding, gamma=None, beta=None, eps=1e-5):
    """ConvTranspose2d (kernel KxK, no bias) on an NHWC activation.
    If gamma/beta are given, the *previous* layer's training-mode BatchNorm
    affine + ReLU is fused into the matmul prologue (x is then the previous
    layer's raw convolution output).  Returns the raw (pre-BN/pre-activation)
    NHWC output in f32."""
    N, H, W, Ci = x.shape
    _, Co, K, _ = weight.shape

    # Weight -> (Ci, Co*K*K), bf16, columns padded to a multiple of 128 so the
    # Pallas output stores are lane-dense.
    Ccols = Co * K * K
    Cp = -(-Ccols // 128) * 128
    w_mat = weight.reshape(Ci, Ccols).astype(jnp.bfloat16)
    if Cp != Ccols:
        w_mat = jnp.pad(w_mat, ((0, 0), (0, Cp - Ccols)))

    M = N * H * W
    tm, Mp = _row_tile(M)
    x2 = _pad_rows(x.astype(jnp.bfloat16).reshape(M, Ci), Mp)

    if gamma is None:
        cols = _convT_cols(x2, w_mat, tm)
    else:
        mean, var = _batch_stats(x2, M)           # batch stats over (N, H, W)
        inv = jax.lax.rsqrt(var + eps)
        scale = (gamma * inv).reshape(1, Ci).astype(jnp.float32)
        shift = (beta - mean * gamma * inv).reshape(1, Ci).astype(jnp.float32)
        cols = _convT_cols_bn_relu(x2, scale, shift, w_mat, tm)

    cols = cols[:M, :Ccols].reshape(N, H, W, Co, K, K)

    # col2im: out[n, h*s - p + kh, w*s - p + kw, co] += cols[n, h, w, co, kh, kw]
    # TODO(synk): col2im overlapping scatter-add stays in JAX glue (strided
    # accumulation is not expressible as a rectangular BlockSpec store).
    Hb = (H - 1) * stride + K
    Wb = (W - 1) * stride + K
    buf = jnp.zeros((N, Hb, Wb, Co), jnp.float32)
    for kh in range(K):
        for kw in range(K):
            buf = buf.at[:, kh:kh + (H - 1) * stride + 1:stride,
                            kw:kw + (W - 1) * stride + 1:stride, :].add(
                cols[:, :, :, :, kh, kw])
    OH = (H - 1) * stride - 2 * padding + K
    OW = (W - 1) * stride - 2 * padding + K
    return buf[:, padding:padding + OH, padding:padding + OW, :]


# ------------------------------- Generator ----------------------------------

def get_channel_sizes(image_shape):
    assert image_shape[1] == image_shape[2], "Image must be square"
    return [8 * image_shape[1], 4 * image_shape[1], 2 * image_shape[1],
            1 * image_shape[1], 1 * image_shape[0]]


def init_generator_params(key, latent_dimensions, image_shape):
    chans = get_channel_sizes(image_shape)
    in_chans = [latent_dimensions] + chans[:-1]
    params = {}
    for li, (ci, co) in enumerate(zip(in_chans, chans), start=1):
        key, wk = jax.random.split(key)
        # DCGAN-style deterministic init: N(0, 0.02) for conv weights
        params[f"w{li}"] = 0.02 * jax.random.normal(wk, (ci, co, 4, 4), jnp.float32)
        if li < 5:  # BatchNorm affine params (PyTorch default init: 1 / 0)
            params[f"gamma{li}"] = jnp.ones((co,), jnp.float32)
            params[f"beta{li}"] = jnp.zeros((co,), jnp.float32)
    return params


@jax.jit
def generator_forward(params, x):
    # x: (N, latent, 1, 1) NCHW like the PyTorch module; NHWC inside.
    h = x.transpose(0, 2, 3, 1)
    h = convT_layer(h, params["w1"], stride=1, padding=0)
    h = convT_layer(h, params["w2"], stride=2, padding=1,
                    gamma=params["gamma1"], beta=params["beta1"])
    h = convT_layer(h, params["w3"], stride=2, padding=1,
                    gamma=params["gamma2"], beta=params["beta2"])
    h = convT_layer(h, params["w4"], stride=2, padding=1,
                    gamma=params["gamma3"], beta=params["beta3"])
    h = convT_layer(h, params["w5"], stride=2, padding=1,
                    gamma=params["gamma4"], beta=params["beta4"])
    h = tanh_lane_dense(h)
    return h.transpose(0, 3, 1, 2)      # back to NCHW


if __name__ == "__main__":
    latent_dimensions = 8
    image_shape = (3, 16, 16)            # channels = [128, 64, 32, 16, 3]
    batch = 2

    key = jax.random.PRNGKey(0)
    key, pkey, xkey = jax.random.split(key, 3)
    params = init_generator_params(pkey, latent_dimensions, image_shape)
    x = jax.random.normal(xkey, (batch, latent_dimensions, 1, 1), jnp.float32)

    out = generator_forward(params, x)
    out = jax.block_until_ready(out)

    assert out.shape == (batch, image_shape[0], 64, 64), out.shape
    assert bool(jnp.all(jnp.isfinite(out)))
    assert bool(jnp.all(jnp.abs(out) <= 1.0))   # tanh output range
    print("KERNEL_OK")
</pallas_src>

<mosaic_0001>
module attributes {stable_mosaic.version = 11 : i64} {
  func.func @_mm_kernel(%arg0: i32, %arg1: memref<2x8xbf16, #tpu.memory_space<vmem>>, %arg2: memref<8x2048xbf16, #tpu.memory_space<vmem>>, %arg3: memref<2x2048xf32, #tpu.memory_space<vmem>>) attributes {dimension_semantics = [#tpu.dimension_semantics<parallel>], iteration_bounds = array<i64: 1>, scalar_prefetch = 0 : i64, scratch_operands = 0 : i64, tpu.core_type = #tpu.core_type<tc>, window_params = [{transform_indices = @transform_0, window_bounds = array<i64: 2, 8>}, {pipeline_mode = #tpu.pipeline_mode<synchronous>, transform_indices = @transform_1, window_bounds = array<i64: 8, 2048>}, {transform_indices = @transform_2, window_bounds = array<i64: 2, 2048>}]} {
    %c0 = arith.constant 0 : index
    %c0_0 = arith.constant 0 : index
    %0 = vector.load %arg1[%c0, %c0_0] : memref<2x8xbf16, #tpu.memory_space<vmem>>, vector<2x8xbf16>
    %c0_1 = arith.constant 0 : index
    %c0_2 = arith.constant 0 : index
    %1 = vector.load %arg2[%c0_1, %c0_2] : memref<8x2048xbf16, #tpu.memory_space<vmem>>, vector<8x2048xbf16>
    %cst = arith.constant dense<0.000000e+00> : vector<2x2048xf32>
    %2 = tpu.matmul %0, %1, %cst {dimension_numbers = #tpu.dot_dimension_numbers<[1], [0], [0], [1], [0, 0, 1, 1], [], []>} : vector<2x8xbf16>, vector<8x2048xbf16>, vector<2x2048xf32> -> vector<2x2048xf32>
    %c0_3 = arith.constant 0 : index
    %c0_4 = arith.constant 0 : index
    %3 = vector.load %arg3[%c0_3, %c0_4] : memref<2x2048xf32, #tpu.memory_space<vmem>>, vector<2x2048xf32>
    tpu.vector_store %arg3[%c0_3, %c0_4], %2 {strides = array<i32>} : memref<2x2048xf32, #tpu.memory_space<vmem>>, vector<2x2048xf32>,
    return
  }
  func.func @transform_0(%arg0: i32) -> (i32, i32) {
    %c0_i32 = arith.constant 0 : i32
    %c0_i32_0 = arith.constant 0 : i32
    return %arg0, %c0_i32 : i32, i32
  }
  func.func @transform_1(%arg0: i32) -> (i32, i32) {
    %c0_i32 = arith.constant 0 : i32
    %c0_i32_0 = arith.constant 0 : i32
    %c0_i32_1 = arith.constant 0 : i32
    return %c0_i32, %c0_i32_0 : i32, i32
  }
  func.func @transform_2(%arg0: i32) -> (i32, i32) {
    %c0_i32 = arith.constant 0 : i32
    %c0_i32_0 = arith.constant 0 : i32
    return %arg0, %c0_i32 : i32, i32
  }
}

module attributes {stable_mosaic.version = 11 : i64} {
  func.func @_stats_kernel(%arg0: i32, %arg1: memref<32x128xbf16, #tpu.memory_space<vmem>>, %arg2: memref<1x1x128xf32, #tpu.memory_space<vmem>>, %arg3: memref<1x1x128xf32, #tpu.memory_space<vmem>>) attributes {dimension_semantics = [#tpu.dimension_semantics<parallel>], iteration_bounds = array<i64: 1>, scalar_prefetch = 0 : i64, scratch_operands = 0 : i64, tpu.core_type = #tpu.core_type<tc>, window_params = [{transform_indices = @transform_0, window_bounds = array<i64: 32, 128>}, {transform_indices = @transform_1, window_bounds = array<i64: 1, 1, 128>}, {transform_indices = @transform_2, window_bounds = array<i64: 1, 1, 128>}]} {
    %c0 = arith.constant 0 : index
    %c0_0 = arith.constant 0 : index
    %0 = vector.load %arg1[%c0, %c0_0] : memref<32x128xbf16, #tpu.memory_space<vmem>>, vector<32x128xbf16>
    %1 = arith.extf %0 : vector<32x128xbf16> to vector<32x128xf32>
    %cst = arith.constant dense<0.000000e+00> : vector<128xf32>
    %2 = vector.multi_reduction <add>, %1, %cst [0] : vector<32x128xf32> to vector<128xf32>
    %3 = vector.shape_cast %2 : vector<128xf32> to vector<1x128xf32>
    %4 = vector.shape_cast %3 : vector<1x128xf32> to vector<1x1x128xf32>
    %c0_1 = arith.constant 0 : index
    %c0_2 = arith.constant 0 : index
    %c0_3 = arith.constant 0 : index
    %5 = vector.load %arg2[%c0_1, %c0_2, %c0_3] : memref<1x1x128xf32, #tpu.memory_space<vmem>>, vector<1x1x128xf32>
    tpu.vector_store %arg2[%c0_1, %c0_2, %c0_3], %4 {strides = array<i32>} : memref<1x1x128xf32, #tpu.memory_space<vmem>>, vector<1x1x128xf32>,
    %6 = arith.mulf %1, %1 : vector<32x128xf32>
    %cst_4 = arith.constant dense<0.000000e+00> : vector<128xf32>
    %7 = vector.multi_reduction <add>, %6, %cst_4 [0] : vector<32x128xf32> to vector<128xf32>
    %8 = vector.shape_cast %7 : vector<128xf32> to vector<1x128xf32>
    %9 = vector.shape_cast %8 : vector<1x128xf32> to vector<1x1x128xf32>
    %c0_5 = arith.constant 0 : index
    %c0_6 = arith.constant 0 : index
    %c0_7 = arith.constant 0 : index
    %10 = vector.load %arg3[%c0_5, %c0_6, %c0_7] : memref<1x1x128xf32, #tpu.memory_space<vmem>>, vector<1x1x128xf32>
    tpu.vector_store %arg3[%c0_5, %c0_6, %c0_7], %9 {strides = array<i32>} : memref<1x1x128xf32, #tpu.memory_space<vmem>>, vector<1x1x128xf32>,
    return
  }
  func.func @transform_0(%arg0: i32) -> (i32, i32) {
    %c0_i32 = arith.constant 0 : i32
    %c0_i32_0 = arith.constant 0 : i32
    return %arg0, %c0_i32 : i32, i32
  }
  func.func @transform_1(%arg0: i32) -> (i32, i32, i32) {
    %c0_i32 = arith.constant 0 : i32
    %c0_i32_0 = arith.constant 0 : i32
    %c0_i32_1 = arith.constant 0 : i32
    return %arg0, %c0_i32, %c0_i32_0 : i32, i32, i32
  }
  func.func @transform_2(%arg0: i32) -> (i32, i32, i32) {
    %c0_i32 = arith.constant 0 : i32
    %c0_i32_0 = arith.constant 0 : i32
    %c0_i32_1 = arith.constant 0 : i32
    return %arg0, %c0_i32, %c0_i32_0 : i32, i32, i32
  }
}

module attributes {stable_mosaic.version = 11 : i64} {
  func.func @_bn_relu_mm_kernel(%arg0: i32, %arg1: memref<32x128xbf16, #tpu.memory_space<vmem>>, %arg2: memref<1x128xf32, #tpu.memory_space<vmem>>, %arg3: memref<1x128xf32, #tpu.memory_space<vmem>>, %arg4: memref<128x1024xbf16, #tpu.memory_space<vmem>>, %arg5: memref<32x1024xf32, #tpu.memory_space<vmem>>) attributes {dimension_semantics = [#tpu.dimension_semantics<parallel>], iteration_bounds = array<i64: 1>, scalar_prefetch = 0 : i64, scratch_operands = 0 : i64, tpu.core_type = #tpu.core_type<tc>, window_params = [{transform_indices = @transform_0, window_bounds = array<i64: 32, 128>}, {pipeline_mode = #tpu.pipeline_mode<synchronous>, transform_indices = @transform_1, window_bounds = array<i64: 1, 128>}, {pipeline_mode = #tpu.pipeline_mode<synchronous>, transform_indices = @transform_2, window_bounds = array<i64: 1, 128>}, {pipeline_mode = #tpu.pipeline_mode<synchronous>, transform_indices = @transform_3, window_bounds = array<i64: 128, 1024>}, {transform_indices = @transform_4, window_bounds = array<i64: 32, 1024>}]} {
    %c0 = arith.constant 0 : index
    %c0_0 = arith.constant 0 : index
    %0 = vector.load %arg1[%c0, %c0_0] : memref<32x128xbf16, #tpu.memory_space<vmem>>, vector<32x128xbf16>
    %1 = arith.extf %0 : vector<32x128xbf16> to vector<32x128xf32>
    %c0_1 = arith.constant 0 : index
    %c0_2 = arith.constant 0 : index
    %2 = vector.load %arg2[%c0_1, %c0_2] : memref<1x128xf32, #tpu.memory_space<vmem>>, vector<1x128xf32>
    %3 = vector.broadcast %2 : vector<1x128xf32> to vector<32x128xf32>
    %4 = arith.mulf %1, %3 : vector<32x128xf32>
    %c0_3 = arith.constant 0 : index
    %c0_4 = arith.constant 0 : index
    %5 = vector.load %arg3[%c0_3, %c0_4] : memref<1x128xf32, #tpu.memory_space<vmem>>, vector<1x128xf32>
    %6 = vector.broadcast %5 : vector<1x128xf32> to vector<32x128xf32>
    %7 = arith.addf %4, %6 : vector<32x128xf32>
    %cst = arith.constant 0.000000e+00 : f32
    %8 = vector.broadcast %cst : f32 to vector<32x128xf32>
    %9 = arith.maximumf %7, %8 : vector<32x128xf32>
    %10 = arith.truncf %9 : vector<32x128xf32> to vector<32x128xbf16>
    %c0_5 = arith.constant 0 : index
    %c0_6 = arith.constant 0 : index
    %11 = vector.load %arg4[%c0_5, %c0_6] : memref<128x1024xbf16, #tpu.memory_space<vmem>>, vector<128x1024xbf16>
    %cst_7 = arith.constant dense<0.000000e+00> : vector<32x1024xf32>
    %12 = tpu.matmul %10, %11, %cst_7 {dimension_numbers = #tpu.dot_dimension_numbers<[1], [0], [0], [1], [0, 0, 1, 1], [], []>} : vector<32x128xbf16>, vector<128x1024xbf16>, vector<32x1024xf32> -> vector<32x1024xf32>
    %c0_8 = arith.constant 0 : index
    %c0_9 = arith.constant 0 : index
    %13 = vector.load %arg5[%c0_8, %c0_9] : memref<32x1024xf32, #tpu.memory_space<vmem>>, vector<32x1024xf32>
    tpu.vector_store %arg5[%c0_8, %c0_9], %12 {strides = array<i32>} : memref<32x1024xf32, #tpu.memory_space<vmem>>, vector<32x1024xf32>,
    return
  }
  func.func @transform_0(%arg0: i32) -> (i32, i32) {
    %c0_i32 = arith.constant 0 : i32
    %c0_i32_0 = arith.constant 0 : i32
    return %arg0, %c0_i32 : i32, i32
  }
  func.func @transform_1(%arg0: i32) -> (i32, i32) {
    %c0_i32 = arith.constant 0 : i32
    %c0_i32_0 = arith.constant 0 : i32
    %c0_i32_1 = arith.constant 0 : i32
    return %c0_i32, %c0_i32_0 : i32, i32
  }
  func.func @transform_2(%arg0: i32) -> (i32, i32) {
    %c0_i32 = arith.constant 0 : i32
    %c0_i32_0 = arith.constant 0 : i32
    %c0_i32_1 = arith.constant 0 : i32
    return %c0_i32, %c0_i32_0 : i32, i32
  }
  func.func @transform_3(%arg0: i32) -> (i32, i32) {
    %c0_i32 = arith.constant 0 : i32
    %c0_i32_0 = arith.constant 0 : i32
    %c0_i32_1 = arith.constant 0 : i32
    return %c0_i32, %c0_i32_0 : i32, i32
  }
  func.func @transform_4(%arg0: i32) -> (i32, i32) {
    %c0_i32 = arith.constant 0 : i32
    %c0_i32_0 = arith.constant 0 : i32
    return %arg0, %c0_i32 : i32, i32
  }
}

module attributes {stable_mosaic.version = 11 : i64} {
  func.func @_stats_kernel(%arg0: i32, %arg1: memref<128x64xbf16, #tpu.memory_space<vmem>>, %arg2: memref<1x1x64xf32, #tpu.memory_space<vmem>>, %arg3: memref<1x1x64xf32, #tpu.memory_space<vmem>>) attributes {dimension_semantics = [#tpu.dimension_semantics<parallel>], iteration_bounds = array<i64: 1>, scalar_prefetch = 0 : i64, scratch_operands = 0 : i64, tpu.core_type = #tpu.core_type<tc>, window_params = [{transform_indices = @transform_0, window_bounds = array<i64: 128, 64>}, {transform_indices = @transform_1, window_bounds = array<i64: 1, 1, 64>}, {transform_indices = @transform_2, window_bounds = array<i64: 1, 1, 64>}]} {
    %c0 = arith.constant 0 : index
    %c0_0 = arith.constant 0 : index
    %0 = vector.load %arg1[%c0, %c0_0] : memref<128x64xbf16, #tpu.memory_space<vmem>>, vector<128x64xbf16>
    %1 = arith.extf %0 : vector<128x64xbf16> to vector<128x64xf32>
    %cst = arith.constant dense<0.000000e+00> : vector<64xf32>
    %2 = vector.multi_reduction <add>, %1, %cst [0] : vector<128x64xf32> to vector<64xf32>
    %3 = vector.shape_cast %2 : vector<64xf32> to vector<1x64xf32>
    %4 = vector.shape_cast %3 : vector<1x64xf32> to vector<1x1x64xf32>
    %c0_1 = arith.constant 0 : index
    %c0_2 = arith.constant 0 : index
    %c0_3 = arith.constant 0 : index
    %5 = vector.load %arg2[%c0_1, %c0_2, %c0_3] : memref<1x1x64xf32, #tpu.memory_space<vmem>>, vector<1x1x64xf32>
    tpu.vector_store %arg2[%c0_1, %c0_2, %c0_3], %4 {strides = array<i32>} : memref<1x1x64xf32, #tpu.memory_space<vmem>>, vector<1x1x64xf32>,
    %6 = arith.mulf %1, %1 : vector<128x64xf32>
    %cst_4 = arith.constant dense<0.000000e+00> : vector<64xf32>
    %7 = vector.multi_reduction <add>, %6, %cst_4 [0] : vector<128x64xf32> to vector<64xf32>
    %8 = vector.shape_cast %7 : vector<64xf32> to vector<1x64xf32>
    %9 = vector.shape_cast %8 : vector<1x64xf32> to vector<1x1x64xf32>
    %c0_5 = arith.constant 0 : index
    %c0_6 = arith.constant 0 : index
    %c0_7 = arith.constant 0 : index
    %10 = vector.load %arg3[%c0_5, %c0_6, %c0_7] : memref<1x1x64xf32, #tpu.memory_space<vmem>>, vector<1x1x64xf32>
    tpu.vector_store %arg3[%c0_5, %c0_6, %c0_7], %9 {strides = array<i32>} : memref<1x1x64xf32, #tpu.memory_space<vmem>>, vector<1x1x64xf32>,
    return
  }
  func.func @transform_0(%arg0: i32) -> (i32, i32) {
    %c0_i32 = arith.constant 0 : i32
    %c0_i32_0 = arith.constant 0 : i32
    return %arg0, %c0_i32 : i32, i32
  }
  func.func @transform_1(%arg0: i32) -> (i32, i32, i32) {
    %c0_i32 = arith.constant 0 : i32
    %c0_i32_0 = arith.constant 0 : i32
    %c0_i32_1 = arith.constant 0 : i32
    return %arg0, %c0_i32, %c0_i32_0 : i32, i32, i32
  }
  func.func @transform_2(%arg0: i32) -> (i32, i32, i32) {
    %c0_i32 = arith.constant 0 : i32
    %c0_i32_0 = arith.constant 0 : i32
    %c0_i32_1 = arith.constant 0 : i32
    return %arg0, %c0_i32, %c0_i32_0 : i32, i32, i32
  }
}

module attributes {stable_mosaic.version = 11 : i64} {
  func.func @_bn_relu_mm_kernel(%arg0: i32, %arg1: memref<128x64xbf16, #tpu.memory_space<vmem>>, %arg2: memref<1x64xf32, #tpu.memory_space<vmem>>, %arg3: memref<1x64xf32, #tpu.memory_space<vmem>>, %arg4: memref<64x512xbf16, #tpu.memory_space<vmem>>, %arg5: memref<128x512xf32, #tpu.memory_space<vmem>>) attributes {dimension_semantics = [#tpu.dimension_semantics<parallel>], iteration_bounds = array<i64: 1>, scalar_prefetch = 0 : i64, scratch_operands = 0 : i64, tpu.core_type = #tpu.core_type<tc>, window_params = [{transform_indices = @transform_0, window_bounds = array<i64: 128, 64>}, {pipeline_mode = #tpu.pipeline_mode<synchronous>, transform_indices = @transform_1, window_bounds = array<i64: 1, 64>}, {pipeline_mode = #tpu.pipeline_mode<synchronous>, transform_indices = @transform_2, window_bounds = array<i64: 1, 64>}, {pipeline_mode = #tpu.pipeline_mode<synchronous>, transform_indices = @transform_3, window_bounds = array<i64: 64, 512>}, {transform_indices = @transform_4, window_bounds = array<i64: 128, 512>}]} {
    %c0 = arith.constant 0 : index
    %c0_0 = arith.constant 0 : index
    %0 = vector.load %arg1[%c0, %c0_0] : memref<128x64xbf16, #tpu.memory_space<vmem>>, vector<128x64xbf16>
    %1 = arith.extf %0 : vector<128x64xbf16> to vector<128x64xf32>
    %c0_1 = arith.constant 0 : index
    %c0_2 = arith.constant 0 : index
    %2 = vector.load %arg2[%c0_1, %c0_2] : memref<1x64xf32, #tpu.memory_space<vmem>>, vector<1x64xf32>
    %3 = vector.broadcast %2 : vector<1x64xf32> to vector<128x64xf32>
    %4 = arith.mulf %1, %3 : vector<128x64xf32>
    %c0_3 = arith.constant 0 : index
    %c0_4 = arith.constant 0 : index
    %5 = vector.load %arg3[%c0_3, %c0_4] : memref<1x64xf32, #tpu.memory_space<vmem>>, vector<1x64xf32>
    %6 = vector.broadcast %5 : vector<1x64xf32> to vector<128x64xf32>
    %7 = arith.addf %4, %6 : vector<128x64xf32>
    %cst = arith.constant 0.000000e+00 : f32
    %8 = vector.broadcast %cst : f32 to vector<128x64xf32>
    %9 = arith.maximumf %7, %8 : vector<128x64xf32>
    %10 = arith.truncf %9 : vector<128x64xf32> to vector<128x64xbf16>
    %c0_5 = arith.constant 0 : index
    %c0_6 = arith.constant 0 : index
    %11 = vector.load %arg4[%c0_5, %c0_6] : memref<64x512xbf16, #tpu.memory_space<vmem>>, vector<64x512xbf16>
    %cst_7 = arith.constant dense<0.000000e+00> : vector<128x512xf32>
    %12 = tpu.matmul %10, %11, %cst_7 {dimension_numbers = #tpu.dot_dimension_numbers<[1], [0], [0], [1], [0, 0, 1, 1], [], []>} : vector<128x64xbf16>, vector<64x512xbf16>, vector<128x512xf32> -> vector<128x512xf32>
    %c0_8 = arith.constant 0 : index
    %c0_9 = arith.constant 0 : index
    %13 = vector.load %arg5[%c0_8, %c0_9] : memref<128x512xf32, #tpu.memory_space<vmem>>, vector<128x512xf32>
    tpu.vector_store %arg5[%c0_8, %c0_9], %12 {strides = array<i32>} : memref<128x512xf32, #tpu.memory_space<vmem>>, vector<128x512xf32>,
    return
  }
  func.func @transform_0(%arg0: i32) -> (i32, i32) {
    %c0_i32 = arith.constant 0 : i32
    %c0_i32_0 = arith.constant 0 : i32
    return %arg0, %c0_i32 : i32, i32
  }
  func.func @transform_1(%arg0: i32) -> (i32, i32) {
    %c0_i32 = arith.constant 0 : i32
    %c0_i32_0 = arith.constant 0 : i32
    %c0_i32_1 = arith.constant 0 : i32
    return %c0_i32, %c0_i32_0 : i32, i32
  }
  func.func @transform_2(%arg0: i32) -> (i32, i32) {
    %c0_i32 = arith.constant 0 : i32
    %c0_i32_0 = arith.constant 0 : i32
    %c0_i32_1 = arith.constant 0 : i32
    return %c0_i32, %c0_i32_0 : i32, i32
  }
  func.func @transform_3(%arg0: i32) -> (i32, i32) {
    %c0_i32 = arith.constant 0 : i32
    %c0_i32_0 = arith.constant 0 : i32
    %c0_i32_1 = arith.constant 0 : i32
    return %c0_i32, %c0_i32_0 : i32, i32
  }
  func.func @transform_4(%arg0: i32) -> (i32, i32) {
    %c0_i32 = arith.constant 0 : i32
    %c0_i32_0 = arith.constant 0 : i32
    return %arg0, %c0_i32 : i32, i32
  }
}

module attributes {stable_mosaic.version = 11 : i64} {
  func.func @_stats_kernel(%arg0: i32, %arg1: memref<512x32xbf16, #tpu.memory_space<vmem>>, %arg2: memref<1x1x32xf32, #tpu.memory_space<vmem>>, %arg3: memref<1x1x32xf32, #tpu.memory_space<vmem>>) attributes {dimension_semantics = [#tpu.dimension_semantics<parallel>], iteration_bounds = array<i64: 1>, scalar_prefetch = 0 : i64, scratch_operands = 0 : i64, tpu.core_type = #tpu.core_type<tc>, window_params = [{transform_indices = @transform_0, window_bounds = array<i64: 512, 32>}, {transform_indices = @transform_1, window_bounds = array<i64: 1, 1, 32>}, {transform_indices = @transform_2, window_bounds = array<i64: 1, 1, 32>}]} {
    %c0 = arith.constant 0 : index
    %c0_0 = arith.constant 0 : index
    %0 = vector.load %arg1[%c0, %c0_0] : memref<512x32xbf16, #tpu.memory_space<vmem>>, vector<512x32xbf16>
    %1 = arith.extf %0 : vector<512x32xbf16> to vector<512x32xf32>
    %cst = arith.constant dense<0.000000e+00> : vector<32xf32>
    %2 = vector.multi_reduction <add>, %1, %cst [0] : vector<512x32xf32> to vector<32xf32>
    %3 = vector.shape_cast %2 : vector<32xf32> to vector<1x32xf32>
    %4 = vector.shape_cast %3 : vector<1x32xf32> to vector<1x1x32xf32>
    %c0_1 = arith.constant 0 : index
    %c0_2 = arith.constant 0 : index
    %c0_3 = arith.constant 0 : index
    %5 = vector.load %arg2[%c0_1, %c0_2, %c0_3] : memref<1x1x32xf32, #tpu.memory_space<vmem>>, vector<1x1x32xf32>
    tpu.vector_store %arg2[%c0_1, %c0_2, %c0_3], %4 {strides = array<i32>} : memref<1x1x32xf32, #tpu.memory_space<vmem>>, vector<1x1x32xf32>,
    %6 = arith.mulf %1, %1 : vector<512x32xf32>
    %cst_4 = arith.constant dense<0.000000e+00> : vector<32xf32>
    %7 = vector.multi_reduction <add>, %6, %cst_4 [0] : vector<512x32xf32> to vector<32xf32>
    %8 = vector.shape_cast %7 : vector<32xf32> to vector<1x32xf32>
    %9 = vector.shape_cast %8 : vector<1x32xf32> to vector<1x1x32xf32>
    %c0_5 = arith.constant 0 : index
    %c0_6 = arith.constant 0 : index
    %c0_7 = arith.constant 0 : index
    %10 = vector.load %arg3[%c0_5, %c0_6, %c0_7] : memref<1x1x32xf32, #tpu.memory_space<vmem>>, vector<1x1x32xf32>
    tpu.vector_store %arg3[%c0_5, %c0_6, %c0_7], %9 {strides = array<i32>} : memref<1x1x32xf32, #tpu.memory_space<vmem>>, vector<1x1x32xf32>,
    return
  }
  func.func @transform_0(%arg0: i32) -> (i32, i32) {
    %c0_i32 = arith.constant 0 : i32
    %c0_i32_0 = arith.constant 0 : i32
    return %arg0, %c0_i32 : i32, i32
  }
  func.func @transform_1(%arg0: i32) -> (i32, i32, i32) {
    %c0_i32 = arith.constant 0 : i32
    %c0_i32_0 = arith.constant 0 : i32
    %c0_i32_1 = arith.constant 0 : i32
    return %arg0, %c0_i32, %c0_i32_0 : i32, i32, i32
  }
  func.func @transform_2(%arg0: i32) -> (i32, i32, i32) {
    %c0_i32 = arith.constant 0 : i32
    %c0_i32_0 = arith.constant 0 : i32
    %c0_i32_1 = arith.constant 0 : i32
    return %arg0, %c0_i32, %c0_i32_0 : i32, i32, i32
  }
}

module attributes {stable_mosaic.version = 11 : i64} {
  func.func @_bn_relu_mm_kernel(%arg0: i32, %arg1: memref<512x32xbf16, #tpu.memory_space<vmem>>, %arg2: memref<1x32xf32, #tpu.memory_space<vmem>>, %arg3: memref<1x32xf32, #tpu.memory_space<vmem>>, %arg4: memref<32x256xbf16, #tpu.memory_space<vmem>>, %arg5: memref<512x256xf32, #tpu.memory_space<vmem>>) attributes {dimension_semantics = [#tpu.dimension_semantics<parallel>], iteration_bounds = array<i64: 1>, scalar_prefetch = 0 : i64, scratch_operands = 0 : i64, tpu.core_type = #tpu.core_type<tc>, window_params = [{transform_indices = @transform_0, window_bounds = array<i64: 512, 32>}, {pipeline_mode = #tpu.pipeline_mode<synchronous>, transform_indices = @transform_1, window_bounds = array<i64: 1, 32>}, {pipeline_mode = #tpu.pipeline_mode<synchronous>, transform_indices = @transform_2, window_bounds = array<i64: 1, 32>}, {pipeline_mode = #tpu.pipeline_mode<synchronous>, transform_indices = @transform_3, window_bounds = array<i64: 32, 256>}, {transform_indices = @transform_4, window_bounds = array<i64: 512, 256>}]} {
    %c0 = arith.constant 0 : index
    %c0_0 = arith.constant 0 : index
    %0 = vector.load %arg1[%c0, %c0_0] : memref<512x32xbf16, #tpu.memory_space<vmem>>, vector<512x32xbf16>
    %1 = arith.extf %0 : vector<512x32xbf16> to vector<512x32xf32>
    %c0_1 = arith.constant 0 : index
    %c0_2 = arith.constant 0 : index
    %2 = vector.load %arg2[%c0_1, %c0_2] : memref<1x32xf32, #tpu.memory_space<vmem>>, vector<1x32xf32>
    %3 = vector.broadcast %2 : vector<1x32xf32> to vector<512x32xf32>
    %4 = arith.mulf %1, %3 : vector<512x32xf32>
    %c0_3 = arith.constant 0 : index
    %c0_4 = arith.constant 0 : index
    %5 = vector.load %arg3[%c0_3, %c0_4] : memref<1x32xf32, #tpu.memory_space<vmem>>, vector<1x32xf32>
    %6 = vector.broadcast %5 : vector<1x32xf32> to vector<512x32xf32>
    %7 = arith.addf %4, %6 : vector<512x32xf32>
    %cst = arith.constant 0.000000e+00 : f32
    %8 = vector.broadcast %cst : f32 to vector<512x32xf32>
    %9 = arith.maximumf %7, %8 : vector<512x32xf32>
    %10 = arith.truncf %9 : vector<512x32xf32> to vector<512x32xbf16>
    %c0_5 = arith.constant 0 : index
    %c0_6 = arith.constant 0 : index
    %11 = vector.load %arg4[%c0_5, %c0_6] : memref<32x256xbf16, #tpu.memory_space<vmem>>, vector<32x256xbf16>
    %cst_7 = arith.constant dense<0.000000e+00> : vector<512x256xf32>
    %12 = tpu.matmul %10, %11, %cst_7 {dimension_numbers = #tpu.dot_dimension_numbers<[1], [0], [0], [1], [0, 0, 1, 1], [], []>} : vector<512x32xbf16>, vector<32x256xbf16>, vector<512x256xf32> -> vector<512x256xf32>
    %c0_8 = arith.constant 0 : index
    %c0_9 = arith.constant 0 : index
    %13 = vector.load %arg5[%c0_8, %c0_9] : memref<512x256xf32, #tpu.memory_space<vmem>>, vector<512x256xf32>
    tpu.vector_store %arg5[%c0_8, %c0_9], %12 {strides = array<i32>} : memref<512x256xf32, #tpu.memory_space<vmem>>, vector<512x256xf32>,
    return
  }
  func.func @transform_0(%arg0: i32) -> (i32, i32) {
    %c0_i32 = arith.constant 0 : i32
    %c0_i32_0 = arith.constant 0 : i32
    return %arg0, %c0_i32 : i32, i32
  }
  func.func @transform_1(%arg0: i32) -> (i32, i32) {
    %c0_i32 = arith.constant 0 : i32
    %c0_i32_0 = arith.constant 0 : i32
    %c0_i32_1 = arith.constant 0 : i32
    return %c0_i32, %c0_i32_0 : i32, i32
  }
  func.func @transform_2(%arg0: i32) -> (i32, i32) {
    %c0_i32 = arith.constant 0 : i32
    %c0_i32_0 = arith.constant 0 : i32
    %c0_i32_1 = arith.constant 0 : i32
    return %c0_i32, %c0_i32_0 : i32, i32
  }
  func.func @transform_3(%arg0: i32) -> (i32, i32) {
    %c0_i32 = arith.constant 0 : i32
    %c0_i32_0 = arith.constant 0 : i32
    %c0_i32_1 = arith.constant 0 : i32
    return %c0_i32, %c0_i32_0 : i32, i32
  }
  func.func @transform_4(%arg0: i32) -> (i32, i32) {
    %c0_i32 = arith.constant 0 : i32
    %c0_i32_0 = arith.constant 0 : i32
    return %arg0, %c0_i32 : i32, i32
  }
}

module attributes {stable_mosaic.version = 11 : i64} {
  func.func @_stats_kernel(%arg0: i32, %arg1: memref<1024x16xbf16, #tpu.memory_space<vmem>>, %arg2: memref<1x1x16xf32, #tpu.memory_space<vmem>>, %arg3: memref<1x1x16xf32, #tpu.memory_space<vmem>>) attributes {dimension_semantics = [#tpu.dimension_semantics<parallel>], iteration_bounds = array<i64: 2>, scalar_prefetch = 0 : i64, scratch_operands = 0 : i64, tpu.core_type = #tpu.core_type<tc>, window_params = [{transform_indices = @transform_0, window_bounds = array<i64: 1024, 16>}, {transform_indices = @transform_1, window_bounds = array<i64: 1, 1, 16>}, {transform_indices = @transform_2, window_bounds = array<i64: 1, 1, 16>}]} {
    %c0 = arith.constant 0 : index
    %c0_0 = arith.constant 0 : index
    %0 = vector.load %arg1[%c0, %c0_0] : memref<1024x16xbf16, #tpu.memory_space<vmem>>, vector<1024x16xbf16>
    %1 = arith.extf %0 : vector<1024x16xbf16> to vector<1024x16xf32>
    %cst = arith.constant dense<0.000000e+00> : vector<16xf32>
    %2 = vector.multi_reduction <add>, %1, %cst [0] : vector<1024x16xf32> to vector<16xf32>
    %3 = vector.shape_cast %2 : vector<16xf32> to vector<1x16xf32>
    %4 = vector.shape_cast %3 : vector<1x16xf32> to vector<1x1x16xf32>
    %c0_1 = arith.constant 0 : index
    %c0_2 = arith.constant 0 : index
    %c0_3 = arith.constant 0 : index
    %5 = vector.load %arg2[%c0_1, %c0_2, %c0_3] : memref<1x1x16xf32, #tpu.memory_space<vmem>>, vector<1x1x16xf32>
    tpu.vector_store %arg2[%c0_1, %c0_2, %c0_3], %4 {strides = array<i32>} : memref<1x1x16xf32, #tpu.memory_space<vmem>>, vector<1x1x16xf32>,
    %6 = arith.mulf %1, %1 : vector<1024x16xf32>
    %cst_4 = arith.constant dense<0.000000e+00> : vector<16xf32>
    %7 = vector.multi_reduction <add>, %6, %cst_4 [0] : vector<1024x16xf32> to vector<16xf32>
    %8 = vector.shape_cast %7 : vector<16xf32> to vector<1x16xf32>
    %9 = vector.shape_cast %8 : vector<1x16xf32> to vector<1x1x16xf32>
    %c0_5 = arith.constant 0 : index
    %c0_6 = arith.constant 0 : index
    %c0_7 = arith.constant 0 : index
    %10 = vector.load %arg3[%c0_5, %c0_6, %c0_7] : memref<1x1x16xf32, #tpu.memory_space<vmem>>, vector<1x1x16xf32>
    tpu.vector_store %arg3[%c0_5, %c0_6, %c0_7], %9 {strides = array<i32>} : memref<1x1x16xf32, #tpu.memory_space<vmem>>, vector<1x1x16xf32>,
    return
  }
  func.func @transform_0(%arg0: i32) -> (i32, i32) {
    %c0_i32 = arith.constant 0 : i32
    %c0_i32_0 = arith.constant 0 : i32
    return %arg0, %c0_i32 : i32, i32
  }
  func.func @transform_1(%arg0: i32) -> (i32, i32, i32) {
    %c0_i32 = arith.constant 0 : i32
    %c0_i32_0 = arith.constant 0 : i32
    %c0_i32_1 = arith.constant 0 : i32
    return %arg0, %c0_i32, %c0_i32_0 : i32, i32, i32
  }
  func.func @transform_2(%arg0: i32) -> (i32, i32, i32) {
    %c0_i32 = arith.constant 0 : i32
    %c0_i32_0 = arith.constant 0 : i32
    %c0_i32_1 = arith.constant 0 : i32
    return %arg0, %c0_i32, %c0_i32_0 : i32, i32, i32
  }
}

module attributes {stable_mosaic.version = 11 : i64} {
  func.func @_bn_relu_mm_kernel(%arg0: i32, %arg1: memref<1024x16xbf16, #tpu.memory_space<vmem>>, %arg2: memref<1x16xf32, #tpu.memory_space<vmem>>, %arg3: memref<1x16xf32, #tpu.memory_space<vmem>>, %arg4: memref<16x128xbf16, #tpu.memory_space<vmem>>, %arg5: memref<1024x128xf32, #tpu.memory_space<vmem>>) attributes {dimension_semantics = [#tpu.dimension_semantics<parallel>], iteration_bounds = array<i64: 2>, scalar_prefetch = 0 : i64, scratch_operands = 0 : i64, tpu.core_type = #tpu.core_type<tc>, window_params = [{transform_indices = @transform_0, window_bounds = array<i64: 1024, 16>}, {pipeline_mode = #tpu.pipeline_mode<synchronous>, transform_indices = @transform_1, window_bounds = array<i64: 1, 16>}, {pipeline_mode = #tpu.pipeline_mode<synchronous>, transform_indices = @transform_2, window_bounds = array<i64: 1, 16>}, {pipeline_mode = #tpu.pipeline_mode<synchronous>, transform_indices = @transform_3, window_bounds = array<i64: 16, 128>}, {transform_indices = @transform_4, window_bounds = array<i64: 1024, 128>}]} {
    %c0 = arith.constant 0 : index
    %c0_0 = arith.constant 0 : index
    %0 = vector.load %arg1[%c0, %c0_0] : memref<1024x16xbf16, #tpu.memory_space<vmem>>, vector<1024x16xbf16>
    %1 = arith.extf %0 : vector<1024x16xbf16> to vector<1024x16xf32>
    %c0_1 = arith.constant 0 : index
    %c0_2 = arith.constant 0 : index
    %2 = vector.load %arg2[%c0_1, %c0_2] : memref<1x16xf32, #tpu.memory_space<vmem>>, vector<1x16xf32>
    %3 = vector.broadcast %2 : vector<1x16xf32> to vector<1024x16xf32>
    %4 = arith.mulf %1, %3 : vector<1024x16xf32>
    %c0_3 = arith.constant 0 : index
    %c0_4 = arith.constant 0 : index
    %5 = vector.load %arg3[%c0_3, %c0_4] : memref<1x16xf32, #tpu.memory_space<vmem>>, vector<1x16xf32>
    %6 = vector.broadcast %5 : vector<1x16xf32> to vector<1024x16xf32>
    %7 = arith.addf %4, %6 : vector<1024x16xf32>
    %cst = arith.constant 0.000000e+00 : f32
    %8 = vector.broadcast %cst : f32 to vector<1024x16xf32>
    %9 = arith.maximumf %7, %8 : vector<1024x16xf32>
    %10 = arith.truncf %9 : vector<1024x16xf32> to vector<1024x16xbf16>
    %c0_5 = arith.constant 0 : index
    %c0_6 = arith.constant 0 : index
    %11 = vector.load %arg4[%c0_5, %c0_6] : memref<16x128xbf16, #tpu.memory_space<vmem>>, vector<16x128xbf16>
    %cst_7 = arith.constant dense<0.000000e+00> : vector<1024x128xf32>
    %12 = tpu.matmul %10, %11, %cst_7 {dimension_numbers = #tpu.dot_dimension_numbers<[1], [0], [0], [1], [0, 0, 1, 1], [], []>} : vector<1024x16xbf16>, vector<16x128xbf16>, vector<1024x128xf32> -> vector<1024x128xf32>
    %c0_8 = arith.constant 0 : index
    %c0_9 = arith.constant 0 : index
    %13 = vector.load %arg5[%c0_8, %c0_9] : memref<1024x128xf32, #tpu.memory_space<vmem>>, vector<1024x128xf32>
    tpu.vector_store %arg5[%c0_8, %c0_9], %12 {strides = array<i32>} : memref<1024x128xf32, #tpu.memory_space<vmem>>, vector<1024x128xf32>,
    return
  }
  func.func @transform_0(%arg0: i32) -> (i32, i32) {
    %c0_i32 = arith.constant 0 : i32
    %c0_i32_0 = arith.constant 0 : i32
    return %arg0, %c0_i32 : i32, i32
  }
  func.func @transform_1(%arg0: i32) -> (i32, i32) {
    %c0_i32 = arith.constant 0 : i32
    %c0_i32_0 = arith.constant 0 : i32
    %c0_i32_1 = arith.constant 0 : i32
    return %c0_i32, %c0_i32_0 : i32, i32
  }
  func.func @transform_2(%arg0: i32) -> (i32, i32) {
    %c0_i32 = arith.constant 0 : i32
    %c0_i32_0 = arith.constant 0 : i32
    %c0_i32_1 = arith.constant 0 : i32
    return %c0_i32, %c0_i32_0 : i32, i32
  }
  func.func @transform_3(%arg0: i32) -> (i32, i32) {
    %c0_i32 = arith.constant 0 : i32
    %c0_i32_0 = arith.constant 0 : i32
    %c0_i32_1 = arith.constant 0 : i32
    return %c0_i32, %c0_i32_0 : i32, i32
  }
  func.func @transform_4(%arg0: i32) -> (i32, i32) {
    %c0_i32 = arith.constant 0 : i32
    %c0_i32_0 = arith.constant 0 : i32
    return %arg0, %c0_i32 : i32, i32
  }
}

module attributes {stable_mosaic.version = 11 : i64} {
  func.func @_tanh_kernel(%arg0: i32, %arg1: memref<192x128xf32, #tpu.memory_space<vmem>>, %arg2: memref<192x128xf32, #tpu.memory_space<vmem>>) attributes {dimension_semantics = [#tpu.dimension_semantics<parallel>], iteration_bounds = array<i64: 1>, scalar_prefetch = 0 : i64, scratch_operands = 0 : i64, tpu.core_type = #tpu.core_type<tc>, window_params = [{transform_indices = @transform_0, window_bounds = array<i64: 192, 128>}, {transform_indices = @transform_1, window_bounds = array<i64: 192, 128>}]} {
    %c0 = arith.constant 0 : index
    %c0_0 = arith.constant 0 : index
    %0 = vector.load %arg1[%c0, %c0_0] : memref<192x128xf32, #tpu.memory_space<vmem>>, vector<192x128xf32>
    %1 = math.tanh %0 : vector<192x128xf32>
    %c0_1 = arith.constant 0 : index
    %c0_2 = arith.constant 0 : index
    %2 = vector.load %arg2[%c0_1, %c0_2] : memref<192x128xf32, #tpu.memory_space<vmem>>, vector<192x128xf32>
    tpu.vector_store %arg2[%c0_1, %c0_2], %1 {strides = array<i32>} : memref<192x128xf32, #tpu.memory_space<vmem>>, vector<192x128xf32>,
    return
  }
  func.func @transform_0(%arg0: i32) -> (i32, i32) {
    %c0_i32 = arith.constant 0 : i32
    %c0_i32_0 = arith.constant 0 : i32
    return %arg0, %c0_i32 : i32, i32
  }
  func.func @transform_1(%arg0: i32) -> (i32, i32) {
    %c0_i32 = arith.constant 0 : i32
    %c0_i32_0 = arith.constant 0 : i32
    return %arg0, %c0_i32 : i32, i32
  }
}

</mosaic_0001>

<llo_original>
// kernel: generator_forward.10
$region0: #{generator_forward.10}
  #allocation0 [shape = 'u32[]', space=smem, size = 0x4, offset = 0x4, fixed_abs, tag = 'smem constant byte address 0x4 - core index']
  #allocation1 [shape = 'u32[144,128]{1,0:T(1,128)}', space=vmem, size = 0x12000, scoped, tag = 'internal scratch']
  %s0 = inlined_call_operand.vmem [shape: bf16[2,8], index: 0, kind: input, shape index: {}]
  %s1 = inlined_call_operand.vmem [shape: bf16[8,2048], index: 1, kind: input, shape index: {}]
  %s2 = inlined_call_operand.vmem [shape: f32[2,2048], index: 2, kind: output, shape index: {}]
  %s3 = sld [smem:[#allocation0]]
  $region18: #{generator_forward.10} parent=0
    _
  %s5 = ssub.s32 1, %s3
  %s6 = scalar_select 0, %s5, %s3
  // Predicated region
  $region2: #{generator_forward.10} parent=0 // pred_check
    _
  $region3: #{generator_forward.10} parent=0 // pred_check_branch
    %8 = sbr.rel (0) target = $region5
  $region4: #{generator_forward.10} parent=0 // pred_region
    _
  $region5: #{generator_forward.10} parent=0 // pred_fallthru
    _
  // Predicated region
  $region6: #{generator_forward.10} parent=0 // pred_check
    _
  $region7: #{generator_forward.10} parent=0 // pred_check_branch
    %10 = sbr.rel (0) target = $region9
  $region8: #{generator_forward.10} parent=0 // pred_region
    _
  $region9: #{generator_forward.10} parent=0 // pred_fallthru
    _
  %v12 = vld [vmem:[%s0] sm:$0x1]
  %v13 = vld [vmem:[%s1] sm:$0xff]
  %v14 = vld [vmem:[%s1 + $0x8] sm:$0xff]
  %v15 = vld [vmem:[%s1 + $0x10] sm:$0xff]
  %v16 = vld [vmem:[%s1 + $0x18] sm:$0xff]
  %v17 = vld [vmem:[%s1 + $0x20] sm:$0xff]
  %v18 = vld [vmem:[%s1 + $0x28] sm:$0xff]
  %v19 = vld [vmem:[%s1 + $0x30] sm:$0xff]
  %v20 = vld [vmem:[%s1 + $0x38] sm:$0xff]
  %v29 = vunpack.c.l.b16 %v13
  %v30 = vunpack.c.h.b16 %v13
  %v31 = vunpack.c.l.b16 %v14
  %v32 = vunpack.c.h.b16 %v14
  %v33 = vunpack.c.l.b16 %v15
  %v34 = vunpack.c.h.b16 %v15
  %v35 = vunpack.c.l.b16 %v16
  %v36 = vunpack.c.h.b16 %v16
  %v37 = vunpack.c.l.b16 %v17
  %v38 = vunpack.c.h.b16 %v17
  %v39 = vunpack.c.l.b16 %v18
  %v40 = vunpack.c.h.b16 %v18
  %v41 = vunpack.c.l.b16 %v19
  %v42 = vunpack.c.h.b16 %v19
  %v43 = vunpack.c.l.b16 %v20
  %v44 = vunpack.c.h.b16 %v20
  %v45 = vpack.c.b16 %v29, %v29
  %v46 = vpack.c.b16 %v30, %v30
  %v47 = vpack.c.b16 %v31, %v31
  %v48 = vpack.c.b16 %v32, %v32
  %v49 = vpack.c.b16 %v33, %v33
  %v50 = vpack.c.b16 %v34, %v34
  %v51 = vpack.c.b16 %v35, %v35
  %v52 = vpack.c.b16 %v36, %v36
  %v53 = vpack.c.b16 %v37, %v37
  %v54 = vpack.c.b16 %v38, %v38
  %v55 = vpack.c.b16 %v39, %v39
  %v56 = vpack.c.b16 %v40, %v40
  %v57 = vpack.c.b16 %v41, %v41
  %v58 = vpack.c.b16 %v42, %v42
  %v59 = vpack.c.b16 %v43, %v43
  %v60 = vpack.c.b16 %v44, %v44
  %vm61 = vcmask 64512
  %v63 = vsel %vm61, %v12, 0
  %vm65 = vcmask 1043456
  %v67 = vsel %vm65, %v45, 0
  %v70 = vsel %vm65, %v46, 0
  %v73 = vsel %vm65, %v47, 0
  %v76 = vsel %vm65, %v48, 0
  %v79 = vsel %vm65, %v49, 0
  %v82 = vsel %vm65, %v50, 0
  %v85 = vsel %vm65, %v51, 0
  %v88 = vsel %vm65, %v52, 0
  %v91 = vsel %vm65, %v53, 0
  %v94 = vsel %vm65, %v54, 0
  %v97 = vsel %vm65, %v55, 0
  %v100 = vsel %vm65, %v56, 0
  %v103 = vsel %vm65, %v57, 0
  %v106 = vsel %vm65, %v58, 0
  %v109 = vsel %vm65, %v59, 0
  %v112 = vsel %vm65, %v60, 0
  %114 = vmatprep.subr.bf16.mxu0 0
  %115 = vmatpush1.bf16.msra.mxu0 0
  %116 = vmatprep.subr.bf16.mxu0 0
  %117 = vmatpush1.bf16.msra.mxu0 0
  %118 = vmatprep.subr.bf16.mxu0 0
  %119 = vmatpush1.bf16.msra.mxu0 0
  %120 = vmatprep.subr.bf16.mxu0 0
  %121 = vmatpush1.bf16.msra.mxu0 0
  %122 = vmatprep.subr.bf16.mxu0 0
  %123 = vmatpush1.bf16.msra.mxu0 0
  %124 = vmatprep.subr.bf16.mxu0 0
  %125 = vmatpush1.bf16.msra.mxu0 0
  %126 = vmatprep.subr.bf16.mxu0 0
  %127 = vmatpush1.bf16.msra.mxu0 0
  %128 = vmatprep.subr.bf16.mxu0 %v70
  %129 = vmatpush1.bf16.msra.mxu0 %v67
  %130 = vmatprep.subr.bf16.mxu0 0
  %131 = vmatpush2.bf16.msra.mxu0 0
  %132 = vmatprep.subr.bf16.mxu0 0
  %133 = vmatpush2.bf16.msra.mxu0 0
  %134 = vmatprep.subr.bf16.mxu0 0
  %135 = vmatpush2.bf16.msra.mxu0 0
  %136 = vmatprep.subr.bf16.mxu0 0
  %137 = vmatpush2.bf16.msra.mxu0 0
  %138 = vmatprep.subr.bf16.mxu0 0
  %139 = vmatpush2.bf16.msra.mxu0 0
  %140 = vmatprep.subr.bf16.mxu0 0
  %141 = vmatpush2.bf16.msra.mxu0 0
  %142 = vmatprep.subr.bf16.mxu0 0
  %143 = vmatpush2.bf16.msra.mxu0 0
  %144 = vmatprep.subr.bf16.mxu0 0
  %145 = vmatpush2.bf16.msra.mxu0 0
  %146 = vmatprep.mubr.bf16.mxu0 0
  %147 = vmatmul.mubr.bf16.gmra.mxu0 %v63
  %v148 = vpop.f32.mrf.mxu0
  %v149 = vadd.f32 0.0, %v148
  %v150 = vpop.f32.mrf.mxu0
  %v151 = vadd.f32 0.0, %v150
  %v152 = vpop.f32.mrf.mxu0
  %v153 = vpop.f32.mrf.mxu0
  %154 = vdwg.mxu0
  %155 = vmatprep.subr.bf16.mxu0 0
  %156 = vmatpush1.bf16.msra.mxu0 0
  %157 = vmatprep.subr.bf16.mxu0 0
  %158 = vmatpush1.bf16.msra.mxu0 0
  %159 = vmatprep.subr.bf16.mxu0 0
  %160 = vmatpush1.bf16.msra.mxu0 0
  %161 = vmatprep.subr.bf16.mxu0 0
  %162 = vmatpush1.bf16.msra.mxu0 0
  %163 = vmatprep.subr.bf16.mxu0 0
  %164 = vmatpush1.bf16.msra.mxu0 0
  %165 = vmatprep.subr.bf16.mxu0 0
  %166 = vmatpush1.bf16.msra.mxu0 0
  %167 = vmatprep.subr.bf16.mxu0 0
  %168 = vmatpush1.bf16.msra.mxu0 0
  %169 = vmatprep.subr.bf16.mxu0 %v76
  %170 = vmatpush1.bf16.msra.mxu0 %v73
  %171 = vmatprep.subr.bf16.mxu0 0
  %172 = vmatpush2.bf16.msra.mxu0 0
  %173 = vmatprep.subr.bf16.mxu0 0
  %174 = vmatpush2.bf16.msra.mxu0 0
  %175 = vmatprep.subr.bf16.mxu0 0
  %176 = vmatpush2.bf16.msra.mxu0 0
  %177 = vmatprep.subr.bf16.mxu0 0
  %178 = vmatpush2.bf16.msra.mxu0 0
  %179 = vmatprep.subr.bf16.mxu0 0
  %180 = vmatpush2.bf16.msra.mxu0 0
  %181 = vmatprep.subr.bf16.mxu0 0
  %182 = vmatpush2.bf16.msra.mxu0 0
  %183 = vmatprep.subr.bf16.mxu0 0
  %184 = vmatpush2.bf16.msra.mxu0 0
  %185 = vmatprep.subr.bf16.mxu0 0
  %186 = vmatpush2.bf16.msra.mxu0 0
  %187 = vmatprep.mubr.bf16.mxu0 0
  %188 = vmatmul.mubr.bf16.gmra.mxu0 %v63
  %v189 = vpop.f32.mrf.mxu0
  %v190 = vadd.f32 0.0, %v189
  %v191 = vpop.f32.mrf.mxu0
  %v192 = vadd.f32 0.0, %v191
  %v193 = vpop.f32.mrf.mxu0
  %v194 = vpop.f32.mrf.mxu0
  %195 = vdwg.mxu0
  %196 = vmatprep.subr.bf16.mxu0 0
  %197 = vmatpush1.bf16.msra.mxu0 0
  %198 = vmatprep.subr.bf16.mxu0 0
  %199 = vmatpush1.bf16.msra.mxu0 0
  %200 = vmatprep.subr.bf16.mxu0 0
  %201 = vmatpush1.bf16.msra.mxu0 0
  %202 = vmatprep.subr.bf16.mxu0 0
  %203 = vmatpush1.bf16.msra.mxu0 0
  %204 = vmatprep.subr.bf16.mxu0 0
  %205 = vmatpush1.bf16.msra.mxu0 0
  %206 = vmatprep.subr.bf16.mxu0 0
  %207 = vmatpush1.bf16.msra.mxu0 0
  %208 = vmatprep.subr.bf16.mxu0 0
  %209 = vmatpush1.bf16.msra.mxu0 0
  %210 = vmatprep.subr.bf16.mxu0 %v82
  %211 = vmatpush1.bf16.msra.mxu0 %v79
  %212 = vmatprep.subr.bf16.mxu0 0
  %213 = vmatpush2.bf16.msra.mxu0 0
  %214 = vmatprep.subr.bf16.mxu0 0
  %215 = vmatpush2.bf16.msra.mxu0 0
  %216 = vmatprep.subr.bf16.mxu0 0
  %217 = vmatpush2.bf16.msra.mxu0 0
  %218 = vmatprep.subr.bf16.mxu0 0
  %219 = vmatpush2.bf16.msra.mxu0 0
  %220 = vmatprep.subr.bf16.mxu0 0
  %221 = vmatpush2.bf16.msra.mxu0 0
  %222 = vmatprep.subr.bf16.mxu0 0
  %223 = vmatpush2.bf16.msra.mxu0 0
  %224 = vmatprep.subr.bf16.mxu0 0
  %225 = vmatpush2.bf16.msra.mxu0 0
  %226 = vmatprep.subr.bf16.mxu0 0
  %227 = vmatpush2.bf16.msra.mxu0 0
  %228 = vmatprep.mubr.bf16.mxu0 0
  %229 = vmatmul.mubr.bf16.gmra.mxu0 %v63
  %v230 = vpop.f32.mrf.mxu0
  %v231 = vadd.f32 0.0, %v230
  %v232 = vpop.f32.mrf.mxu0
  %v233 = vadd.f32 0.0, %v232
  %v234 = vpop.f32.mrf.mxu0
  %v235 = vpop.f32.mrf.mxu0
  %236 = vdwg.mxu0
  %237 = vmatprep.subr.bf16.mxu0 0
  %238 = vmatpush1.bf16.msra.mxu0 0
  %239 = vmatprep.subr.bf16.mxu0 0
  %240 = vmatpush1.bf16.msra.mxu0 0
  %241 = vmatprep.subr.bf16.mxu0 0
  %242 = vmatpush1.bf16.msra.mxu0 0
  %243 = vmatprep.subr.bf16.mxu0 0
  %244 = vmatpush1.bf16.msra.mxu0 0
  %245 = vmatprep.subr.bf16.mxu0 0
  %246 = vmatpush1.bf16.msra.mxu0 0
  %247 = vmatprep.subr.bf16.mxu0 0
  %248 = vmatpush1.bf16.msra.mxu0 0
  %249 = vmatprep.subr.bf16.mxu0 0
  %250 = vmatpush1.bf16.msra.mxu0 0
  %251 = vmatprep.subr.bf16.mxu0 %v88
  %252 = vmatpush1.bf16.msra.mxu0 %v85
  %253 = vmatprep.subr.bf16.mxu0 0
  %254 = vmatpush2.bf16.msra.mxu0 0
  %255 = vmatprep.subr.bf16.mxu0 0
  %256 = vmatpush2.bf16.msra.mxu0 0
  %257 = vmatprep.subr.bf16.mxu0 0
  %258 = vmatpush2.bf16.msra.mxu0 0
  %259 = vmatprep.subr.bf16.mxu0 0
  %260 = vmatpush2.bf16.msra.mxu0 0
  %261 = vmatprep.subr.bf16.mxu0 0
  %262 = vmatpush2.bf16.msra.mxu0 0
  %263 = vmatprep.subr.bf16.mxu0 0
  %264 = vmatpush2.bf16.msra.mxu0 0
  %265 = vmatprep.subr.bf16.mxu0 0
  %266 = vmatpush2.bf16.msra.mxu0 0
  %267 = vmatprep.subr.bf16.mxu0 0
  %268 = vmatpush2.bf16.msra.mxu0 0
  %269 = vmatprep.mubr.bf16.mxu0 0
  %270 = vmatmul.mubr.bf16.gmra.mxu0 %v63
  %v271 = vpop.f32.mrf.mxu0
  %v272 = vadd.f32 0.0, %v271
  %v273 = vpop.f32.mrf.mxu0
  %v274 = vadd.f32 0.0, %v273
  %v275 = vpop.f32.mrf.mxu0
  %v276 = vpop.f32.mrf.mxu0
  %277 = vdwg.mxu0
  %278 = vmatprep.subr.bf16.mxu0 0
  %279 = vmatpush1.bf16.msra.mxu0 0
  %280 = vmatprep.subr.bf16.mxu0 0
  %281 = vmatpush1.bf16.msra.mxu0 0
  %282 = vmatprep.subr.bf16.mxu0 0
  %283 = vmatpush1.bf16.msra.mxu0 0
  %284 = vmatprep.subr.bf16.mxu0 0
  %285 = vmatpush1.bf16.msra.mxu0 0
  %286 = vmatprep.subr.bf16.mxu0 0
  %287 = vmatpush1.bf16.msra.mxu0 0
  %288 = vmatprep.subr.bf16.mxu0 0
  %289 = vmatpush1.bf16.msra.mxu0 0
  %290 = vmatprep.subr.bf16.mxu0 0
  %291 = vmatpush1.bf16.msra.mxu0 0
  %292 = vmatprep.subr.bf16.mxu0 %v94
  %293 = vmatpush1.bf16.msra.mxu0 %v91
  %294 = vmatprep.subr.bf16.mxu0 0
  %295 = vmatpush2.bf16.msra.mxu0 0
  %296 = vmatprep.subr.bf16.mxu0 0
  %297 = vmatpush2.bf16.msra.mxu0 0
  %298 = vmatprep.subr.bf16.mxu0 0
  %299 = vmatpush2.bf16.msra.mxu0 0
  %300 = vmatprep.subr.bf16.mxu0 0
  %301 = vmatpush2.bf16.msra.mxu0 0
  %302 = vmatprep.subr.bf16.mxu0 0
  %303 = vmatpush2.bf16.msra.mxu0 0
  %304 = vmatprep.subr.bf16.mxu0 0
  %305 = vmatpush2.bf16.msra.mxu0 0
  %306 = vmatprep.subr.bf16.mxu0 0
  %307 = vmatpush2.bf16.msra.mxu0 0
  %308 = vmatprep.subr.bf16.mxu0 0
  %309 = vmatpush2.bf16.msra.mxu0 0
  %310 = vmatprep.mubr.bf16.mxu0 0
  %311 = vmatmul.mubr.bf16.gmra.mxu0 %v63
  %v312 = vpop.f32.mrf.mxu0
  %v313 = vadd.f32 0.0, %v312
  %v314 = vpop.f32.mrf.mxu0
  %v315 = vadd.f32 0.0, %v314
  %v316 = vpop.f32.mrf.mxu0
  %v317 = vpop.f32.mrf.mxu0
  %318 = vdwg.mxu0
  %319 = vmatprep.subr.bf16.mxu0 0
  %320 = vmatpush1.bf16.msra.mxu0 0
  %321 = vmatprep.subr.bf16.mxu0 0
  %322 = vmatpush1.bf16.msra.mxu0 0
  %323 = vmatprep.subr.bf16.mxu0 0
  %324 = vmatpush1.bf16.msra.mxu0 0
  %325 = vmatprep.subr.bf16.mxu0 0
  %326 = vmatpush1.bf16.msra.mxu0 0
  %327 = vmatprep.subr.bf16.mxu0 0
  %328 = vmatpush1.bf16.msra.mxu0 0
  %329 = vmatprep.subr.bf16.mxu0 0
  %330 = vmatpush1.bf16.msra.mxu0 0
  %331 = vmatprep.subr.bf16.mxu0 0
  %332 = vmatpush1.bf16.msra.mxu0 0
  %333 = vmatprep.subr.bf16.mxu0 %v100
  %334 = vmatpush1.bf16.msra.mxu0 %v97
  %335 = vmatprep.subr.bf16.mxu0 0
  %336 = vmatpush2.bf16.msra.mxu0 0
  %337 = vmatprep.subr.bf16.mxu0 0
  %338 = vmatpush2.bf16.msra.mxu0 0
  %339 = vmatprep.subr.bf16.mxu0 0
  %340 = vmatpush2.bf16.msra.mxu0 0
  %341 = vmatprep.subr.bf16.mxu0 0
  %342 = vmatpush2.bf16.msra.mxu0 0
  %343 = vmatprep.subr.bf16.mxu0 0
  %344 = vmatpush2.bf16.msra.mxu0 0
  %345 = vmatprep.subr.bf16.mxu0 0
  %346 = vmatpush2.bf16.msra.mxu0 0
  %347 = vmatprep.subr.bf16.mxu0 0
  %348 = vmatpush2.bf16.msra.mxu0 0
  %349 = vmatprep.subr.bf16.mxu0 0
  %350 = vmatpush2.bf16.msra.mxu0 0
  %351 = vmatprep.mubr.bf16.mxu0 0
  %352 = vmatmul.mubr.bf16.gmra.mxu0 %v63
  %v353 = vpop.f32.mrf.mxu0
  %v354 = vadd.f32 0.0, %v353
  %v355 = vpop.f32.mrf.mxu0
  %v356 = vadd.f32 0.0, %v355
  %v357 = vpop.f32.mrf.mxu0
  %v358 = vpop.f32.mrf.mxu0
  %359 = vdwg.mxu0
  %360 = vmatprep.subr.bf16.mxu0 0
  %361 = vmatpush1.bf16.msra.mxu0 0
  %362 = vmatprep.subr.bf16.mxu0 0
  %363 = vmatpush1.bf16.msra.mxu0 0
  %364 = vmatprep.subr.bf16.mxu0 0
  %365 = vmatpush1.bf16.msra.mxu0 0
  %366 = vmatprep.subr.bf16.mxu0 0
  %367 = vmatpush1.bf16.msra.mxu0 0
  %368 = vmatprep.subr.bf16.mxu0 0
  %369 = vmatpush1.bf16.msra.mxu0 0
  %370 = vmatprep.subr.bf16.mxu0 0
  %371 = vmatpush1.bf16.msra.mxu0 0
  %372 = vmatprep.subr.bf16.mxu0 0
  %373 = vmatpush1.bf16.msra.mxu0 0
  %374 = vmatprep.subr.bf16.mxu0 %v106
  %375 = vmatpush1.bf16.msra.mxu0 %v103
  %376 = vmatprep.subr.bf16.mxu0 0
  %377 = vmatpush2.bf16.msra.mxu0 0
  %378 = vmatprep.subr.bf16.mxu0 0
  %379 = vmatpush2.bf16.msra.mxu0 0
  %380 = vmatprep.subr.bf16.mxu0 0
  %381 = vmatpush2.bf16.msra.mxu0 0
  %382 = vmatprep.subr.bf16.mxu0 0
  %383 = vmatpush2.bf16.msra.mxu0 0
  %384 = vmatprep.subr.bf16.mxu0 0
  %385 = vmatpush2.bf16.msra.mxu0 0
  %386 = vmatprep.subr.bf16.mxu0 0
  %387 = vmatpush2.bf16.msra.mxu0 0
  %388 = vmatprep.subr.bf16.mxu0 0
  %389 = vmatpush2.bf16.msra.mxu0 0
  %390 = vmatprep.subr.bf16.mxu0 0
  %391 = vmatpush2.bf16.msra.mxu0 0
  %392 = vmatprep.mubr.bf16.mxu0 0
  %393 = vmatmul.mubr.bf16.gmra.mxu0 %v63
  %v394 = vpop.f32.mrf.mxu0
  %v395 = vadd.f32 0.0, %v394
  %v396 = vpop.f32.mrf.mxu0
  %v397 = vadd.f32 0.0, %v396
  %v398 = vpop.f32.mrf.mxu0
  %v399 = vpop.f32.mrf.mxu0
  %400 = vdwg.mxu0
  %401 = vmatprep.subr.bf16.mxu0 0
  %402 = vmatpush1.bf16.msra.mxu0 0
  %403 = vmatprep.subr.bf16.mxu0 0
  %404 = vmatpush1.bf16.msra.mxu0 0
  %405 = vmatprep.subr.bf16.mxu0 0
  %406 = vmatpush1.bf16.msra.mxu0 0
  %407 = vmatprep.subr.bf16.mxu0 0
  %408 = vmatpush1.bf16.msra.mxu0 0
  %409 = vmatprep.subr.bf16.mxu0 0
  %410 = vmatpush1.bf16.msra.mxu0 0
  %411 = vmatprep.subr.bf16.mxu0 0
  %412 = vmatpush1.bf16.msra.mxu0 0
  %413 = vmatprep.subr.bf16.mxu0 0
  %414 = vmatpush1.bf16.msra.mxu0 0
  %415 = vmatprep.subr.bf16.mxu0 %v112
  %416 = vmatpush1.bf16.msra.mxu0 %v109
  %417 = vmatprep.subr.bf16.mxu0 0
  %418 = vmatpush2.bf16.msra.mxu0 0
  %419 = vmatprep.subr.bf16.mxu0 0
  %420 = vmatpush2.bf16.msra.mxu0 0
  %421 = vmatprep.subr.bf16.mxu0 0
  %422 = vmatpush2.bf16.msra.mxu0 0
  %423 = vmatprep.subr.bf16.mxu0 0
  %424 = vmatpush2.bf16.msra.mxu0 0
  %425 = vmatprep.subr.bf16.mxu0 0
  %426 = vmatpush2.bf16.msra.mxu0 0
  %427 = vmatprep.subr.bf16.mxu0 0
  %428 = vmatpush2.bf16.msra.mxu0 0
  %429 = vmatprep.subr.bf16.mxu0 0
  %430 = vmatpush2.bf16.msra.mxu0 0
  %431 = vmatprep.subr.bf16.mxu0 0
  %432 = vmatpush2.bf16.msra.mxu0 0
  %433 = vmatprep.mubr.bf16.mxu0 0
  %434 = vmatmul.mubr.bf16.gmra.mxu0 %v63
  %v435 = vpop.f32.mrf.mxu0
  %v436 = vadd.f32 0.0, %v435
  %v437 = vpop.f32.mrf.mxu0
  %v438 = vadd.f32 0.0, %v437
  %v439 = vpop.f32.mrf.mxu0
  %v440 = vpop.f32.mrf.mxu0
  %441 = vdwg.mxu0
  %v458 = vcombine.low %v149, %v151
  %v459 = vcombine.low %v190, %v192
  %v461 = vunpack.c.l.s4 1983009808
  %v462 = vunpack.c.0.s8 %v461
  %v463 = vlaneseq
  %v464 = vshrl.u32 %v463, 7
  %v465 = vsub.s32 %v462, %v464
  %v466 = vrot.slane %v458, %v465
  %v468 = vunpack.c.l.s4 1983009808
  %v469 = vunpack.c.0.s8 %v468
  %v470 = vlaneseq
  %v471 = vshrl.u32 %v470, 7
  %v472 = vsub.s32 %v469, %v471
  %v473 = vrot.slane %v459, %v472
  %v474 = vcombine.low %v466, %v473
  %v475 = vcombine.low %v231, %v233
  %v476 = vcombine.low %v272, %v274
  %v478 = vunpack.c.l.s4 1983009808
  %v479 = vunpack.c.0.s8 %v478
  %v480 = vlaneseq
  %v481 = vshrl.u32 %v480, 7
  %v482 = vsub.s32 %v479, %v481
  %v483 = vrot.slane %v475, %v482
  %v485 = vunpack.c.l.s4 1983009808
  %v486 = vunpack.c.0.s8 %v485
  %v487 = vlaneseq
  %v488 = vshrl.u32 %v487, 7
  %v489 = vsub.s32 %v486, %v488
  %v490 = vrot.slane %v476, %v489
  %v491 = vcombine.low %v483, %v490
  %v492 = vcombine.low %v313, %v315
  %v493 = vcombine.low %v354, %v356
  %v495 = vunpack.c.l.s4 1983009808
  %v496 = vunpack.c.0.s8 %v495
  %v497 = vlaneseq
  %v498 = vshrl.u32 %v497, 7
  %v499 = vsub.s32 %v496, %v498
  %v500 = vrot.slane %v492, %v499
  %v502 = vunpack.c.l.s4 1983009808
  %v503 = vunpack.c.0.s8 %v502
  %v504 = vlaneseq
  %v505 = vshrl.u32 %v504, 7
  %v506 = vsub.s32 %v503, %v505
  %v507 = vrot.slane %v493, %v506
  %v508 = vcombine.low %v500, %v507
  %v509 = vcombine.low %v395, %v397
  %v510 = vcombine.low %v436, %v438
  %v512 = vunpack.c.l.s4 1983009808
  %v513 = vunpack.c.0.s8 %v512
  %v514 = vlaneseq
  %v515 = vshrl.u32 %v514, 7
  %v516 = vsub.s32 %v513, %v515
  %v517 = vrot.slane %v509, %v516
  %v519 = vunpack.c.l.s4 1983009808
  %v520 = vunpack.c.0.s8 %v519
  %v521 = vlaneseq
  %v522 = vshrl.u32 %v521, 7
  %v523 = vsub.s32 %v520, %v522
  %v524 = vrot.slane %v510, %v523
  %v525 = vcombine.low %v517, %v524
  %530 = vst [vmem:[%s2] sm:$0xff] %v474
  %531 = vst [vmem:[%s2 + $0x8] sm:$0xff] %v491
  %532 = vst [vmem:[%s2 + $0x10] sm:$0xff] %v508
  %533 = vst [vmem:[%s2 + $0x18] sm:$0xff] %v525
  // Predicated region
  $region10: #{generator_forward.10} parent=0 // pred_check
    _
  $region11: #{generator_forward.10} parent=0 // pred_check_branch
    %535 = sbr.rel (0) target = $region13
  $region12: #{generator_forward.10} parent=0 // pred_region
    _
  $region13: #{generator_forward.10} parent=0 // pred_fallthru
    _
  // Predicated region
  $region14: #{generator_forward.10} parent=0 // pred_check
    _
  $region15: #{generator_forward.10} parent=0 // pred_check_branch
    %537 = sbr.rel (0) target = $region17
  $region16: #{generator_forward.10} parent=0 // pred_region
    _
  $region17: #{generator_forward.10} parent=0 // pred_fallthru
    _

// kernel: generator_forward.11
$region0: #{generator_forward.11}
  #allocation0 [shape = 'u32[]', space=smem, size = 0x4, offset = 0x4, fixed_abs, tag = 'smem constant byte address 0x4 - core index']
  #allocation1 [shape = 'u32[144,128]{1,0:T(1,128)}', space=vmem, size = 0x12000, scoped, tag = 'internal scratch']
  %s0 = inlined_call_operand.vmem [shape: bf16[32,128], index: 0, kind: input, shape index: {}]
  %s1 = inlined_call_operand.vmem [shape: f32[1,1,128], index: 1, kind: output, shape index: {0}]
  %s2 = inlined_call_operand.vmem [shape: f32[1,1,128], index: 2, kind: output, shape index: {1}]
  %3 = xla_tuple %s1, %s2
  %s4 = sld [smem:[#allocation0]]
  $region22: #{generator_forward.11} parent=0
    _
  %s6 = ssub.s32 1, %s4
  %s7 = scalar_select 0, %s6, %s4
  // Predicated region
  $region2: #{generator_forward.11} parent=0 // pred_check
    _
  $region3: #{generator_forward.11} parent=0 // pred_check_branch
    %9 = sbr.rel (0) target = $region5
  $region4: #{generator_forward.11} parent=0 // pred_region
    _
  $region5: #{generator_forward.11} parent=0 // pred_fallthru
    _
  %v10 = vld [vmem:[%s0] sm:$0xf]
  %v11 = vld [vmem:[%s0 + $0x4] sm:$0xf]
  %v12 = vld [vmem:[%s0 + $0x8] sm:$0xf]
  %v13 = vld [vmem:[%s0 + $0xc] sm:$0xf]
  %v14 = vunpack.c.l.bf16 %v10
  %v15 = vunpack.c.l.bf16 %v11
  %v16 = vunpack.c.l.bf16 %v12
  %v17 = vunpack.c.l.bf16 %v13
  %v18 = vadd.f32 %v14, %v15
  %v19 = vadd.f32 %v18, %v16
  %v20 = vadd.f32 %v19, %v17
  %v21 = vrot.slane %v20, 4
  %v22 = vadd.f32 %v20, %v21
  %v23 = vrot.slane %v22, 2
  %v24 = vadd.f32 %v22, %v23
  %v25 = vrot.slane %v24, 1
  %v26 = vadd.f32 %v24, %v25
  %27 = vst [vmem:[%s1] sm:$0x1] %v26
  %v28 = vmul.f32 %v14, %v14
  %v29 = vmul.f32 %v15, %v15
  %v30 = vmul.f32 %v16, %v16
  %v31 = vmul.f32 %v17, %v17
  %v32 = vadd.f32 %v28, %v29
  %v33 = vadd.f32 %v32, %v30
  %v34 = vadd.f32 %v33, %v31
  %v35 = vrot.slane %v34, 4
  %v36 = vadd.f32 %v34, %v35
  %v37 = vrot.slane %v36, 2
  %v38 = vadd.f32 %v36, %v37
  %v39 = vrot.slane %v38, 1
  %v40 = vadd.f32 %v38, %v39
  %41 = vst [vmem:[%s2] sm:$0x1] %v40
  // Predicated region
  $region6: #{generator_forward.11} parent=0 // pred_check
    _
  $region7: #{generator_forward.11} parent=0 // pred_check_branch
    %43 = sbr.rel (0) target = $region9
  $region8: #{generator_forward.11} parent=0 // pred_region
    _
  $region9: #{generator_forward.11} parent=0 // pred_fallthru
    _
  // Predicated region
  $region10: #{generator_forward.11} parent=0 // pred_check
    _
  $region11: #{generator_forward.11} parent=0 // pred_check_branch
    %45 = sbr.rel (0) target = $region13
  $region12: #{generator_forward.11} parent=0 // pred_region
    _
  $region13: #{generator_forward.11} parent=0 // pred_fallthru
    _
  // Predicated region
  $region14: #{generator_forward.11} parent=0 // pred_check
    _
  $region15: #{generator_forward.11} parent=0 // pred_check_branch
    %47 = sbr.rel (0) target = $region17
  $region16: #{generator_forward.11} parent=0 // pred_region
    _
  $region17: #{generator_forward.11} parent=0 // pred_fallthru
    _
  // Predicated region
  $region18: #{generator_forward.11} parent=0 // pred_check
    _
  $region19: #{generator_forward.11} parent=0 // pred_check_branch
    %49 = sbr.rel (0) target = $region21
  $region20: #{generator_forward.11} parent=0 // pred_region
    _
  $region21: #{generator_forward.11} parent=0 // pred_fallthru
    _

// kernel: generator_forward.12
$region0: #{generator_forward.12}
  #allocation0 [shape = 'u32[]', space=smem, size = 0x4, offset = 0x4, fixed_abs, tag = 'smem constant byte address 0x4 - core index']
  #allocation1 [shape = 'u32[144,128]{1,0:T(1,128)}', space=vmem, size = 0x12000, scoped, tag = 'internal scratch']
  %s0 = inlined_call_operand.vmem [shape: bf16[32,128], index: 0, kind: input, shape index: {}]
  %s1 = inlined_call_operand.vmem [shape: f32[1,128], index: 1, kind: input, shape index: {}]
  %s2 = inlined_call_operand.vmem [shape: f32[1,128], index: 2, kind: input, shape index: {}]
  %s3 = inlined_call_operand.vmem [shape: bf16[128,1024], index: 3, kind: input, shape index: {}]
  %s4 = inlined_call_operand.vmem [shape: f32[32,1024], index: 4, kind: output, shape index: {}]
  %s5 = sld [smem:[#allocation0]]
  $region26: #{generator_forward.12} parent=0
    _
  %s7 = ssub.s32 1, %s5
  %s8 = scalar_select 0, %s7, %s5
  // Predicated region
  $region2: #{generator_forward.12} parent=0 // pred_check
    _
  $region3: #{generator_forward.12} parent=0 // pred_check_branch
    %10 = sbr.rel (0) target = $region5
  $region4: #{generator_forward.12} parent=0 // pred_region
    _
  $region5: #{generator_forward.12} parent=0 // pred_fallthru
    _
  // Predicated region
  $region6: #{generator_forward.12} parent=0 // pred_check
    _
  $region7: #{generator_forward.12} parent=0 // pred_check_branch
    %12 = sbr.rel (0) target = $region9
  $region8: #{generator_forward.12} parent=0 // pred_region
    _
  $region9: #{generator_forward.12} parent=0 // pred_fallthru
    _
  // Predicated region
  $region10: #{generator_forward.12} parent=0 // pred_check
    _
  $region11: #{generator_forward.12} parent=0 // pred_check_branch
    %14 = sbr.rel (0) target = $region13
  $region12: #{generator_forward.12} parent=0 // pred_region
    _
  $region13: #{generator_forward.12} parent=0 // pred_fallthru
    _
  // Predicated region
  $region14: #{generator_forward.12} parent=0 // pred_check
    _
  $region15: #{generator_forward.12} parent=0 // pred_check_branch
    %16 = sbr.rel (0) target = $region17
  $region16: #{generator_forward.12} parent=0 // pred_region
    _
  $region17: #{generator_forward.12} parent=0 // pred_fallthru
    _
  %v18 = vld [vmem:[%s0] sm:$0xf]
  %v19 = vld [vmem:[%s0 + $0x4] sm:$0xf]
  %v20 = vld [vmem:[%s0 + $0x8] sm:$0xf]
  %v21 = vld [vmem:[%s0 + $0xc] sm:$0xf]
  %v22 = vunpack.c.l.bf16 %v18
  %v23 = vunpack.c.l.bf16 %v19
  %v24 = vunpack.c.l.bf16 %v20
  %v25 = vunpack.c.l.bf16 %v21
  %v26 = vld [vmem:[%s1] sm:$0x1]
  %v28 = vlaneseq
  %v29 = vshrl.u32 %v28, 7
  %v30 = vsub.s32 0, %v29
  %v31 = vrot.slane %v26, %v30
  %v33 = vmul.f32 %v22, %v31
  %v34 = vmul.f32 %v23, %v31
  %v35 = vmul.f32 %v24, %v31
  %v36 = vmul.f32 %v25, %v31
  %v37 = vld [vmem:[%s2] sm:$0x1]
  %v39 = vlaneseq
  %v40 = vshrl.u32 %v39, 7
  %v41 = vsub.s32 0, %v40
  %v42 = vrot.slane %v37, %v41
  %v44 = vadd.f32 %v33, %v42
  %v45 = vadd.f32 %v34, %v42
  %v46 = vadd.f32 %v35, %v42
  %v47 = vadd.f32 %v36, %v42
  %v48 = vmax.f32 %v44, 0.0
  %v49 = vmax.f32 %v45, 0.0
  %v50 = vmax.f32 %v46, 0.0
  %v51 = vmax.f32 %v47, 0.0
  %v52 = vpack.c.bf16 %v49, %v48
  %v53 = vpack.c.bf16 %v51, %v50
  %v54 = vld [vmem:[%s3] sm:$0xff]
  %v55 = vld [vmem:[%s3 + $0x8] sm:$0xff]
  %v56 = vld [vmem:[%s3 + $0x10] sm:$0xff]
  %v57 = vld [vmem:[%s3 + $0x18] sm:$0xff]
  %v58 = vld [vmem:[%s3 + $0x20] sm:$0xff]
  %v59 = vld [vmem:[%s3 + $0x28] sm:$0xff]
  %v60 = vld [vmem:[%s3 + $0x30] sm:$0xff]
  %v61 = vld [vmem:[%s3 + $0x38] sm:$0xff]
  %v62 = vld [vmem:[%s3 + $0x40] sm:$0xff]
  %v63 = vld [vmem:[%s3 + $0x48] sm:$0xff]
  %v64 = vld [vmem:[%s3 + $0x50] sm:$0xff]
  %v65 = vld [vmem:[%s3 + $0x58] sm:$0xff]
  %v66 = vld [vmem:[%s3 + $0x60] sm:$0xff]
  %v67 = vld [vmem:[%s3 + $0x68] sm:$0xff]
  %v68 = vld [vmem:[%s3 + $0x70] sm:$0xff]
  %v69 = vld [vmem:[%s3 + $0x78] sm:$0xff]
  %v70 = vld [vmem:[%s3 + $0x80] sm:$0xff]
  %v71 = vld [vmem:[%s3 + $0x88] sm:$0xff]
  %v72 = vld [vmem:[%s3 + $0x90] sm:$0xff]
  %v73 = vld [vmem:[%s3 + $0x98] sm:$0xff]
  %v74 = vld [vmem:[%s3 + $0xa0] sm:$0xff]
  %v75 = vld [vmem:[%s3 + $0xa8] sm:$0xff]
  %v76 = vld [vmem:[%s3 + $0xb0] sm:$0xff]
  %v77 = vld [vmem:[%s3 + $0xb8] sm:$0xff]
  %v78 = vld [vmem:[%s3 + $0xc0] sm:$0xff]
  %v79 = vld [vmem:[%s3 + $0xc8] sm:$0xff]
  %v80 = vld [vmem:[%s3 + $0xd0] sm:$0xff]
  %v81 = vld [vmem:[%s3 + $0xd8] sm:$0xff]
  %v82 = vld [vmem:[%s3 + $0xe0] sm:$0xff]
  %v83 = vld [vmem:[%s3 + $0xe8] sm:$0xff]
  %v84 = vld [vmem:[%s3 + $0xf0] sm:$0xff]
  %v85 = vld [vmem:[%s3 + $0xf8] sm:$0xff]
  %v86 = vld [vmem:[%s3 + $0x100] sm:$0xff]
  %v87 = vld [vmem:[%s3 + $0x108] sm:$0xff]
  %v88 = vld [vmem:[%s3 + $0x110] sm:$0xff]
  %v89 = vld [vmem:[%s3 + $0x118] sm:$0xff]
  %v90 = vld [vmem:[%s3 + $0x120] sm:$0xff]
  %v91 = vld [vmem:[%s3 + $0x128] sm:$0xff]
  %v92 = vld [vmem:[%s3 + $0x130] sm:$0xff]
  %v93 = vld [vmem:[%s3 + $0x138] sm:$0xff]
  %v94 = vld [vmem:[%s3 + $0x140] sm:$0xff]
  %v95 = vld [vmem:[%s3 + $0x148] sm:$0xff]
  %v96 = vld [vmem:[%s3 + $0x150] sm:$0xff]
  %v97 = vld [vmem:[%s3 + $0x158] sm:$0xff]
  %v98 = vld [vmem:[%s3 + $0x160] sm:$0xff]
  %v99 = vld [vmem:[%s3 + $0x168] sm:$0xff]
  %v100 = vld [vmem:[%s3 + $0x170] sm:$0xff]
  %v101 = vld [vmem:[%s3 + $0x178] sm:$0xff]
  %v102 = vld [vmem:[%s3 + $0x180] sm:$0xff]
  %v103 = vld [vmem:[%s3 + $0x188] sm:$0xff]
  %v104 = vld [vmem:[%s3 + $0x190] sm:$0xff]
  %v105 = vld [vmem:[%s3 + $0x198] sm:$0xff]
  %v106 = vld [vmem:[%s3 + $0x1a0] sm:$0xff]
  %v107 = vld [vmem:[%s3 + $0x1a8] sm:$0xff]
  %v108 = vld [vmem:[%s3 + $0x1b0] sm:$0xff]
  %v109 = vld [vmem:[%s3 + $0x1b8] sm:$0xff]
  %v110 = vld [vmem:[%s3 + $0x1c0] sm:$0xff]
  %v111 = vld [vmem:[%s3 + $0x1c8] sm:$0xff]
  %v112 = vld [vmem:[%s3 + $0x1d0] sm:$0xff]
  %v113 = vld [vmem:[%s3 + $0x1d8] sm:$0xff]
  %v114 = vld [vmem:[%s3 + $0x1e0] sm:$0xff]
  %v115 = vld [vmem:[%s3 + $0x1e8] sm:$0xff]
  %v116 = vld [vmem:[%s3 + $0x1f0] sm:$0xff]
  %v117 = vld [vmem:[%s3 + $0x1f8] sm:$0xff]
  %v182 = vunpack.c.l.b16 %v54
  %v183 = vunpack.c.h.b16 %v54
  %v184 = vunpack.c.l.b16 %v55
  %v185 = vunpack.c.h.b16 %v55
  %v186 = vunpack.c.l.b16 %v56
  %v187 = vunpack.c.h.b16 %v56
  %v188 = vunpack.c.l.b16 %v57
  %v189 = vunpack.c.h.b16 %v57
  %v190 = vunpack.c.l.b16 %v58
  %v191 = vunpack.c.h.b16 %v58
  %v192 = vunpack.c.l.b16 %v59
  %v193 = vunpack.c.h.b16 %v59
  %v194 = vunpack.c.l.b16 %v60
  %v195 = vunpack.c.h.b16 %v60
  %v196 = vunpack.c.l.b16 %v61
  %v197 = vunpack.c.h.b16 %v61
  %v198 = vunpack.c.l.b16 %v62
  %v199 = vunpack.c.h.b16 %v62
  %v200 = vunpack.c.l.b16 %v63
  %v201 = vunpack.c.h.b16 %v63
  %v202 = vunpack.c.l.b16 %v64
  %v203 = vunpack.c.h.b16 %v64
  %v204 = vunpack.c.l.b16 %v65
  %v205 = vunpack.c.h.b16 %v65
  %v206 = vunpack.c.l.b16 %v66
  %v207 = vunpack.c.h.b16 %v66
  %v208 = vunpack.c.l.b16 %v67
  %v209 = vunpack.c.h.b16 %v67
  %v210 = vunpack.c.l.b16 %v68
  %v211 = vunpack.c.h.b16 %v68
  %v212 = vunpack.c.l.b16 %v69
  %v213 = vunpack.c.h.b16 %v69
  %v214 = vunpack.c.l.b16 %v70
  %v215 = vunpack.c.h.b16 %v70
  %v216 = vunpack.c.l.b16 %v71
  %v217 = vunpack.c.h.b16 %v71
  %v218 = vunpack.c.l.b16 %v72
  %v219 = vunpack.c.h.b16 %v72
  %v220 = vunpack.c.l.b16 %v73
  %v221 = vunpack.c.h.b16 %v73
  %v222 = vunpack.c.l.b16 %v74
  %v223 = vunpack.c.h.b16 %v74
  %v224 = vunpack.c.l.b16 %v75
  %v225 = vunpack.c.h.b16 %v75
  %v226 = vunpack.c.l.b16 %v76
  %v227 = vunpack.c.h.b16 %v76
  %v228 = vunpack.c.l.b16 %v77
  %v229 = vunpack.c.h.b16 %v77
  %v230 = vunpack.c.l.b16 %v78
  %v231 = vunpack.c.h.b16 %v78
  %v232 = vunpack.c.l.b16 %v79
  %v233 = vunpack.c.h.b16 %v79
  %v234 = vunpack.c.l.b16 %v80
  %v235 = vunpack.c.h.b16 %v80
  %v236 = vunpack.c.l.b16 %v81
  %v237 = vunpack.c.h.b16 %v81
  %v238 = vunpack.c.l.b16 %v82
  %v239 = vunpack.c.h.b16 %v82
  %v240 = vunpack.c.l.b16 %v83
  %v241 = vunpack.c.h.b16 %v83
  %v242 = vunpack.c.l.b16 %v84
  %v243 = vunpack.c.h.b16 %v84
  %v244 = vunpack.c.l.b16 %v85
  %v245 = vunpack.c.h.b16 %v85
  %v246 = vunpack.c.l.b16 %v86
  %v247 = vunpack.c.h.b16 %v86
  %v248 = vunpack.c.l.b16 %v87
  %v249 = vunpack.c.h.b16 %v87
  %v250 = vunpack.c.l.b16 %v88
  %v251 = vunpack.c.h.b16 %v88
  %v252 = vunpack.c.l.b16 %v89
  %v253 = vunpack.c.h.b16 %v89
  %v254 = vunpack.c.l.b16 %v90
  %v255 = vunpack.c.h.b16 %v90
  %v256 = vunpack.c.l.b16 %v91
  %v257 = vunpack.c.h.b16 %v91
  %v258 = vunpack.c.l.b16 %v92
  %v259 = vunpack.c.h.b16 %v92
  %v260 = vunpack.c.l.b16 %v93
  %v261 = vunpack.c.h.b16 %v93
  %v262 = vunpack.c.l.b16 %v94
  %v263 = vunpack.c.h.b16 %v94
  %v264 = vunpack.c.l.b16 %v95
  %v265 = vunpack.c.h.b16 %v95
  %v266 = vunpack.c.l.b16 %v96
  %v267 = vunpack.c.h.b16 %v96
  %v268 = vunpack.c.l.b16 %v97
  %v269 = vunpack.c.h.b16 %v97
  %v270 = vunpack.c.l.b16 %v98
  %v271 = vunpack.c.h.b16 %v98
  %v272 = vunpack.c.l.b16 %v99
  %v273 = vunpack.c.h.b16 %v99
  %v274 = vunpack.c.l.b16 %v100
  %v275 = vunpack.c.h.b16 %v100
  %v276 = vunpack.c.l.b16 %v101
  %v277 = vunpack.c.h.b16 %v101
  %v278 = vunpack.c.l.b16 %v102
  %v279 = vunpack.c.h.b16 %v102
  %v280 = vunpack.c.l.b16 %v103
  %v281 = vunpack.c.h.b16 %v103
  %v282 = vunpack.c.l.b16 %v104
  %v283 = vunpack.c.h.b16 %v104
  %v284 = vunpack.c.l.b16 %v105
  %v285 = vunpack.c.h.b16 %v105
  %v286 = vunpack.c.l.b16 %v106
  %v287 = vunpack.c.h.b16 %v106
  %v288 = vunpack.c.l.b16 %v107
  %v289 = vunpack.c.h.b16 %v107
  %v290 = vunpack.c.l.b16 %v108
  %v291 = vunpack.c.h.b16 %v108
  %v292 = vunpack.c.l.b16 %v109
  %v293 = vunpack.c.h.b16 %v109
  %v294 = vunpack.c.l.b16 %v110
  %v295 = vunpack.c.h.b16 %v110
  %v296 = vunpack.c.l.b16 %v111
  %v297 = vunpack.c.h.b16 %v111
  %v298 = vunpack.c.l.b16 %v112
  %v299 = vunpack.c.h.b16 %v112
  %v300 = vunpack.c.l.b16 %v113
  %v301 = vunpack.c.h.b16 %v113
  %v302 = vunpack.c.l.b16 %v114
  %v303 = vunpack.c.h.b16 %v114
  %v304 = vunpack.c.l.b16 %v115
  %v305 = vunpack.c.h.b16 %v115
  %v306 = vunpack.c.l.b16 %v116
  %v307 = vunpack.c.h.b16 %v116
  %v308 = vunpack.c.l.b16 %v117
  %v309 = vunpack.c.h.b16 %v117
  %v310 = vpack.c.b16 %v190, %v182
  %v311 = vpack.c.b16 %v191, %v183
  %v312 = vpack.c.b16 %v192, %v184
  %v313 = vpack.c.b16 %v193, %v185
  %v314 = vpack.c.b16 %v194, %v186
  %v315 = vpack.c.b16 %v195, %v187
  %v316 = vpack.c.b16 %v196, %v188
  %v317 = vpack.c.b16 %v197, %v189
  %v318 = vpack.c.b16 %v206, %v198
  %v319 = vpack.c.b16 %v207, %v199
  %v320 = vpack.c.b16 %v208, %v200
  %v321 = vpack.c.b16 %v209, %v201
  %v322 = vpack.c.b16 %v210, %v202
  %v323 = vpack.c.b16 %v211, %v203
  %v324 = vpack.c.b16 %v212, %v204
  %v325 = vpack.c.b16 %v213, %v205
  %v326 = vpack.c.b16 %v222, %v214
  %v327 = vpack.c.b16 %v223, %v215
  %v328 = vpack.c.b16 %v224, %v216
  %v329 = vpack.c.b16 %v225, %v217
  %v330 = vpack.c.b16 %v226, %v218
  %v331 = vpack.c.b16 %v227, %v219
  %v332 = vpack.c.b16 %v228, %v220
  %v333 = vpack.c.b16 %v229, %v221
  %v334 = vpack.c.b16 %v238, %v230
  %v335 = vpack.c.b16 %v239, %v231
  %v336 = vpack.c.b16 %v240, %v232
  %v337 = vpack.c.b16 %v241, %v233
  %v338 = vpack.c.b16 %v242, %v234
  %v339 = vpack.c.b16 %v243, %v235
  %v340 = vpack.c.b16 %v244, %v236
  %v341 = vpack.c.b16 %v245, %v237
  %v342 = vpack.c.b16 %v254, %v246
  %v343 = vpack.c.b16 %v255, %v247
  %v344 = vpack.c.b16 %v256, %v248
  %v345 = vpack.c.b16 %v257, %v249
  %v346 = vpack.c.b16 %v258, %v250
  %v347 = vpack.c.b16 %v259, %v251
  %v348 = vpack.c.b16 %v260, %v252
  %v349 = vpack.c.b16 %v261, %v253
  %v350 = vpack.c.b16 %v270, %v262
  %v351 = vpack.c.b16 %v271, %v263
  %v352 = vpack.c.b16 %v272, %v264
  %v353 = vpack.c.b16 %v273, %v265
  %v354 = vpack.c.b16 %v274, %v266
  %v355 = vpack.c.b16 %v275, %v267
  %v356 = vpack.c.b16 %v276, %v268
  %v357 = vpack.c.b16 %v277, %v269
  %v358 = vpack.c.b16 %v286, %v278
  %v359 = vpack.c.b16 %v287, %v279
  %v360 = vpack.c.b16 %v288, %v280
  %v361 = vpack.c.b16 %v289, %v281
  %v362 = vpack.c.b16 %v290, %v282
  %v363 = vpack.c.b16 %v291, %v283
  %v364 = vpack.c.b16 %v292, %v284
  %v365 = vpack.c.b16 %v293, %v285
  %v366 = vpack.c.b16 %v302, %v294
  %v367 = vpack.c.b16 %v303, %v295
  %v368 = vpack.c.b16 %v304, %v296
  %v369 = vpack.c.b16 %v305, %v297
  %v370 = vpack.c.b16 %v306, %v298
  %v371 = vpack.c.b16 %v307, %v299
  %v372 = vpack.c.b16 %v308, %v300
  %v373 = vpack.c.b16 %v309, %v301
  %438 = vmatprep.subr.bf16.mxu0 %v367
  %439 = vmatpush1.bf16.msra.mxu0 %v366
  %440 = vmatprep.subr.bf16.mxu0 %v359
  %441 = vmatpush1.bf16.msra.mxu0 %v358
  %442 = vmatprep.subr.bf16.mxu0 %v351
  %443 = vmatpush1.bf16.msra.mxu0 %v350
  %444 = vmatprep.subr.bf16.mxu0 %v343
  %445 = vmatpush1.bf16.msra.mxu0 %v342
  %446 = vmatprep.subr.bf16.mxu0 %v335
  %447 = vmatpush1.bf16.msra.mxu0 %v334
  %448 = vmatprep.subr.bf16.mxu0 %v327
  %449 = vmatpush1.bf16.msra.mxu0 %v326
  %450 = vmatprep.subr.bf16.mxu0 %v319
  %451 = vmatpush1.bf16.msra.mxu0 %v318
  %452 = vmatprep.subr.bf16.mxu0 %v311
  %453 = vmatpush1.bf16.msra.mxu0 %v310
  %454 = vmatprep.subr.bf16.mxu0 0
  %455 = vmatpush2.bf16.msra.mxu0 0
  %456 = vmatprep.subr.bf16.mxu0 0
  %457 = vmatpush2.bf16.msra.mxu0 0
  %458 = vmatprep.subr.bf16.mxu0 0
  %459 = vmatpush2.bf16.msra.mxu0 0
  %460 = vmatprep.subr.bf16.mxu0 0
  %461 = vmatpush2.bf16.msra.mxu0 0
  %462 = vmatprep.subr.bf16.mxu0 0
  %463 = vmatpush2.bf16.msra.mxu0 0
  %464 = vmatprep.subr.bf16.mxu0 0
  %465 = vmatpush2.bf16.msra.mxu0 0
  %466 = vmatprep.subr.bf16.mxu0 0
  %467 = vmatpush2.bf16.msra.mxu0 0
  %468 = vmatprep.subr.bf16.mxu0 0
  %469 = vmatpush2.bf16.msra.mxu0 0
  %470 = vmatprep.mubr.bf16.mxu0 0
  %471 = vmatmul.mubr.bf16.gmra.mxu0 %v52
  %v472 = vpop.f32.mrf.mxu0
  %v473 = vadd.f32 0.0, %v472
  %v474 = vpop.f32.mrf.mxu0
  %v475 = vadd.f32 0.0, %v474
  %v476 = vpop.f32.mrf.mxu0
  %v477 = vadd.f32 0.0, %v476
  %v478 = vpop.f32.mrf.mxu0
  %v479 = vadd.f32 0.0, %v478
  %480 = vmatprep.mubr.bf16.mxu0 0
  %481 = vmatmul.mubr.bf16.gmra.mxu0 %v53
  %v482 = vpop.f32.mrf.mxu0
  %v483 = vadd.f32 0.0, %v482
  %v484 = vpop.f32.mrf.mxu0
  %v485 = vadd.f32 0.0, %v484
  %v486 = vpop.f32.mrf.mxu0
  %v487 = vadd.f32 0.0, %v486
  %v488 = vpop.f32.mrf.mxu0
  %v489 = vadd.f32 0.0, %v488
  %490 = vdwg.mxu0
  %491 = vmatprep.subr.bf16.mxu0 %v369
  %492 = vmatpush1.bf16.msra.mxu0 %v368
  %493 = vmatprep.subr.bf16.mxu0 %v361
  %494 = vmatpush1.bf16.msra.mxu0 %v360
  %495 = vmatprep.subr.bf16.mxu0 %v353
  %496 = vmatpush1.bf16.msra.mxu0 %v352
  %497 = vmatprep.subr.bf16.mxu0 %v345
  %498 = vmatpush1.bf16.msra.mxu0 %v344
  %499 = vmatprep.subr.bf16.mxu0 %v337
  %500 = vmatpush1.bf16.msra.mxu0 %v336
  %501 = vmatprep.subr.bf16.mxu0 %v329
  %502 = vmatpush1.bf16.msra.mxu0 %v328
  %503 = vmatprep.subr.bf16.mxu0 %v321
  %504 = vmatpush1.bf16.msra.mxu0 %v320
  %505 = vmatprep.subr.bf16.mxu0 %v313
  %506 = vmatpush1.bf16.msra.mxu0 %v312
  %507 = vmatprep.subr.bf16.mxu0 0
  %508 = vmatpush2.bf16.msra.mxu0 0
  %509 = vmatprep.subr.bf16.mxu0 0
  %510 = vmatpush2.bf16.msra.mxu0 0
  %511 = vmatprep.subr.bf16.mxu0 0
  %512 = vmatpush2.bf16.msra.mxu0 0
  %513 = vmatprep.subr.bf16.mxu0 0
  %514 = vmatpush2.bf16.msra.mxu0 0
  %515 = vmatprep.subr.bf16.mxu0 0
  %516 = vmatpush2.bf16.msra.mxu0 0
  %517 = vmatprep.subr.bf16.mxu0 0
  %518 = vmatpush2.bf16.msra.mxu0 0
  %519 = vmatprep.subr.bf16.mxu0 0
  %520 = vmatpush2.bf16.msra.mxu0 0
  %521 = vmatprep.subr.bf16.mxu0 0
  %522 = vmatpush2.bf16.msra.mxu0 0
  %523 = vmatprep.mubr.bf16.mxu0 0
  %524 = vmatmul.mubr.bf16.gmra.mxu0 %v52
  %v525 = vpop.f32.mrf.mxu0
  %v526 = vadd.f32 0.0, %v525
  %v527 = vpop.f32.mrf.mxu0
  %v528 = vadd.f32 0.0, %v527
  %v529 = vpop.f32.mrf.mxu0
  %v530 = vadd.f32 0.0, %v529
  %v531 = vpop.f32.mrf.mxu0
  %v532 = vadd.f32 0.0, %v531
  %533 = vmatprep.mubr.bf16.mxu0 0
  %534 = vmatmul.mubr.bf16.gmra.mxu0 %v53
  %v535 = vpop.f32.mrf.mxu0
  %v536 = vadd.f32 0.0, %v535
  %v537 = vpop.f32.mrf.mxu0
  %v538 = vadd.f32 0.0, %v537
  %v539 = vpop.f32.mrf.mxu0
  %v540 = vadd.f32 0.0, %v539
  %v541 = vpop.f32.mrf.mxu0
  %v542 = vadd.f32 0.0, %v541
  %543 = vdwg.mxu0
  %544 = vmatprep.subr.bf16.mxu0 %v371
  %545 = vmatpush1.bf16.msra.mxu0 %v370
  %546 = vmatprep.subr.bf16.mxu0 %v363
  %547 = vmatpush1.bf16.msra.mxu0 %v362
  %548 = vmatprep.subr.bf16.mxu0 %v355
  %549 = vmatpush1.bf16.msra.mxu0 %v354
  %550 = vmatprep.subr.bf16.mxu0 %v347
  %551 = vmatpush1.bf16.msra.mxu0 %v346
  %552 = vmatprep.subr.bf16.mxu0 %v339
  %553 = vmatpush1.bf16.msra.mxu0 %v338
  %554 = vmatprep.subr.bf16.mxu0 %v331
  %555 = vmatpush1.bf16.msra.mxu0 %v330
  %556 = vmatprep.subr.bf16.mxu0 %v323
  %557 = vmatpush1.bf16.msra.mxu0 %v322
  %558 = vmatprep.subr.bf16.mxu0 %v315
  %559 = vmatpush1.bf16.msra.mxu0 %v314
  %560 = vmatprep.subr.bf16.mxu0 0
  %561 = vmatpush2.bf16.msra.mxu0 0
  %562 = vmatprep.subr.bf16.mxu0 0
  %563 = vmatpush2.bf16.msra.mxu0 0
  %564 = vmatprep.subr.bf16.mxu0 0
  %565 = vmatpush2.bf16.msra.mxu0 0
  %566 = vmatprep.subr.bf16.mxu0 0
  %567 = vmatpush2.bf16.msra.mxu0 0
  %568 = vmatprep.subr.bf16.mxu0 0
  %569 = vmatpush2.bf16.msra.mxu0 0
  %570 = vmatprep.subr.bf16.mxu0 0
  %571 = vmatpush2.bf16.msra.mxu0 0
  %572 = vmatprep.subr.bf16.mxu0 0
  %573 = vmatpush2.bf16.msra.mxu0 0
  %574 = vmatprep.subr.bf16.mxu0 0
  %575 = vmatpush2.bf16.msra.mxu0 0
  %576 = vmatprep.mubr.bf16.mxu0 0
  %577 = vmatmul.mubr.bf16.gmra.mxu0 %v52
  %v578 = vpop.f32.mrf.mxu0
  %v579 = vadd.f32 0.0, %v578
  %v580 = vpop.f32.mrf.mxu0
  %v581 = vadd.f32 0.0, %v580
  %v582 = vpop.f32.mrf.mxu0
  %v583 = vadd.f32 0.0, %v582
  %v584 = vpop.f32.mrf.mxu0
  %v585 = vadd.f32 0.0, %v584
  %586 = vmatprep.mubr.bf16.mxu0 0
  %587 = vmatmul.mubr.bf16.gmra.mxu0 %v53
  %v588 = vpop.f32.mrf.mxu0
  %v589 = vadd.f32 0.0, %v588
  %v590 = vpop.f32.mrf.mxu0
  %v591 = vadd.f32 0.0, %v590
  %v592 = vpop.f32.mrf.mxu0
  %v593 = vadd.f32 0.0, %v592
  %v594 = vpop.f32.mrf.mxu0
  %v595 = vadd.f32 0.0, %v594
  %596 = vdwg.mxu0
  %597 = vmatprep.subr.bf16.mxu0 %v373
  %598 = vmatpush1.bf16.msra.mxu0 %v372
  %599 = vmatprep.subr.bf16.mxu0 %v365
  %600 = vmatpush1.bf16.msra.mxu0 %v364
  %601 = vmatprep.subr.bf16.mxu0 %v357
  %602 = vmatpush1.bf16.msra.mxu0 %v356
  %603 = vmatprep.subr.bf16.mxu0 %v349
  %604 = vmatpush1.bf16.msra.mxu0 %v348
  %605 = vmatprep.subr.bf16.mxu0 %v341
  %606 = vmatpush1.bf16.msra.mxu0 %v340
  %607 = vmatprep.subr.bf16.mxu0 %v333
  %608 = vmatpush1.bf16.msra.mxu0 %v332
  %609 = vmatprep.subr.bf16.mxu0 %v325
  %610 = vmatpush1.bf16.msra.mxu0 %v324
  %611 = vmatprep.subr.bf16.mxu0 %v317
  %612 = vmatpush1.bf16.msra.mxu0 %v316
  %613 = vmatprep.subr.bf16.mxu0 0
  %614 = vmatpush2.bf16.msra.mxu0 0
  %615 = vmatprep.subr.bf16.mxu0 0
  %616 = vmatpush2.bf16.msra.mxu0 0
  %617 = vmatprep.subr.bf16.mxu0 0
  %618 = vmatpush2.bf16.msra.mxu0 0
  %619 = vmatprep.subr.bf16.mxu0 0
  %620 = vmatpush2.bf16.msra.mxu0 0
  %621 = vmatprep.subr.bf16.mxu0 0
  %622 = vmatpush2.bf16.msra.mxu0 0
  %623 = vmatprep.subr.bf16.mxu0 0
  %624 = vmatpush2.bf16.msra.mxu0 0
  %625 = vmatprep.subr.bf16.mxu0 0
  %626 = vmatpush2.bf16.msra.mxu0 0
  %627 = vmatprep.subr.bf16.mxu0 0
  %628 = vmatpush2.bf16.msra.mxu0 0
  %629 = vmatprep.mubr.bf16.mxu0 0
  %630 = vmatmul.mubr.bf16.gmra.mxu0 %v52
  %v631 = vpop.f32.mrf.mxu0
  %v632 = vadd.f32 0.0, %v631
  %v633 = vpop.f32.mrf.mxu0
  %v634 = vadd.f32 0.0, %v633
  %v635 = vpop.f32.mrf.mxu0
  %v636 = vadd.f32 0.0, %v635
  %v637 = vpop.f32.mrf.mxu0
  %v638 = vadd.f32 0.0, %v637
  %639 = vmatprep.mubr.bf16.mxu0 0
  %640 = vmatmul.mubr.bf16.gmra.mxu0 %v53
  %v641 = vpop.f32.mrf.mxu0
  %v642 = vadd.f32 0.0, %v641
  %v643 = vpop.f32.mrf.mxu0
  %v644 = vadd.f32 0.0, %v643
  %v645 = vpop.f32.mrf.mxu0
  %v646 = vadd.f32 0.0, %v645
  %v647 = vpop.f32.mrf.mxu0
  %v648 = vadd.f32 0.0, %v647
  %649 = vdwg.mxu0
  %650 = vst [vmem:[%s4] sm:$0xff] %v473
  %651 = vst [vmem:[%s4 + $0x8] sm:$0xff] %v475
  %652 = vst [vmem:[%s4 + $0x10] sm:$0xff] %v526
  %653 = vst [vmem:[%s4 + $0x18] sm:$0xff] %v528
  %654 = vst [vmem:[%s4 + $0x20] sm:$0xff] %v579
  %655 = vst [vmem:[%s4 + $0x28] sm:$0xff] %v581
  %656 = vst [vmem:[%s4 + $0x30] sm:$0xff] %v632
  %657 = vst [vmem:[%s4 + $0x38] sm:$0xff] %v634
  %658 = vst [vmem:[%s4 + $0x40] sm:$0xff] %v477
  %659 = vst [vmem:[%s4 + $0x48] sm:$0xff] %v479
  %660 = vst [vmem:[%s4 + $0x50] sm:$0xff] %v530
  %661 = vst [vmem:[%s4 + $0x58] sm:$0xff] %v532
  %662 = vst [vmem:[%s4 + $0x60] sm:$0xff] %v583
  %663 = vst [vmem:[%s4 + $0x68] sm:$0xff] %v585
  %664 = vst [vmem:[%s4 + $0x70] sm:$0xff] %v636
  %665 = vst [vmem:[%s4 + $0x78] sm:$0xff] %v638
  %666 = vst [vmem:[%s4 + $0x80] sm:$0xff] %v483
  %667 = vst [vmem:[%s4 + $0x88] sm:$0xff] %v485
  %668 = vst [vmem:[%s4 + $0x90] sm:$0xff] %v536
  %669 = vst [vmem:[%s4 + $0x98] sm:$0xff] %v538
  %670 = vst [vmem:[%s4 + $0xa0] sm:$0xff] %v589
  %671 = vst [vmem:[%s4 + $0xa8] sm:$0xff] %v591
  %672 = vst [vmem:[%s4 + $0xb0] sm:$0xff] %v642
  %673 = vst [vmem:[%s4 + $0xb8] sm:$0xff] %v644
  %674 = vst [vmem:[%s4 + $0xc0] sm:$0xff] %v487
  %675 = vst [vmem:[%s4 + $0xc8] sm:$0xff] %v489
  %676 = vst [vmem:[%s4 + $0xd0] sm:$0xff] %v540
  %677 = vst [vmem:[%s4 + $0xd8] sm:$0xff] %v542
  %678 = vst [vmem:[%s4 + $0xe0] sm:$0xff] %v593
  %679 = vst [vmem:[%s4 + $0xe8] sm:$0xff] %v595
  %680 = vst [vmem:[%s4 + $0xf0] sm:$0xff] %v646
  %681 = vst [vmem:[%s4 + $0xf8] sm:$0xff] %v648
  // Predicated region
  $region18: #{generator_forward.12} parent=0 // pred_check
    _
  $region19: #{generator_forward.12} parent=0 // pred_check_branch
    %683 = sbr.rel (0) target = $region21
  $region20: #{generator_forward.12} parent=0 // pred_region
    _
  $region21: #{generator_forward.12} parent=0 // pred_fallthru
    _
  // Predicated region
  $region22: #{generator_forward.12} parent=0 // pred_check
    _
  $region23: #{generator_forward.12} parent=0 // pred_check_branch
    %685 = sbr.rel (0) target = $region25
  $region24: #{generator_forward.12} parent=0 // pred_region
    _
  $region25: #{generator_forward.12} parent=0 // pred_fallthru
    _

// kernel: generator_forward.13
$region0: #{generator_forward.13}
  #allocation0 [shape = 'u32[]', space=smem, size = 0x4, offset = 0x4, fixed_abs, tag = 'smem constant byte address 0x4 - core index']
  #allocation1 [shape = 'u32[144,128]{1,0:T(1,128)}', space=vmem, size = 0x12000, scoped, tag = 'internal scratch']
  %s0 = inlined_call_operand.vmem [shape: bf16[128,64], index: 0, kind: input, shape index: {}]
  %s1 = inlined_call_operand.vmem [shape: f32[1,1,64], index: 1, kind: output, shape index: {0}]
  %s2 = inlined_call_operand.vmem [shape: f32[1,1,64], index: 2, kind: output, shape index: {1}]
  %3 = xla_tuple %s1, %s2
  %s4 = sld [smem:[#allocation0]]
  $region22: #{generator_forward.13} parent=0
    _
  %s6 = ssub.s32 1, %s4
  %s7 = scalar_select 0, %s6, %s4
  // Predicated region
  $region2: #{generator_forward.13} parent=0 // pred_check
    _
  $region3: #{generator_forward.13} parent=0 // pred_check_branch
    %9 = sbr.rel (0) target = $region5
  $region4: #{generator_forward.13} parent=0 // pred_region
    _
  $region5: #{generator_forward.13} parent=0 // pred_fallthru
    _
  %v10 = vld [vmem:[%s0] sm:$0xf]
  %v11 = vld [vmem:[%s0 + $0x4] sm:$0xf]
  %v12 = vld [vmem:[%s0 + $0x8] sm:$0xf]
  %v13 = vld [vmem:[%s0 + $0xc] sm:$0xf]
  %v14 = vld [vmem:[%s0 + $0x10] sm:$0xf]
  %v15 = vld [vmem:[%s0 + $0x14] sm:$0xf]
  %v16 = vld [vmem:[%s0 + $0x18] sm:$0xf]
  %v17 = vld [vmem:[%s0 + $0x1c] sm:$0xf]
  %v18 = vld [vmem:[%s0 + $0x20] sm:$0xf]
  %v19 = vld [vmem:[%s0 + $0x24] sm:$0xf]
  %v20 = vld [vmem:[%s0 + $0x28] sm:$0xf]
  %v21 = vld [vmem:[%s0 + $0x2c] sm:$0xf]
  %v22 = vld [vmem:[%s0 + $0x30] sm:$0xf]
  %v23 = vld [vmem:[%s0 + $0x34] sm:$0xf]
  %v24 = vld [vmem:[%s0 + $0x38] sm:$0xf]
  %v25 = vld [vmem:[%s0 + $0x3c] sm:$0xf]
  %v26 = vunpack.c.l.bf16 %v10
  %v27 = vunpack.c.l.bf16 %v11
  %v28 = vunpack.c.l.bf16 %v12
  %v29 = vunpack.c.l.bf16 %v13
  %v30 = vunpack.c.l.bf16 %v14
  %v31 = vunpack.c.l.bf16 %v15
  %v32 = vunpack.c.l.bf16 %v16
  %v33 = vunpack.c.l.bf16 %v17
  %v34 = vunpack.c.l.bf16 %v18
  %v35 = vunpack.c.l.bf16 %v19
  %v36 = vunpack.c.l.bf16 %v20
  %v37 = vunpack.c.l.bf16 %v21
  %v38 = vunpack.c.l.bf16 %v22
  %v39 = vunpack.c.l.bf16 %v23
  %v40 = vunpack.c.l.bf16 %v24
  %v41 = vunpack.c.l.bf16 %v25
  %vm42 = vcmask 523264
  %v43 = vsel %vm42, %v26, 0.0
  %v44 = vsel %vm42, %v27, 0.0
  %v45 = vadd.f32 %v43, %v44
  %v46 = vsel %vm42, %v28, 0.0
  %v47 = vadd.f32 %v45, %v46
  %v48 = vsel %vm42, %v29, 0.0
  %v49 = vadd.f32 %v47, %v48
  %v50 = vsel %vm42, %v30, 0.0
  %v51 = vadd.f32 %v49, %v50
  %v52 = vsel %vm42, %v31, 0.0
  %v53 = vadd.f32 %v51, %v52
  %v54 = vsel %vm42, %v32, 0.0
  %v55 = vadd.f32 %v53, %v54
  %v56 = vsel %vm42, %v33, 0.0
  %v57 = vadd.f32 %v55, %v56
  %v58 = vsel %vm42, %v34, 0.0
  %v59 = vadd.f32 %v57, %v58
  %v60 = vsel %vm42, %v35, 0.0
  %v61 = vadd.f32 %v59, %v60
  %v62 = vsel %vm42, %v36, 0.0
  %v63 = vadd.f32 %v61, %v62
  %v64 = vsel %vm42, %v37, 0.0
  %v65 = vadd.f32 %v63, %v64
  %v66 = vsel %vm42, %v38, 0.0
  %v67 = vadd.f32 %v65, %v66
  %v68 = vsel %vm42, %v39, 0.0
  %v69 = vadd.f32 %v67, %v68
  %v70 = vsel %vm42, %v40, 0.0
  %v71 = vadd.f32 %v69, %v70
  %v72 = vsel %vm42, %v41, 0.0
  %v73 = vadd.f32 %v71, %v72
  %v74 = vrot.slane %v73, 4
  %v75 = vadd.f32 %v73, %v74
  %v76 = vrot.slane %v75, 2
  %v77 = vadd.f32 %v75, %v76
  %v78 = vrot.slane %v77, 1
  %v79 = vadd.f32 %v77, %v78
  %vm80 = vcmask 516096
  %81 = vst.msk [vmem:[%s1] sm:$0x1] %vm80, %v79
  %v82 = vmul.f32 %v26, %v26
  %v83 = vmul.f32 %v27, %v27
  %v84 = vmul.f32 %v28, %v28
  %v85 = vmul.f32 %v29, %v29
  %v86 = vmul.f32 %v30, %v30
  %v87 = vmul.f32 %v31, %v31
  %v88 = vmul.f32 %v32, %v32
  %v89 = vmul.f32 %v33, %v33
  %v90 = vmul.f32 %v34, %v34
  %v91 = vmul.f32 %v35, %v35
  %v92 = vmul.f32 %v36, %v36
  %v93 = vmul.f32 %v37, %v37
  %v94 = vmul.f32 %v38, %v38
  %v95 = vmul.f32 %v39, %v39
  %v96 = vmul.f32 %v40, %v40
  %v97 = vmul.f32 %v41, %v41
  %v98 = vsel %vm42, %v82, 0.0
  %v99 = vsel %vm42, %v83, 0.0
  %v100 = vadd.f32 %v98, %v99
  %v101 = vsel %vm42, %v84, 0.0
  %v102 = vadd.f32 %v100, %v101
  %v103 = vsel %vm42, %v85, 0.0
  %v104 = vadd.f32 %v102, %v103
  %v105 = vsel %vm42, %v86, 0.0
  %v106 = vadd.f32 %v104, %v105
  %v107 = vsel %vm42, %v87, 0.0
  %v108 = vadd.f32 %v106, %v107
  %v109 = vsel %vm42, %v88, 0.0
  %v110 = vadd.f32 %v108, %v109
  %v111 = vsel %vm42, %v89, 0.0
  %v112 = vadd.f32 %v110, %v111
  %v113 = vsel %vm42, %v90, 0.0
  %v114 = vadd.f32 %v112, %v113
  %v115 = vsel %vm42, %v91, 0.0
  %v116 = vadd.f32 %v114, %v115
  %v117 = vsel %vm42, %v92, 0.0
  %v118 = vadd.f32 %v116, %v117
  %v119 = vsel %vm42, %v93, 0.0
  %v120 = vadd.f32 %v118, %v119
  %v121 = vsel %vm42, %v94, 0.0
  %v122 = vadd.f32 %v120, %v121
  %v123 = vsel %vm42, %v95, 0.0
  %v124 = vadd.f32 %v122, %v123
  %v125 = vsel %vm42, %v96, 0.0
  %v126 = vadd.f32 %v124, %v125
  %v127 = vsel %vm42, %v97, 0.0
  %v128 = vadd.f32 %v126, %v127
  %v129 = vrot.slane %v128, 4
  %v130 = vadd.f32 %v128, %v129
  %v131 = vrot.slane %v130, 2
  %v132 = vadd.f32 %v130, %v131
  %v133 = vrot.slane %v132, 1
  %v134 = vadd.f32 %v132, %v133
  %135 = vst.msk [vmem:[%s2] sm:$0x1] %vm80, %v134
  // Predicated region
  $region6: #{generator_forward.13} parent=0 // pred_check
    _
  $region7: #{generator_forward.13} parent=0 // pred_check_branch
    %137 = sbr.rel (0) target = $region9
  $region8: #{generator_forward.13} parent=0 // pred_region
    _
  $region9: #{generator_forward.13} parent=0 // pred_fallthru
    _
  // Predicated region
  $region10: #{generator_forward.13} parent=0 // pred_check
    _
  $region11: #{generator_forward.13} parent=0 // pred_check_branch
    %139 = sbr.rel (0) target = $region13
  $region12: #{generator_forward.13} parent=0 // pred_region
    _
  $region13: #{generator_forward.13} parent=0 // pred_fallthru
    _
  // Predicated region
  $region14: #{generator_forward.13} parent=0 // pred_check
    _
  $region15: #{generator_forward.13} parent=0 // pred_check_branch
    %141 = sbr.rel (0) target = $region17
  $region16: #{generator_forward.13} parent=0 // pred_region
    _
  $region17: #{generator_forward.13} parent=0 // pred_fallthru
    _
  // Predicated region
  $region18: #{generator_forward.13} parent=0 // pred_check
    _
  $region19: #{generator_forward.13} parent=0 // pred_check_branch
    %143 = sbr.rel (0) target = $region21
  $region20: #{generator_forward.13} parent=0 // pred_region
    _
  $region21: #{generator_forward.13} parent=0 // pred_fallthru
    _

// kernel: generator_forward.14
$region0: #{generator_forward.14}
  #allocation0 [shape = 'u32[]', space=smem, size = 0x4, offset = 0x4, fixed_abs, tag = 'smem constant byte address 0x4 - core index']
  #allocation1 [shape = 'u32[144,128]{1,0:T(1,128)}', space=vmem, size = 0x12000, scoped, tag = 'internal scratch']
  %s0 = inlined_call_operand.vmem [shape: bf16[128,64], index: 0, kind: input, shape index: {}]
  %s1 = inlined_call_operand.vmem [shape: f32[1,64], index: 1, kind: input, shape index: {}]
  %s2 = inlined_call_operand.vmem [shape: f32[1,64], index: 2, kind: input, shape index: {}]
  %s3 = inlined_call_operand.vmem [shape: bf16[64,512], index: 3, kind: input, shape index: {}]
  %s4 = inlined_call_operand.vmem [shape: f32[128,512], index: 4, kind: output, shape index: {}]
  %s5 = sld [smem:[#allocation0]]
  $region26: #{generator_forward.14} parent=0
    _
  %s7 = ssub.s32 1, %s5
  %s8 = scalar_select 0, %s7, %s5
  // Predicated region
  $region2: #{generator_forward.14} parent=0 // pred_check
    _
  $region3: #{generator_forward.14} parent=0 // pred_check_branch
    %10 = sbr.rel (0) target = $region5
  $region4: #{generator_forward.14} parent=0 // pred_region
    _
  $region5: #{generator_forward.14} parent=0 // pred_fallthru
    _
  // Predicated region
  $region6: #{generator_forward.14} parent=0 // pred_check
    _
  $region7: #{generator_forward.14} parent=0 // pred_check_branch
    %12 = sbr.rel (0) target = $region9
  $region8: #{generator_forward.14} parent=0 // pred_region
    _
  $region9: #{generator_forward.14} parent=0 // pred_fallthru
    _
  // Predicated region
  $region10: #{generator_forward.14} parent=0 // pred_check
    _
  $region11: #{generator_forward.14} parent=0 // pred_check_branch
    %14 = sbr.rel (0) target = $region13
  $region12: #{generator_forward.14} parent=0 // pred_region
    _
  $region13: #{generator_forward.14} parent=0 // pred_fallthru
    _
  // Predicated region
  $region14: #{generator_forward.14} parent=0 // pred_check
    _
  $region15: #{generator_forward.14} parent=0 // pred_check_branch
    %16 = sbr.rel (0) target = $region17
  $region16: #{generator_forward.14} parent=0 // pred_region
    _
  $region17: #{generator_forward.14} parent=0 // pred_fallthru
    _
  %v18 = vld [vmem:[%s0] sm:$0xf]
  %v19 = vld [vmem:[%s0 + $0x4] sm:$0xf]
  %v20 = vld [vmem:[%s0 + $0x8] sm:$0xf]
  %v21 = vld [vmem:[%s0 + $0xc] sm:$0xf]
  %v22 = vld [vmem:[%s0 + $0x10] sm:$0xf]
  %v23 = vld [vmem:[%s0 + $0x14] sm:$0xf]
  %v24 = vld [vmem:[%s0 + $0x18] sm:$0xf]
  %v25 = vld [vmem:[%s0 + $0x1c] sm:$0xf]
  %v26 = vld [vmem:[%s0 + $0x20] sm:$0xf]
  %v27 = vld [vmem:[%s0 + $0x24] sm:$0xf]
  %v28 = vld [vmem:[%s0 + $0x28] sm:$0xf]
  %v29 = vld [vmem:[%s0 + $0x2c] sm:$0xf]
  %v30 = vld [vmem:[%s0 + $0x30] sm:$0xf]
  %v31 = vld [vmem:[%s0 + $0x34] sm:$0xf]
  %v32 = vld [vmem:[%s0 + $0x38] sm:$0xf]
  %v33 = vld [vmem:[%s0 + $0x3c] sm:$0xf]
  %v34 = vunpack.c.l.bf16 %v18
  %v35 = vunpack.c.l.bf16 %v19
  %v36 = vunpack.c.l.bf16 %v20
  %v37 = vunpack.c.l.bf16 %v21
  %v38 = vunpack.c.l.bf16 %v22
  %v39 = vunpack.c.l.bf16 %v23
  %v40 = vunpack.c.l.bf16 %v24
  %v41 = vunpack.c.l.bf16 %v25
  %v42 = vunpack.c.l.bf16 %v26
  %v43 = vunpack.c.l.bf16 %v27
  %v44 = vunpack.c.l.bf16 %v28
  %v45 = vunpack.c.l.bf16 %v29
  %v46 = vunpack.c.l.bf16 %v30
  %v47 = vunpack.c.l.bf16 %v31
  %v48 = vunpack.c.l.bf16 %v32
  %v49 = vunpack.c.l.bf16 %v33
  %v50 = vld [vmem:[%s1] sm:$0x1]
  %v52 = vlaneseq
  %v53 = vshrl.u32 %v52, 7
  %v54 = vsub.s32 0, %v53
  %v55 = vrot.slane %v50, %v54
  %v57 = vmul.f32 %v34, %v55
  %v58 = vmul.f32 %v35, %v55
  %v59 = vmul.f32 %v36, %v55
  %v60 = vmul.f32 %v37, %v55
  %v61 = vmul.f32 %v38, %v55
  %v62 = vmul.f32 %v39, %v55
  %v63 = vmul.f32 %v40, %v55
  %v64 = vmul.f32 %v41, %v55
  %v65 = vmul.f32 %v42, %v55
  %v66 = vmul.f32 %v43, %v55
  %v67 = vmul.f32 %v44, %v55
  %v68 = vmul.f32 %v45, %v55
  %v69 = vmul.f32 %v46, %v55
  %v70 = vmul.f32 %v47, %v55
  %v71 = vmul.f32 %v48, %v55
  %v72 = vmul.f32 %v49, %v55
  %v73 = vld [vmem:[%s2] sm:$0x1]
  %v75 = vlaneseq
  %v76 = vshrl.u32 %v75, 7
  %v77 = vsub.s32 0, %v76
  %v78 = vrot.slane %v73, %v77
  %v80 = vadd.f32 %v57, %v78
  %v81 = vadd.f32 %v58, %v78
  %v82 = vadd.f32 %v59, %v78
  %v83 = vadd.f32 %v60, %v78
  %v84 = vadd.f32 %v61, %v78
  %v85 = vadd.f32 %v62, %v78
  %v86 = vadd.f32 %v63, %v78
  %v87 = vadd.f32 %v64, %v78
  %v88 = vadd.f32 %v65, %v78
  %v89 = vadd.f32 %v66, %v78
  %v90 = vadd.f32 %v67, %v78
  %v91 = vadd.f32 %v68, %v78
  %v92 = vadd.f32 %v69, %v78
  %v93 = vadd.f32 %v70, %v78
  %v94 = vadd.f32 %v71, %v78
  %v95 = vadd.f32 %v72, %v78
  %v96 = vmax.f32 %v80, 0.0
  %v97 = vmax.f32 %v81, 0.0
  %v98 = vmax.f32 %v82, 0.0
  %v99 = vmax.f32 %v83, 0.0
  %v100 = vmax.f32 %v84, 0.0
  %v101 = vmax.f32 %v85, 0.0
  %v102 = vmax.f32 %v86, 0.0
  %v103 = vmax.f32 %v87, 0.0
  %v104 = vmax.f32 %v88, 0.0
  %v105 = vmax.f32 %v89, 0.0
  %v106 = vmax.f32 %v90, 0.0
  %v107 = vmax.f32 %v91, 0.0
  %v108 = vmax.f32 %v92, 0.0
  %v109 = vmax.f32 %v93, 0.0
  %v110 = vmax.f32 %v94, 0.0
  %v111 = vmax.f32 %v95, 0.0
  %v112 = vpack.c.bf16 %v97, %v96
  %v113 = vpack.c.bf16 %v99, %v98
  %v114 = vpack.c.bf16 %v101, %v100
  %v115 = vpack.c.bf16 %v103, %v102
  %v116 = vpack.c.bf16 %v105, %v104
  %v117 = vpack.c.bf16 %v107, %v106
  %v118 = vpack.c.bf16 %v109, %v108
  %v119 = vpack.c.bf16 %v111, %v110
  %v120 = vld [vmem:[%s3] sm:$0xff]
  %v121 = vld [vmem:[%s3 + $0x8] sm:$0xff]
  %v122 = vld [vmem:[%s3 + $0x10] sm:$0xff]
  %v123 = vld [vmem:[%s3 + $0x18] sm:$0xff]
  %v124 = vld [vmem:[%s3 + $0x20] sm:$0xff]
  %v125 = vld [vmem:[%s3 + $0x28] sm:$0xff]
  %v126 = vld [vmem:[%s3 + $0x30] sm:$0xff]
  %v127 = vld [vmem:[%s3 + $0x38] sm:$0xff]
  %v128 = vld [vmem:[%s3 + $0x40] sm:$0xff]
  %v129 = vld [vmem:[%s3 + $0x48] sm:$0xff]
  %v130 = vld [vmem:[%s3 + $0x50] sm:$0xff]
  %v131 = vld [vmem:[%s3 + $0x58] sm:$0xff]
  %v132 = vld [vmem:[%s3 + $0x60] sm:$0xff]
  %v133 = vld [vmem:[%s3 + $0x68] sm:$0xff]
  %v134 = vld [vmem:[%s3 + $0x70] sm:$0xff]
  %v135 = vld [vmem:[%s3 + $0x78] sm:$0xff]
  %v152 = vunpack.c.l.b16 %v120
  %v153 = vunpack.c.h.b16 %v120
  %v154 = vunpack.c.l.b16 %v121
  %v155 = vunpack.c.h.b16 %v121
  %v156 = vunpack.c.l.b16 %v122
  %v157 = vunpack.c.h.b16 %v122
  %v158 = vunpack.c.l.b16 %v123
  %v159 = vunpack.c.h.b16 %v123
  %v160 = vunpack.c.l.b16 %v124
  %v161 = vunpack.c.h.b16 %v124
  %v162 = vunpack.c.l.b16 %v125
  %v163 = vunpack.c.h.b16 %v125
  %v164 = vunpack.c.l.b16 %v126
  %v165 = vunpack.c.h.b16 %v126
  %v166 = vunpack.c.l.b16 %v127
  %v167 = vunpack.c.h.b16 %v127
  %v168 = vunpack.c.l.b16 %v128
  %v169 = vunpack.c.h.b16 %v128
  %v170 = vunpack.c.l.b16 %v129
  %v171 = vunpack.c.h.b16 %v129
  %v172 = vunpack.c.l.b16 %v130
  %v173 = vunpack.c.h.b16 %v130
  %v174 = vunpack.c.l.b16 %v131
  %v175 = vunpack.c.h.b16 %v131
  %v176 = vunpack.c.l.b16 %v132
  %v177 = vunpack.c.h.b16 %v132
  %v178 = vunpack.c.l.b16 %v133
  %v179 = vunpack.c.h.b16 %v133
  %v180 = vunpack.c.l.b16 %v134
  %v181 = vunpack.c.h.b16 %v134
  %v182 = vunpack.c.l.b16 %v135
  %v183 = vunpack.c.h.b16 %v135
  %v184 = vpack.c.b16 %v156, %v152
  %v185 = vpack.c.b16 %v157, %v153
  %v186 = vpack.c.b16 %v158, %v154
  %v187 = vpack.c.b16 %v159, %v155
  %v188 = vpack.c.b16 %v164, %v160
  %v189 = vpack.c.b16 %v165, %v161
  %v190 = vpack.c.b16 %v166, %v162
  %v191 = vpack.c.b16 %v167, %v163
  %v192 = vpack.c.b16 %v172, %v168
  %v193 = vpack.c.b16 %v173, %v169
  %v194 = vpack.c.b16 %v174, %v170
  %v195 = vpack.c.b16 %v175, %v171
  %v196 = vpack.c.b16 %v180, %v176
  %v197 = vpack.c.b16 %v181, %v177
  %v198 = vpack.c.b16 %v182, %v178
  %v199 = vpack.c.b16 %v183, %v179
  %vm216 = vcmask 523264
  %v218 = vsel %vm216, %v112, 0
  %v221 = vsel %vm216, %v113, 0
  %v224 = vsel %vm216, %v114, 0
  %v227 = vsel %vm216, %v115, 0
  %v230 = vsel %vm216, %v116, 0
  %v233 = vsel %vm216, %v117, 0
  %v236 = vsel %vm216, %v118, 0
  %v239 = vsel %vm216, %v119, 0
  %241 = vmatprep.subr.bf16.mxu0 0
  %242 = vmatpush1.bf16.msra.mxu0 0
  %243 = vmatprep.subr.bf16.mxu0 0
  %244 = vmatpush1.bf16.msra.mxu0 0
  %245 = vmatprep.subr.bf16.mxu0 0
  %246 = vmatpush1.bf16.msra.mxu0 0
  %247 = vmatprep.subr.bf16.mxu0 0
  %248 = vmatpush1.bf16.msra.mxu0 0
  %249 = vmatprep.subr.bf16.mxu0 %v197
  %250 = vmatpush1.bf16.msra.mxu0 %v196
  %251 = vmatprep.subr.bf16.mxu0 %v193
  %252 = vmatpush1.bf16.msra.mxu0 %v192
  %253 = vmatprep.subr.bf16.mxu0 %v189
  %254 = vmatpush1.bf16.msra.mxu0 %v188
  %255 = vmatprep.subr.bf16.mxu0 %v185
  %256 = vmatpush1.bf16.msra.mxu0 %v184
  %257 = vmatprep.subr.bf16.mxu0 0
  %258 = vmatpush2.bf16.msra.mxu0 0
  %259 = vmatprep.subr.bf16.mxu0 0
  %260 = vmatpush2.bf16.msra.mxu0 0
  %261 = vmatprep.subr.bf16.mxu0 0
  %262 = vmatpush2.bf16.msra.mxu0 0
  %263 = vmatprep.subr.bf16.mxu0 0
  %264 = vmatpush2.bf16.msra.mxu0 0
  %265 = vmatprep.subr.bf16.mxu0 0
  %266 = vmatpush2.bf16.msra.mxu0 0
  %267 = vmatprep.subr.bf16.mxu0 0
  %268 = vmatpush2.bf16.msra.mxu0 0
  %269 = vmatprep.subr.bf16.mxu0 0
  %270 = vmatpush2.bf16.msra.mxu0 0
  %271 = vmatprep.subr.bf16.mxu0 0
  %272 = vmatpush2.bf16.msra.mxu0 0
  %273 = vmatprep.mubr.bf16.mxu0 0
  %274 = vmatmul.mubr.bf16.gmra.mxu0 %v218
  %v275 = vpop.f32.mrf.mxu0
  %v276 = vadd.f32 0.0, %v275
  %v277 = vpop.f32.mrf.mxu0
  %v278 = vadd.f32 0.0, %v277
  %v279 = vpop.f32.mrf.mxu0
  %v280 = vadd.f32 0.0, %v279
  %v281 = vpop.f32.mrf.mxu0
  %v282 = vadd.f32 0.0, %v281
  %283 = vmatprep.mubr.bf16.mxu0 0
  %284 = vmatmul.mubr.bf16.gmra.mxu0 %v221
  %v285 = vpop.f32.mrf.mxu0
  %v286 = vadd.f32 0.0, %v285
  %v287 = vpop.f32.mrf.mxu0
  %v288 = vadd.f32 0.0, %v287
  %v289 = vpop.f32.mrf.mxu0
  %v290 = vadd.f32 0.0, %v289
  %v291 = vpop.f32.mrf.mxu0
  %v292 = vadd.f32 0.0, %v291
  %293 = vmatprep.mubr.bf16.mxu0 0
  %294 = vmatmul.mubr.bf16.gmra.mxu0 %v224
  %v295 = vpop.f32.mrf.mxu0
  %v296 = vadd.f32 0.0, %v295
  %v297 = vpop.f32.mrf.mxu0
  %v298 = vadd.f32 0.0, %v297
  %v299 = vpop.f32.mrf.mxu0
  %v300 = vadd.f32 0.0, %v299
  %v301 = vpop.f32.mrf.mxu0
  %v302 = vadd.f32 0.0, %v301
  %303 = vmatprep.mubr.bf16.mxu0 0
  %304 = vmatmul.mubr.bf16.gmra.mxu0 %v227
  %v305 = vpop.f32.mrf.mxu0
  %v306 = vadd.f32 0.0, %v305
  %v307 = vpop.f32.mrf.mxu0
  %v308 = vadd.f32 0.0, %v307
  %v309 = vpop.f32.mrf.mxu0
  %v310 = vadd.f32 0.0, %v309
  %v311 = vpop.f32.mrf.mxu0
  %v312 = vadd.f32 0.0, %v311
  %313 = vmatprep.mubr.bf16.mxu0 0
  %314 = vmatmul.mubr.bf16.gmra.mxu0 %v230
  %v315 = vpop.f32.mrf.mxu0
  %v316 = vadd.f32 0.0, %v315
  %v317 = vpop.f32.mrf.mxu0
  %v318 = vadd.f32 0.0, %v317
  %v319 = vpop.f32.mrf.mxu0
  %v320 = vadd.f32 0.0, %v319
  %v321 = vpop.f32.mrf.mxu0
  %v322 = vadd.f32 0.0, %v321
  %323 = vmatprep.mubr.bf16.mxu0 0
  %324 = vmatmul.mubr.bf16.gmra.mxu0 %v233
  %v325 = vpop.f32.mrf.mxu0
  %v326 = vadd.f32 0.0, %v325
  %v327 = vpop.f32.mrf.mxu0
  %v328 = vadd.f32 0.0, %v327
  %v329 = vpop.f32.mrf.mxu0
  %v330 = vadd.f32 0.0, %v329
  %v331 = vpop.f32.mrf.mxu0
  %v332 = vadd.f32 0.0, %v331
  %333 = vmatprep.mubr.bf16.mxu0 0
  %334 = vmatmul.mubr.bf16.gmra.mxu0 %v236
  %v335 = vpop.f32.mrf.mxu0
  %v336 = vadd.f32 0.0, %v335
  %v337 = vpop.f32.mrf.mxu0
  %v338 = vadd.f32 0.0, %v337
  %v339 = vpop.f32.mrf.mxu0
  %v340 = vadd.f32 0.0, %v339
  %v341 = vpop.f32.mrf.mxu0
  %v342 = vadd.f32 0.0, %v341
  %343 = vmatprep.mubr.bf16.mxu0 0
  %344 = vmatmul.mubr.bf16.gmra.mxu0 %v239
  %v345 = vpop.f32.mrf.mxu0
  %v346 = vadd.f32 0.0, %v345
  %v347 = vpop.f32.mrf.mxu0
  %v348 = vadd.f32 0.0, %v347
  %v349 = vpop.f32.mrf.mxu0
  %v350 = vadd.f32 0.0, %v349
  %v351 = vpop.f32.mrf.mxu0
  %v352 = vadd.f32 0.0, %v351
  %353 = vdwg.mxu0
  %354 = vmatprep.subr.bf16.mxu0 0
  %355 = vmatpush1.bf16.msra.mxu0 0
  %356 = vmatprep.subr.bf16.mxu0 0
  %357 = vmatpush1.bf16.msra.mxu0 0
  %358 = vmatprep.subr.bf16.mxu0 0
  %359 = vmatpush1.bf16.msra.mxu0 0
  %360 = vmatprep.subr.bf16.mxu0 0
  %361 = vmatpush1.bf16.msra.mxu0 0
  %362 = vmatprep.subr.bf16.mxu0 %v199
  %363 = vmatpush1.bf16.msra.mxu0 %v198
  %364 = vmatprep.subr.bf16.mxu0 %v195
  %365 = vmatpush1.bf16.msra.mxu0 %v194
  %366 = vmatprep.subr.bf16.mxu0 %v191
  %367 = vmatpush1.bf16.msra.mxu0 %v190
  %368 = vmatprep.subr.bf16.mxu0 %v187
  %369 = vmatpush1.bf16.msra.mxu0 %v186
  %370 = vmatprep.subr.bf16.mxu0 0
  %371 = vmatpush2.bf16.msra.mxu0 0
  %372 = vmatprep.subr.bf16.mxu0 0
  %373 = vmatpush2.bf16.msra.mxu0 0
  %374 = vmatprep.subr.bf16.mxu0 0
  %375 = vmatpush2.bf16.msra.mxu0 0
  %376 = vmatprep.subr.bf16.mxu0 0
  %377 = vmatpush2.bf16.msra.mxu0 0
  %378 = vmatprep.subr.bf16.mxu0 0
  %379 = vmatpush2.bf16.msra.mxu0 0
  %380 = vmatprep.subr.bf16.mxu0 0
  %381 = vmatpush2.bf16.msra.mxu0 0
  %382 = vmatprep.subr.bf16.mxu0 0
  %383 = vmatpush2.bf16.msra.mxu0 0
  %384 = vmatprep.subr.bf16.mxu0 0
  %385 = vmatpush2.bf16.msra.mxu0 0
  %386 = vmatprep.mubr.bf16.mxu0 0
  %387 = vmatmul.mubr.bf16.gmra.mxu0 %v218
  %v388 = vpop.f32.mrf.mxu0
  %v389 = vadd.f32 0.0, %v388
  %v390 = vpop.f32.mrf.mxu0
  %v391 = vadd.f32 0.0, %v390
  %v392 = vpop.f32.mrf.mxu0
  %v393 = vadd.f32 0.0, %v392
  %v394 = vpop.f32.mrf.mxu0
  %v395 = vadd.f32 0.0, %v394
  %396 = vmatprep.mubr.bf16.mxu0 0
  %397 = vmatmul.mubr.bf16.gmra.mxu0 %v221
  %v398 = vpop.f32.mrf.mxu0
  %v399 = vadd.f32 0.0, %v398
  %v400 = vpop.f32.mrf.mxu0
  %v401 = vadd.f32 0.0, %v400
  %v402 = vpop.f32.mrf.mxu0
  %v403 = vadd.f32 0.0, %v402
  %v404 = vpop.f32.mrf.mxu0
  %v405 = vadd.f32 0.0, %v404
  %406 = vmatprep.mubr.bf16.mxu0 0
  %407 = vmatmul.mubr.bf16.gmra.mxu0 %v224
  %v408 = vpop.f32.mrf.mxu0
  %v409 = vadd.f32 0.0, %v408
  %v410 = vpop.f32.mrf.mxu0
  %v411 = vadd.f32 0.0, %v410
  %v412 = vpop.f32.mrf.mxu0
  %v413 = vadd.f32 0.0, %v412
  %v414 = vpop.f32.mrf.mxu0
  %v415 = vadd.f32 0.0, %v414
  %416 = vmatprep.mubr.bf16.mxu0 0
  %417 = vmatmul.mubr.bf16.gmra.mxu0 %v227
  %v418 = vpop.f32.mrf.mxu0
  %v419 = vadd.f32 0.0, %v418
  %v420 = vpop.f32.mrf.mxu0
  %v421 = vadd.f32 0.0, %v420
  %v422 = vpop.f32.mrf.mxu0
  %v423 = vadd.f32 0.0, %v422
  %v424 = vpop.f32.mrf.mxu0
  %v425 = vadd.f32 0.0, %v424
  %426 = vmatprep.mubr.bf16.mxu0 0
  %427 = vmatmul.mubr.bf16.gmra.mxu0 %v230
  %v428 = vpop.f32.mrf.mxu0
  %v429 = vadd.f32 0.0, %v428
  %v430 = vpop.f32.mrf.mxu0
  %v431 = vadd.f32 0.0, %v430
  %v432 = vpop.f32.mrf.mxu0
  %v433 = vadd.f32 0.0, %v432
  %v434 = vpop.f32.mrf.mxu0
  %v435 = vadd.f32 0.0, %v434
  %436 = vmatprep.mubr.bf16.mxu0 0
  %437 = vmatmul.mubr.bf16.gmra.mxu0 %v233
  %v438 = vpop.f32.mrf.mxu0
  %v439 = vadd.f32 0.0, %v438
  %v440 = vpop.f32.mrf.mxu0
  %v441 = vadd.f32 0.0, %v440
  %v442 = vpop.f32.mrf.mxu0
  %v443 = vadd.f32 0.0, %v442
  %v444 = vpop.f32.mrf.mxu0
  %v445 = vadd.f32 0.0, %v444
  %446 = vmatprep.mubr.bf16.mxu0 0
  %447 = vmatmul.mubr.bf16.gmra.mxu0 %v236
  %v448 = vpop.f32.mrf.mxu0
  %v449 = vadd.f32 0.0, %v448
  %v450 = vpop.f32.mrf.mxu0
  %v451 = vadd.f32 0.0, %v450
  %v452 = vpop.f32.mrf.mxu0
  %v453 = vadd.f32 0.0, %v452
  %v454 = vpop.f32.mrf.mxu0
  %v455 = vadd.f32 0.0, %v454
  %456 = vmatprep.mubr.bf16.mxu0 0
  %457 = vmatmul.mubr.bf16.gmra.mxu0 %v239
  %v458 = vpop.f32.mrf.mxu0
  %v459 = vadd.f32 0.0, %v458
  %v460 = vpop.f32.mrf.mxu0
  %v461 = vadd.f32 0.0, %v460
  %v462 = vpop.f32.mrf.mxu0
  %v463 = vadd.f32 0.0, %v462
  %v464 = vpop.f32.mrf.mxu0
  %v465 = vadd.f32 0.0, %v464
  %466 = vdwg.mxu0
  %467 = vst [vmem:[%s4] sm:$0xff] %v276
  %468 = vst [vmem:[%s4 + $0x8] sm:$0xff] %v278
  %469 = vst [vmem:[%s4 + $0x10] sm:$0xff] %v389
  %470 = vst [vmem:[%s4 + $0x18] sm:$0xff] %v391
  %471 = vst [vmem:[%s4 + $0x20] sm:$0xff] %v280
  %472 = vst [vmem:[%s4 + $0x28] sm:$0xff] %v282
  %473 = vst [vmem:[%s4 + $0x30] sm:$0xff] %v393
  %474 = vst [vmem:[%s4 + $0x38] sm:$0xff] %v395
  %475 = vst [vmem:[%s4 + $0x40] sm:$0xff] %v286
  %476 = vst [vmem:[%s4 + $0x48] sm:$0xff] %v288
  %477 = vst [vmem:[%s4 + $0x50] sm:$0xff] %v399
  %478 = vst [vmem:[%s4 + $0x58] sm:$0xff] %v401
  %479 = vst [vmem:[%s4 + $0x60] sm:$0xff] %v290
  %480 = vst [vmem:[%s4 + $0x68] sm:$0xff] %v292
  %481 = vst [vmem:[%s4 + $0x70] sm:$0xff] %v403
  %482 = vst [vmem:[%s4 + $0x78] sm:$0xff] %v405
  %483 = vst [vmem:[%s4 + $0x80] sm:$0xff] %v296
  %484 = vst [vmem:[%s4 + $0x88] sm:$0xff] %v298
  %485 = vst [vmem:[%s4 + $0x90] sm:$0xff] %v409
  %486 = vst [vmem:[%s4 + $0x98] sm:$0xff] %v411
  %487 = vst [vmem:[%s4 + $0xa0] sm:$0xff] %v300
  %488 = vst [vmem:[%s4 + $0xa8] sm:$0xff] %v302
  %489 = vst [vmem:[%s4 + $0xb0] sm:$0xff] %v413
  %490 = vst [vmem:[%s4 + $0xb8] sm:$0xff] %v415
  %491 = vst [vmem:[%s4 + $0xc0] sm:$0xff] %v306
  %492 = vst [vmem:[%s4 + $0xc8] sm:$0xff] %v308
  %493 = vst [vmem:[%s4 + $0xd0] sm:$0xff] %v419
  %494 = vst [vmem:[%s4 + $0xd8] sm:$0xff] %v421
  %495 = vst [vmem:[%s4 + $0xe0] sm:$0xff] %v310
  %496 = vst [vmem:[%s4 + $0xe8] sm:$0xff] %v312
  %497 = vst [vmem:[%s4 + $0xf0] sm:$0xff] %v423
  %498 = vst [vmem:[%s4 + $0xf8] sm:$0xff] %v425
  %499 = vst [vmem:[%s4 + $0x100] sm:$0xff] %v316
  %500 = vst [vmem:[%s4 + $0x108] sm:$0xff] %v318
  %501 = vst [vmem:[%s4 + $0x110] sm:$0xff] %v429
  %502 = vst [vmem:[%s4 + $0x118] sm:$0xff] %v431
  %503 = vst [vmem:[%s4 + $0x120] sm:$0xff] %v320
  %504 = vst [vmem:[%s4 + $0x128] sm:$0xff] %v322
  %505 = vst [vmem:[%s4 + $0x130] sm:$0xff] %v433
  %506 = vst [vmem:[%s4 + $0x138] sm:$0xff] %v435
  %507 = vst [vmem:[%s4 + $0x140] sm:$0xff] %v326
  %508 = vst [vmem:[%s4 + $0x148] sm:$0xff] %v328
  %509 = vst [vmem:[%s4 + $0x150] sm:$0xff] %v439
  %510 = vst [vmem:[%s4 + $0x158] sm:$0xff] %v441
  %511 = vst [vmem:[%s4 + $0x160] sm:$0xff] %v330
  %512 = vst [vmem:[%s4 + $0x168] sm:$0xff] %v332
  %513 = vst [vmem:[%s4 + $0x170] sm:$0xff] %v443
  %514 = vst [vmem:[%s4 + $0x178] sm:$0xff] %v445
  %515 = vst [vmem:[%s4 + $0x180] sm:$0xff] %v336
  %516 = vst [vmem:[%s4 + $0x188] sm:$0xff] %v338
  %517 = vst [vmem:[%s4 + $0x190] sm:$0xff] %v449
  %518 = vst [vmem:[%s4 + $0x198] sm:$0xff] %v451
  %519 = vst [vmem:[%s4 + $0x1a0] sm:$0xff] %v340
  %520 = vst [vmem:[%s4 + $0x1a8] sm:$0xff] %v342
  %521 = vst [vmem:[%s4 + $0x1b0] sm:$0xff] %v453
  %522 = vst [vmem:[%s4 + $0x1b8] sm:$0xff] %v455
  %523 = vst [vmem:[%s4 + $0x1c0] sm:$0xff] %v346
  %524 = vst [vmem:[%s4 + $0x1c8] sm:$0xff] %v348
  %525 = vst [vmem:[%s4 + $0x1d0] sm:$0xff] %v459
  %526 = vst [vmem:[%s4 + $0x1d8] sm:$0xff] %v461
  %527 = vst [vmem:[%s4 + $0x1e0] sm:$0xff] %v350
  %528 = vst [vmem:[%s4 + $0x1e8] sm:$0xff] %v352
  %529 = vst [vmem:[%s4 + $0x1f0] sm:$0xff] %v463
  %530 = vst [vmem:[%s4 + $0x1f8] sm:$0xff] %v465
  // Predicated region
  $region18: #{generator_forward.14} parent=0 // pred_check
    _
  $region19: #{generator_forward.14} parent=0 // pred_check_branch
    %532 = sbr.rel (0) target = $region21
  $region20: #{generator_forward.14} parent=0 // pred_region
    _
  $region21: #{generator_forward.14} parent=0 // pred_fallthru
    _
  // Predicated region
  $region22: #{generator_forward.14} parent=0 // pred_check
    _
  $region23: #{generator_forward.14} parent=0 // pred_check_branch
    %534 = sbr.rel (0) target = $region25
  $region24: #{generator_forward.14} parent=0 // pred_region
    _
  $region25: #{generator_forward.14} parent=0 // pred_fallthru
    _

// kernel: generator_forward.15
$region0: #{generator_forward.15}
  #allocation0 [shape = 'u32[]', space=smem, size = 0x4, offset = 0x4, fixed_abs, tag = 'smem constant byte address 0x4 - core index']
  #allocation1 [shape = 'u32[144,128]{1,0:T(1,128)}', space=vmem, size = 0x12000, scoped, tag = 'internal scratch']
  %s0 = inlined_call_operand.vmem [shape: bf16[512,32], index: 0, kind: input, shape index: {}]
  %s1 = inlined_call_operand.vmem [shape: f32[1,1,32], index: 1, kind: output, shape index: {0}]
  %s2 = inlined_call_operand.vmem [shape: f32[1,1,32], index: 2, kind: output, shape index: {1}]
  %3 = xla_tuple %s1, %s2
  %s4 = sld [smem:[#allocation0]]
  $region22: #{generator_forward.15} parent=0
    _
  %s6 = ssub.s32 1, %s4
  %s7 = scalar_select 0, %s6, %s4
  // Predicated region
  $region2: #{generator_forward.15} parent=0 // pred_check
    _
  $region3: #{generator_forward.15} parent=0 // pred_check_branch
    %9 = sbr.rel (0) target = $region5
  $region4: #{generator_forward.15} parent=0 // pred_region
    _
  $region5: #{generator_forward.15} parent=0 // pred_fallthru
    _
  %v10 = vld [vmem:[%s0] sm:$0xf]
  %v11 = vld [vmem:[%s0 + $0x4] sm:$0xf]
  %v12 = vld [vmem:[%s0 + $0x8] sm:$0xf]
  %v13 = vld [vmem:[%s0 + $0xc] sm:$0xf]
  %v14 = vld [vmem:[%s0 + $0x10] sm:$0xf]
  %v15 = vld [vmem:[%s0 + $0x14] sm:$0xf]
  %v16 = vld [vmem:[%s0 + $0x18] sm:$0xf]
  %v17 = vld [vmem:[%s0 + $0x1c] sm:$0xf]
  %v18 = vld [vmem:[%s0 + $0x20] sm:$0xf]
  %v19 = vld [vmem:[%s0 + $0x24] sm:$0xf]
  %v20 = vld [vmem:[%s0 + $0x28] sm:$0xf]
  %v21 = vld [vmem:[%s0 + $0x2c] sm:$0xf]
  %v22 = vld [vmem:[%s0 + $0x30] sm:$0xf]
  %v23 = vld [vmem:[%s0 + $0x34] sm:$0xf]
  %v24 = vld [vmem:[%s0 + $0x38] sm:$0xf]
  %v25 = vld [vmem:[%s0 + $0x3c] sm:$0xf]
  %v26 = vld [vmem:[%s0 + $0x40] sm:$0xf]
  %v27 = vld [vmem:[%s0 + $0x44] sm:$0xf]
  %v28 = vld [vmem:[%s0 + $0x48] sm:$0xf]
  %v29 = vld [vmem:[%s0 + $0x4c] sm:$0xf]
  %v30 = vld [vmem:[%s0 + $0x50] sm:$0xf]
  %v31 = vld [vmem:[%s0 + $0x54] sm:$0xf]
  %v32 = vld [vmem:[%s0 + $0x58] sm:$0xf]
  %v33 = vld [vmem:[%s0 + $0x5c] sm:$0xf]
  %v34 = vld [vmem:[%s0 + $0x60] sm:$0xf]
  %v35 = vld [vmem:[%s0 + $0x64] sm:$0xf]
  %v36 = vld [vmem:[%s0 + $0x68] sm:$0xf]
  %v37 = vld [vmem:[%s0 + $0x6c] sm:$0xf]
  %v38 = vld [vmem:[%s0 + $0x70] sm:$0xf]
  %v39 = vld [vmem:[%s0 + $0x74] sm:$0xf]
  %v40 = vld [vmem:[%s0 + $0x78] sm:$0xf]
  %v41 = vld [vmem:[%s0 + $0x7c] sm:$0xf]
  %v42 = vld [vmem:[%s0 + $0x80] sm:$0xf]
  %v43 = vld [vmem:[%s0 + $0x84] sm:$0xf]
  %v44 = vld [vmem:[%s0 + $0x88] sm:$0xf]
  %v45 = vld [vmem:[%s0 + $0x8c] sm:$0xf]
  %v46 = vld [vmem:[%s0 + $0x90] sm:$0xf]
  %v47 = vld [vmem:[%s0 + $0x94] sm:$0xf]
  %v48 = vld [vmem:[%s0 + $0x98] sm:$0xf]
  %v49 = vld [vmem:[%s0 + $0x9c] sm:$0xf]
  %v50 = vld [vmem:[%s0 + $0xa0] sm:$0xf]
  %v51 = vld [vmem:[%s0 + $0xa4] sm:$0xf]
  %v52 = vld [vmem:[%s0 + $0xa8] sm:$0xf]
  %v53 = vld [vmem:[%s0 + $0xac] sm:$0xf]
  %v54 = vld [vmem:[%s0 + $0xb0] sm:$0xf]
  %v55 = vld [vmem:[%s0 + $0xb4] sm:$0xf]
  %v56 = vld [vmem:[%s0 + $0xb8] sm:$0xf]
  %v57 = vld [vmem:[%s0 + $0xbc] sm:$0xf]
  %v58 = vld [vmem:[%s0 + $0xc0] sm:$0xf]
  %v59 = vld [vmem:[%s0 + $0xc4] sm:$0xf]
  %v60 = vld [vmem:[%s0 + $0xc8] sm:$0xf]
  %v61 = vld [vmem:[%s0 + $0xcc] sm:$0xf]
  %v62 = vld [vmem:[%s0 + $0xd0] sm:$0xf]
  %v63 = vld [vmem:[%s0 + $0xd4] sm:$0xf]
  %v64 = vld [vmem:[%s0 + $0xd8] sm:$0xf]
  %v65 = vld [vmem:[%s0 + $0xdc] sm:$0xf]
  %v66 = vld [vmem:[%s0 + $0xe0] sm:$0xf]
  %v67 = vld [vmem:[%s0 + $0xe4] sm:$0xf]
  %v68 = vld [vmem:[%s0 + $0xe8] sm:$0xf]
  %v69 = vld [vmem:[%s0 + $0xec] sm:$0xf]
  %v70 = vld [vmem:[%s0 + $0xf0] sm:$0xf]
  %v71 = vld [vmem:[%s0 + $0xf4] sm:$0xf]
  %v72 = vld [vmem:[%s0 + $0xf8] sm:$0xf]
  %v73 = vld [vmem:[%s0 + $0xfc] sm:$0xf]
  %v74 = vunpack.c.l.bf16 %v10
  %v75 = vunpack.c.l.bf16 %v11
  %v76 = vunpack.c.l.bf16 %v12
  %v77 = vunpack.c.l.bf16 %v13
  %v78 = vunpack.c.l.bf16 %v14
  %v79 = vunpack.c.l.bf16 %v15
  %v80 = vunpack.c.l.bf16 %v16
  %v81 = vunpack.c.l.bf16 %v17
  %v82 = vunpack.c.l.bf16 %v18
  %v83 = vunpack.c.l.bf16 %v19
  %v84 = vunpack.c.l.bf16 %v20
  %v85 = vunpack.c.l.bf16 %v21
  %v86 = vunpack.c.l.bf16 %v22
  %v87 = vunpack.c.l.bf16 %v23
  %v88 = vunpack.c.l.bf16 %v24
  %v89 = vunpack.c.l.bf16 %v25
  %v90 = vunpack.c.l.bf16 %v26
  %v91 = vunpack.c.l.bf16 %v27
  %v92 = vunpack.c.l.bf16 %v28
  %v93 = vunpack.c.l.bf16 %v29
  %v94 = vunpack.c.l.bf16 %v30
  %v95 = vunpack.c.l.bf16 %v31
  %v96 = vunpack.c.l.bf16 %v32
  %v97 = vunpack.c.l.bf16 %v33
  %v98 = vunpack.c.l.bf16 %v34
  %v99 = vunpack.c.l.bf16 %v35
  %v100 = vunpack.c.l.bf16 %v36
  %v101 = vunpack.c.l.bf16 %v37
  %v102 = vunpack.c.l.bf16 %v38
  %v103 = vunpack.c.l.bf16 %v39
  %v104 = vunpack.c.l.bf16 %v40
  %v105 = vunpack.c.l.bf16 %v41
  %v106 = vunpack.c.l.bf16 %v42
  %v107 = vunpack.c.l.bf16 %v43
  %v108 = vunpack.c.l.bf16 %v44
  %v109 = vunpack.c.l.bf16 %v45
  %v110 = vunpack.c.l.bf16 %v46
  %v111 = vunpack.c.l.bf16 %v47
  %v112 = vunpack.c.l.bf16 %v48
  %v113 = vunpack.c.l.bf16 %v49
  %v114 = vunpack.c.l.bf16 %v50
  %v115 = vunpack.c.l.bf16 %v51
  %v116 = vunpack.c.l.bf16 %v52
  %v117 = vunpack.c.l.bf16 %v53
  %v118 = vunpack.c.l.bf16 %v54
  %v119 = vunpack.c.l.bf16 %v55
  %v120 = vunpack.c.l.bf16 %v56
  %v121 = vunpack.c.l.bf16 %v57
  %v122 = vunpack.c.l.bf16 %v58
  %v123 = vunpack.c.l.bf16 %v59
  %v124 = vunpack.c.l.bf16 %v60
  %v125 = vunpack.c.l.bf16 %v61
  %v126 = vunpack.c.l.bf16 %v62
  %v127 = vunpack.c.l.bf16 %v63
  %v128 = vunpack.c.l.bf16 %v64
  %v129 = vunpack.c.l.bf16 %v65
  %v130 = vunpack.c.l.bf16 %v66
  %v131 = vunpack.c.l.bf16 %v67
  %v132 = vunpack.c.l.bf16 %v68
  %v133 = vunpack.c.l.bf16 %v69
  %v134 = vunpack.c.l.bf16 %v70
  %v135 = vunpack.c.l.bf16 %v71
  %v136 = vunpack.c.l.bf16 %v72
  %v137 = vunpack.c.l.bf16 %v73
  %vm138 = vcmask 261120
  %v139 = vsel %vm138, %v74, 0.0
  %v140 = vsel %vm138, %v75, 0.0
  %v141 = vadd.f32 %v139, %v140
  %v142 = vsel %vm138, %v76, 0.0
  %v143 = vadd.f32 %v141, %v142
  %v144 = vsel %vm138, %v77, 0.0
  %v145 = vadd.f32 %v143, %v144
  %v146 = vsel %vm138, %v78, 0.0
  %v147 = vadd.f32 %v145, %v146
  %v148 = vsel %vm138, %v79, 0.0
  %v149 = vadd.f32 %v147, %v148
  %v150 = vsel %vm138, %v80, 0.0
  %v151 = vadd.f32 %v149, %v150
  %v152 = vsel %vm138, %v81, 0.0
  %v153 = vadd.f32 %v151, %v152
  %v154 = vsel %vm138, %v82, 0.0
  %v155 = vadd.f32 %v153, %v154
  %v156 = vsel %vm138, %v83, 0.0
  %v157 = vadd.f32 %v155, %v156
  %v158 = vsel %vm138, %v84, 0.0
  %v159 = vadd.f32 %v157, %v158
  %v160 = vsel %vm138, %v85, 0.0
  %v161 = vadd.f32 %v159, %v160
  %v162 = vsel %vm138, %v86, 0.0
  %v163 = vadd.f32 %v161, %v162
  %v164 = vsel %vm138, %v87, 0.0
  %v165 = vadd.f32 %v163, %v164
  %v166 = vsel %vm138, %v88, 0.0
  %v167 = vadd.f32 %v165, %v166
  %v168 = vsel %vm138, %v89, 0.0
  %v169 = vadd.f32 %v167, %v168
  %v170 = vsel %vm138, %v90, 0.0
  %v171 = vadd.f32 %v169, %v170
  %v172 = vsel %vm138, %v91, 0.0
  %v173 = vadd.f32 %v171, %v172
  %v174 = vsel %vm138, %v92, 0.0
  %v175 = vadd.f32 %v173, %v174
  %v176 = vsel %vm138, %v93, 0.0
  %v177 = vadd.f32 %v175, %v176
  %v178 = vsel %vm138, %v94, 0.0
  %v179 = vadd.f32 %v177, %v178
  %v180 = vsel %vm138, %v95, 0.0
  %v181 = vadd.f32 %v179, %v180
  %v182 = vsel %vm138, %v96, 0.0
  %v183 = vadd.f32 %v181, %v182
  %v184 = vsel %vm138, %v97, 0.0
  %v185 = vadd.f32 %v183, %v184
  %v186 = vsel %vm138, %v98, 0.0
  %v187 = vadd.f32 %v185, %v186
  %v188 = vsel %vm138, %v99, 0.0
  %v189 = vadd.f32 %v187, %v188
  %v190 = vsel %vm138, %v100, 0.0
  %v191 = vadd.f32 %v189, %v190
  %v192 = vsel %vm138, %v101, 0.0
  %v193 = vadd.f32 %v191, %v192
  %v194 = vsel %vm138, %v102, 0.0
  %v195 = vadd.f32 %v193, %v194
  %v196 = vsel %vm138, %v103, 0.0
  %v197 = vadd.f32 %v195, %v196
  %v198 = vsel %vm138, %v104, 0.0
  %v199 = vadd.f32 %v197, %v198
  %v200 = vsel %vm138, %v105, 0.0
  %v201 = vadd.f32 %v199, %v200
  %v202 = vsel %vm138, %v106, 0.0
  %v203 = vadd.f32 %v201, %v202
  %v204 = vsel %vm138, %v107, 0.0
  %v205 = vadd.f32 %v203, %v204
  %v206 = vsel %vm138, %v108, 0.0
  %v207 = vadd.f32 %v205, %v206
  %v208 = vsel %vm138, %v109, 0.0
  %v209 = vadd.f32 %v207, %v208
  %v210 = vsel %vm138, %v110, 0.0
  %v211 = vadd.f32 %v209, %v210
  %v212 = vsel %vm138, %v111, 0.0
  %v213 = vadd.f32 %v211, %v212
  %v214 = vsel %vm138, %v112, 0.0
  %v215 = vadd.f32 %v213, %v214
  %v216 = vsel %vm138, %v113, 0.0
  %v217 = vadd.f32 %v215, %v216
  %v218 = vsel %vm138, %v114, 0.0
  %v219 = vadd.f32 %v217, %v218
  %v220 = vsel %vm138, %v115, 0.0
  %v221 = vadd.f32 %v219, %v220
  %v222 = vsel %vm138, %v116, 0.0
  %v223 = vadd.f32 %v221, %v222
  %v224 = vsel %vm138, %v117, 0.0
  %v225 = vadd.f32 %v223, %v224
  %v226 = vsel %vm138, %v118, 0.0
  %v227 = vadd.f32 %v225, %v226
  %v228 = vsel %vm138, %v119, 0.0
  %v229 = vadd.f32 %v227, %v228
  %v230 = vsel %vm138, %v120, 0.0
  %v231 = vadd.f32 %v229, %v230
  %v232 = vsel %vm138, %v121, 0.0
  %v233 = vadd.f32 %v231, %v232
  %v234 = vsel %vm138, %v122, 0.0
  %v235 = vadd.f32 %v233, %v234
  %v236 = vsel %vm138, %v123, 0.0
  %v237 = vadd.f32 %v235, %v236
  %v238 = vsel %vm138, %v124, 0.0
  %v239 = vadd.f32 %v237, %v238
  %v240 = vsel %vm138, %v125, 0.0
  %v241 = vadd.f32 %v239, %v240
  %v242 = vsel %vm138, %v126, 0.0
  %v243 = vadd.f32 %v241, %v242
  %v244 = vsel %vm138, %v127, 0.0
  %v245 = vadd.f32 %v243, %v244
  %v246 = vsel %vm138, %v128, 0.0
  %v247 = vadd.f32 %v245, %v246
  %v248 = vsel %vm138, %v129, 0.0
  %v249 = vadd.f32 %v247, %v248
  %v250 = vsel %vm138, %v130, 0.0
  %v251 = vadd.f32 %v249, %v250
  %v252 = vsel %vm138, %v131, 0.0
  %v253 = vadd.f32 %v251, %v252
  %v254 = vsel %vm138, %v132, 0.0
  %v255 = vadd.f32 %v253, %v254
  %v256 = vsel %vm138, %v133, 0.0
  %v257 = vadd.f32 %v255, %v256
  %v258 = vsel %vm138, %v134, 0.0
  %v259 = vadd.f32 %v257, %v258
  %v260 = vsel %vm138, %v135, 0.0
  %v261 = vadd.f32 %v259, %v260
  %v262 = vsel %vm138, %v136, 0.0
  %v263 = vadd.f32 %v261, %v262
  %v264 = vsel %vm138, %v137, 0.0
  %v265 = vadd.f32 %v263, %v264
  %v266 = vrot.slane %v265, 4
  %v267 = vadd.f32 %v265, %v266
  %v268 = vrot.slane %v267, 2
  %v269 = vadd.f32 %v267, %v268
  %v270 = vrot.slane %v269, 1
  %v271 = vadd.f32 %v269, %v270
  %vm272 = vcmask 253952
  %273 = vst.msk [vmem:[%s1] sm:$0x1] %vm272, %v271
  %v274 = vmul.f32 %v74, %v74
  %v275 = vmul.f32 %v75, %v75
  %v276 = vmul.f32 %v76, %v76
  %v277 = vmul.f32 %v77, %v77
  %v278 = vmul.f32 %v78, %v78
  %v279 = vmul.f32 %v79, %v79
  %v280 = vmul.f32 %v80, %v80
  %v281 = vmul.f32 %v81, %v81
  %v282 = vmul.f32 %v82, %v82
  %v283 = vmul.f32 %v83, %v83
  %v284 = vmul.f32 %v84, %v84
  %v285 = vmul.f32 %v85, %v85
  %v286 = vmul.f32 %v86, %v86
  %v287 = vmul.f32 %v87, %v87
  %v288 = vmul.f32 %v88, %v88
  %v289 = vmul.f32 %v89, %v89
  %v290 = vmul.f32 %v90, %v90
  %v291 = vmul.f32 %v91, %v91
  %v292 = vmul.f32 %v92, %v92
  %v293 = vmul.f32 %v93, %v93
  %v294 = vmul.f32 %v94, %v94
  %v295 = vmul.f32 %v95, %v95
  %v296 = vmul.f32 %v96, %v96
  %v297 = vmul.f32 %v97, %v97
  %v298 = vmul.f32 %v98, %v98
  %v299 = vmul.f32 %v99, %v99
  %v300 = vmul.f32 %v100, %v100
  %v301 = vmul.f32 %v101, %v101
  %v302 = vmul.f32 %v102, %v102
  %v303 = vmul.f32 %v103, %v103
  %v304 = vmul.f32 %v104, %v104
  %v305 = vmul.f32 %v105, %v105
  %v306 = vmul.f32 %v106, %v106
  %v307 = vmul.f32 %v107, %v107
  %v308 = vmul.f32 %v108, %v108
  %v309 = vmul.f32 %v109, %v109
  %v310 = vmul.f32 %v110, %v110
  %v311 = vmul.f32 %v111, %v111
  %v312 = vmul.f32 %v112, %v112
  %v313 = vmul.f32 %v113, %v113
  %v314 = vmul.f32 %v114, %v114
  %v315 = vmul.f32 %v115, %v115
  %v316 = vmul.f32 %v116, %v116
  %v317 = vmul.f32 %v117, %v117
  %v318 = vmul.f32 %v118, %v118
  %v319 = vmul.f32 %v119, %v119
  %v320 = vmul.f32 %v120, %v120
  %v321 = vmul.f32 %v121, %v121
  %v322 = vmul.f32 %v122, %v122
  %v323 = vmul.f32 %v123, %v123
  %v324 = vmul.f32 %v124, %v124
  %v325 = vmul.f32 %v125, %v125
  %v326 = vmul.f32 %v126, %v126
  %v327 = vmul.f32 %v127, %v127
  %v328 = vmul.f32 %v128, %v128
  %v329 = vmul.f32 %v129, %v129
  %v330 = vmul.f32 %v130, %v130
  %v331 = vmul.f32 %v131, %v131
  %v332 = vmul.f32 %v132, %v132
  %v333 = vmul.f32 %v133, %v133
  %v334 = vmul.f32 %v134, %v134
  %v335 = vmul.f32 %v135, %v135
  %v336 = vmul.f32 %v136, %v136
  %v337 = vmul.f32 %v137, %v137
  %v338 = vsel %vm138, %v274, 0.0
  %v339 = vsel %vm138, %v275, 0.0
  %v340 = vadd.f32 %v338, %v339
  %v341 = vsel %vm138, %v276, 0.0
  %v342 = vadd.f32 %v340, %v341
  %v343 = vsel %vm138, %v277, 0.0
  %v344 = vadd.f32 %v342, %v343
  %v345 = vsel %vm138, %v278, 0.0
  %v346 = vadd.f32 %v344, %v345
  %v347 = vsel %vm138, %v279, 0.0
  %v348 = vadd.f32 %v346, %v347
  %v349 = vsel %vm138, %v280, 0.0
  %v350 = vadd.f32 %v348, %v349
  %v351 = vsel %vm138, %v281, 0.0
  %v352 = vadd.f32 %v350, %v351
  %v353 = vsel %vm138, %v282, 0.0
  %v354 = vadd.f32 %v352, %v353
  %v355 = vsel %vm138, %v283, 0.0
  %v356 = vadd.f32 %v354, %v355
  %v357 = vsel %vm138, %v284, 0.0
  %v358 = vadd.f32 %v356, %v357
  %v359 = vsel %vm138, %v285, 0.0
  %v360 = vadd.f32 %v358, %v359
  %v361 = vsel %vm138, %v286, 0.0
  %v362 = vadd.f32 %v360, %v361
  %v363 = vsel %vm138, %v287, 0.0
  %v364 = vadd.f32 %v362, %v363
  %v365 = vsel %vm138, %v288, 0.0
  %v366 = vadd.f32 %v364, %v365
  %v367 = vsel %vm138, %v289, 0.0
  %v368 = vadd.f32 %v366, %v367
  %v369 = vsel %vm138, %v290, 0.0
  %v370 = vadd.f32 %v368, %v369
  %v371 = vsel %vm138, %v291, 0.0
  %v372 = vadd.f32 %v370, %v371
  %v373 = vsel %vm138, %v292, 0.0
  %v374 = vadd.f32 %v372, %v373
  %v375 = vsel %vm138, %v293, 0.0
  %v376 = vadd.f32 %v374, %v375
  %v377 = vsel %vm138, %v294, 0.0
  %v378 = vadd.f32 %v376, %v377
  %v379 = vsel %vm138, %v295, 0.0
  %v380 = vadd.f32 %v378, %v379
  %v381 = vsel %vm138, %v296, 0.0
  %v382 = vadd.f32 %v380, %v381
  %v383 = vsel %vm138, %v297, 0.0
  %v384 = vadd.f32 %v382, %v383
  %v385 = vsel %vm138, %v298, 0.0
  %v386 = vadd.f32 %v384, %v385
  %v387 = vsel %vm138, %v299, 0.0
  %v388 = vadd.f32 %v386, %v387
  %v389 = vsel %vm138, %v300, 0.0
  %v390 = vadd.f32 %v388, %v389
  %v391 = vsel %vm138, %v301, 0.0
  %v392 = vadd.f32 %v390, %v391
  %v393 = vsel %vm138, %v302, 0.0
  %v394 = vadd.f32 %v392, %v393
  %v395 = vsel %vm138, %v303, 0.0
  %v396 = vadd.f32 %v394, %v395
  %v397 = vsel %vm138, %v304, 0.0
  %v398 = vadd.f32 %v396, %v397
  %v399 = vsel %vm138, %v305, 0.0
  %v400 = vadd.f32 %v398, %v399
  %v401 = vsel %vm138, %v306, 0.0
  %v402 = vadd.f32 %v400, %v401
  %v403 = vsel %vm138, %v307, 0.0
  %v404 = vadd.f32 %v402, %v403
  %v405 = vsel %vm138, %v308, 0.0
  %v406 = vadd.f32 %v404, %v405
  %v407 = vsel %vm138, %v309, 0.0
  %v408 = vadd.f32 %v406, %v407
  %v409 = vsel %vm138, %v310, 0.0
  %v410 = vadd.f32 %v408, %v409
  %v411 = vsel %vm138, %v311, 0.0
  %v412 = vadd.f32 %v410, %v411
  %v413 = vsel %vm138, %v312, 0.0
  %v414 = vadd.f32 %v412, %v413
  %v415 = vsel %vm138, %v313, 0.0
  %v416 = vadd.f32 %v414, %v415
  %v417 = vsel %vm138, %v314, 0.0
  %v418 = vadd.f32 %v416, %v417
  %v419 = vsel %vm138, %v315, 0.0
  %v420 = vadd.f32 %v418, %v419
  %v421 = vsel %vm138, %v316, 0.0
  %v422 = vadd.f32 %v420, %v421
  %v423 = vsel %vm138, %v317, 0.0
  %v424 = vadd.f32 %v422, %v423
  %v425 = vsel %vm138, %v318, 0.0
  %v426 = vadd.f32 %v424, %v425
  %v427 = vsel %vm138, %v319, 0.0
  %v428 = vadd.f32 %v426, %v427
  %v429 = vsel %vm138, %v320, 0.0
  %v430 = vadd.f32 %v428, %v429
  %v431 = vsel %vm138, %v321, 0.0
  %v432 = vadd.f32 %v430, %v431
  %v433 = vsel %vm138, %v322, 0.0
  %v434 = vadd.f32 %v432, %v433
  %v435 = vsel %vm138, %v323, 0.0
  %v436 = vadd.f32 %v434, %v435
  %v437 = vsel %vm138, %v324, 0.0
  %v438 = vadd.f32 %v436, %v437
  %v439 = vsel %vm138, %v325, 0.0
  %v440 = vadd.f32 %v438, %v439
  %v441 = vsel %vm138, %v326, 0.0
  %v442 = vadd.f32 %v440, %v441
  %v443 = vsel %vm138, %v327, 0.0
  %v444 = vadd.f32 %v442, %v443
  %v445 = vsel %vm138, %v328, 0.0
  %v446 = vadd.f32 %v444, %v445
  %v447 = vsel %vm138, %v329, 0.0
  %v448 = vadd.f32 %v446, %v447
  %v449 = vsel %vm138, %v330, 0.0
  %v450 = vadd.f32 %v448, %v449
  %v451 = vsel %vm138, %v331, 0.0
  %v452 = vadd.f32 %v450, %v451
  %v453 = vsel %vm138, %v332, 0.0
  %v454 = vadd.f32 %v452, %v453
  %v455 = vsel %vm138, %v333, 0.0
  %v456 = vadd.f32 %v454, %v455
  %v457 = vsel %vm138, %v334, 0.0
  %v458 = vadd.f32 %v456, %v457
  %v459 = vsel %vm138, %v335, 0.0
  %v460 = vadd.f32 %v458, %v459
  %v461 = vsel %vm138, %v336, 0.0
  %v462 = vadd.f32 %v460, %v461
  %v463 = vsel %vm138, %v337, 0.0
  %v464 = vadd.f32 %v462, %v463
  %v465 = vrot.slane %v464, 4
  %v466 = vadd.f32 %v464, %v465
  %v467 = vrot.slane %v466, 2
  %v468 = vadd.f32 %v466, %v467
  %v469 = vrot.slane %v468, 1
  %v470 = vadd.f32 %v468, %v469
  %471 = vst.msk [vmem:[%s2] sm:$0x1] %vm272, %v470
  // Predicated region
  $region6: #{generator_forward.15} parent=0 // pred_check
    _
  $region7: #{generator_forward.15} parent=0 // pred_check_branch
    %473 = sbr.rel (0) target = $region9
  $region8: #{generator_forward.15} parent=0 // pred_region
    _
  $region9: #{generator_forward.15} parent=0 // pred_fallthru
    _
  // Predicated region
  $region10: #{generator_forward.15} parent=0 // pred_check
    _
  $region11: #{generator_forward.15} parent=0 // pred_check_branch
    %475 = sbr.rel (0) target = $region13
  $region12: #{generator_forward.15} parent=0 // pred_region
    _
  $region13: #{generator_forward.15} parent=0 // pred_fallthru
    _
  // Predicated region
  $region14: #{generator_forward.15} parent=0 // pred_check
    _
  $region15: #{generator_forward.15} parent=0 // pred_check_branch
    %477 = sbr.rel (0) target = $region17
  $region16: #{generator_forward.15} parent=0 // pred_region
    _
  $region17: #{generator_forward.15} parent=0 // pred_fallthru
    _
  // Predicated region
  $region18: #{generator_forward.15} parent=0 // pred_check
    _
  $region19: #{generator_forward.15} parent=0 // pred_check_branch
    %479 = sbr.rel (0) target = $region21
  $region20: #{generator_forward.15} parent=0 // pred_region
    _
  $region21: #{generator_forward.15} parent=0 // pred_fallthru
    _

// kernel: generator_forward.16
$region0: #{generator_forward.16}
  #allocation0 [shape = 'u32[]', space=smem, size = 0x4, offset = 0x4, fixed_abs, tag = 'smem constant byte address 0x4 - core index']
  #allocation1 [shape = 'u32[144,128]{1,0:T(1,128)}', space=vmem, size = 0x12000, scoped, tag = 'internal scratch']
  %s0 = inlined_call_operand.vmem [shape: bf16[512,32], index: 0, kind: input, shape index: {}]
  %s1 = inlined_call_operand.vmem [shape: f32[1,32], index: 1, kind: input, shape index: {}]
  %s2 = inlined_call_operand.vmem [shape: f32[1,32], index: 2, kind: input, shape index: {}]
  %s3 = inlined_call_operand.vmem [shape: bf16[32,256], index: 3, kind: input, shape index: {}]
  %s4 = inlined_call_operand.vmem [shape: f32[512,256], index: 4, kind: output, shape index: {}]
  %s5 = sld [smem:[#allocation0]]
  $region26: #{generator_forward.16} parent=0
    _
  %s7 = ssub.s32 1, %s5
  %s8 = scalar_select 0, %s7, %s5
  // Predicated region
  $region2: #{generator_forward.16} parent=0 // pred_check
    _
  $region3: #{generator_forward.16} parent=0 // pred_check_branch
    %10 = sbr.rel (0) target = $region5
  $region4: #{generator_forward.16} parent=0 // pred_region
    _
  $region5: #{generator_forward.16} parent=0 // pred_fallthru
    _
  // Predicated region
  $region6: #{generator_forward.16} parent=0 // pred_check
    _
  $region7: #{generator_forward.16} parent=0 // pred_check_branch
    %12 = sbr.rel (0) target = $region9
  $region8: #{generator_forward.16} parent=0 // pred_region
    _
  $region9: #{generator_forward.16} parent=0 // pred_fallthru
    _
  // Predicated region
  $region10: #{generator_forward.16} parent=0 // pred_check
    _
  $region11: #{generator_forward.16} parent=0 // pred_check_branch
    %14 = sbr.rel (0) target = $region13
  $region12: #{generator_forward.16} parent=0 // pred_region
    _
  $region13: #{generator_forward.16} parent=0 // pred_fallthru
    _
  // Predicated region
  $region14: #{generator_forward.16} parent=0 // pred_check
    _
  $region15: #{generator_forward.16} parent=0 // pred_check_branch
    %16 = sbr.rel (0) target = $region17
  $region16: #{generator_forward.16} parent=0 // pred_region
    _
  $region17: #{generator_forward.16} parent=0 // pred_fallthru
    _
  %v18 = vld [vmem:[%s0] sm:$0xf]
  %v19 = vld [vmem:[%s0 + $0x4] sm:$0xf]
  %v20 = vld [vmem:[%s0 + $0x8] sm:$0xf]
  %v21 = vld [vmem:[%s0 + $0xc] sm:$0xf]
  %v22 = vld [vmem:[%s0 + $0x10] sm:$0xf]
  %v23 = vld [vmem:[%s0 + $0x14] sm:$0xf]
  %v24 = vld [vmem:[%s0 + $0x18] sm:$0xf]
  %v25 = vld [vmem:[%s0 + $0x1c] sm:$0xf]
  %v26 = vld [vmem:[%s0 + $0x20] sm:$0xf]
  %v27 = vld [vmem:[%s0 + $0x24] sm:$0xf]
  %v28 = vld [vmem:[%s0 + $0x28] sm:$0xf]
  %v29 = vld [vmem:[%s0 + $0x2c] sm:$0xf]
  %v30 = vld [vmem:[%s0 + $0x30] sm:$0xf]
  %v31 = vld [vmem:[%s0 + $0x34] sm:$0xf]
  %v32 = vld [vmem:[%s0 + $0x38] sm:$0xf]
  %v33 = vld [vmem:[%s0 + $0x3c] sm:$0xf]
  %v34 = vld [vmem:[%s0 + $0x40] sm:$0xf]
  %v35 = vld [vmem:[%s0 + $0x44] sm:$0xf]
  %v36 = vld [vmem:[%s0 + $0x48] sm:$0xf]
  %v37 = vld [vmem:[%s0 + $0x4c] sm:$0xf]
  %v38 = vld [vmem:[%s0 + $0x50] sm:$0xf]
  %v39 = vld [vmem:[%s0 + $0x54] sm:$0xf]
  %v40 = vld [vmem:[%s0 + $0x58] sm:$0xf]
  %v41 = vld [vmem:[%s0 + $0x5c] sm:$0xf]
  %v42 = vld [vmem:[%s0 + $0x60] sm:$0xf]
  %v43 = vld [vmem:[%s0 + $0x64] sm:$0xf]
  %v44 = vld [vmem:[%s0 + $0x68] sm:$0xf]
  %v45 = vld [vmem:[%s0 + $0x6c] sm:$0xf]
  %v46 = vld [vmem:[%s0 + $0x70] sm:$0xf]
  %v47 = vld [vmem:[%s0 + $0x74] sm:$0xf]
  %v48 = vld [vmem:[%s0 + $0x78] sm:$0xf]
  %v49 = vld [vmem:[%s0 + $0x7c] sm:$0xf]
  %v50 = vld [vmem:[%s0 + $0x80] sm:$0xf]
  %v51 = vld [vmem:[%s0 + $0x84] sm:$0xf]
  %v52 = vld [vmem:[%s0 + $0x88] sm:$0xf]
  %v53 = vld [vmem:[%s0 + $0x8c] sm:$0xf]
  %v54 = vld [vmem:[%s0 + $0x90] sm:$0xf]
  %v55 = vld [vmem:[%s0 + $0x94] sm:$0xf]
  %v56 = vld [vmem:[%s0 + $0x98] sm:$0xf]
  %v57 = vld [vmem:[%s0 + $0x9c] sm:$0xf]
  %v58 = vld [vmem:[%s0 + $0xa0] sm:$0xf]
  %v59 = vld [vmem:[%s0 + $0xa4] sm:$0xf]
  %v60 = vld [vmem:[%s0 + $0xa8] sm:$0xf]
  %v61 = vld [vmem:[%s0 + $0xac] sm:$0xf]
  %v62 = vld [vmem:[%s0 + $0xb0] sm:$0xf]
  %v63 = vld [vmem:[%s0 + $0xb4] sm:$0xf]
  %v64 = vld [vmem:[%s0 + $0xb8] sm:$0xf]
  %v65 = vld [vmem:[%s0 + $0xbc] sm:$0xf]
  %v66 = vld [vmem:[%s0 + $0xc0] sm:$0xf]
  %v67 = vld [vmem:[%s0 + $0xc4] sm:$0xf]
  %v68 = vld [vmem:[%s0 + $0xc8] sm:$0xf]
  %v69 = vld [vmem:[%s0 + $0xcc] sm:$0xf]
  %v70 = vld [vmem:[%s0 + $0xd0] sm:$0xf]
  %v71 = vld [vmem:[%s0 + $0xd4] sm:$0xf]
  %v72 = vld [vmem:[%s0 + $0xd8] sm:$0xf]
  %v73 = vld [vmem:[%s0 + $0xdc] sm:$0xf]
  %v74 = vld [vmem:[%s0 + $0xe0] sm:$0xf]
  %v75 = vld [vmem:[%s0 + $0xe4] sm:$0xf]
  %v76 = vld [vmem:[%s0 + $0xe8] sm:$0xf]
  %v77 = vld [vmem:[%s0 + $0xec] sm:$0xf]
  %v78 = vld [vmem:[%s0 + $0xf0] sm:$0xf]
  %v79 = vld [vmem:[%s0 + $0xf4] sm:$0xf]
  %v80 = vld [vmem:[%s0 + $0xf8] sm:$0xf]
  %v81 = vld [vmem:[%s0 + $0xfc] sm:$0xf]
  %v82 = vunpack.c.l.bf16 %v18
  %v83 = vunpack.c.l.bf16 %v19
  %v84 = vunpack.c.l.bf16 %v20
  %v85 = vunpack.c.l.bf16 %v21
  %v86 = vunpack.c.l.bf16 %v22
  %v87 = vunpack.c.l.bf16 %v23
  %v88 = vunpack.c.l.bf16 %v24
  %v89 = vunpack.c.l.bf16 %v25
  %v90 = vunpack.c.l.bf16 %v26
  %v91 = vunpack.c.l.bf16 %v27
  %v92 = vunpack.c.l.bf16 %v28
  %v93 = vunpack.c.l.bf16 %v29
  %v94 = vunpack.c.l.bf16 %v30
  %v95 = vunpack.c.l.bf16 %v31
  %v96 = vunpack.c.l.bf16 %v32
  %v97 = vunpack.c.l.bf16 %v33
  %v98 = vunpack.c.l.bf16 %v34
  %v99 = vunpack.c.l.bf16 %v35
  %v100 = vunpack.c.l.bf16 %v36
  %v101 = vunpack.c.l.bf16 %v37
  %v102 = vunpack.c.l.bf16 %v38
  %v103 = vunpack.c.l.bf16 %v39
  %v104 = vunpack.c.l.bf16 %v40
  %v105 = vunpack.c.l.bf16 %v41
  %v106 = vunpack.c.l.bf16 %v42
  %v107 = vunpack.c.l.bf16 %v43
  %v108 = vunpack.c.l.bf16 %v44
  %v109 = vunpack.c.l.bf16 %v45
  %v110 = vunpack.c.l.bf16 %v46
  %v111 = vunpack.c.l.bf16 %v47
  %v112 = vunpack.c.l.bf16 %v48
  %v113 = vunpack.c.l.bf16 %v49
  %v114 = vunpack.c.l.bf16 %v50
  %v115 = vunpack.c.l.bf16 %v51
  %v116 = vunpack.c.l.bf16 %v52
  %v117 = vunpack.c.l.bf16 %v53
  %v118 = vunpack.c.l.bf16 %v54
  %v119 = vunpack.c.l.bf16 %v55
  %v120 = vunpack.c.l.bf16 %v56
  %v121 = vunpack.c.l.bf16 %v57
  %v122 = vunpack.c.l.bf16 %v58
  %v123 = vunpack.c.l.bf16 %v59
  %v124 = vunpack.c.l.bf16 %v60
  %v125 = vunpack.c.l.bf16 %v61
  %v126 = vunpack.c.l.bf16 %v62
  %v127 = vunpack.c.l.bf16 %v63
  %v128 = vunpack.c.l.bf16 %v64
  %v129 = vunpack.c.l.bf16 %v65
  %v130 = vunpack.c.l.bf16 %v66
  %v131 = vunpack.c.l.bf16 %v67
  %v132 = vunpack.c.l.bf16 %v68
  %v133 = vunpack.c.l.bf16 %v69
  %v134 = vunpack.c.l.bf16 %v70
  %v135 = vunpack.c.l.bf16 %v71
  %v136 = vunpack.c.l.bf16 %v72
  %v137 = vunpack.c.l.bf16 %v73
  %v138 = vunpack.c.l.bf16 %v74
  %v139 = vunpack.c.l.bf16 %v75
  %v140 = vunpack.c.l.bf16 %v76
  %v141 = vunpack.c.l.bf16 %v77
  %v142 = vunpack.c.l.bf16 %v78
  %v143 = vunpack.c.l.bf16 %v79
  %v144 = vunpack.c.l.bf16 %v80
  %v145 = vunpack.c.l.bf16 %v81
  %v146 = vld [vmem:[%s1] sm:$0x1]
  %v148 = vlaneseq
  %v149 = vshrl.u32 %v148, 7
  %v150 = vsub.s32 0, %v149
  %v151 = vrot.slane %v146, %v150
  %v153 = vmul.f32 %v82, %v151
  %v154 = vmul.f32 %v83, %v151
  %v155 = vmul.f32 %v84, %v151
  %v156 = vmul.f32 %v85, %v151
  %v157 = vmul.f32 %v86, %v151
  %v158 = vmul.f32 %v87, %v151
  %v159 = vmul.f32 %v88, %v151
  %v160 = vmul.f32 %v89, %v151
  %v161 = vmul.f32 %v90, %v151
  %v162 = vmul.f32 %v91, %v151
  %v163 = vmul.f32 %v92, %v151
  %v164 = vmul.f32 %v93, %v151
  %v165 = vmul.f32 %v94, %v151
  %v166 = vmul.f32 %v95, %v151
  %v167 = vmul.f32 %v96, %v151
  %v168 = vmul.f32 %v97, %v151
  %v169 = vmul.f32 %v98, %v151
  %v170 = vmul.f32 %v99, %v151
  %v171 = vmul.f32 %v100, %v151
  %v172 = vmul.f32 %v101, %v151
  %v173 = vmul.f32 %v102, %v151
  %v174 = vmul.f32 %v103, %v151
  %v175 = vmul.f32 %v104, %v151
  %v176 = vmul.f32 %v105, %v151
  %v177 = vmul.f32 %v106, %v151
  %v178 = vmul.f32 %v107, %v151
  %v179 = vmul.f32 %v108, %v151
  %v180 = vmul.f32 %v109, %v151
  %v181 = vmul.f32 %v110, %v151
  %v182 = vmul.f32 %v111, %v151
  %v183 = vmul.f32 %v112, %v151
  %v184 = vmul.f32 %v113, %v151
  %v185 = vmul.f32 %v114, %v151
  %v186 = vmul.f32 %v115, %v151
  %v187 = vmul.f32 %v116, %v151
  %v188 = vmul.f32 %v117, %v151
  %v189 = vmul.f32 %v118, %v151
  %v190 = vmul.f32 %v119, %v151
  %v191 = vmul.f32 %v120, %v151
  %v192 = vmul.f32 %v121, %v151
  %v193 = vmul.f32 %v122, %v151
  %v194 = vmul.f32 %v123, %v151
  %v195 = vmul.f32 %v124, %v151
  %v196 = vmul.f32 %v125, %v151
  %v197 = vmul.f32 %v126, %v151
  %v198 = vmul.f32 %v127, %v151
  %v199 = vmul.f32 %v128, %v151
  %v200 = vmul.f32 %v129, %v151
  %v201 = vmul.f32 %v130, %v151
  %v202 = vmul.f32 %v131, %v151
  %v203 = vmul.f32 %v132, %v151
  %v204 = vmul.f32 %v133, %v151
  %v205 = vmul.f32 %v134, %v151
  %v206 = vmul.f32 %v135, %v151
  %v207 = vmul.f32 %v136, %v151
  %v208 = vmul.f32 %v137, %v151
  %v209 = vmul.f32 %v138, %v151
  %v210 = vmul.f32 %v139, %v151
  %v211 = vmul.f32 %v140, %v151
  %v212 = vmul.f32 %v141, %v151
  %v213 = vmul.f32 %v142, %v151
  %v214 = vmul.f32 %v143, %v151
  %v215 = vmul.f32 %v144, %v151
  %v216 = vmul.f32 %v145, %v151
  %v217 = vld [vmem:[%s2] sm:$0x1]
  %v219 = vlaneseq
  %v220 = vshrl.u32 %v219, 7
  %v221 = vsub.s32 0, %v220
  %v222 = vrot.slane %v217, %v221
  %v224 = vadd.f32 %v153, %v222
  %v225 = vadd.f32 %v154, %v222
  %v226 = vadd.f32 %v155, %v222
  %v227 = vadd.f32 %v156, %v222
  %v228 = vadd.f32 %v157, %v222
  %v229 = vadd.f32 %v158, %v222
  %v230 = vadd.f32 %v159, %v222
  %v231 = vadd.f32 %v160, %v222
  %v232 = vadd.f32 %v161, %v222
  %v233 = vadd.f32 %v162, %v222
  %v234 = vadd.f32 %v163, %v222
  %v235 = vadd.f32 %v164, %v222
  %v236 = vadd.f32 %v165, %v222
  %v237 = vadd.f32 %v166, %v222
  %v238 = vadd.f32 %v167, %v222
  %v239 = vadd.f32 %v168, %v222
  %v240 = vadd.f32 %v169, %v222
  %v241 = vadd.f32 %v170, %v222
  %v242 = vadd.f32 %v171, %v222
  %v243 = vadd.f32 %v172, %v222
  %v244 = vadd.f32 %v173, %v222
  %v245 = vadd.f32 %v174, %v222
  %v246 = vadd.f32 %v175, %v222
  %v247 = vadd.f32 %v176, %v222
  %v248 = vadd.f32 %v177, %v222
  %v249 = vadd.f32 %v178, %v222
  %v250 = vadd.f32 %v179, %v222
  %v251 = vadd.f32 %v180, %v222
  %v252 = vadd.f32 %v181, %v222
  %v253 = vadd.f32 %v182, %v222
  %v254 = vadd.f32 %v183, %v222
  %v255 = vadd.f32 %v184, %v222
  %v256 = vadd.f32 %v185, %v222
  %v257 = vadd.f32 %v186, %v222
  %v258 = vadd.f32 %v187, %v222
  %v259 = vadd.f32 %v188, %v222
  %v260 = vadd.f32 %v189, %v222
  %v261 = vadd.f32 %v190, %v222
  %v262 = vadd.f32 %v191, %v222
  %v263 = vadd.f32 %v192, %v222
  %v264 = vadd.f32 %v193, %v222
  %v265 = vadd.f32 %v194, %v222
  %v266 = vadd.f32 %v195, %v222
  %v267 = vadd.f32 %v196, %v222
  %v268 = vadd.f32 %v197, %v222
  %v269 = vadd.f32 %v198, %v222
  %v270 = vadd.f32 %v199, %v222
  %v271 = vadd.f32 %v200, %v222
  %v272 = vadd.f32 %v201, %v222
  %v273 = vadd.f32 %v202, %v222
  %v274 = vadd.f32 %v203, %v222
  %v275 = vadd.f32 %v204, %v222
  %v276 = vadd.f32 %v205, %v222
  %v277 = vadd.f32 %v206, %v222
  %v278 = vadd.f32 %v207, %v222
  %v279 = vadd.f32 %v208, %v222
  %v280 = vadd.f32 %v209, %v222
  %v281 = vadd.f32 %v210, %v222
  %v282 = vadd.f32 %v211, %v222
  %v283 = vadd.f32 %v212, %v222
  %v284 = vadd.f32 %v213, %v222
  %v285 = vadd.f32 %v214, %v222
  %v286 = vadd.f32 %v215, %v222
  %v287 = vadd.f32 %v216, %v222
  %v288 = vmax.f32 %v224, 0.0
  %v289 = vmax.f32 %v225, 0.0
  %v290 = vmax.f32 %v226, 0.0
  %v291 = vmax.f32 %v227, 0.0
  %v292 = vmax.f32 %v228, 0.0
  %v293 = vmax.f32 %v229, 0.0
  %v294 = vmax.f32 %v230, 0.0
  %v295 = vmax.f32 %v231, 0.0
  %v296 = vmax.f32 %v232, 0.0
  %v297 = vmax.f32 %v233, 0.0
  %v298 = vmax.f32 %v234, 0.0
  %v299 = vmax.f32 %v235, 0.0
  %v300 = vmax.f32 %v236, 0.0
  %v301 = vmax.f32 %v237, 0.0
  %v302 = vmax.f32 %v238, 0.0
  %v303 = vmax.f32 %v239, 0.0
  %v304 = vmax.f32 %v240, 0.0
  %v305 = vmax.f32 %v241, 0.0
  %v306 = vmax.f32 %v242, 0.0
  %v307 = vmax.f32 %v243, 0.0
  %v308 = vmax.f32 %v244, 0.0
  %v309 = vmax.f32 %v245, 0.0
  %v310 = vmax.f32 %v246, 0.0
  %v311 = vmax.f32 %v247, 0.0
  %v312 = vmax.f32 %v248, 0.0
  %v313 = vmax.f32 %v249, 0.0
  %v314 = vmax.f32 %v250, 0.0
  %v315 = vmax.f32 %v251, 0.0
  %v316 = vmax.f32 %v252, 0.0
  %v317 = vmax.f32 %v253, 0.0
  %v318 = vmax.f32 %v254, 0.0
  %v319 = vmax.f32 %v255, 0.0
  %v320 = vmax.f32 %v256, 0.0
  %v321 = vmax.f32 %v257, 0.0
  %v322 = vmax.f32 %v258, 0.0
  %v323 = vmax.f32 %v259, 0.0
  %v324 = vmax.f32 %v260, 0.0
  %v325 = vmax.f32 %v261, 0.0
  %v326 = vmax.f32 %v262, 0.0
  %v327 = vmax.f32 %v263, 0.0
  %v328 = vmax.f32 %v264, 0.0
  %v329 = vmax.f32 %v265, 0.0
  %v330 = vmax.f32 %v266, 0.0
  %v331 = vmax.f32 %v267, 0.0
  %v332 = vmax.f32 %v268, 0.0
  %v333 = vmax.f32 %v269, 0.0
  %v334 = vmax.f32 %v270, 0.0
  %v335 = vmax.f32 %v271, 0.0
  %v336 = vmax.f32 %v272, 0.0
  %v337 = vmax.f32 %v273, 0.0
  %v338 = vmax.f32 %v274, 0.0
  %v339 = vmax.f32 %v275, 0.0
  %v340 = vmax.f32 %v276, 0.0
  %v341 = vmax.f32 %v277, 0.0
  %v342 = vmax.f32 %v278, 0.0
  %v343 = vmax.f32 %v279, 0.0
  %v344 = vmax.f32 %v280, 0.0
  %v345 = vmax.f32 %v281, 0.0
  %v346 = vmax.f32 %v282, 0.0
  %v347 = vmax.f32 %v283, 0.0
  %v348 = vmax.f32 %v284, 0.0
  %v349 = vmax.f32 %v285, 0.0
  %v350 = vmax.f32 %v286, 0.0
  %v351 = vmax.f32 %v287, 0.0
  %v352 = vpack.c.bf16 %v289, %v288
  %v353 = vpack.c.bf16 %v291, %v290
  %v354 = vpack.c.bf16 %v293, %v292
  %v355 = vpack.c.bf16 %v295, %v294
  %v356 = vpack.c.bf16 %v297, %v296
  %v357 = vpack.c.bf16 %v299, %v298
  %v358 = vpack.c.bf16 %v301, %v300
  %v359 = vpack.c.bf16 %v303, %v302
  %v360 = vpack.c.bf16 %v305, %v304
  %v361 = vpack.c.bf16 %v307, %v306
  %v362 = vpack.c.bf16 %v309, %v308
  %v363 = vpack.c.bf16 %v311, %v310
  %v364 = vpack.c.bf16 %v313, %v312
  %v365 = vpack.c.bf16 %v315, %v314
  %v366 = vpack.c.bf16 %v317, %v316
  %v367 = vpack.c.bf16 %v319, %v318
  %v368 = vpack.c.bf16 %v321, %v320
  %v369 = vpack.c.bf16 %v323, %v322
  %v370 = vpack.c.bf16 %v325, %v324
  %v371 = vpack.c.bf16 %v327, %v326
  %v372 = vpack.c.bf16 %v329, %v328
  %v373 = vpack.c.bf16 %v331, %v330
  %v374 = vpack.c.bf16 %v333, %v332
  %v375 = vpack.c.bf16 %v335, %v334
  %v376 = vpack.c.bf16 %v337, %v336
  %v377 = vpack.c.bf16 %v339, %v338
  %v378 = vpack.c.bf16 %v341, %v340
  %v379 = vpack.c.bf16 %v343, %v342
  %v380 = vpack.c.bf16 %v345, %v344
  %v381 = vpack.c.bf16 %v347, %v346
  %v382 = vpack.c.bf16 %v349, %v348
  %v383 = vpack.c.bf16 %v351, %v350
  %v384 = vld [vmem:[%s3] sm:$0xff]
  %v385 = vld [vmem:[%s3 + $0x8] sm:$0xff]
  %v386 = vld [vmem:[%s3 + $0x10] sm:$0xff]
  %v387 = vld [vmem:[%s3 + $0x18] sm:$0xff]
  %v392 = vunpack.c.l.b16 %v384
  %v393 = vunpack.c.h.b16 %v384
  %v394 = vunpack.c.l.b16 %v385
  %v395 = vunpack.c.h.b16 %v385
  %v396 = vunpack.c.l.b16 %v386
  %v397 = vunpack.c.h.b16 %v386
  %v398 = vunpack.c.l.b16 %v387
  %v399 = vunpack.c.h.b16 %v387
  %v400 = vpack.c.b16 %v394, %v392
  %v401 = vpack.c.b16 %v395, %v393
  %v402 = vpack.c.b16 %v398, %v396
  %v403 = vpack.c.b16 %v399, %v397
  %vm408 = vcmask 261120
  %v410 = vsel %vm408, %v352, 0
  %v413 = vsel %vm408, %v353, 0
  %v416 = vsel %vm408, %v354, 0
  %v419 = vsel %vm408, %v355, 0
  %v422 = vsel %vm408, %v356, 0
  %v425 = vsel %vm408, %v357, 0
  %v428 = vsel %vm408, %v358, 0
  %v431 = vsel %vm408, %v359, 0
  %v434 = vsel %vm408, %v360, 0
  %v437 = vsel %vm408, %v361, 0
  %v440 = vsel %vm408, %v362, 0
  %v443 = vsel %vm408, %v363, 0
  %v446 = vsel %vm408, %v364, 0
  %v449 = vsel %vm408, %v365, 0
  %v452 = vsel %vm408, %v366, 0
  %v455 = vsel %vm408, %v367, 0
  %v458 = vsel %vm408, %v368, 0
  %v461 = vsel %vm408, %v369, 0
  %v464 = vsel %vm408, %v370, 0
  %v467 = vsel %vm408, %v371, 0
  %v470 = vsel %vm408, %v372, 0
  %v473 = vsel %vm408, %v373, 0
  %v476 = vsel %vm408, %v374, 0
  %v479 = vsel %vm408, %v375, 0
  %v482 = vsel %vm408, %v376, 0
  %v485 = vsel %vm408, %v377, 0
  %v488 = vsel %vm408, %v378, 0
  %v491 = vsel %vm408, %v379, 0
  %v494 = vsel %vm408, %v380, 0
  %v497 = vsel %vm408, %v381, 0
  %v500 = vsel %vm408, %v382, 0
  %v503 = vsel %vm408, %v383, 0
  %505 = vmatprep.subr.bf16.mxu0 0
  %506 = vmatpush1.bf16.msra.mxu0 0
  %507 = vmatprep.subr.bf16.mxu0 0
  %508 = vmatpush1.bf16.msra.mxu0 0
  %509 = vmatprep.subr.bf16.mxu0 0
  %510 = vmatpush1.bf16.msra.mxu0 0
  %511 = vmatprep.subr.bf16.mxu0 0
  %512 = vmatpush1.bf16.msra.mxu0 0
  %513 = vmatprep.subr.bf16.mxu0 0
  %514 = vmatpush1.bf16.msra.mxu0 0
  %515 = vmatprep.subr.bf16.mxu0 0
  %516 = vmatpush1.bf16.msra.mxu0 0
  %517 = vmatprep.subr.bf16.mxu0 %v403
  %518 = vmatpush1.bf16.msra.mxu0 %v402
  %519 = vmatprep.subr.bf16.mxu0 %v401
  %520 = vmatpush1.bf16.msra.mxu0 %v400
  %521 = vmatprep.subr.bf16.mxu0 0
  %522 = vmatpush2.bf16.msra.mxu0 0
  %523 = vmatprep.subr.bf16.mxu0 0
  %524 = vmatpush2.bf16.msra.mxu0 0
  %525 = vmatprep.subr.bf16.mxu0 0
  %526 = vmatpush2.bf16.msra.mxu0 0
  %527 = vmatprep.subr.bf16.mxu0 0
  %528 = vmatpush2.bf16.msra.mxu0 0
  %529 = vmatprep.subr.bf16.mxu0 0
  %530 = vmatpush2.bf16.msra.mxu0 0
  %531 = vmatprep.subr.bf16.mxu0 0
  %532 = vmatpush2.bf16.msra.mxu0 0
  %533 = vmatprep.subr.bf16.mxu0 0
  %534 = vmatpush2.bf16.msra.mxu0 0
  %535 = vmatprep.subr.bf16.mxu0 0
  %536 = vmatpush2.bf16.msra.mxu0 0
  %537 = vmatprep.mubr.bf16.mxu0 0
  %538 = vmatmul.mubr.bf16.gmra.mxu0 %v410
  %v539 = vpop.f32.mrf.mxu0
  %v540 = vadd.f32 0.0, %v539
  %v541 = vpop.f32.mrf.mxu0
  %v542 = vadd.f32 0.0, %v541
  %v543 = vpop.f32.mrf.mxu0
  %v544 = vadd.f32 0.0, %v543
  %v545 = vpop.f32.mrf.mxu0
  %v546 = vadd.f32 0.0, %v545
  %547 = vmatprep.mubr.bf16.mxu0 0
  %548 = vmatmul.mubr.bf16.gmra.mxu0 %v413
  %v549 = vpop.f32.mrf.mxu0
  %v550 = vadd.f32 0.0, %v549
  %v551 = vpop.f32.mrf.mxu0
  %v552 = vadd.f32 0.0, %v551
  %v553 = vpop.f32.mrf.mxu0
  %v554 = vadd.f32 0.0, %v553
  %v555 = vpop.f32.mrf.mxu0
  %v556 = vadd.f32 0.0, %v555
  %557 = vmatprep.mubr.bf16.mxu0 0
  %558 = vmatmul.mubr.bf16.gmra.mxu0 %v416
  %v559 = vpop.f32.mrf.mxu0
  %v560 = vadd.f32 0.0, %v559
  %v561 = vpop.f32.mrf.mxu0
  %v562 = vadd.f32 0.0, %v561
  %v563 = vpop.f32.mrf.mxu0
  %v564 = vadd.f32 0.0, %v563
  %v565 = vpop.f32.mrf.mxu0
  %v566 = vadd.f32 0.0, %v565
  %567 = vmatprep.mubr.bf16.mxu0 0
  %568 = vmatmul.mubr.bf16.gmra.mxu0 %v419
  %v569 = vpop.f32.mrf.mxu0
  %v570 = vadd.f32 0.0, %v569
  %v571 = vpop.f32.mrf.mxu0
  %v572 = vadd.f32 0.0, %v571
  %v573 = vpop.f32.mrf.mxu0
  %v574 = vadd.f32 0.0, %v573
  %v575 = vpop.f32.mrf.mxu0
  %v576 = vadd.f32 0.0, %v575
  %577 = vmatprep.mubr.bf16.mxu0 0
  %578 = vmatmul.mubr.bf16.gmra.mxu0 %v422
  %v579 = vpop.f32.mrf.mxu0
  %v580 = vadd.f32 0.0, %v579
  %v581 = vpop.f32.mrf.mxu0
  %v582 = vadd.f32 0.0, %v581
  %v583 = vpop.f32.mrf.mxu0
  %v584 = vadd.f32 0.0, %v583
  %v585 = vpop.f32.mrf.mxu0
  %v586 = vadd.f32 0.0, %v585
  %587 = vmatprep.mubr.bf16.mxu0 0
  %588 = vmatmul.mubr.bf16.gmra.mxu0 %v425
  %v589 = vpop.f32.mrf.mxu0
  %v590 = vadd.f32 0.0, %v589
  %v591 = vpop.f32.mrf.mxu0
  %v592 = vadd.f32 0.0, %v591
  %v593 = vpop.f32.mrf.mxu0
  %v594 = vadd.f32 0.0, %v593
  %v595 = vpop.f32.mrf.mxu0
  %v596 = vadd.f32 0.0, %v595
  %597 = vmatprep.mubr.bf16.mxu0 0
  %598 = vmatmul.mubr.bf16.gmra.mxu0 %v428
  %v599 = vpop.f32.mrf.mxu0
  %v600 = vadd.f32 0.0, %v599
  %v601 = vpop.f32.mrf.mxu0
  %v602 = vadd.f32 0.0, %v601
  %v603 = vpop.f32.mrf.mxu0
  %v604 = vadd.f32 0.0, %v603
  %v605 = vpop.f32.mrf.mxu0
  %v606 = vadd.f32 0.0, %v605
  %607 = vmatprep.mubr.bf16.mxu0 0
  %608 = vmatmul.mubr.bf16.gmra.mxu0 %v431
  %v609 = vpop.f32.mrf.mxu0
  %v610 = vadd.f32 0.0, %v609
  %v611 = vpop.f32.mrf.mxu0
  %v612 = vadd.f32 0.0, %v611
  %v613 = vpop.f32.mrf.mxu0
  %v614 = vadd.f32 0.0, %v613
  %v615 = vpop.f32.mrf.mxu0
  %v616 = vadd.f32 0.0, %v615
  %617 = vmatprep.mubr.bf16.mxu0 0
  %618 = vmatmul.mubr.bf16.gmra.mxu0 %v434
  %v619 = vpop.f32.mrf.mxu0
  %v620 = vadd.f32 0.0, %v619
  %v621 = vpop.f32.mrf.mxu0
  %v622 = vadd.f32 0.0, %v621
  %v623 = vpop.f32.mrf.mxu0
  %v624 = vadd.f32 0.0, %v623
  %v625 = vpop.f32.mrf.mxu0
  %v626 = vadd.f32 0.0, %v625
  %627 = vmatprep.mubr.bf16.mxu0 0
  %628 = vmatmul.mubr.bf16.gmra.mxu0 %v437
  %v629 = vpop.f32.mrf.mxu0
  %v630 = vadd.f32 0.0, %v629
  %v631 = vpop.f32.mrf.mxu0
  %v632 = vadd.f32 0.0, %v631
  %v633 = vpop.f32.mrf.mxu0
  %v634 = vadd.f32 0.0, %v633
  %v635 = vpop.f32.mrf.mxu0
  %v636 = vadd.f32 0.0, %v635
  %637 = vmatprep.mubr.bf16.mxu0 0
  %638 = vmatmul.mubr.bf16.gmra.mxu0 %v440
  %v639 = vpop.f32.mrf.mxu0
  %v640 = vadd.f32 0.0, %v639
  %v641 = vpop.f32.mrf.mxu0
  %v642 = vadd.f32 0.0, %v641
  %v643 = vpop.f32.mrf.mxu0
  %v644 = vadd.f32 0.0, %v643
  %v645 = vpop.f32.mrf.mxu0
  %v646 = vadd.f32 0.0, %v645
  %647 = vmatprep.mubr.bf16.mxu0 0
  %648 = vmatmul.mubr.bf16.gmra.mxu0 %v443
  %v649 = vpop.f32.mrf.mxu0
  %v650 = vadd.f32 0.0, %v649
  %v651 = vpop.f32.mrf.mxu0
  %v652 = vadd.f32 0.0, %v651
  %v653 = vpop.f32.mrf.mxu0
  %v654 = vadd.f32 0.0, %v653
  %v655 = vpop.f32.mrf.mxu0
  %v656 = vadd.f32 0.0, %v655
  %657 = vmatprep.mubr.bf16.mxu0 0
  %658 = vmatmul.mubr.bf16.gmra.mxu0 %v446
  %v659 = vpop.f32.mrf.mxu0
  %v660 = vadd.f32 0.0, %v659
  %v661 = vpop.f32.mrf.mxu0
  %v662 = vadd.f32 0.0, %v661
  %v663 = vpop.f32.mrf.mxu0
  %v664 = vadd.f32 0.0, %v663
  %v665 = vpop.f32.mrf.mxu0
  %v666 = vadd.f32 0.0, %v665
  %667 = vmatprep.mubr.bf16.mxu0 0
  %668 = vmatmul.mubr.bf16.gmra.mxu0 %v449
  %v669 = vpop.f32.mrf.mxu0
  %v670 = vadd.f32 0.0, %v669
  %v671 = vpop.f32.mrf.mxu0
  %v672 = vadd.f32 0.0, %v671
  %v673 = vpop.f32.mrf.mxu0
  %v674 = vadd.f32 0.0, %v673
  %v675 = vpop.f32.mrf.mxu0
  %v676 = vadd.f32 0.0, %v675
  %677 = vmatprep.mubr.bf16.mxu0 0
  %678 = vmatmul.mubr.bf16.gmra.mxu0 %v452
  %v679 = vpop.f32.mrf.mxu0
  %v680 = vadd.f32 0.0, %v679
  %v681 = vpop.f32.mrf.mxu0
  %v682 = vadd.f32 0.0, %v681
  %v683 = vpop.f32.mrf.mxu0
  %v684 = vadd.f32 0.0, %v683
  %v685 = vpop.f32.mrf.mxu0
  %v686 = vadd.f32 0.0, %v685
  %687 = vmatprep.mubr.bf16.mxu0 0
  %688 = vmatmul.mubr.bf16.gmra.mxu0 %v455
  %v689 = vpop.f32.mrf.mxu0
  %v690 = vadd.f32 0.0, %v689
  %v691 = vpop.f32.mrf.mxu0
  %v692 = vadd.f32 0.0, %v691
  %v693 = vpop.f32.mrf.mxu0
  %v694 = vadd.f32 0.0, %v693
  %v695 = vpop.f32.mrf.mxu0
  %v696 = vadd.f32 0.0, %v695
  %697 = vmatprep.mubr.bf16.mxu0 0
  %698 = vmatmul.mubr.bf16.gmra.mxu0 %v458
  %v699 = vpop.f32.mrf.mxu0
  %v700 = vadd.f32 0.0, %v699
  %v701 = vpop.f32.mrf.mxu0
  %v702 = vadd.f32 0.0, %v701
  %v703 = vpop.f32.mrf.mxu0
  %v704 = vadd.f32 0.0, %v703
  %v705 = vpop.f32.mrf.mxu0
  %v706 = vadd.f32 0.0, %v705
  %707 = vmatprep.mubr.bf16.mxu0 0
  %708 = vmatmul.mubr.bf16.gmra.mxu0 %v461
  %v709 = vpop.f32.mrf.mxu0
  %v710 = vadd.f32 0.0, %v709
  %v711 = vpop.f32.mrf.mxu0
  %v712 = vadd.f32 0.0, %v711
  %v713 = vpop.f32.mrf.mxu0
  %v714 = vadd.f32 0.0, %v713
  %v715 = vpop.f32.mrf.mxu0
  %v716 = vadd.f32 0.0, %v715
  %717 = vmatprep.mubr.bf16.mxu0 0
  %718 = vmatmul.mubr.bf16.gmra.mxu0 %v464
  %v719 = vpop.f32.mrf.mxu0
  %v720 = vadd.f32 0.0, %v719
  %v721 = vpop.f32.mrf.mxu0
  %v722 = vadd.f32 0.0, %v721
  %v723 = vpop.f32.mrf.mxu0
  %v724 = vadd.f32 0.0, %v723
  %v725 = vpop.f32.mrf.mxu0
  %v726 = vadd.f32 0.0, %v725
  %727 = vmatprep.mubr.bf16.mxu0 0
  %728 = vmatmul.mubr.bf16.gmra.mxu0 %v467
  %v729 = vpop.f32.mrf.mxu0
  %v730 = vadd.f32 0.0, %v729
  %v731 = vpop.f32.mrf.mxu0
  %v732 = vadd.f32 0.0, %v731
  %v733 = vpop.f32.mrf.mxu0
  %v734 = vadd.f32 0.0, %v733
  %v735 = vpop.f32.mrf.mxu0
  %v736 = vadd.f32 0.0, %v735
  %737 = vmatprep.mubr.bf16.mxu0 0
  %738 = vmatmul.mubr.bf16.gmra.mxu0 %v470
  %v739 = vpop.f32.mrf.mxu0
  %v740 = vadd.f32 0.0, %v739
  %v741 = vpop.f32.mrf.mxu0
  %v742 = vadd.f32 0.0, %v741
  %v743 = vpop.f32.mrf.mxu0
  %v744 = vadd.f32 0.0, %v743
  %v745 = vpop.f32.mrf.mxu0
  %v746 = vadd.f32 0.0, %v745
  %747 = vmatprep.mubr.bf16.mxu0 0
  %748 = vmatmul.mubr.bf16.gmra.mxu0 %v473
  %v749 = vpop.f32.mrf.mxu0
  %v750 = vadd.f32 0.0, %v749
  %v751 = vpop.f32.mrf.mxu0
  %v752 = vadd.f32 0.0, %v751
  %v753 = vpop.f32.mrf.mxu0
  %v754 = vadd.f32 0.0, %v753
  %v755 = vpop.f32.mrf.mxu0
  %v756 = vadd.f32 0.0, %v755
  %757 = vmatprep.mubr.bf16.mxu0 0
  %758 = vmatmul.mubr.bf16.gmra.mxu0 %v476
  %v759 = vpop.f32.mrf.mxu0
  %v760 = vadd.f32 0.0, %v759
  %v761 = vpop.f32.mrf.mxu0
  %v762 = vadd.f32 0.0, %v761
  %v763 = vpop.f32.mrf.mxu0
  %v764 = vadd.f32 0.0, %v763
  %v765 = vpop.f32.mrf.mxu0
  %v766 = vadd.f32 0.0, %v765
  %767 = vmatprep.mubr.bf16.mxu0 0
  %768 = vmatmul.mubr.bf16.gmra.mxu0 %v479
  %v769 = vpop.f32.mrf.mxu0
  %v770 = vadd.f32 0.0, %v769
  %v771 = vpop.f32.mrf.mxu0
  %v772 = vadd.f32 0.0, %v771
  %v773 = vpop.f32.mrf.mxu0
  %v774 = vadd.f32 0.0, %v773
  %v775 = vpop.f32.mrf.mxu0
  %v776 = vadd.f32 0.0, %v775
  %777 = vmatprep.mubr.bf16.mxu0 0
  %778 = vmatmul.mubr.bf16.gmra.mxu0 %v482
  %v779 = vpop.f32.mrf.mxu0
  %v780 = vadd.f32 0.0, %v779
  %v781 = vpop.f32.mrf.mxu0
  %v782 = vadd.f32 0.0, %v781
  %v783 = vpop.f32.mrf.mxu0
  %v784 = vadd.f32 0.0, %v783
  %v785 = vpop.f32.mrf.mxu0
  %v786 = vadd.f32 0.0, %v785
  %787 = vmatprep.mubr.bf16.mxu0 0
  %788 = vmatmul.mubr.bf16.gmra.mxu0 %v485
  %v789 = vpop.f32.mrf.mxu0
  %v790 = vadd.f32 0.0, %v789
  %v791 = vpop.f32.mrf.mxu0
  %v792 = vadd.f32 0.0, %v791
  %v793 = vpop.f32.mrf.mxu0
  %v794 = vadd.f32 0.0, %v793
  %v795 = vpop.f32.mrf.mxu0
  %v796 = vadd.f32 0.0, %v795
  %797 = vmatprep.mubr.bf16.mxu0 0
  %798 = vmatmul.mubr.bf16.gmra.mxu0 %v488
  %v799 = vpop.f32.mrf.mxu0
  %v800 = vadd.f32 0.0, %v799
  %v801 = vpop.f32.mrf.mxu0
  %v802 = vadd.f32 0.0, %v801
  %v803 = vpop.f32.mrf.mxu0
  %v804 = vadd.f32 0.0, %v803
  %v805 = vpop.f32.mrf.mxu0
  %v806 = vadd.f32 0.0, %v805
  %807 = vmatprep.mubr.bf16.mxu0 0
  %808 = vmatmul.mubr.bf16.gmra.mxu0 %v491
  %v809 = vpop.f32.mrf.mxu0
  %v810 = vadd.f32 0.0, %v809
  %v811 = vpop.f32.mrf.mxu0
  %v812 = vadd.f32 0.0, %v811
  %v813 = vpop.f32.mrf.mxu0
  %v814 = vadd.f32 0.0, %v813
  %v815 = vpop.f32.mrf.mxu0
  %v816 = vadd.f32 0.0, %v815
  %817 = vmatprep.mubr.bf16.mxu0 0
  %818 = vmatmul.mubr.bf16.gmra.mxu0 %v494
  %v819 = vpop.f32.mrf.mxu0
  %v820 = vadd.f32 0.0, %v819
  %v821 = vpop.f32.mrf.mxu0
  %v822 = vadd.f32 0.0, %v821
  %v823 = vpop.f32.mrf.mxu0
  %v824 = vadd.f32 0.0, %v823
  %v825 = vpop.f32.mrf.mxu0
  %v826 = vadd.f32 0.0, %v825
  %827 = vmatprep.mubr.bf16.mxu0 0
  %828 = vmatmul.mubr.bf16.gmra.mxu0 %v497
  %v829 = vpop.f32.mrf.mxu0
  %v830 = vadd.f32 0.0, %v829
  %v831 = vpop.f32.mrf.mxu0
  %v832 = vadd.f32 0.0, %v831
  %v833 = vpop.f32.mrf.mxu0
  %v834 = vadd.f32 0.0, %v833
  %v835 = vpop.f32.mrf.mxu0
  %v836 = vadd.f32 0.0, %v835
  %837 = vmatprep.mubr.bf16.mxu0 0
  %838 = vmatmul.mubr.bf16.gmra.mxu0 %v500
  %v839 = vpop.f32.mrf.mxu0
  %v840 = vadd.f32 0.0, %v839
  %v841 = vpop.f32.mrf.mxu0
  %v842 = vadd.f32 0.0, %v841
  %v843 = vpop.f32.mrf.mxu0
  %v844 = vadd.f32 0.0, %v843
  %v845 = vpop.f32.mrf.mxu0
  %v846 = vadd.f32 0.0, %v845
  %847 = vmatprep.mubr.bf16.mxu0 0
  %848 = vmatmul.mubr.bf16.gmra.mxu0 %v503
  %v849 = vpop.f32.mrf.mxu0
  %v850 = vadd.f32 0.0, %v849
  %v851 = vpop.f32.mrf.mxu0
  %v852 = vadd.f32 0.0, %v851
  %v853 = vpop.f32.mrf.mxu0
  %v854 = vadd.f32 0.0, %v853
  %v855 = vpop.f32.mrf.mxu0
  %v856 = vadd.f32 0.0, %v855
  %857 = vdwg.mxu0
  %858 = vst [vmem:[%s4] sm:$0xff] %v540
  %859 = vst [vmem:[%s4 + $0x8] sm:$0xff] %v542
  %860 = vst [vmem:[%s4 + $0x10] sm:$0xff] %v544
  %861 = vst [vmem:[%s4 + $0x18] sm:$0xff] %v546
  %862 = vst [vmem:[%s4 + $0x20] sm:$0xff] %v550
  %863 = vst [vmem:[%s4 + $0x28] sm:$0xff] %v552
  %864 = vst [vmem:[%s4 + $0x30] sm:$0xff] %v554
  %865 = vst [vmem:[%s4 + $0x38] sm:$0xff] %v556
  %866 = vst [vmem:[%s4 + $0x40] sm:$0xff] %v560
  %867 = vst [vmem:[%s4 + $0x48] sm:$0xff] %v562
  %868 = vst [vmem:[%s4 + $0x50] sm:$0xff] %v564
  %869 = vst [vmem:[%s4 + $0x58] sm:$0xff] %v566
  %870 = vst [vmem:[%s4 + $0x60] sm:$0xff] %v570
  %871 = vst [vmem:[%s4 + $0x68] sm:$0xff] %v572
  %872 = vst [vmem:[%s4 + $0x70] sm:$0xff] %v574
  %873 = vst [vmem:[%s4 + $0x78] sm:$0xff] %v576
  %874 = vst [vmem:[%s4 + $0x80] sm:$0xff] %v580
  %875 = vst [vmem:[%s4 + $0x88] sm:$0xff] %v582
  %876 = vst [vmem:[%s4 + $0x90] sm:$0xff] %v584
  %877 = vst [vmem:[%s4 + $0x98] sm:$0xff] %v586
  %878 = vst [vmem:[%s4 + $0xa0] sm:$0xff] %v590
  %879 = vst [vmem:[%s4 + $0xa8] sm:$0xff] %v592
  %880 = vst [vmem:[%s4 + $0xb0] sm:$0xff] %v594
  %881 = vst [vmem:[%s4 + $0xb8] sm:$0xff] %v596
  %882 = vst [vmem:[%s4 + $0xc0] sm:$0xff] %v600
  %883 = vst [vmem:[%s4 + $0xc8] sm:$0xff] %v602
  %884 = vst [vmem:[%s4 + $0xd0] sm:$0xff] %v604
  %885 = vst [vmem:[%s4 + $0xd8] sm:$0xff] %v606
  %886 = vst [vmem:[%s4 + $0xe0] sm:$0xff] %v610
  %887 = vst [vmem:[%s4 + $0xe8] sm:$0xff] %v612
  %888 = vst [vmem:[%s4 + $0xf0] sm:$0xff] %v614
  %889 = vst [vmem:[%s4 + $0xf8] sm:$0xff] %v616
  %890 = vst [vmem:[%s4 + $0x100] sm:$0xff] %v620
  %891 = vst [vmem:[%s4 + $0x108] sm:$0xff] %v622
  %892 = vst [vmem:[%s4 + $0x110] sm:$0xff] %v624
  %893 = vst [vmem:[%s4 + $0x118] sm:$0xff] %v626
  %894 = vst [vmem:[%s4 + $0x120] sm:$0xff] %v630
  %895 = vst [vmem:[%s4 + $0x128] sm:$0xff] %v632
  %896 = vst [vmem:[%s4 + $0x130] sm:$0xff] %v634
  %897 = vst [vmem:[%s4 + $0x138] sm:$0xff] %v636
  %898 = vst [vmem:[%s4 + $0x140] sm:$0xff] %v640
  %899 = vst [vmem:[%s4 + $0x148] sm:$0xff] %v642
  %900 = vst [vmem:[%s4 + $0x150] sm:$0xff] %v644
  %901 = vst [vmem:[%s4 + $0x158] sm:$0xff] %v646
  %902 = vst [vmem:[%s4 + $0x160] sm:$0xff] %v650
  %903 = vst [vmem:[%s4 + $0x168] sm:$0xff] %v652
  %904 = vst [vmem:[%s4 + $0x170] sm:$0xff] %v654
  %905 = vst [vmem:[%s4 + $0x178] sm:$0xff] %v656
  %906 = vst [vmem:[%s4 + $0x180] sm:$0xff] %v660
  %907 = vst [vmem:[%s4 + $0x188] sm:$0xff] %v662
  %908 = vst [vmem:[%s4 + $0x190] sm:$0xff] %v664
  %909 = vst [vmem:[%s4 + $0x198] sm:$0xff] %v666
  %910 = vst [vmem:[%s4 + $0x1a0] sm:$0xff] %v670
  %911 = vst [vmem:[%s4 + $0x1a8] sm:$0xff] %v672
  %912 = vst [vmem:[%s4 + $0x1b0] sm:$0xff] %v674
  %913 = vst [vmem:[%s4 + $0x1b8] sm:$0xff] %v676
  %914 = vst [vmem:[%s4 + $0x1c0] sm:$0xff] %v680
  %915 = vst [vmem:[%s4 + $0x1c8] sm:$0xff] %v682
  %916 = vst [vmem:[%s4 + $0x1d0] sm:$0xff] %v684
  %917 = vst [vmem:[%s4 + $0x1d8] sm:$0xff] %v686
  %918 = vst [vmem:[%s4 + $0x1e0] sm:$0xff] %v690
  %919 = vst [vmem:[%s4 + $0x1e8] sm:$0xff] %v692
  %920 = vst [vmem:[%s4 + $0x1f0] sm:$0xff] %v694
  %921 = vst [vmem:[%s4 + $0x1f8] sm:$0xff] %v696
  %922 = vst [vmem:[%s4 + $0x200] sm:$0xff] %v700
  %923 = vst [vmem:[%s4 + $0x208] sm:$0xff] %v702
  %924 = vst [vmem:[%s4 + $0x210] sm:$0xff] %v704
  %925 = vst [vmem:[%s4 + $0x218] sm:$0xff] %v706
  %926 = vst [vmem:[%s4 + $0x220] sm:$0xff] %v710
  %927 = vst [vmem:[%s4 + $0x228] sm:$0xff] %v712
  %928 = vst [vmem:[%s4 + $0x230] sm:$0xff] %v714
  %929 = vst [vmem:[%s4 + $0x238] sm:$0xff] %v716
  %930 = vst [vmem:[%s4 + $0x240] sm:$0xff] %v720
  %931 = vst [vmem:[%s4 + $0x248] sm:$0xff] %v722
  %932 = vst [vmem:[%s4 + $0x250] sm:$0xff] %v724
  %933 = vst [vmem:[%s4 + $0x258] sm:$0xff] %v726
  %934 = vst [vmem:[%s4 + $0x260] sm:$0xff] %v730
  %935 = vst [vmem:[%s4 + $0x268] sm:$0xff] %v732
  %936 = vst [vmem:[%s4 + $0x270] sm:$0xff] %v734
  %937 = vst [vmem:[%s4 + $0x278] sm:$0xff] %v736
  %938 = vst [vmem:[%s4 + $0x280] sm:$0xff] %v740
  %939 = vst [vmem:[%s4 + $0x288] sm:$0xff] %v742
  %940 = vst [vmem:[%s4 + $0x290] sm:$0xff] %v744
  %941 = vst [vmem:[%s4 + $0x298] sm:$0xff] %v746
  %942 = vst [vmem:[%s4 + $0x2a0] sm:$0xff] %v750
  %943 = vst [vmem:[%s4 + $0x2a8] sm:$0xff] %v752
  %944 = vst [vmem:[%s4 + $0x2b0] sm:$0xff] %v754
  %945 = vst [vmem:[%s4 + $0x2b8] sm:$0xff] %v756
  %946 = vst [vmem:[%s4 + $0x2c0] sm:$0xff] %v760
  %947 = vst [vmem:[%s4 + $0x2c8] sm:$0xff] %v762
  %948 = vst [vmem:[%s4 + $0x2d0] sm:$0xff] %v764
  %949 = vst [vmem:[%s4 + $0x2d8] sm:$0xff] %v766
  %950 = vst [vmem:[%s4 + $0x2e0] sm:$0xff] %v770
  %951 = vst [vmem:[%s4 + $0x2e8] sm:$0xff] %v772
  %952 = vst [vmem:[%s4 + $0x2f0] sm:$0xff] %v774
  %953 = vst [vmem:[%s4 + $0x2f8] sm:$0xff] %v776
  %954 = vst [vmem:[%s4 + $0x300] sm:$0xff] %v780
  %955 = vst [vmem:[%s4 + $0x308] sm:$0xff] %v782
  %956 = vst [vmem:[%s4 + $0x310] sm:$0xff] %v784
  %957 = vst [vmem:[%s4 + $0x318] sm:$0xff] %v786
  %958 = vst [vmem:[%s4 + $0x320] sm:$0xff] %v790
  %959 = vst [vmem:[%s4 + $0x328] sm:$0xff] %v792
  %960 = vst [vmem:[%s4 + $0x330] sm:$0xff] %v794
  %961 = vst [vmem:[%s4 + $0x338] sm:$0xff] %v796
  %962 = vst [vmem:[%s4 + $0x340] sm:$0xff] %v800
  %963 = vst [vmem:[%s4 + $0x348] sm:$0xff] %v802
  %964 = vst [vmem:[%s4 + $0x350] sm:$0xff] %v804
  %965 = vst [vmem:[%s4 + $0x358] sm:$0xff] %v806
  %966 = vst [vmem:[%s4 + $0x360] sm:$0xff] %v810
  %967 = vst [vmem:[%s4 + $0x368] sm:$0xff] %v812
  %968 = vst [vmem:[%s4 + $0x370] sm:$0xff] %v814
  %969 = vst [vmem:[%s4 + $0x378] sm:$0xff] %v816
  %970 = vst [vmem:[%s4 + $0x380] sm:$0xff] %v820
  %971 = vst [vmem:[%s4 + $0x388] sm:$0xff] %v822
  %972 = vst [vmem:[%s4 + $0x390] sm:$0xff] %v824
  %973 = vst [vmem:[%s4 + $0x398] sm:$0xff] %v826
  %974 = vst [vmem:[%s4 + $0x3a0] sm:$0xff] %v830
  %975 = vst [vmem:[%s4 + $0x3a8] sm:$0xff] %v832
  %976 = vst [vmem:[%s4 + $0x3b0] sm:$0xff] %v834
  %977 = vst [vmem:[%s4 + $0x3b8] sm:$0xff] %v836
  %978 = vst [vmem:[%s4 + $0x3c0] sm:$0xff] %v840
  %979 = vst [vmem:[%s4 + $0x3c8] sm:$0xff] %v842
  %980 = vst [vmem:[%s4 + $0x3d0] sm:$0xff] %v844
  %981 = vst [vmem:[%s4 + $0x3d8] sm:$0xff] %v846
  %982 = vst [vmem:[%s4 + $0x3e0] sm:$0xff] %v850
  %983 = vst [vmem:[%s4 + $0x3e8] sm:$0xff] %v852
  %984 = vst [vmem:[%s4 + $0x3f0] sm:$0xff] %v854
  %985 = vst [vmem:[%s4 + $0x3f8] sm:$0xff] %v856
  // Predicated region
  $region18: #{generator_forward.16} parent=0 // pred_check
    _
  $region19: #{generator_forward.16} parent=0 // pred_check_branch
    %987 = sbr.rel (0) target = $region21
  $region20: #{generator_forward.16} parent=0 // pred_region
    _
  $region21: #{generator_forward.16} parent=0 // pred_fallthru
    _
  // Predicated region
  $region22: #{generator_forward.16} parent=0 // pred_check
    _
  $region23: #{generator_forward.16} parent=0 // pred_check_branch
    %989 = sbr.rel (0) target = $region25
  $region24: #{generator_forward.16} parent=0 // pred_region
    _
  $region25: #{generator_forward.16} parent=0 // pred_fallthru
    _

// kernel: generator_forward.17
$region0: #{generator_forward.17}
  #allocation0 [shape = 'u32[]', space=smem, size = 0x4, offset = 0x4, fixed_abs, tag = 'smem constant byte address 0x4 - core index']
  #allocation1 [shape = 'u32[144,128]{1,0:T(1,128)}', space=vmem, size = 0x12000, scoped, tag = 'internal scratch']
  %s0 = inlined_call_operand.vmem [shape: bf16[2048,16], index: 0, kind: input, shape index: {}]
  %s1 = inlined_call_operand.vmem [shape: f32[2,1,16], index: 1, kind: output, shape index: {0}]
  %s2 = inlined_call_operand.vmem [shape: f32[2,1,16], index: 2, kind: output, shape index: {1}]
  %3 = xla_tuple %s1, %s2
  %s4 = sld [smem:[#allocation0]]
  $region45: #{generator_forward.17} parent=0
    _
  %s6 = ssub.s32 1, %s4
  %s7 = scalar_select 0, %s6, %s4
  loop: start=0, step=1, limit=4
  $region2: #{generator_forward.17} parent=0 // loop_pre_header
    _
  $region3: #{generator_forward.17} parent=0 // loop_header
    %s9 = sphi 0, %s13
    %p10 = scmp.ge.s32.totalorder %s9, 4
    %s19 = sphi 0, %s21
    %s22 = sphi 0, %s19
    %s23 = sphi 0, %s22
    %s39 = sphi 0, %s23
    %s45 = sphi 0, %s47
    %s48 = sphi 0, %s45
    %s49 = sphi 0, %s48
    %s65 = sphi 0, %s49
    %s71 = sphi 0, %s73
    %s74 = sphi 0, %s71
    %s75 = sphi 0, %s74
    %s91 = sphi 0, %s75
  $region4: #{generator_forward.17} parent=0 // loop_header_branch
    %12 = sbr.rel (%p10) target = $region8
  $region5: #{generator_forward.17} parent=0 // loop_body
    %s14 = ssub.s32 %s9, 1
    %s15 = ssub.s32 %s9, 2
    %s16 = sadd.s32 %s9, 1
    %s17 = ssub.s32 %s9, %s16
    %p18 = scmp.eq.s32.totalorder %s17, 0
    %s20 = sadd.s32 %s19, 1
    %s21 = scalar_select %p18, %s19, %s20
    %p24 = pneg %p18
    %p25 = scmp.eq.s32.totalorder %s9, 1
    %p26 = por %p24, %p25
    %p27 = scmp.ne.s32.totalorder %s19, %s22
    %p28 = scmp.eq.s32.totalorder %s9, 0
    %p29 = por %p27, %p28
    %p30 = scmp.ne.s32.totalorder %s19, %s22
    %p31 = scmp.eq.s32.totalorder %s14, 1
    %p32 = por %p30, %p31
    %p33 = scmp.ne.s32.totalorder %s22, %s23
    %p34 = scmp.eq.s32.totalorder %s14, 0
    %p35 = por %p33, %p34
    %p36 = scmp.ne.s32.totalorder %s22, %s23
    %p37 = scmp.eq.s32.totalorder %s15, 1
    %p38 = por %p36, %p37
    %p40 = scmp.ne.s32.totalorder %s23, %s39
    %p41 = scmp.eq.s32.totalorder %s15, 0
    %p42 = por %p40, %p41
    %s43 = ssub.s32 %s9, %s16
    %p44 = scmp.eq.s32.totalorder %s43, 0
    %s46 = sadd.s32 %s45, 1
    %s47 = scalar_select %p44, %s45, %s46
    %p50 = pneg %p44
    %p51 = scmp.eq.s32.totalorder %s9, 1
    %p52 = por %p50, %p51
    %p53 = scmp.ne.s32.totalorder %s45, %s48
    %p54 = scmp.eq.s32.totalorder %s9, 0
    %p55 = por %p53, %p54
    %p56 = scmp.ne.s32.totalorder %s45, %s48
    %p57 = scmp.eq.s32.totalorder %s14, 1
    %p58 = por %p56, %p57
    %p59 = scmp.ne.s32.totalorder %s48, %s49
    %p60 = scmp.eq.s32.totalorder %s14, 0
    %p61 = por %p59, %p60
    %p62 = scmp.ne.s32.totalorder %s48, %s49
    %p63 = scmp.eq.s32.totalorder %s15, 1
    %p64 = por %p62, %p63
    %p66 = scmp.ne.s32.totalorder %s49, %s65
    %p67 = scmp.eq.s32.totalorder %s15, 0
    %p68 = por %p66, %p67
    %s69 = ssub.s32 %s9, %s16
    %p70 = scmp.eq.s32.totalorder %s69, 0
    %s72 = sadd.s32 %s71, 1
    %s73 = scalar_select %p70, %s71, %s72
    %p76 = pneg %p70
    %p77 = scmp.eq.s32.totalorder %s9, 1
    %p78 = por %p76, %p77
    %p79 = scmp.ne.s32.totalorder %s71, %s74
    %p80 = scmp.eq.s32.totalorder %s9, 0
    %p81 = por %p79, %p80
    %p82 = scmp.ne.s32.totalorder %s71, %s74
    %p83 = scmp.eq.s32.totalorder %s14, 1
    %p84 = por %p82, %p83
    %p85 = scmp.ne.s32.totalorder %s74, %s75
    %p86 = scmp.eq.s32.totalorder %s14, 0
    %p87 = por %p85, %p86
    %p88 = scmp.ne.s32.totalorder %s74, %s75
    %p89 = scmp.eq.s32.totalorder %s15, 1
    %p90 = por %p88, %p89
    %p92 = scmp.ne.s32.totalorder %s75, %s91
    %p93 = scmp.eq.s32.totalorder %s15, 0
    %p94 = por %p92, %p93
    %p95 = scmp.le.s32.totalorder 1, %s9
    %p96 = scmp.lt.s32.totalorder %s9, 3
    %p97 = pnand %p95, %p96
    %p98 = pneg %p97
    // Predicated region
    $region9: #{generator_forward.17} parent=5 // pred_check
      _
    $region10: #{generator_forward.17} parent=5 // pred_check_branch
      %100 = sbr.rel (%p97) target = $region12
    $region11: #{generator_forward.17} parent=5 // pred_region
      %s101 = ssub.s32 %s9, 1
    $region12: #{generator_forward.17} parent=5 // pred_fallthru
      _
    %p102 = scmp.lt.s32.totalorder %s9, 2
    // Predicated region
    $region13: #{generator_forward.17} parent=5 // pred_check
      %p103 = pneg %p102
    $region14: #{generator_forward.17} parent=5 // pred_check_branch
      %105 = sbr.rel (%p103) target = $region16
    $region15: #{generator_forward.17} parent=5 // pred_region
      // Predicated region
      $region17: #{generator_forward.17} parent=15 // pred_check
        %p106 = pneg %p29
      $region18: #{generator_forward.17} parent=15 // pred_check_branch
        %108 = sbr.rel (%p106) target = $region20
      $region19: #{generator_forward.17} parent=15 // pred_region
        %s109 = smul.u32 128, %s9
        %p110 = scmp.lt.s32.totalorder %s109, 255
        %s111 = scalar_select %p110, %s109, 255
        %s112 = smul.addr %s111, 4
        %s113 = scalar_lea.vmem %s0, %s112
        %s114 = smul.u32 128, %s9
      $region20: #{generator_forward.17} parent=15 // pred_fallthru
        _
    $region16: #{generator_forward.17} parent=5 // pred_fallthru
      _
    %p115 = scmp.le.s32.totalorder 1, %s9
    %p116 = scmp.lt.s32.totalorder %s9, 3
    %p117 = pnand %p115, %p116
    %p118 = pneg %p117
    // Predicated region
    $region21: #{generator_forward.17} parent=5 // pred_check
      _
    $region22: #{generator_forward.17} parent=5 // pred_check_branch
      %120 = sbr.rel (%p117) target = $region24
    $region23: #{generator_forward.17} parent=5 // pred_region
      %s121 = ssub.s32 %s9, 1
      %s122 = smul.u32 128, %s14
      %p123 = scmp.lt.s32.totalorder %s122, 255
      %s124 = scalar_select %p123, %s122, 255
      %s125 = smul.addr %s124, 4
      %s126 = scalar_lea.vmem %s0, %s125
      %p127 = pneg %p35
      %p128 = pneg %p32
      %p129 = pneg %p61
      %p130 = pneg %p58
      %p131 = scmp.lt.s32.totalorder %s14, 1
      %s132 = scalar_select %p131, %s14, 1
      %s133 = scalar_lea.vmem %s1, %s132
      %p134 = pneg %p87
      %p135 = pneg %p84
      %p136 = scmp.lt.s32.totalorder %s14, 1
      %s137 = scalar_select %p136, %s14, 1
      %s138 = scalar_lea.vmem %s2, %s137
      %s139 = smul.u32 128, %s14
      %p140 = scmp.lt.s32.totalorder %s139, 255
      %s141 = scalar_select %p140, %s139, 255
      %s142 = smul.addr %s141, 4
      %s143 = scalar_lea.vmem %s0, %s142
      %s144 = smul.u32 128, %s14
      %p145 = scmp.lt.s32.totalorder %s14, 1
      %s146 = scalar_select %p145, %s14, 1
      %s147 = scalar_lea.vmem %s1, %s146
      %p148 = scmp.lt.s32.totalorder %s14, 1
      %s149 = scalar_select %p148, %s14, 1
      %s150 = scalar_lea.vmem %s2, %s149
      %v151 = vld [vmem:[%s143] sm:$0xf]
      %v152 = vld [vmem:[%s143 + $0x4] sm:$0xf]
      %v153 = vld [vmem:[%s143 + $0x8] sm:$0xf]
      %v154 = vld [vmem:[%s143 + $0xc] sm:$0xf]
      %v155 = vld [vmem:[%s143 + $0x10] sm:$0xf]
      %v156 = vld [vmem:[%s143 + $0x14] sm:$0xf]
      %v157 = vld [vmem:[%s143 + $0x18] sm:$0xf]
      %v158 = vld [vmem:[%s143 + $0x1c] sm:$0xf]
      %v159 = vld [vmem:[%s143 + $0x20] sm:$0xf]
      %v160 = vld [vmem:[%s143 + $0x24] sm:$0xf]
      %v161 = vld [vmem:[%s143 + $0x28] sm:$0xf]
      %v162 = vld [vmem:[%s143 + $0x2c] sm:$0xf]
      %v163 = vld [vmem:[%s143 + $0x30] sm:$0xf]
      %v164 = vld [vmem:[%s143 + $0x34] sm:$0xf]
      %v165 = vld [vmem:[%s143 + $0x38] sm:$0xf]
      %v166 = vld [vmem:[%s143 + $0x3c] sm:$0xf]
      %v167 = vld [vmem:[%s143 + $0x40] sm:$0xf]
      %v168 = vld [vmem:[%s143 + $0x44] sm:$0xf]
      %v169 = vld [vmem:[%s143 + $0x48] sm:$0xf]
      %v170 = vld [vmem:[%s143 + $0x4c] sm:$0xf]
      %v171 = vld [vmem:[%s143 + $0x50] sm:$0xf]
      %v172 = vld [vmem:[%s143 + $0x54] sm:$0xf]
      %v173 = vld [vmem:[%s143 + $0x58] sm:$0xf]
      %v174 = vld [vmem:[%s143 + $0x5c] sm:$0xf]
      %v175 = vld [vmem:[%s143 + $0x60] sm:$0xf]
      %v176 = vld [vmem:[%s143 + $0x64] sm:$0xf]
      %v177 = vld [vmem:[%s143 + $0x68] sm:$0xf]
      %v178 = vld [vmem:[%s143 + $0x6c] sm:$0xf]
      %v179 = vld [vmem:[%s143 + $0x70] sm:$0xf]
      %v180 = vld [vmem:[%s143 + $0x74] sm:$0xf]
      %v181 = vld [vmem:[%s143 + $0x78] sm:$0xf]
      %v182 = vld [vmem:[%s143 + $0x7c] sm:$0xf]
      %v183 = vld [vmem:[%s143 + $0x80] sm:$0xf]
      %v184 = vld [vmem:[%s143 + $0x84] sm:$0xf]
      %v185 = vld [vmem:[%s143 + $0x88] sm:$0xf]
      %v186 = vld [vmem:[%s143 + $0x8c] sm:$0xf]
      %v187 = vld [vmem:[%s143 + $0x90] sm:$0xf]
      %v188 = vld [vmem:[%s143 + $0x94] sm:$0xf]
      %v189 = vld [vmem:[%s143 + $0x98] sm:$0xf]
      %v190 = vld [vmem:[%s143 + $0x9c] sm:$0xf]
      %v191 = vld [vmem:[%s143 + $0xa0] sm:$0xf]
      %v192 = vld [vmem:[%s143 + $0xa4] sm:$0xf]
      %v193 = vld [vmem:[%s143 + $0xa8] sm:$0xf]
      %v194 = vld [vmem:[%s143 + $0xac] sm:$0xf]
      %v195 = vld [vmem:[%s143 + $0xb0] sm:$0xf]
      %v196 = vld [vmem:[%s143 + $0xb4] sm:$0xf]
      %v197 = vld [vmem:[%s143 + $0xb8] sm:$0xf]
      %v198 = vld [vmem:[%s143 + $0xbc] sm:$0xf]
      %v199 = vld [vmem:[%s143 + $0xc0] sm:$0xf]
      %v200 = vld [vmem:[%s143 + $0xc4] sm:$0xf]
      %v201 = vld [vmem:[%s143 + $0xc8] sm:$0xf]
      %v202 = vld [vmem:[%s143 + $0xcc] sm:$0xf]
      %v203 = vld [vmem:[%s143 + $0xd0] sm:$0xf]
      %v204 = vld [vmem:[%s143 + $0xd4] sm:$0xf]
      %v205 = vld [vmem:[%s143 + $0xd8] sm:$0xf]
      %v206 = vld [vmem:[%s143 + $0xdc] sm:$0xf]
      %v207 = vld [vmem:[%s143 + $0xe0] sm:$0xf]
      %v208 = vld [vmem:[%s143 + $0xe4] sm:$0xf]
      %v209 = vld [vmem:[%s143 + $0xe8] sm:$0xf]
      %v210 = vld [vmem:[%s143 + $0xec] sm:$0xf]
      %v211 = vld [vmem:[%s143 + $0xf0] sm:$0xf]
      %v212 = vld [vmem:[%s143 + $0xf4] sm:$0xf]
      %v213 = vld [vmem:[%s143 + $0xf8] sm:$0xf]
      %v214 = vld [vmem:[%s143 + $0xfc] sm:$0xf]
      %v215 = vld [vmem:[%s143 + $0x100] sm:$0xf]
      %v216 = vld [vmem:[%s143 + $0x104] sm:$0xf]
      %v217 = vld [vmem:[%s143 + $0x108] sm:$0xf]
      %v218 = vld [vmem:[%s143 + $0x10c] sm:$0xf]
      %v219 = vld [vmem:[%s143 + $0x110] sm:$0xf]
      %v220 = vld [vmem:[%s143 + $0x114] sm:$0xf]
      %v221 = vld [vmem:[%s143 + $0x118] sm:$0xf]
      %v222 = vld [vmem:[%s143 + $0x11c] sm:$0xf]
      %v223 = vld [vmem:[%s143 + $0x120] sm:$0xf]
      %v224 = vld [vmem:[%s143 + $0x124] sm:$0xf]
      %v225 = vld [vmem:[%s143 + $0x128] sm:$0xf]
      %v226 = vld [vmem:[%s143 + $0x12c] sm:$0xf]
      %v227 = vld [vmem:[%s143 + $0x130] sm:$0xf]
      %v228 = vld [vmem:[%s143 + $0x134] sm:$0xf]
      %v229 = vld [vmem:[%s143 + $0x138] sm:$0xf]
      %v230 = vld [vmem:[%s143 + $0x13c] sm:$0xf]
      %v231 = vld [vmem:[%s143 + $0x140] sm:$0xf]
      %v232 = vld [vmem:[%s143 + $0x144] sm:$0xf]
      %v233 = vld [vmem:[%s143 + $0x148] sm:$0xf]
      %v234 = vld [vmem:[%s143 + $0x14c] sm:$0xf]
      %v235 = vld [vmem:[%s143 + $0x150] sm:$0xf]
      %v236 = vld [vmem:[%s143 + $0x154] sm:$0xf]
      %v237 = vld [vmem:[%s143 + $0x158] sm:$0xf]
      %v238 = vld [vmem:[%s143 + $0x15c] sm:$0xf]
      %v239 = vld [vmem:[%s143 + $0x160] sm:$0xf]
      %v240 = vld [vmem:[%s143 + $0x164] sm:$0xf]
      %v241 = vld [vmem:[%s143 + $0x168] sm:$0xf]
      %v242 = vld [vmem:[%s143 + $0x16c] sm:$0xf]
      %v243 = vld [vmem:[%s143 + $0x170] sm:$0xf]
      %v244 = vld [vmem:[%s143 + $0x174] sm:$0xf]
      %v245 = vld [vmem:[%s143 + $0x178] sm:$0xf]
      %v246 = vld [vmem:[%s143 + $0x17c] sm:$0xf]
      %v247 = vld [vmem:[%s143 + $0x180] sm:$0xf]
      %v248 = vld [vmem:[%s143 + $0x184] sm:$0xf]
      %v249 = vld [vmem:[%s143 + $0x188] sm:$0xf]
      %v250 = vld [vmem:[%s143 + $0x18c] sm:$0xf]
      %v251 = vld [vmem:[%s143 + $0x190] sm:$0xf]
      %v252 = vld [vmem:[%s143 + $0x194] sm:$0xf]
      %v253 = vld [vmem:[%s143 + $0x198] sm:$0xf]
      %v254 = vld [vmem:[%s143 + $0x19c] sm:$0xf]
      %v255 = vld [vmem:[%s143 + $0x1a0] sm:$0xf]
      %v256 = vld [vmem:[%s143 + $0x1a4] sm:$0xf]
      %v257 = vld [vmem:[%s143 + $0x1a8] sm:$0xf]
      %v258 = vld [vmem:[%s143 + $0x1ac] sm:$0xf]
      %v259 = vld [vmem:[%s143 + $0x1b0] sm:$0xf]
      %v260 = vld [vmem:[%s143 + $0x1b4] sm:$0xf]
      %v261 = vld [vmem:[%s143 + $0x1b8] sm:$0xf]
      %v262 = vld [vmem:[%s143 + $0x1bc] sm:$0xf]
      %v263 = vld [vmem:[%s143 + $0x1c0] sm:$0xf]
      %v264 = vld [vmem:[%s143 + $0x1c4] sm:$0xf]
      %v265 = vld [vmem:[%s143 + $0x1c8] sm:$0xf]
      %v266 = vld [vmem:[%s143 + $0x1cc] sm:$0xf]
      %v267 = vld [vmem:[%s143 + $0x1d0] sm:$0xf]
      %v268 = vld [vmem:[%s143 + $0x1d4] sm:$0xf]
      %v269 = vld [vmem:[%s143 + $0x1d8] sm:$0xf]
      %v270 = vld [vmem:[%s143 + $0x1dc] sm:$0xf]
      %v271 = vld [vmem:[%s143 + $0x1e0] sm:$0xf]
      %v272 = vld [vmem:[%s143 + $0x1e4] sm:$0xf]
      %v273 = vld [vmem:[%s143 + $0x1e8] sm:$0xf]
      %v274 = vld [vmem:[%s143 + $0x1ec] sm:$0xf]
      %v275 = vld [vmem:[%s143 + $0x1f0] sm:$0xf]
      %v276 = vld [vmem:[%s143 + $0x1f4] sm:$0xf]
      %v277 = vld [vmem:[%s143 + $0x1f8] sm:$0xf]
      %v278 = vld [vmem:[%s143 + $0x1fc] sm:$0xf]
      %v279 = vunpack.c.l.bf16 %v151
      %v280 = vunpack.c.l.bf16 %v152
      %v281 = vunpack.c.l.bf16 %v153
      %v282 = vunpack.c.l.bf16 %v154
      %v283 = vunpack.c.l.bf16 %v155
      %v284 = vunpack.c.l.bf16 %v156
      %v285 = vunpack.c.l.bf16 %v157
      %v286 = vunpack.c.l.bf16 %v158
      %v287 = vunpack.c.l.bf16 %v159
      %v288 = vunpack.c.l.bf16 %v160
      %v289 = vunpack.c.l.bf16 %v161
      %v290 = vunpack.c.l.bf16 %v162
      %v291 = vunpack.c.l.bf16 %v163
      %v292 = vunpack.c.l.bf16 %v164
      %v293 = vunpack.c.l.bf16 %v165
      %v294 = vunpack.c.l.bf16 %v166
      %v295 = vunpack.c.l.bf16 %v167
      %v296 = vunpack.c.l.bf16 %v168
      %v297 = vunpack.c.l.bf16 %v169
      %v298 = vunpack.c.l.bf16 %v170
      %v299 = vunpack.c.l.bf16 %v171
      %v300 = vunpack.c.l.bf16 %v172
      %v301 = vunpack.c.l.bf16 %v173
      %v302 = vunpack.c.l.bf16 %v174
      %v303 = vunpack.c.l.bf16 %v175
      %v304 = vunpack.c.l.bf16 %v176
      %v305 = vunpack.c.l.bf16 %v177
      %v306 = vunpack.c.l.bf16 %v178
      %v307 = vunpack.c.l.bf16 %v179
      %v308 = vunpack.c.l.bf16 %v180
      %v309 = vunpack.c.l.bf16 %v181
      %v310 = vunpack.c.l.bf16 %v182
      %v311 = vunpack.c.l.bf16 %v183
      %v312 = vunpack.c.l.bf16 %v184
      %v313 = vunpack.c.l.bf16 %v185
      %v314 = vunpack.c.l.bf16 %v186
      %v315 = vunpack.c.l.bf16 %v187
      %v316 = vunpack.c.l.bf16 %v188
      %v317 = vunpack.c.l.bf16 %v189
      %v318 = vunpack.c.l.bf16 %v190
      %v319 = vunpack.c.l.bf16 %v191
      %v320 = vunpack.c.l.bf16 %v192
      %v321 = vunpack.c.l.bf16 %v193
      %v322 = vunpack.c.l.bf16 %v194
      %v323 = vunpack.c.l.bf16 %v195
      %v324 = vunpack.c.l.bf16 %v196
      %v325 = vunpack.c.l.bf16 %v197
      %v326 = vunpack.c.l.bf16 %v198
      %v327 = vunpack.c.l.bf16 %v199
      %v328 = vunpack.c.l.bf16 %v200
      %v329 = vunpack.c.l.bf16 %v201
      %v330 = vunpack.c.l.bf16 %v202
      %v331 = vunpack.c.l.bf16 %v203
      %v332 = vunpack.c.l.bf16 %v204
      %v333 = vunpack.c.l.bf16 %v205
      %v334 = vunpack.c.l.bf16 %v206
      %v335 = vunpack.c.l.bf16 %v207
      %v336 = vunpack.c.l.bf16 %v208
      %v337 = vunpack.c.l.bf16 %v209
      %v338 = vunpack.c.l.bf16 %v210
      %v339 = vunpack.c.l.bf16 %v211
      %v340 = vunpack.c.l.bf16 %v212
      %v341 = vunpack.c.l.bf16 %v213
      %v342 = vunpack.c.l.bf16 %v214
      %v343 = vunpack.c.l.bf16 %v215
      %v344 = vunpack.c.l.bf16 %v216
      %v345 = vunpack.c.l.bf16 %v217
      %v346 = vunpack.c.l.bf16 %v218
      %v347 = vunpack.c.l.bf16 %v219
      %v348 = vunpack.c.l.bf16 %v220
      %v349 = vunpack.c.l.bf16 %v221
      %v350 = vunpack.c.l.bf16 %v222
      %v351 = vunpack.c.l.bf16 %v223
      %v352 = vunpack.c.l.bf16 %v224
      %v353 = vunpack.c.l.bf16 %v225
      %v354 = vunpack.c.l.bf16 %v226
      %v355 = vunpack.c.l.bf16 %v227
      %v356 = vunpack.c.l.bf16 %v228
      %v357 = vunpack.c.l.bf16 %v229
      %v358 = vunpack.c.l.bf16 %v230
      %v359 = vunpack.c.l.bf16 %v231
      %v360 = vunpack.c.l.bf16 %v232
      %v361 = vunpack.c.l.bf16 %v233
      %v362 = vunpack.c.l.bf16 %v234
      %v363 = vunpack.c.l.bf16 %v235
      %v364 = vunpack.c.l.bf16 %v236
      %v365 = vunpack.c.l.bf16 %v237
      %v366 = vunpack.c.l.bf16 %v238
      %v367 = vunpack.c.l.bf16 %v239
      %v368 = vunpack.c.l.bf16 %v240
      %v369 = vunpack.c.l.bf16 %v241
      %v370 = vunpack.c.l.bf16 %v242
      %v371 = vunpack.c.l.bf16 %v243
      %v372 = vunpack.c.l.bf16 %v244
      %v373 = vunpack.c.l.bf16 %v245
      %v374 = vunpack.c.l.bf16 %v246
      %v375 = vunpack.c.l.bf16 %v247
      %v376 = vunpack.c.l.bf16 %v248
      %v377 = vunpack.c.l.bf16 %v249
      %v378 = vunpack.c.l.bf16 %v250
      %v379 = vunpack.c.l.bf16 %v251
      %v380 = vunpack.c.l.bf16 %v252
      %v381 = vunpack.c.l.bf16 %v253
      %v382 = vunpack.c.l.bf16 %v254
      %v383 = vunpack.c.l.bf16 %v255
      %v384 = vunpack.c.l.bf16 %v256
      %v385 = vunpack.c.l.bf16 %v257
      %v386 = vunpack.c.l.bf16 %v258
      %v387 = vunpack.c.l.bf16 %v259
      %v388 = vunpack.c.l.bf16 %v260
      %v389 = vunpack.c.l.bf16 %v261
      %v390 = vunpack.c.l.bf16 %v262
      %v391 = vunpack.c.l.bf16 %v263
      %v392 = vunpack.c.l.bf16 %v264
      %v393 = vunpack.c.l.bf16 %v265
      %v394 = vunpack.c.l.bf16 %v266
      %v395 = vunpack.c.l.bf16 %v267
      %v396 = vunpack.c.l.bf16 %v268
      %v397 = vunpack.c.l.bf16 %v269
      %v398 = vunpack.c.l.bf16 %v270
      %v399 = vunpack.c.l.bf16 %v271
      %v400 = vunpack.c.l.bf16 %v272
      %v401 = vunpack.c.l.bf16 %v273
      %v402 = vunpack.c.l.bf16 %v274
      %v403 = vunpack.c.l.bf16 %v275
      %v404 = vunpack.c.l.bf16 %v276
      %v405 = vunpack.c.l.bf16 %v277
      %v406 = vunpack.c.l.bf16 %v278
      %vm407 = vcmask 130048
      %v408 = vsel %vm407, %v279, 0.0
      %v409 = vsel %vm407, %v280, 0.0
      %v410 = vadd.f32 %v408, %v409
      %v411 = vsel %vm407, %v281, 0.0
      %v412 = vadd.f32 %v410, %v411
      %v413 = vsel %vm407, %v282, 0.0
      %v414 = vadd.f32 %v412, %v413
      %v415 = vsel %vm407, %v283, 0.0
      %v416 = vadd.f32 %v414, %v415
      %v417 = vsel %vm407, %v284, 0.0
      %v418 = vadd.f32 %v416, %v417
      %v419 = vsel %vm407, %v285, 0.0
      %v420 = vadd.f32 %v418, %v419
      %v421 = vsel %vm407, %v286, 0.0
      %v422 = vadd.f32 %v420, %v421
      %v423 = vsel %vm407, %v287, 0.0
      %v424 = vadd.f32 %v422, %v423
      %v425 = vsel %vm407, %v288, 0.0
      %v426 = vadd.f32 %v424, %v425
      %v427 = vsel %vm407, %v289, 0.0
      %v428 = vadd.f32 %v426, %v427
      %v429 = vsel %vm407, %v290, 0.0
      %v430 = vadd.f32 %v428, %v429
      %v431 = vsel %vm407, %v291, 0.0
      %v432 = vadd.f32 %v430, %v431
      %v433 = vsel %vm407, %v292, 0.0
      %v434 = vadd.f32 %v432, %v433
      %v435 = vsel %vm407, %v293, 0.0
      %v436 = vadd.f32 %v434, %v435
      %v437 = vsel %vm407, %v294, 0.0
      %v438 = vadd.f32 %v436, %v437
      %v439 = vsel %vm407, %v295, 0.0
      %v440 = vadd.f32 %v438, %v439
      %v441 = vsel %vm407, %v296, 0.0
      %v442 = vadd.f32 %v440, %v441
      %v443 = vsel %vm407, %v297, 0.0
      %v444 = vadd.f32 %v442, %v443
      %v445 = vsel %vm407, %v298, 0.0
      %v446 = vadd.f32 %v444, %v445
      %v447 = vsel %vm407, %v299, 0.0
      %v448 = vadd.f32 %v446, %v447
      %v449 = vsel %vm407, %v300, 0.0
      %v450 = vadd.f32 %v448, %v449
      %v451 = vsel %vm407, %v301, 0.0
      %v452 = vadd.f32 %v450, %v451
      %v453 = vsel %vm407, %v302, 0.0
      %v454 = vadd.f32 %v452, %v453
      %v455 = vsel %vm407, %v303, 0.0
      %v456 = vadd.f32 %v454, %v455
      %v457 = vsel %vm407, %v304, 0.0
      %v458 = vadd.f32 %v456, %v457
      %v459 = vsel %vm407, %v305, 0.0
      %v460 = vadd.f32 %v458, %v459
      %v461 = vsel %vm407, %v306, 0.0
      %v462 = vadd.f32 %v460, %v461
      %v463 = vsel %vm407, %v307, 0.0
      %v464 = vadd.f32 %v462, %v463
      %v465 = vsel %vm407, %v308, 0.0
      %v466 = vadd.f32 %v464, %v465
      %v467 = vsel %vm407, %v309, 0.0
      %v468 = vadd.f32 %v466, %v467
      %v469 = vsel %vm407, %v310, 0.0
      %v470 = vadd.f32 %v468, %v469
      %v471 = vsel %vm407, %v311, 0.0
      %v472 = vadd.f32 %v470, %v471
      %v473 = vsel %vm407, %v312, 0.0
      %v474 = vadd.f32 %v472, %v473
      %v475 = vsel %vm407, %v313, 0.0
      %v476 = vadd.f32 %v474, %v475
      %v477 = vsel %vm407, %v314, 0.0
      %v478 = vadd.f32 %v476, %v477
      %v479 = vsel %vm407, %v315, 0.0
      %v480 = vadd.f32 %v478, %v479
      %v481 = vsel %vm407, %v316, 0.0
      %v482 = vadd.f32 %v480, %v481
      %v483 = vsel %vm407, %v317, 0.0
      %v484 = vadd.f32 %v482, %v483
      %v485 = vsel %vm407, %v318, 0.0
      %v486 = vadd.f32 %v484, %v485
      %v487 = vsel %vm407, %v319, 0.0
      %v488 = vadd.f32 %v486, %v487
      %v489 = vsel %vm407, %v320, 0.0
      %v490 = vadd.f32 %v488, %v489
      %v491 = vsel %vm407, %v321, 0.0
      %v492 = vadd.f32 %v490, %v491
      %v493 = vsel %vm407, %v322, 0.0
      %v494 = vadd.f32 %v492, %v493
      %v495 = vsel %vm407, %v323, 0.0
      %v496 = vadd.f32 %v494, %v495
      %v497 = vsel %vm407, %v324, 0.0
      %v498 = vadd.f32 %v496, %v497
      %v499 = vsel %vm407, %v325, 0.0
      %v500 = vadd.f32 %v498, %v499
      %v501 = vsel %vm407, %v326, 0.0
      %v502 = vadd.f32 %v500, %v501
      %v503 = vsel %vm407, %v327, 0.0
      %v504 = vadd.f32 %v502, %v503
      %v505 = vsel %vm407, %v328, 0.0
      %v506 = vadd.f32 %v504, %v505
      %v507 = vsel %vm407, %v329, 0.0
      %v508 = vadd.f32 %v506, %v507
      %v509 = vsel %vm407, %v330, 0.0
      %v510 = vadd.f32 %v508, %v509
      %v511 = vsel %vm407, %v331, 0.0
      %v512 = vadd.f32 %v510, %v511
      %v513 = vsel %vm407, %v332, 0.0
      %v514 = vadd.f32 %v512, %v513
      %v515 = vsel %vm407, %v333, 0.0
      %v516 = vadd.f32 %v514, %v515
      %v517 = vsel %vm407, %v334, 0.0
      %v518 = vadd.f32 %v516, %v517
      %v519 = vsel %vm407, %v335, 0.0
      %v520 = vadd.f32 %v518, %v519
      %v521 = vsel %vm407, %v336, 0.0
      %v522 = vadd.f32 %v520, %v521
      %v523 = vsel %vm407, %v337, 0.0
      %v524 = vadd.f32 %v522, %v523
      %v525 = vsel %vm407, %v338, 0.0
      %v526 = vadd.f32 %v524, %v525
      %v527 = vsel %vm407, %v339, 0.0
      %v528 = vadd.f32 %v526, %v527
      %v529 = vsel %vm407, %v340, 0.0
      %v530 = vadd.f32 %v528, %v529
      %v531 = vsel %vm407, %v341, 0.0
      %v532 = vadd.f32 %v530, %v531
      %v533 = vsel %vm407, %v342, 0.0
      %v534 = vadd.f32 %v532, %v533
      %v535 = vsel %vm407, %v343, 0.0
      %v536 = vadd.f32 %v534, %v535
      %v537 = vsel %vm407, %v344, 0.0
      %v538 = vadd.f32 %v536, %v537
      %v539 = vsel %vm407, %v345, 0.0
      %v540 = vadd.f32 %v538, %v539
      %v541 = vsel %vm407, %v346, 0.0
      %v542 = vadd.f32 %v540, %v541
      %v543 = vsel %vm407, %v347, 0.0
      %v544 = vadd.f32 %v542, %v543
      %v545 = vsel %vm407, %v348, 0.0
      %v546 = vadd.f32 %v544, %v545
      %v547 = vsel %vm407, %v349, 0.0
      %v548 = vadd.f32 %v546, %v547
      %v549 = vsel %vm407, %v350, 0.0
      %v550 = vadd.f32 %v548, %v549
      %v551 = vsel %vm407, %v351, 0.0
      %v552 = vadd.f32 %v550, %v551
      %v553 = vsel %vm407, %v352, 0.0
      %v554 = vadd.f32 %v552, %v553
      %v555 = vsel %vm407, %v353, 0.0
      %v556 = vadd.f32 %v554, %v555
      %v557 = vsel %vm407, %v354, 0.0
      %v558 = vadd.f32 %v556, %v557
      %v559 = vsel %vm407, %v355, 0.0
      %v560 = vadd.f32 %v558, %v559
      %v561 = vsel %vm407, %v356, 0.0
      %v562 = vadd.f32 %v560, %v561
      %v563 = vsel %vm407, %v357, 0.0
      %v564 = vadd.f32 %v562, %v563
      %v565 = vsel %vm407, %v358, 0.0
      %v566 = vadd.f32 %v564, %v565
      %v567 = vsel %vm407, %v359, 0.0
      %v568 = vadd.f32 %v566, %v567
      %v569 = vsel %vm407, %v360, 0.0
      %v570 = vadd.f32 %v568, %v569
      %v571 = vsel %vm407, %v361, 0.0
      %v572 = vadd.f32 %v570, %v571
      %v573 = vsel %vm407, %v362, 0.0
      %v574 = vadd.f32 %v572, %v573
      %v575 = vsel %vm407, %v363, 0.0
      %v576 = vadd.f32 %v574, %v575
      %v577 = vsel %vm407, %v364, 0.0
      %v578 = vadd.f32 %v576, %v577
      %v579 = vsel %vm407, %v365, 0.0
      %v580 = vadd.f32 %v578, %v579
      %v581 = vsel %vm407, %v366, 0.0
      %v582 = vadd.f32 %v580, %v581
      %v583 = vsel %vm407, %v367, 0.0
      %v584 = vadd.f32 %v582, %v583
      %v585 = vsel %vm407, %v368, 0.0
      %v586 = vadd.f32 %v584, %v585
      %v587 = vsel %vm407, %v369, 0.0
      %v588 = vadd.f32 %v586, %v587
      %v589 = vsel %vm407, %v370, 0.0
      %v590 = vadd.f32 %v588, %v589
      %v591 = vsel %vm407, %v371, 0.0
      %v592 = vadd.f32 %v590, %v591
      %v593 = vsel %vm407, %v372, 0.0
      %v594 = vadd.f32 %v592, %v593
      %v595 = vsel %vm407, %v373, 0.0
      %v596 = vadd.f32 %v594, %v595
      %v597 = vsel %vm407, %v374, 0.0
      %v598 = vadd.f32 %v596, %v597
      %v599 = vsel %vm407, %v375, 0.0
      %v600 = vadd.f32 %v598, %v599
      %v601 = vsel %vm407, %v376, 0.0
      %v602 = vadd.f32 %v600, %v601
      %v603 = vsel %vm407, %v377, 0.0
      %v604 = vadd.f32 %v602, %v603
      %v605 = vsel %vm407, %v378, 0.0
      %v606 = vadd.f32 %v604, %v605
      %v607 = vsel %vm407, %v379, 0.0
      %v608 = vadd.f32 %v606, %v607
      %v609 = vsel %vm407, %v380, 0.0
      %v610 = vadd.f32 %v608, %v609
      %v611 = vsel %vm407, %v381, 0.0
      %v612 = vadd.f32 %v610, %v611
      %v613 = vsel %vm407, %v382, 0.0
      %v614 = vadd.f32 %v612, %v613
      %v615 = vsel %vm407, %v383, 0.0
      %v616 = vadd.f32 %v614, %v615
      %v617 = vsel %vm407, %v384, 0.0
      %v618 = vadd.f32 %v616, %v617
      %v619 = vsel %vm407, %v385, 0.0
      %v620 = vadd.f32 %v618, %v619
      %v621 = vsel %vm407, %v386, 0.0
      %v622 = vadd.f32 %v620, %v621
      %v623 = vsel %vm407, %v387, 0.0
      %v624 = vadd.f32 %v622, %v623
      %v625 = vsel %vm407, %v388, 0.0
      %v626 = vadd.f32 %v624, %v625
      %v627 = vsel %vm407, %v389, 0.0
      %v628 = vadd.f32 %v626, %v627
      %v629 = vsel %vm407, %v390, 0.0
      %v630 = vadd.f32 %v628, %v629
      %v631 = vsel %vm407, %v391, 0.0
      %v632 = vadd.f32 %v630, %v631
      %v633 = vsel %vm407, %v392, 0.0
      %v634 = vadd.f32 %v632, %v633
      %v635 = vsel %vm407, %v393, 0.0
      %v636 = vadd.f32 %v634, %v635
      %v637 = vsel %vm407, %v394, 0.0
      %v638 = vadd.f32 %v636, %v637
      %v639 = vsel %vm407, %v395, 0.0
      %v640 = vadd.f32 %v638, %v639
      %v641 = vsel %vm407, %v396, 0.0
      %v642 = vadd.f32 %v640, %v641
      %v643 = vsel %vm407, %v397, 0.0
      %v644 = vadd.f32 %v642, %v643
      %v645 = vsel %vm407, %v398, 0.0
      %v646 = vadd.f32 %v644, %v645
      %v647 = vsel %vm407, %v399, 0.0
      %v648 = vadd.f32 %v646, %v647
      %v649 = vsel %vm407, %v400, 0.0
      %v650 = vadd.f32 %v648, %v649
      %v651 = vsel %vm407, %v401, 0.0
      %v652 = vadd.f32 %v650, %v651
      %v653 = vsel %vm407, %v402, 0.0
      %v654 = vadd.f32 %v652, %v653
      %v655 = vsel %vm407, %v403, 0.0
      %v656 = vadd.f32 %v654, %v655
      %v657 = vsel %vm407, %v404, 0.0
      %v658 = vadd.f32 %v656, %v657
      %v659 = vsel %vm407, %v405, 0.0
      %v660 = vadd.f32 %v658, %v659
      %v661 = vsel %vm407, %v406, 0.0
      %v662 = vadd.f32 %v660, %v661
      %v663 = vrot.slane %v662, 4
      %v664 = vadd.f32 %v662, %v663
      %v665 = vrot.slane %v664, 2
      %v666 = vadd.f32 %v664, %v665
      %v667 = vrot.slane %v666, 1
      %v668 = vadd.f32 %v666, %v667
      %vm669 = vcmask 122880
      %670 = vst.msk [vmem:[%s147] sm:$0x1] %vm669, %v668
      %v671 = vmul.f32 %v279, %v279
      %v672 = vmul.f32 %v280, %v280
      %v673 = vmul.f32 %v281, %v281
      %v674 = vmul.f32 %v282, %v282
      %v675 = vmul.f32 %v283, %v283
      %v676 = vmul.f32 %v284, %v284
      %v677 = vmul.f32 %v285, %v285
      %v678 = vmul.f32 %v286, %v286
      %v679 = vmul.f32 %v287, %v287
      %v680 = vmul.f32 %v288, %v288
      %v681 = vmul.f32 %v289, %v289
      %v682 = vmul.f32 %v290, %v290
      %v683 = vmul.f32 %v291, %v291
      %v684 = vmul.f32 %v292, %v292
      %v685 = vmul.f32 %v293, %v293
      %v686 = vmul.f32 %v294, %v294
      %v687 = vmul.f32 %v295, %v295
      %v688 = vmul.f32 %v296, %v296
      %v689 = vmul.f32 %v297, %v297
      %v690 = vmul.f32 %v298, %v298
      %v691 = vmul.f32 %v299, %v299
      %v692 = vmul.f32 %v300, %v300
      %v693 = vmul.f32 %v301, %v301
      %v694 = vmul.f32 %v302, %v302
      %v695 = vmul.f32 %v303, %v303
      %v696 = vmul.f32 %v304, %v304
      %v697 = vmul.f32 %v305, %v305
      %v698 = vmul.f32 %v306, %v306
      %v699 = vmul.f32 %v307, %v307
      %v700 = vmul.f32 %v308, %v308
      %v701 = vmul.f32 %v309, %v309
      %v702 = vmul.f32 %v310, %v310
      %v703 = vmul.f32 %v311, %v311
      %v704 = vmul.f32 %v312, %v312
      %v705 = vmul.f32 %v313, %v313
      %v706 = vmul.f32 %v314, %v314
      %v707 = vmul.f32 %v315, %v315
      %v708 = vmul.f32 %v316, %v316
      %v709 = vmul.f32 %v317, %v317
      %v710 = vmul.f32 %v318, %v318
      %v711 = vmul.f32 %v319, %v319
      %v712 = vmul.f32 %v320, %v320
      %v713 = vmul.f32 %v321, %v321
      %v714 = vmul.f32 %v322, %v322
      %v715 = vmul.f32 %v323, %v323
      %v716 = vmul.f32 %v324, %v324
      %v717 = vmul.f32 %v325, %v325
      %v718 = vmul.f32 %v326, %v326
      %v719 = vmul.f32 %v327, %v327
      %v720 = vmul.f32 %v328, %v328
      %v721 = vmul.f32 %v329, %v329
      %v722 = vmul.f32 %v330, %v330
      %v723 = vmul.f32 %v331, %v331
      %v724 = vmul.f32 %v332, %v332
      %v725 = vmul.f32 %v333, %v333
      %v726 = vmul.f32 %v334, %v334
      %v727 = vmul.f32 %v335, %v335
      %v728 = vmul.f32 %v336, %v336
      %v729 = vmul.f32 %v337, %v337
      %v730 = vmul.f32 %v338, %v338
      %v731 = vmul.f32 %v339, %v339
      %v732 = vmul.f32 %v340, %v340
      %v733 = vmul.f32 %v341, %v341
      %v734 = vmul.f32 %v342, %v342
      %v735 = vmul.f32 %v343, %v343
      %v736 = vmul.f32 %v344, %v344
      %v737 = vmul.f32 %v345, %v345
      %v738 = vmul.f32 %v346, %v346
      %v739 = vmul.f32 %v347, %v347
      %v740 = vmul.f32 %v348, %v348
      %v741 = vmul.f32 %v349, %v349
      %v742 = vmul.f32 %v350, %v350
      %v743 = vmul.f32 %v351, %v351
      %v744 = vmul.f32 %v352, %v352
      %v745 = vmul.f32 %v353, %v353
      %v746 = vmul.f32 %v354, %v354
      %v747 = vmul.f32 %v355, %v355
      %v748 = vmul.f32 %v356, %v356
      %v749 = vmul.f32 %v357, %v357
      %v750 = vmul.f32 %v358, %v358
      %v751 = vmul.f32 %v359, %v359
      %v752 = vmul.f32 %v360, %v360
      %v753 = vmul.f32 %v361, %v361
      %v754 = vmul.f32 %v362, %v362
      %v755 = vmul.f32 %v363, %v363
      %v756 = vmul.f32 %v364, %v364
      %v757 = vmul.f32 %v365, %v365
      %v758 = vmul.f32 %v366, %v366
      %v759 = vmul.f32 %v367, %v367
      %v760 = vmul.f32 %v368, %v368
      %v761 = vmul.f32 %v369, %v369
      %v762 = vmul.f32 %v370, %v370
      %v763 = vmul.f32 %v371, %v371
      %v764 = vmul.f32 %v372, %v372
      %v765 = vmul.f32 %v373, %v373
      %v766 = vmul.f32 %v374, %v374
      %v767 = vmul.f32 %v375, %v375
      %v768 = vmul.f32 %v376, %v376
      %v769 = vmul.f32 %v377, %v377
      %v770 = vmul.f32 %v378, %v378
      %v771 = vmul.f32 %v379, %v379
      %v772 = vmul.f32 %v380, %v380
      %v773 = vmul.f32 %v381, %v381
      %v774 = vmul.f32 %v382, %v382
      %v775 = vmul.f32 %v383, %v383
      %v776 = vmul.f32 %v384, %v384
      %v777 = vmul.f32 %v385, %v385
      %v778 = vmul.f32 %v386, %v386
      %v779 = vmul.f32 %v387, %v387
      %v780 = vmul.f32 %v388, %v388
      %v781 = vmul.f32 %v389, %v389
      %v782 = vmul.f32 %v390, %v390
      %v783 = vmul.f32 %v391, %v391
      %v784 = vmul.f32 %v392, %v392
      %v785 = vmul.f32 %v393, %v393
      %v786 = vmul.f32 %v394, %v394
      %v787 = vmul.f32 %v395, %v395
      %v788 = vmul.f32 %v396, %v396
      %v789 = vmul.f32 %v397, %v397
      %v790 = vmul.f32 %v398, %v398
      %v791 = vmul.f32 %v399, %v399
      %v792 = vmul.f32 %v400, %v400
      %v793 = vmul.f32 %v401, %v401
      %v794 = vmul.f32 %v402, %v402
      %v795 = vmul.f32 %v403, %v403
      %v796 = vmul.f32 %v404, %v404
      %v797 = vmul.f32 %v405, %v405
      %v798 = vmul.f32 %v406, %v406
      %v799 = vsel %vm407, %v671, 0.0
      %v800 = vsel %vm407, %v672, 0.0
      %v801 = vadd.f32 %v799, %v800
      %v802 = vsel %vm407, %v673, 0.0
      %v803 = vadd.f32 %v801, %v802
      %v804 = vsel %vm407, %v674, 0.0
      %v805 = vadd.f32 %v803, %v804
      %v806 = vsel %vm407, %v675, 0.0
      %v807 = vadd.f32 %v805, %v806
      %v808 = vsel %vm407, %v676, 0.0
      %v809 = vadd.f32 %v807, %v808
      %v810 = vsel %vm407, %v677, 0.0
      %v811 = vadd.f32 %v809, %v810
      %v812 = vsel %vm407, %v678, 0.0
      %v813 = vadd.f32 %v811, %v812
      %v814 = vsel %vm407, %v679, 0.0
      %v815 = vadd.f32 %v813, %v814
      %v816 = vsel %vm407, %v680, 0.0
      %v817 = vadd.f32 %v815, %v816
      %v818 = vsel %vm407, %v681, 0.0
      %v819 = vadd.f32 %v817, %v818
      %v820 = vsel %vm407, %v682, 0.0
      %v821 = vadd.f32 %v819, %v820
      %v822 = vsel %vm407, %v683, 0.0
      %v823 = vadd.f32 %v821, %v822
      %v824 = vsel %vm407, %v684, 0.0
      %v825 = vadd.f32 %v823, %v824
      %v826 = vsel %vm407, %v685, 0.0
      %v827 = vadd.f32 %v825, %v826
      %v828 = vsel %vm407, %v686, 0.0
      %v829 = vadd.f32 %v827, %v828
      %v830 = vsel %vm407, %v687, 0.0
      %v831 = vadd.f32 %v829, %v830
      %v832 = vsel %vm407, %v688, 0.0
      %v833 = vadd.f32 %v831, %v832
      %v834 = vsel %vm407, %v689, 0.0
      %v835 = vadd.f32 %v833, %v834
      %v836 = vsel %vm407, %v690, 0.0
      %v837 = vadd.f32 %v835, %v836
      %v838 = vsel %vm407, %v691, 0.0
      %v839 = vadd.f32 %v837, %v838
      %v840 = vsel %vm407, %v692, 0.0
      %v841 = vadd.f32 %v839, %v840
      %v842 = vsel %vm407, %v693, 0.0
      %v843 = vadd.f32 %v841, %v842
      %v844 = vsel %vm407, %v694, 0.0
      %v845 = vadd.f32 %v843, %v844
      %v846 = vsel %vm407, %v695, 0.0
      %v847 = vadd.f32 %v845, %v846
      %v848 = vsel %vm407, %v696, 0.0
      %v849 = vadd.f32 %v847, %v848
      %v850 = vsel %vm407, %v697, 0.0
      %v851 = vadd.f32 %v849, %v850
      %v852 = vsel %vm407, %v698, 0.0
      %v853 = vadd.f32 %v851, %v852
      %v854 = vsel %vm407, %v699, 0.0
      %v855 = vadd.f32 %v853, %v854
      %v856 = vsel %vm407, %v700, 0.0
      %v857 = vadd.f32 %v855, %v856
      %v858 = vsel %vm407, %v701, 0.0
      %v859 = vadd.f32 %v857, %v858
      %v860 = vsel %vm407, %v702, 0.0
      %v861 = vadd.f32 %v859, %v860
      %v862 = vsel %vm407, %v703, 0.0
      %v863 = vadd.f32 %v861, %v862
      %v864 = vsel %vm407, %v704, 0.0
      %v865 = vadd.f32 %v863, %v864
      %v866 = vsel %vm407, %v705, 0.0
      %v867 = vadd.f32 %v865, %v866
      %v868 = vsel %vm407, %v706, 0.0
      %v869 = vadd.f32 %v867, %v868
      %v870 = vsel %vm407, %v707, 0.0
      %v871 = vadd.f32 %v869, %v870
      %v872 = vsel %vm407, %v708, 0.0
      %v873 = vadd.f32 %v871, %v872
      %v874 = vsel %vm407, %v709, 0.0
      %v875 = vadd.f32 %v873, %v874
      %v876 = vsel %vm407, %v710, 0.0
      %v877 = vadd.f32 %v875, %v876
      %v878 = vsel %vm407, %v711, 0.0
      %v879 = vadd.f32 %v877, %v878
      %v880 = vsel %vm407, %v712, 0.0
      %v881 = vadd.f32 %v879, %v880
      %v882 = vsel %vm407, %v713, 0.0
      %v883 = vadd.f32 %v881, %v882
      %v884 = vsel %vm407, %v714, 0.0
      %v885 = vadd.f32 %v883, %v884
      %v886 = vsel %vm407, %v715, 0.0
      %v887 = vadd.f32 %v885, %v886
      %v888 = vsel %vm407, %v716, 0.0
      %v889 = vadd.f32 %v887, %v888
      %v890 = vsel %vm407, %v717, 0.0
      %v891 = vadd.f32 %v889, %v890
      %v892 = vsel %vm407, %v718, 0.0
      %v893 = vadd.f32 %v891, %v892
      %v894 = vsel %vm407, %v719, 0.0
      %v895 = vadd.f32 %v893, %v894
      %v896 = vsel %vm407, %v720, 0.0
      %v897 = vadd.f32 %v895, %v896
      %v898 = vsel %vm407, %v721, 0.0
      %v899 = vadd.f32 %v897, %v898
      %v900 = vsel %vm407, %v722, 0.0
      %v901 = vadd.f32 %v899, %v900
      %v902 = vsel %vm407, %v723, 0.0
      %v903 = vadd.f32 %v901, %v902
      %v904 = vsel %vm407, %v724, 0.0
      %v905 = vadd.f32 %v903, %v904
      %v906 = vsel %vm407, %v725, 0.0
      %v907 = vadd.f32 %v905, %v906
      %v908 = vsel %vm407, %v726, 0.0
      %v909 = vadd.f32 %v907, %v908
      %v910 = vsel %vm407, %v727, 0.0
      %v911 = vadd.f32 %v909, %v910
      %v912 = vsel %vm407, %v728, 0.0
      %v913 = vadd.f32 %v911, %v912
      %v914 = vsel %vm407, %v729, 0.0
      %v915 = vadd.f32 %v913, %v914
      %v916 = vsel %vm407, %v730, 0.0
      %v917 = vadd.f32 %v915, %v916
      %v918 = vsel %vm407, %v731, 0.0
      %v919 = vadd.f32 %v917, %v918
      %v920 = vsel %vm407, %v732, 0.0
      %v921 = vadd.f32 %v919, %v920
      %v922 = vsel %vm407, %v733, 0.0
      %v923 = vadd.f32 %v921, %v922
      %v924 = vsel %vm407, %v734, 0.0
      %v925 = vadd.f32 %v923, %v924
      %v926 = vsel %vm407, %v735, 0.0
      %v927 = vadd.f32 %v925, %v926
      %v928 = vsel %vm407, %v736, 0.0
      %v929 = vadd.f32 %v927, %v928
      %v930 = vsel %vm407, %v737, 0.0
      %v931 = vadd.f32 %v929, %v930
      %v932 = vsel %vm407, %v738, 0.0
      %v933 = vadd.f32 %v931, %v932
      %v934 = vsel %vm407, %v739, 0.0
      %v935 = vadd.f32 %v933, %v934
      %v936 = vsel %vm407, %v740, 0.0
      %v937 = vadd.f32 %v935, %v936
      %v938 = vsel %vm407, %v741, 0.0
      %v939 = vadd.f32 %v937, %v938
      %v940 = vsel %vm407, %v742, 0.0
      %v941 = vadd.f32 %v939, %v940
      %v942 = vsel %vm407, %v743, 0.0
      %v943 = vadd.f32 %v941, %v942
      %v944 = vsel %vm407, %v744, 0.0
      %v945 = vadd.f32 %v943, %v944
      %v946 = vsel %vm407, %v745, 0.0
      %v947 = vadd.f32 %v945, %v946
      %v948 = vsel %vm407, %v746, 0.0
      %v949 = vadd.f32 %v947, %v948
      %v950 = vsel %vm407, %v747, 0.0
      %v951 = vadd.f32 %v949, %v950
      %v952 = vsel %vm407, %v748, 0.0
      %v953 = vadd.f32 %v951, %v952
      %v954 = vsel %vm407, %v749, 0.0
      %v955 = vadd.f32 %v953, %v954
      %v956 = vsel %vm407, %v750, 0.0
      %v957 = vadd.f32 %v955, %v956
      %v958 = vsel %vm407, %v751, 0.0
      %v959 = vadd.f32 %v957, %v958
      %v960 = vsel %vm407, %v752, 0.0
      %v961 = vadd.f32 %v959, %v960
      %v962 = vsel %vm407, %v753, 0.0
      %v963 = vadd.f32 %v961, %v962
      %v964 = vsel %vm407, %v754, 0.0
      %v965 = vadd.f32 %v963, %v964
      %v966 = vsel %vm407, %v755, 0.0
      %v967 = vadd.f32 %v965, %v966
      %v968 = vsel %vm407, %v756, 0.0
      %v969 = vadd.f32 %v967, %v968
      %v970 = vsel %vm407, %v757, 0.0
      %v971 = vadd.f32 %v969, %v970
      %v972 = vsel %vm407, %v758, 0.0
      %v973 = vadd.f32 %v971, %v972
      %v974 = vsel %vm407, %v759, 0.0
      %v975 = vadd.f32 %v973, %v974
      %v976 = vsel %vm407, %v760, 0.0
      %v977 = vadd.f32 %v975, %v976
      %v978 = vsel %vm407, %v761, 0.0
      %v979 = vadd.f32 %v977, %v978
      %v980 = vsel %vm407, %v762, 0.0
      %v981 = vadd.f32 %v979, %v980
      %v982 = vsel %vm407, %v763, 0.0
      %v983 = vadd.f32 %v981, %v982
      %v984 = vsel %vm407, %v764, 0.0
      %v985 = vadd.f32 %v983, %v984
      %v986 = vsel %vm407, %v765, 0.0
      %v987 = vadd.f32 %v985, %v986
      %v988 = vsel %vm407, %v766, 0.0
      %v989 = vadd.f32 %v987, %v988
      %v990 = vsel %vm407, %v767, 0.0
      %v991 = vadd.f32 %v989, %v990
      %v992 = vsel %vm407, %v768, 0.0
      %v993 = vadd.f32 %v991, %v992
      %v994 = vsel %vm407, %v769, 0.0
      %v995 = vadd.f32 %v993, %v994
      %v996 = vsel %vm407, %v770, 0.0
      %v997 = vadd.f32 %v995, %v996
      %v998 = vsel %vm407, %v771, 0.0
      %v999 = vadd.f32 %v997, %v998
      %v1000 = vsel %vm407, %v772, 0.0
      %v1001 = vadd.f32 %v999, %v1000
      %v1002 = vsel %vm407, %v773, 0.0
      %v1003 = vadd.f32 %v1001, %v1002
      %v1004 = vsel %vm407, %v774, 0.0
      %v1005 = vadd.f32 %v1003, %v1004
      %v1006 = vsel %vm407, %v775, 0.0
      %v1007 = vadd.f32 %v1005, %v1006
      %v1008 = vsel %vm407, %v776, 0.0
      %v1009 = vadd.f32 %v1007, %v1008
      %v1010 = vsel %vm407, %v777, 0.0
      %v1011 = vadd.f32 %v1009, %v1010
      %v1012 = vsel %vm407, %v778, 0.0
      %v1013 = vadd.f32 %v1011, %v1012
      %v1014 = vsel %vm407, %v779, 0.0
      %v1015 = vadd.f32 %v1013, %v1014
      %v1016 = vsel %vm407, %v780, 0.0
      %v1017 = vadd.f32 %v1015, %v1016
      %v1018 = vsel %vm407, %v781, 0.0
      %v1019 = vadd.f32 %v1017, %v1018
      %v1020 = vsel %vm407, %v782, 0.0
      %v1021 = vadd.f32 %v1019, %v1020
      %v1022 = vsel %vm407, %v783, 0.0
      %v1023 = vadd.f32 %v1021, %v1022
      %v1024 = vsel %vm407, %v784, 0.0
      %v1025 = vadd.f32 %v1023, %v1024
      %v1026 = vsel %vm407, %v785, 0.0
      %v1027 = vadd.f32 %v1025, %v1026
      %v1028 = vsel %vm407, %v786, 0.0
      %v1029 = vadd.f32 %v1027, %v1028
      %v1030 = vsel %vm407, %v787, 0.0
      %v1031 = vadd.f32 %v1029, %v1030
      %v1032 = vsel %vm407, %v788, 0.0
      %v1033 = vadd.f32 %v1031, %v1032
      %v1034 = vsel %vm407, %v789, 0.0
      %v1035 = vadd.f32 %v1033, %v1034
      %v1036 = vsel %vm407, %v790, 0.0
      %v1037 = vadd.f32 %v1035, %v1036
      %v1038 = vsel %vm407, %v791, 0.0
      %v1039 = vadd.f32 %v1037, %v1038
      %v1040 = vsel %vm407, %v792, 0.0
      %v1041 = vadd.f32 %v1039, %v1040
      %v1042 = vsel %vm407, %v793, 0.0
      %v1043 = vadd.f32 %v1041, %v1042
      %v1044 = vsel %vm407, %v794, 0.0
      %v1045 = vadd.f32 %v1043, %v1044
      %v1046 = vsel %vm407, %v795, 0.0
      %v1047 = vadd.f32 %v1045, %v1046
      %v1048 = vsel %vm407, %v796, 0.0
      %v1049 = vadd.f32 %v1047, %v1048
      %v1050 = vsel %vm407, %v797, 0.0
      %v1051 = vadd.f32 %v1049, %v1050
      %v1052 = vsel %vm407, %v798, 0.0
      %v1053 = vadd.f32 %v1051, %v1052
      %v1054 = vrot.slane %v1053, 4
      %v1055 = vadd.f32 %v1053, %v1054
      %v1056 = vrot.slane %v1055, 2
      %v1057 = vadd.f32 %v1055, %v1056
      %v1058 = vrot.slane %v1057, 1
      %v1059 = vadd.f32 %v1057, %v1058
      %1060 = vst.msk [vmem:[%s150] sm:$0x1] %vm669, %v1059
      %p1061 = scmp.lt.s32.totalorder %s14, 1
      %s1062 = scalar_select %p1061, %s14, 1
      %s1063 = scalar_lea.vmem %s1, %s1062
      %p1064 = scmp.lt.s32.totalorder %s14, 1
      %s1065 = scalar_select %p1064, %s14, 1
      %s1066 = scalar_lea.vmem %s2, %s1065
      // Predicated region
      $region25: #{generator_forward.17} parent=23 // pred_check
        %p1067 = pneg %p58
      $region26: #{generator_forward.17} parent=23 // pred_check_branch
        %1069 = sbr.rel (%p1067) target = $region28
      $region27: #{generator_forward.17} parent=23 // pred_region
        _
      $region28: #{generator_forward.17} parent=23 // pred_fallthru
        _
      // Predicated region
      $region29: #{generator_forward.17} parent=23 // pred_check
        %p1070 = pneg %p84
      $region30: #{generator_forward.17} parent=23 // pred_check_branch
        %1072 = sbr.rel (%p1070) target = $region32
      $region31: #{generator_forward.17} parent=23 // pred_region
        _
      $region32: #{generator_forward.17} parent=23 // pred_fallthru
        _
    $region24: #{generator_forward.17} parent=5 // pred_fallthru
      _
    %p1073 = scmp.le.s32.totalorder 2, %s9
    // Predicated region
    $region33: #{generator_forward.17} parent=5 // pred_check
      %p1074 = pneg %p1073
    $region34: #{generator_forward.17} parent=5 // pred_check_branch
      %1076 = sbr.rel (%p1074) target = $region36
    $region35: #{generator_forward.17} parent=5 // pred_region
      %s1077 = ssub.s32 %s9, 2
      // Predicated region
      $region37: #{generator_forward.17} parent=35 // pred_check
        %p1078 = pneg %p64
      $region38: #{generator_forward.17} parent=35 // pred_check_branch
        %1080 = sbr.rel (%p1078) target = $region40
      $region39: #{generator_forward.17} parent=35 // pred_region
        %p1081 = scmp.lt.s32.totalorder %s15, 1
        %s1082 = scalar_select %p1081, %s15, 1
        %s1083 = scalar_lea.vmem %s1, %s1082
      $region40: #{generator_forward.17} parent=35 // pred_fallthru
        _
      // Predicated region
      $region41: #{generator_forward.17} parent=35 // pred_check
        %p1084 = pneg %p90
      $region42: #{generator_forward.17} parent=35 // pred_check_branch
        %1086 = sbr.rel (%p1084) target = $region44
      $region43: #{generator_forward.17} parent=35 // pred_region
        %p1087 = scmp.lt.s32.totalorder %s15, 1
        %s1088 = scalar_select %p1087, %s15, 1
        %s1089 = scalar_lea.vmem %s2, %s1088
      $region44: #{generator_forward.17} parent=35 // pred_fallthru
        _
    $region36: #{generator_forward.17} parent=5 // pred_fallthru
      _
  $region6: #{generator_forward.17} parent=0 // loop_footer
    %s13 = sadd.s32 1, %s9
  $region7: #{generator_forward.17} parent=0 // loop_footer_branch
    %8 = sbr.rel target = $region3
  $region8: #{generator_forward.17} parent=0 // loop_exit
    _

// kernel: generator_forward.18
$region0: #{generator_forward.18}
  #allocation0 [shape = 'u32[]', space=smem, size = 0x4, offset = 0x4, fixed_abs, tag = 'smem constant byte address 0x4 - core index']
  #allocation1 [shape = 'u32[144,128]{1,0:T(1,128)}', space=vmem, size = 0x12000, scoped, tag = 'internal scratch']
  %s0 = inlined_call_operand.vmem [shape: bf16[2048,16], index: 0, kind: input, shape index: {}]
  %s1 = inlined_call_operand.vmem [shape: f32[1,16], index: 1, kind: input, shape index: {}]
  %s2 = inlined_call_operand.vmem [shape: f32[1,16], index: 2, kind: input, shape index: {}]
  %s3 = inlined_call_operand.vmem [shape: bf16[16,128], index: 3, kind: input, shape index: {}]
  %s4 = inlined_call_operand.vmem [shape: f32[2048,128], index: 4, kind: output, shape index: {}]
  %s5 = sld [smem:[#allocation0]]
  $region49: #{generator_forward.18} parent=0
    _
  %s7 = ssub.s32 1, %s5
  %s8 = scalar_select 0, %s7, %s5
  loop: start=0, step=1, limit=4
  $region2: #{generator_forward.18} parent=0 // loop_pre_header
    _
  $region3: #{generator_forward.18} parent=0 // loop_header
    %s10 = sphi 0, %s14
    %p11 = scmp.ge.s32.totalorder %s10, 4
    %s20 = sphi 0, %s22
    %s23 = sphi 0, %s20
    %s24 = sphi 0, %s23
    %s40 = sphi 0, %s24
    %s44 = sphi 0, %s44
    %s46 = sphi 0, %s44
    %s47 = sphi 0, %s46
    %s61 = sphi 0, %s47
    %s65 = sphi 0, %s65
    %s67 = sphi 0, %s65
    %s68 = sphi 0, %s67
    %s82 = sphi 0, %s68
    %s86 = sphi 0, %s86
    %s88 = sphi 0, %s86
    %s89 = sphi 0, %s88
    %s103 = sphi 0, %s89
    %s109 = sphi 0, %s111
    %s112 = sphi 0, %s109
    %s113 = sphi 0, %s112
    %s129 = sphi 0, %s113
  $region4: #{generator_forward.18} parent=0 // loop_header_branch
    %13 = sbr.rel (%p11) target = $region8
  $region5: #{generator_forward.18} parent=0 // loop_body
    %s15 = ssub.s32 %s10, 1
    %s16 = ssub.s32 %s10, 2
    %s17 = sadd.s32 %s10, 1
    %s18 = ssub.s32 %s10, %s17
    %p19 = scmp.eq.s32.totalorder %s18, 0
    %s21 = sadd.s32 %s20, 1
    %s22 = scalar_select %p19, %s20, %s21
    %p25 = pneg %p19
    %p26 = scmp.eq.s32.totalorder %s10, 1
    %p27 = por %p25, %p26
    %p28 = scmp.ne.s32.totalorder %s20, %s23
    %p29 = scmp.eq.s32.totalorder %s10, 0
    %p30 = por %p28, %p29
    %p31 = scmp.ne.s32.totalorder %s20, %s23
    %p32 = scmp.eq.s32.totalorder %s15, 1
    %p33 = por %p31, %p32
    %p34 = scmp.ne.s32.totalorder %s23, %s24
    %p35 = scmp.eq.s32.totalorder %s15, 0
    %p36 = por %p34, %p35
    %p37 = scmp.ne.s32.totalorder %s23, %s24
    %p38 = scmp.eq.s32.totalorder %s16, 1
    %p39 = por %p37, %p38
    %p41 = scmp.ne.s32.totalorder %s24, %s40
    %p42 = scmp.eq.s32.totalorder %s16, 0
    %p43 = por %p41, %p42
    %s45 = sadd.s32 %s44, 1
    %p48 = scmp.eq.s32.totalorder %s10, 1
    %p49 = scmp.ne.s32.totalorder %s44, %s46
    %p50 = scmp.eq.s32.totalorder %s10, 0
    %p51 = por %p49, %p50
    %p52 = scmp.ne.s32.totalorder %s44, %s46
    %p53 = scmp.eq.s32.totalorder %s15, 1
    %p54 = por %p52, %p53
    %p55 = scmp.ne.s32.totalorder %s46, %s47
    %p56 = scmp.eq.s32.totalorder %s15, 0
    %p57 = por %p55, %p56
    %p58 = scmp.ne.s32.totalorder %s46, %s47
    %p59 = scmp.eq.s32.totalorder %s16, 1
    %p60 = por %p58, %p59
    %p62 = scmp.ne.s32.totalorder %s47, %s61
    %p63 = scmp.eq.s32.totalorder %s16, 0
    %p64 = por %p62, %p63
    %s66 = sadd.s32 %s65, 1
    %p69 = scmp.eq.s32.totalorder %s10, 1
    %p70 = scmp.ne.s32.totalorder %s65, %s67
    %p71 = scmp.eq.s32.totalorder %s10, 0
    %p72 = por %p70, %p71
    %p73 = scmp.ne.s32.totalorder %s65, %s67
    %p74 = scmp.eq.s32.totalorder %s15, 1
    %p75 = por %p73, %p74
    %p76 = scmp.ne.s32.totalorder %s67, %s68
    %p77 = scmp.eq.s32.totalorder %s15, 0
    %p78 = por %p76, %p77
    %p79 = scmp.ne.s32.totalorder %s67, %s68
    %p80 = scmp.eq.s32.totalorder %s16, 1
    %p81 = por %p79, %p80
    %p83 = scmp.ne.s32.totalorder %s68, %s82
    %p84 = scmp.eq.s32.totalorder %s16, 0
    %p85 = por %p83, %p84
    %s87 = sadd.s32 %s86, 1
    %p90 = scmp.eq.s32.totalorder %s10, 1
    %p91 = scmp.ne.s32.totalorder %s86, %s88
    %p92 = scmp.eq.s32.totalorder %s10, 0
    %p93 = por %p91, %p92
    %p94 = scmp.ne.s32.totalorder %s86, %s88
    %p95 = scmp.eq.s32.totalorder %s15, 1
    %p96 = por %p94, %p95
    %p97 = scmp.ne.s32.totalorder %s88, %s89
    %p98 = scmp.eq.s32.totalorder %s15, 0
    %p99 = por %p97, %p98
    %p100 = scmp.ne.s32.totalorder %s88, %s89
    %p101 = scmp.eq.s32.totalorder %s16, 1
    %p102 = por %p100, %p101
    %p104 = scmp.ne.s32.totalorder %s89, %s103
    %p105 = scmp.eq.s32.totalorder %s16, 0
    %p106 = por %p104, %p105
    %s107 = ssub.s32 %s10, %s17
    %p108 = scmp.eq.s32.totalorder %s107, 0
    %s110 = sadd.s32 %s109, 1
    %s111 = scalar_select %p108, %s109, %s110
    %p114 = pneg %p108
    %p115 = scmp.eq.s32.totalorder %s10, 1
    %p116 = por %p114, %p115
    %p117 = scmp.ne.s32.totalorder %s109, %s112
    %p118 = scmp.eq.s32.totalorder %s10, 0
    %p119 = por %p117, %p118
    %p120 = scmp.ne.s32.totalorder %s109, %s112
    %p121 = scmp.eq.s32.totalorder %s15, 1
    %p122 = por %p120, %p121
    %p123 = scmp.ne.s32.totalorder %s112, %s113
    %p124 = scmp.eq.s32.totalorder %s15, 0
    %p125 = por %p123, %p124
    %p126 = scmp.ne.s32.totalorder %s112, %s113
    %p127 = scmp.eq.s32.totalorder %s16, 1
    %p128 = por %p126, %p127
    %p130 = scmp.ne.s32.totalorder %s113, %s129
    %p131 = scmp.eq.s32.totalorder %s16, 0
    %p132 = por %p130, %p131
    %p133 = scmp.le.s32.totalorder 1, %s10
    %p134 = scmp.lt.s32.totalorder %s10, 3
    %p135 = pnand %p133, %p134
    %p136 = pneg %p135
    // Predicated region
    $region9: #{generator_forward.18} parent=5 // pred_check
      _
    $region10: #{generator_forward.18} parent=5 // pred_check_branch
      %138 = sbr.rel (%p135) target = $region12
    $region11: #{generator_forward.18} parent=5 // pred_region
      %s139 = ssub.s32 %s10, 1
      // Predicated region
      $region13: #{generator_forward.18} parent=11 // pred_check
        %p140 = pneg %p57
      $region14: #{generator_forward.18} parent=11 // pred_check_branch
        %142 = sbr.rel (%p140) target = $region16
      $region15: #{generator_forward.18} parent=11 // pred_region
        _
      $region16: #{generator_forward.18} parent=11 // pred_fallthru
        _
      // Predicated region
      $region17: #{generator_forward.18} parent=11 // pred_check
        %p143 = pneg %p78
      $region18: #{generator_forward.18} parent=11 // pred_check_branch
        %145 = sbr.rel (%p143) target = $region20
      $region19: #{generator_forward.18} parent=11 // pred_region
        _
      $region20: #{generator_forward.18} parent=11 // pred_fallthru
        _
      // Predicated region
      $region21: #{generator_forward.18} parent=11 // pred_check
        %p146 = pneg %p99
      $region22: #{generator_forward.18} parent=11 // pred_check_branch
        %148 = sbr.rel (%p146) target = $region24
      $region23: #{generator_forward.18} parent=11 // pred_region
        _
      $region24: #{generator_forward.18} parent=11 // pred_fallthru
        _
    $region12: #{generator_forward.18} parent=5 // pred_fallthru
      _
    %p149 = scmp.lt.s32.totalorder %s10, 2
    // Predicated region
    $region25: #{generator_forward.18} parent=5 // pred_check
      %p150 = pneg %p149
    $region26: #{generator_forward.18} parent=5 // pred_check_branch
      %152 = sbr.rel (%p150) target = $region28
    $region27: #{generator_forward.18} parent=5 // pred_region
      // Predicated region
      $region29: #{generator_forward.18} parent=27 // pred_check
        %p153 = pneg %p30
      $region30: #{generator_forward.18} parent=27 // pred_check_branch
        %155 = sbr.rel (%p153) target = $region32
      $region31: #{generator_forward.18} parent=27 // pred_region
        %s156 = smul.u32 128, %s10
        %p157 = scmp.lt.s32.totalorder %s156, 255
        %s158 = scalar_select %p157, %s156, 255
        %s159 = smul.addr %s158, 4
        %s160 = scalar_lea.vmem %s0, %s159
        %s161 = smul.u32 128, %s10
      $region32: #{generator_forward.18} parent=27 // pred_fallthru
        _
    $region28: #{generator_forward.18} parent=5 // pred_fallthru
      _
    %p162 = scmp.le.s32.totalorder 1, %s10
    %p163 = scmp.lt.s32.totalorder %s10, 3
    %p164 = pnand %p162, %p163
    %p165 = pneg %p164
    // Predicated region
    $region33: #{generator_forward.18} parent=5 // pred_check
      _
    $region34: #{generator_forward.18} parent=5 // pred_check_branch
      %167 = sbr.rel (%p164) target = $region36
    $region35: #{generator_forward.18} parent=5 // pred_region
      %s168 = ssub.s32 %s10, 1
      %s169 = smul.u32 128, %s15
      %p170 = scmp.lt.s32.totalorder %s169, 255
      %s171 = scalar_select %p170, %s169, 255
      %s172 = smul.addr %s171, 4
      %s173 = scalar_lea.vmem %s0, %s172
      %p174 = pneg %p36
      %p175 = pneg %p33
      %p176 = pneg %p57
      %p177 = pneg %p54
      %p178 = pneg %p78
      %p179 = pneg %p75
      %p180 = pneg %p99
      %p181 = pneg %p96
      %p182 = pneg %p125
      %p183 = pneg %p122
      %s184 = smul.u32 128, %s15
      %p185 = scmp.lt.s32.totalorder %s184, 255
      %s186 = scalar_select %p185, %s184, 255
      %s187 = smul.addr %s186, 8
      %s188 = scalar_lea.vmem %s4, %s187
      %s189 = smul.u32 128, %s15
      %p190 = scmp.lt.s32.totalorder %s189, 255
      %s191 = scalar_select %p190, %s189, 255
      %s192 = smul.addr %s191, 4
      %s193 = scalar_lea.vmem %s0, %s192
      %s194 = smul.u32 128, %s15
      %s195 = smul.u32 128, %s15
      %p196 = scmp.lt.s32.totalorder %s195, 255
      %s197 = scalar_select %p196, %s195, 255
      %s198 = smul.addr %s197, 8
      %s199 = scalar_lea.vmem %s4, %s198
      %s200 = smul.u32 128, %s15
      %v202 = vld [vmem:[%s193] sm:$0xf]
      %v203 = vld [vmem:[%s193 + $0x4] sm:$0xf]
      %v204 = vld [vmem:[%s193 + $0x8] sm:$0xf]
      %v205 = vld [vmem:[%s193 + $0xc] sm:$0xf]
      %v206 = vld [vmem:[%s193 + $0x10] sm:$0xf]
      %v207 = vld [vmem:[%s193 + $0x14] sm:$0xf]
      %v208 = vld [vmem:[%s193 + $0x18] sm:$0xf]
      %v209 = vld [vmem:[%s193 + $0x1c] sm:$0xf]
      %v210 = vld [vmem:[%s193 + $0x20] sm:$0xf]
      %v211 = vld [vmem:[%s193 + $0x24] sm:$0xf]
      %v212 = vld [vmem:[%s193 + $0x28] sm:$0xf]
      %v213 = vld [vmem:[%s193 + $0x2c] sm:$0xf]
      %v214 = vld [vmem:[%s193 + $0x30] sm:$0xf]
      %v215 = vld [vmem:[%s193 + $0x34] sm:$0xf]
      %v216 = vld [vmem:[%s193 + $0x38] sm:$0xf]
      %v217 = vld [vmem:[%s193 + $0x3c] sm:$0xf]
      %v218 = vld [vmem:[%s193 + $0x40] sm:$0xf]
      %v219 = vld [vmem:[%s193 + $0x44] sm:$0xf]
      %v220 = vld [vmem:[%s193 + $0x48] sm:$0xf]
      %v221 = vld [vmem:[%s193 + $0x4c] sm:$0xf]
      %v222 = vld [vmem:[%s193 + $0x50] sm:$0xf]
      %v223 = vld [vmem:[%s193 + $0x54] sm:$0xf]
      %v224 = vld [vmem:[%s193 + $0x58] sm:$0xf]
      %v225 = vld [vmem:[%s193 + $0x5c] sm:$0xf]
      %v226 = vld [vmem:[%s193 + $0x60] sm:$0xf]
      %v227 = vld [vmem:[%s193 + $0x64] sm:$0xf]
      %v228 = vld [vmem:[%s193 + $0x68] sm:$0xf]
      %v229 = vld [vmem:[%s193 + $0x6c] sm:$0xf]
      %v230 = vld [vmem:[%s193 + $0x70] sm:$0xf]
      %v231 = vld [vmem:[%s193 + $0x74] sm:$0xf]
      %v232 = vld [vmem:[%s193 + $0x78] sm:$0xf]
      %v233 = vld [vmem:[%s193 + $0x7c] sm:$0xf]
      %v234 = vld [vmem:[%s193 + $0x80] sm:$0xf]
      %v235 = vld [vmem:[%s193 + $0x84] sm:$0xf]
      %v236 = vld [vmem:[%s193 + $0x88] sm:$0xf]
      %v237 = vld [vmem:[%s193 + $0x8c] sm:$0xf]
      %v238 = vld [vmem:[%s193 + $0x90] sm:$0xf]
      %v239 = vld [vmem:[%s193 + $0x94] sm:$0xf]
      %v240 = vld [vmem:[%s193 + $0x98] sm:$0xf]
      %v241 = vld [vmem:[%s193 + $0x9c] sm:$0xf]
      %v242 = vld [vmem:[%s193 + $0xa0] sm:$0xf]
      %v243 = vld [vmem:[%s193 + $0xa4] sm:$0xf]
      %v244 = vld [vmem:[%s193 + $0xa8] sm:$0xf]
      %v245 = vld [vmem:[%s193 + $0xac] sm:$0xf]
      %v246 = vld [vmem:[%s193 + $0xb0] sm:$0xf]
      %v247 = vld [vmem:[%s193 + $0xb4] sm:$0xf]
      %v248 = vld [vmem:[%s193 + $0xb8] sm:$0xf]
      %v249 = vld [vmem:[%s193 + $0xbc] sm:$0xf]
      %v250 = vld [vmem:[%s193 + $0xc0] sm:$0xf]
      %v251 = vld [vmem:[%s193 + $0xc4] sm:$0xf]
      %v252 = vld [vmem:[%s193 + $0xc8] sm:$0xf]
      %v253 = vld [vmem:[%s193 + $0xcc] sm:$0xf]
      %v254 = vld [vmem:[%s193 + $0xd0] sm:$0xf]
      %v255 = vld [vmem:[%s193 + $0xd4] sm:$0xf]
      %v256 = vld [vmem:[%s193 + $0xd8] sm:$0xf]
      %v257 = vld [vmem:[%s193 + $0xdc] sm:$0xf]
      %v258 = vld [vmem:[%s193 + $0xe0] sm:$0xf]
      %v259 = vld [vmem:[%s193 + $0xe4] sm:$0xf]
      %v260 = vld [vmem:[%s193 + $0xe8] sm:$0xf]
      %v261 = vld [vmem:[%s193 + $0xec] sm:$0xf]
      %v262 = vld [vmem:[%s193 + $0xf0] sm:$0xf]
      %v263 = vld [vmem:[%s193 + $0xf4] sm:$0xf]
      %v264 = vld [vmem:[%s193 + $0xf8] sm:$0xf]
      %v265 = vld [vmem:[%s193 + $0xfc] sm:$0xf]
      %v266 = vld [vmem:[%s193 + $0x100] sm:$0xf]
      %v267 = vld [vmem:[%s193 + $0x104] sm:$0xf]
      %v268 = vld [vmem:[%s193 + $0x108] sm:$0xf]
      %v269 = vld [vmem:[%s193 + $0x10c] sm:$0xf]
      %v270 = vld [vmem:[%s193 + $0x110] sm:$0xf]
      %v271 = vld [vmem:[%s193 + $0x114] sm:$0xf]
      %v272 = vld [vmem:[%s193 + $0x118] sm:$0xf]
      %v273 = vld [vmem:[%s193 + $0x11c] sm:$0xf]
      %v274 = vld [vmem:[%s193 + $0x120] sm:$0xf]
      %v275 = vld [vmem:[%s193 + $0x124] sm:$0xf]
      %v276 = vld [vmem:[%s193 + $0x128] sm:$0xf]
      %v277 = vld [vmem:[%s193 + $0x12c] sm:$0xf]
      %v278 = vld [vmem:[%s193 + $0x130] sm:$0xf]
      %v279 = vld [vmem:[%s193 + $0x134] sm:$0xf]
      %v280 = vld [vmem:[%s193 + $0x138] sm:$0xf]
      %v281 = vld [vmem:[%s193 + $0x13c] sm:$0xf]
      %v282 = vld [vmem:[%s193 + $0x140] sm:$0xf]
      %v283 = vld [vmem:[%s193 + $0x144] sm:$0xf]
      %v284 = vld [vmem:[%s193 + $0x148] sm:$0xf]
      %v285 = vld [vmem:[%s193 + $0x14c] sm:$0xf]
      %v286 = vld [vmem:[%s193 + $0x150] sm:$0xf]
      %v287 = vld [vmem:[%s193 + $0x154] sm:$0xf]
      %v288 = vld [vmem:[%s193 + $0x158] sm:$0xf]
      %v289 = vld [vmem:[%s193 + $0x15c] sm:$0xf]
      %v290 = vld [vmem:[%s193 + $0x160] sm:$0xf]
      %v291 = vld [vmem:[%s193 + $0x164] sm:$0xf]
      %v292 = vld [vmem:[%s193 + $0x168] sm:$0xf]
      %v293 = vld [vmem:[%s193 + $0x16c] sm:$0xf]
      %v294 = vld [vmem:[%s193 + $0x170] sm:$0xf]
      %v295 = vld [vmem:[%s193 + $0x174] sm:$0xf]
      %v296 = vld [vmem:[%s193 + $0x178] sm:$0xf]
      %v297 = vld [vmem:[%s193 + $0x17c] sm:$0xf]
      %v298 = vld [vmem:[%s193 + $0x180] sm:$0xf]
      %v299 = vld [vmem:[%s193 + $0x184] sm:$0xf]
      %v300 = vld [vmem:[%s193 + $0x188] sm:$0xf]
      %v301 = vld [vmem:[%s193 + $0x18c] sm:$0xf]
      %v302 = vld [vmem:[%s193 + $0x190] sm:$0xf]
      %v303 = vld [vmem:[%s193 + $0x194] sm:$0xf]
      %v304 = vld [vmem:[%s193 + $0x198] sm:$0xf]
      %v305 = vld [vmem:[%s193 + $0x19c] sm:$0xf]
      %v306 = vld [vmem:[%s193 + $0x1a0] sm:$0xf]
      %v307 = vld [vmem:[%s193 + $0x1a4] sm:$0xf]
      %v308 = vld [vmem:[%s193 + $0x1a8] sm:$0xf]
      %v309 = vld [vmem:[%s193 + $0x1ac] sm:$0xf]
      %v310 = vld [vmem:[%s193 + $0x1b0] sm:$0xf]
      %v311 = vld [vmem:[%s193 + $0x1b4] sm:$0xf]
      %v312 = vld [vmem:[%s193 + $0x1b8] sm:$0xf]
      %v313 = vld [vmem:[%s193 + $0x1bc] sm:$0xf]
      %v314 = vld [vmem:[%s193 + $0x1c0] sm:$0xf]
      %v315 = vld [vmem:[%s193 + $0x1c4] sm:$0xf]
      %v316 = vld [vmem:[%s193 + $0x1c8] sm:$0xf]
      %v317 = vld [vmem:[%s193 + $0x1cc] sm:$0xf]
      %v318 = vld [vmem:[%s193 + $0x1d0] sm:$0xf]
      %v319 = vld [vmem:[%s193 + $0x1d4] sm:$0xf]
      %v320 = vld [vmem:[%s193 + $0x1d8] sm:$0xf]
      %v321 = vld [vmem:[%s193 + $0x1dc] sm:$0xf]
      %v322 = vld [vmem:[%s193 + $0x1e0] sm:$0xf]
      %v323 = vld [vmem:[%s193 + $0x1e4] sm:$0xf]
      %v324 = vld [vmem:[%s193 + $0x1e8] sm:$0xf]
      %v325 = vld [vmem:[%s193 + $0x1ec] sm:$0xf]
      %v326 = vld [vmem:[%s193 + $0x1f0] sm:$0xf]
      %v327 = vld [vmem:[%s193 + $0x1f4] sm:$0xf]
      %v328 = vld [vmem:[%s193 + $0x1f8] sm:$0xf]
      %v329 = vld [vmem:[%s193 + $0x1fc] sm:$0xf]
      %v330 = vunpack.c.l.bf16 %v202
      %v331 = vunpack.c.l.bf16 %v203
      %v332 = vunpack.c.l.bf16 %v204
      %v333 = vunpack.c.l.bf16 %v205
      %v334 = vunpack.c.l.bf16 %v206
      %v335 = vunpack.c.l.bf16 %v207
      %v336 = vunpack.c.l.bf16 %v208
      %v337 = vunpack.c.l.bf16 %v209
      %v338 = vunpack.c.l.bf16 %v210
      %v339 = vunpack.c.l.bf16 %v211
      %v340 = vunpack.c.l.bf16 %v212
      %v341 = vunpack.c.l.bf16 %v213
      %v342 = vunpack.c.l.bf16 %v214
      %v343 = vunpack.c.l.bf16 %v215
      %v344 = vunpack.c.l.bf16 %v216
      %v345 = vunpack.c.l.bf16 %v217
      %v346 = vunpack.c.l.bf16 %v218
      %v347 = vunpack.c.l.bf16 %v219
      %v348 = vunpack.c.l.bf16 %v220
      %v349 = vunpack.c.l.bf16 %v221
      %v350 = vunpack.c.l.bf16 %v222
      %v351 = vunpack.c.l.bf16 %v223
      %v352 = vunpack.c.l.bf16 %v224
      %v353 = vunpack.c.l.bf16 %v225
      %v354 = vunpack.c.l.bf16 %v226
      %v355 = vunpack.c.l.bf16 %v227
      %v356 = vunpack.c.l.bf16 %v228
      %v357 = vunpack.c.l.bf16 %v229
      %v358 = vunpack.c.l.bf16 %v230
      %v359 = vunpack.c.l.bf16 %v231
      %v360 = vunpack.c.l.bf16 %v232
      %v361 = vunpack.c.l.bf16 %v233
      %v362 = vunpack.c.l.bf16 %v234
      %v363 = vunpack.c.l.bf16 %v235
      %v364 = vunpack.c.l.bf16 %v236
      %v365 = vunpack.c.l.bf16 %v237
      %v366 = vunpack.c.l.bf16 %v238
      %v367 = vunpack.c.l.bf16 %v239
      %v368 = vunpack.c.l.bf16 %v240
      %v369 = vunpack.c.l.bf16 %v241
      %v370 = vunpack.c.l.bf16 %v242
      %v371 = vunpack.c.l.bf16 %v243
      %v372 = vunpack.c.l.bf16 %v244
      %v373 = vunpack.c.l.bf16 %v245
      %v374 = vunpack.c.l.bf16 %v246
      %v375 = vunpack.c.l.bf16 %v247
      %v376 = vunpack.c.l.bf16 %v248
      %v377 = vunpack.c.l.bf16 %v249
      %v378 = vunpack.c.l.bf16 %v250
      %v379 = vunpack.c.l.bf16 %v251
      %v380 = vunpack.c.l.bf16 %v252
      %v381 = vunpack.c.l.bf16 %v253
      %v382 = vunpack.c.l.bf16 %v254
      %v383 = vunpack.c.l.bf16 %v255
      %v384 = vunpack.c.l.bf16 %v256
      %v385 = vunpack.c.l.bf16 %v257
      %v386 = vunpack.c.l.bf16 %v258
      %v387 = vunpack.c.l.bf16 %v259
      %v388 = vunpack.c.l.bf16 %v260
      %v389 = vunpack.c.l.bf16 %v261
      %v390 = vunpack.c.l.bf16 %v262
      %v391 = vunpack.c.l.bf16 %v263
      %v392 = vunpack.c.l.bf16 %v264
      %v393 = vunpack.c.l.bf16 %v265
      %v394 = vunpack.c.l.bf16 %v266
      %v395 = vunpack.c.l.bf16 %v267
      %v396 = vunpack.c.l.bf16 %v268
      %v397 = vunpack.c.l.bf16 %v269
      %v398 = vunpack.c.l.bf16 %v270
      %v399 = vunpack.c.l.bf16 %v271
      %v400 = vunpack.c.l.bf16 %v272
      %v401 = vunpack.c.l.bf16 %v273
      %v402 = vunpack.c.l.bf16 %v274
      %v403 = vunpack.c.l.bf16 %v275
      %v404 = vunpack.c.l.bf16 %v276
      %v405 = vunpack.c.l.bf16 %v277
      %v406 = vunpack.c.l.bf16 %v278
      %v407 = vunpack.c.l.bf16 %v279
      %v408 = vunpack.c.l.bf16 %v280
      %v409 = vunpack.c.l.bf16 %v281
      %v410 = vunpack.c.l.bf16 %v282
      %v411 = vunpack.c.l.bf16 %v283
      %v412 = vunpack.c.l.bf16 %v284
      %v413 = vunpack.c.l.bf16 %v285
      %v414 = vunpack.c.l.bf16 %v286
      %v415 = vunpack.c.l.bf16 %v287
      %v416 = vunpack.c.l.bf16 %v288
      %v417 = vunpack.c.l.bf16 %v289
      %v418 = vunpack.c.l.bf16 %v290
      %v419 = vunpack.c.l.bf16 %v291
      %v420 = vunpack.c.l.bf16 %v292
      %v421 = vunpack.c.l.bf16 %v293
      %v422 = vunpack.c.l.bf16 %v294
      %v423 = vunpack.c.l.bf16 %v295
      %v424 = vunpack.c.l.bf16 %v296
      %v425 = vunpack.c.l.bf16 %v297
      %v426 = vunpack.c.l.bf16 %v298
      %v427 = vunpack.c.l.bf16 %v299
      %v428 = vunpack.c.l.bf16 %v300
      %v429 = vunpack.c.l.bf16 %v301
      %v430 = vunpack.c.l.bf16 %v302
      %v431 = vunpack.c.l.bf16 %v303
      %v432 = vunpack.c.l.bf16 %v304
      %v433 = vunpack.c.l.bf16 %v305
      %v434 = vunpack.c.l.bf16 %v306
      %v435 = vunpack.c.l.bf16 %v307
      %v436 = vunpack.c.l.bf16 %v308
      %v437 = vunpack.c.l.bf16 %v309
      %v438 = vunpack.c.l.bf16 %v310
      %v439 = vunpack.c.l.bf16 %v311
      %v440 = vunpack.c.l.bf16 %v312
      %v441 = vunpack.c.l.bf16 %v313
      %v442 = vunpack.c.l.bf16 %v314
      %v443 = vunpack.c.l.bf16 %v315
      %v444 = vunpack.c.l.bf16 %v316
      %v445 = vunpack.c.l.bf16 %v317
      %v446 = vunpack.c.l.bf16 %v318
      %v447 = vunpack.c.l.bf16 %v319
      %v448 = vunpack.c.l.bf16 %v320
      %v449 = vunpack.c.l.bf16 %v321
      %v450 = vunpack.c.l.bf16 %v322
      %v451 = vunpack.c.l.bf16 %v323
      %v452 = vunpack.c.l.bf16 %v324
      %v453 = vunpack.c.l.bf16 %v325
      %v454 = vunpack.c.l.bf16 %v326
      %v455 = vunpack.c.l.bf16 %v327
      %v456 = vunpack.c.l.bf16 %v328
      %v457 = vunpack.c.l.bf16 %v329
      %v458 = vld [vmem:[%s1] sm:$0x1]
      %v460 = vlaneseq
      %v461 = vshrl.u32 %v460, 7
      %v462 = vsub.s32 0, %v461
      %v463 = vrot.slane %v458, %v462
      %v465 = vmul.f32 %v330, %v463
      %v466 = vmul.f32 %v331, %v463
      %v467 = vmul.f32 %v332, %v463
      %v468 = vmul.f32 %v333, %v463
      %v469 = vmul.f32 %v334, %v463
      %v470 = vmul.f32 %v335, %v463
      %v471 = vmul.f32 %v336, %v463
      %v472 = vmul.f32 %v337, %v463
      %v473 = vmul.f32 %v338, %v463
      %v474 = vmul.f32 %v339, %v463
      %v475 = vmul.f32 %v340, %v463
      %v476 = vmul.f32 %v341, %v463
      %v477 = vmul.f32 %v342, %v463
      %v478 = vmul.f32 %v343, %v463
      %v479 = vmul.f32 %v344, %v463
      %v480 = vmul.f32 %v345, %v463
      %v481 = vmul.f32 %v346, %v463
      %v482 = vmul.f32 %v347, %v463
      %v483 = vmul.f32 %v348, %v463
      %v484 = vmul.f32 %v349, %v463
      %v485 = vmul.f32 %v350, %v463
      %v486 = vmul.f32 %v351, %v463
      %v487 = vmul.f32 %v352, %v463
      %v488 = vmul.f32 %v353, %v463
      %v489 = vmul.f32 %v354, %v463
      %v490 = vmul.f32 %v355, %v463
      %v491 = vmul.f32 %v356, %v463
      %v492 = vmul.f32 %v357, %v463
      %v493 = vmul.f32 %v358, %v463
      %v494 = vmul.f32 %v359, %v463
      %v495 = vmul.f32 %v360, %v463
      %v496 = vmul.f32 %v361, %v463
      %v497 = vmul.f32 %v362, %v463
      %v498 = vmul.f32 %v363, %v463
      %v499 = vmul.f32 %v364, %v463
      %v500 = vmul.f32 %v365, %v463
      %v501 = vmul.f32 %v366, %v463
      %v502 = vmul.f32 %v367, %v463
      %v503 = vmul.f32 %v368, %v463
      %v504 = vmul.f32 %v369, %v463
      %v505 = vmul.f32 %v370, %v463
      %v506 = vmul.f32 %v371, %v463
      %v507 = vmul.f32 %v372, %v463
      %v508 = vmul.f32 %v373, %v463
      %v509 = vmul.f32 %v374, %v463
      %v510 = vmul.f32 %v375, %v463
      %v511 = vmul.f32 %v376, %v463
      %v512 = vmul.f32 %v377, %v463
      %v513 = vmul.f32 %v378, %v463
      %v514 = vmul.f32 %v379, %v463
      %v515 = vmul.f32 %v380, %v463
      %v516 = vmul.f32 %v381, %v463
      %v517 = vmul.f32 %v382, %v463
      %v518 = vmul.f32 %v383, %v463
      %v519 = vmul.f32 %v384, %v463
      %v520 = vmul.f32 %v385, %v463
      %v521 = vmul.f32 %v386, %v463
      %v522 = vmul.f32 %v387, %v463
      %v523 = vmul.f32 %v388, %v463
      %v524 = vmul.f32 %v389, %v463
      %v525 = vmul.f32 %v390, %v463
      %v526 = vmul.f32 %v391, %v463
      %v527 = vmul.f32 %v392, %v463
      %v528 = vmul.f32 %v393, %v463
      %v529 = vmul.f32 %v394, %v463
      %v530 = vmul.f32 %v395, %v463
      %v531 = vmul.f32 %v396, %v463
      %v532 = vmul.f32 %v397, %v463
      %v533 = vmul.f32 %v398, %v463
      %v534 = vmul.f32 %v399, %v463
      %v535 = vmul.f32 %v400, %v463
      %v536 = vmul.f32 %v401, %v463
      %v537 = vmul.f32 %v402, %v463
      %v538 = vmul.f32 %v403, %v463
      %v539 = vmul.f32 %v404, %v463
      %v540 = vmul.f32 %v405, %v463
      %v541 = vmul.f32 %v406, %v463
      %v542 = vmul.f32 %v407, %v463
      %v543 = vmul.f32 %v408, %v463
      %v544 = vmul.f32 %v409, %v463
      %v545 = vmul.f32 %v410, %v463
      %v546 = vmul.f32 %v411, %v463
      %v547 = vmul.f32 %v412, %v463
      %v548 = vmul.f32 %v413, %v463
      %v549 = vmul.f32 %v414, %v463
      %v550 = vmul.f32 %v415, %v463
      %v551 = vmul.f32 %v416, %v463
      %v552 = vmul.f32 %v417, %v463
      %v553 = vmul.f32 %v418, %v463
      %v554 = vmul.f32 %v419, %v463
      %v555 = vmul.f32 %v420, %v463
      %v556 = vmul.f32 %v421, %v463
      %v557 = vmul.f32 %v422, %v463
      %v558 = vmul.f32 %v423, %v463
      %v559 = vmul.f32 %v424, %v463
      %v560 = vmul.f32 %v425, %v463
      %v561 = vmul.f32 %v426, %v463
      %v562 = vmul.f32 %v427, %v463
      %v563 = vmul.f32 %v428, %v463
      %v564 = vmul.f32 %v429, %v463
      %v565 = vmul.f32 %v430, %v463
      %v566 = vmul.f32 %v431, %v463
      %v567 = vmul.f32 %v432, %v463
      %v568 = vmul.f32 %v433, %v463
      %v569 = vmul.f32 %v434, %v463
      %v570 = vmul.f32 %v435, %v463
      %v571 = vmul.f32 %v436, %v463
      %v572 = vmul.f32 %v437, %v463
      %v573 = vmul.f32 %v438, %v463
      %v574 = vmul.f32 %v439, %v463
      %v575 = vmul.f32 %v440, %v463
      %v576 = vmul.f32 %v441, %v463
      %v577 = vmul.f32 %v442, %v463
      %v578 = vmul.f32 %v443, %v463
      %v579 = vmul.f32 %v444, %v463
      %v580 = vmul.f32 %v445, %v463
      %v581 = vmul.f32 %v446, %v463
      %v582 = vmul.f32 %v447, %v463
      %v583 = vmul.f32 %v448, %v463
      %v584 = vmul.f32 %v449, %v463
      %v585 = vmul.f32 %v450, %v463
      %v586 = vmul.f32 %v451, %v463
      %v587 = vmul.f32 %v452, %v463
      %v588 = vmul.f32 %v453, %v463
      %v589 = vmul.f32 %v454, %v463
      %v590 = vmul.f32 %v455, %v463
      %v591 = vmul.f32 %v456, %v463
      %v592 = vmul.f32 %v457, %v463
      %v593 = vld [vmem:[%s2] sm:$0x1]
      %v595 = vlaneseq
      %v596 = vshrl.u32 %v595, 7
      %v597 = vsub.s32 0, %v596
      %v598 = vrot.slane %v593, %v597
      %v600 = vadd.f32 %v465, %v598
      %v601 = vadd.f32 %v466, %v598
      %v602 = vadd.f32 %v467, %v598
      %v603 = vadd.f32 %v468, %v598
      %v604 = vadd.f32 %v469, %v598
      %v605 = vadd.f32 %v470, %v598
      %v606 = vadd.f32 %v471, %v598
      %v607 = vadd.f32 %v472, %v598
      %v608 = vadd.f32 %v473, %v598
      %v609 = vadd.f32 %v474, %v598
      %v610 = vadd.f32 %v475, %v598
      %v611 = vadd.f32 %v476, %v598
      %v612 = vadd.f32 %v477, %v598
      %v613 = vadd.f32 %v478, %v598
      %v614 = vadd.f32 %v479, %v598
      %v615 = vadd.f32 %v480, %v598
      %v616 = vadd.f32 %v481, %v598
      %v617 = vadd.f32 %v482, %v598
      %v618 = vadd.f32 %v483, %v598
      %v619 = vadd.f32 %v484, %v598
      %v620 = vadd.f32 %v485, %v598
      %v621 = vadd.f32 %v486, %v598
      %v622 = vadd.f32 %v487, %v598
      %v623 = vadd.f32 %v488, %v598
      %v624 = vadd.f32 %v489, %v598
      %v625 = vadd.f32 %v490, %v598
      %v626 = vadd.f32 %v491, %v598
      %v627 = vadd.f32 %v492, %v598
      %v628 = vadd.f32 %v493, %v598
      %v629 = vadd.f32 %v494, %v598
      %v630 = vadd.f32 %v495, %v598
      %v631 = vadd.f32 %v496, %v598
      %v632 = vadd.f32 %v497, %v598
      %v633 = vadd.f32 %v498, %v598
      %v634 = vadd.f32 %v499, %v598
      %v635 = vadd.f32 %v500, %v598
      %v636 = vadd.f32 %v501, %v598
      %v637 = vadd.f32 %v502, %v598
      %v638 = vadd.f32 %v503, %v598
      %v639 = vadd.f32 %v504, %v598
      %v640 = vadd.f32 %v505, %v598
      %v641 = vadd.f32 %v506, %v598
      %v642 = vadd.f32 %v507, %v598
      %v643 = vadd.f32 %v508, %v598
      %v644 = vadd.f32 %v509, %v598
      %v645 = vadd.f32 %v510, %v598
      %v646 = vadd.f32 %v511, %v598
      %v647 = vadd.f32 %v512, %v598
      %v648 = vadd.f32 %v513, %v598
      %v649 = vadd.f32 %v514, %v598
      %v650 = vadd.f32 %v515, %v598
      %v651 = vadd.f32 %v516, %v598
      %v652 = vadd.f32 %v517, %v598
      %v653 = vadd.f32 %v518, %v598
      %v654 = vadd.f32 %v519, %v598
      %v655 = vadd.f32 %v520, %v598
      %v656 = vadd.f32 %v521, %v598
      %v657 = vadd.f32 %v522, %v598
      %v658 = vadd.f32 %v523, %v598
      %v659 = vadd.f32 %v524, %v598
      %v660 = vadd.f32 %v525, %v598
      %v661 = vadd.f32 %v526, %v598
      %v662 = vadd.f32 %v527, %v598
      %v663 = vadd.f32 %v528, %v598
      %v664 = vadd.f32 %v529, %v598
      %v665 = vadd.f32 %v530, %v598
      %v666 = vadd.f32 %v531, %v598
      %v667 = vadd.f32 %v532, %v598
      %v668 = vadd.f32 %v533, %v598
      %v669 = vadd.f32 %v534, %v598
      %v670 = vadd.f32 %v535, %v598
      %v671 = vadd.f32 %v536, %v598
      %v672 = vadd.f32 %v537, %v598
      %v673 = vadd.f32 %v538, %v598
      %v674 = vadd.f32 %v539, %v598
      %v675 = vadd.f32 %v540, %v598
      %v676 = vadd.f32 %v541, %v598
      %v677 = vadd.f32 %v542, %v598
      %v678 = vadd.f32 %v543, %v598
      %v679 = vadd.f32 %v544, %v598
      %v680 = vadd.f32 %v545, %v598
      %v681 = vadd.f32 %v546, %v598
      %v682 = vadd.f32 %v547, %v598
      %v683 = vadd.f32 %v548, %v598
      %v684 = vadd.f32 %v549, %v598
      %v685 = vadd.f32 %v550, %v598
      %v686 = vadd.f32 %v551, %v598
      %v687 = vadd.f32 %v552, %v598
      %v688 = vadd.f32 %v553, %v598
      %v689 = vadd.f32 %v554, %v598
      %v690 = vadd.f32 %v555, %v598
      %v691 = vadd.f32 %v556, %v598
      %v692 = vadd.f32 %v557, %v598
      %v693 = vadd.f32 %v558, %v598
      %v694 = vadd.f32 %v559, %v598
      %v695 = vadd.f32 %v560, %v598
      %v696 = vadd.f32 %v561, %v598
      %v697 = vadd.f32 %v562, %v598
      %v698 = vadd.f32 %v563, %v598
      %v699 = vadd.f32 %v564, %v598
      %v700 = vadd.f32 %v565, %v598
      %v701 = vadd.f32 %v566, %v598
      %v702 = vadd.f32 %v567, %v598
      %v703 = vadd.f32 %v568, %v598
      %v704 = vadd.f32 %v569, %v598
      %v705 = vadd.f32 %v570, %v598
      %v706 = vadd.f32 %v571, %v598
      %v707 = vadd.f32 %v572, %v598
      %v708 = vadd.f32 %v573, %v598
      %v709 = vadd.f32 %v574, %v598
      %v710 = vadd.f32 %v575, %v598
      %v711 = vadd.f32 %v576, %v598
      %v712 = vadd.f32 %v577, %v598
      %v713 = vadd.f32 %v578, %v598
      %v714 = vadd.f32 %v579, %v598
      %v715 = vadd.f32 %v580, %v598
      %v716 = vadd.f32 %v581, %v598
      %v717 = vadd.f32 %v582, %v598
      %v718 = vadd.f32 %v583, %v598
      %v719 = vadd.f32 %v584, %v598
      %v720 = vadd.f32 %v585, %v598
      %v721 = vadd.f32 %v586, %v598
      %v722 = vadd.f32 %v587, %v598
      %v723 = vadd.f32 %v588, %v598
      %v724 = vadd.f32 %v589, %v598
      %v725 = vadd.f32 %v590, %v598
      %v726 = vadd.f32 %v591, %v598
      %v727 = vadd.f32 %v592, %v598
      %v728 = vmax.f32 %v600, 0.0
      %v729 = vmax.f32 %v601, 0.0
      %v730 = vmax.f32 %v602, 0.0
      %v731 = vmax.f32 %v603, 0.0
      %v732 = vmax.f32 %v604, 0.0
      %v733 = vmax.f32 %v605, 0.0
      %v734 = vmax.f32 %v606, 0.0
      %v735 = vmax.f32 %v607, 0.0
      %v736 = vmax.f32 %v608, 0.0
      %v737 = vmax.f32 %v609, 0.0
      %v738 = vmax.f32 %v610, 0.0
      %v739 = vmax.f32 %v611, 0.0
      %v740 = vmax.f32 %v612, 0.0
      %v741 = vmax.f32 %v613, 0.0
      %v742 = vmax.f32 %v614, 0.0
      %v743 = vmax.f32 %v615, 0.0
      %v744 = vmax.f32 %v616, 0.0
      %v745 = vmax.f32 %v617, 0.0
      %v746 = vmax.f32 %v618, 0.0
      %v747 = vmax.f32 %v619, 0.0
      %v748 = vmax.f32 %v620, 0.0
      %v749 = vmax.f32 %v621, 0.0
      %v750 = vmax.f32 %v622, 0.0
      %v751 = vmax.f32 %v623, 0.0
      %v752 = vmax.f32 %v624, 0.0
      %v753 = vmax.f32 %v625, 0.0
      %v754 = vmax.f32 %v626, 0.0
      %v755 = vmax.f32 %v627, 0.0
      %v756 = vmax.f32 %v628, 0.0
      %v757 = vmax.f32 %v629, 0.0
      %v758 = vmax.f32 %v630, 0.0
      %v759 = vmax.f32 %v631, 0.0
      %v760 = vmax.f32 %v632, 0.0
      %v761 = vmax.f32 %v633, 0.0
      %v762 = vmax.f32 %v634, 0.0
      %v763 = vmax.f32 %v635, 0.0
      %v764 = vmax.f32 %v636, 0.0
      %v765 = vmax.f32 %v637, 0.0
      %v766 = vmax.f32 %v638, 0.0
      %v767 = vmax.f32 %v639, 0.0
      %v768 = vmax.f32 %v640, 0.0
      %v769 = vmax.f32 %v641, 0.0
      %v770 = vmax.f32 %v642, 0.0
      %v771 = vmax.f32 %v643, 0.0
      %v772 = vmax.f32 %v644, 0.0
      %v773 = vmax.f32 %v645, 0.0
      %v774 = vmax.f32 %v646, 0.0
      %v775 = vmax.f32 %v647, 0.0
      %v776 = vmax.f32 %v648, 0.0
      %v777 = vmax.f32 %v649, 0.0
      %v778 = vmax.f32 %v650, 0.0
      %v779 = vmax.f32 %v651, 0.0
      %v780 = vmax.f32 %v652, 0.0
      %v781 = vmax.f32 %v653, 0.0
      %v782 = vmax.f32 %v654, 0.0
      %v783 = vmax.f32 %v655, 0.0
      %v784 = vmax.f32 %v656, 0.0
      %v785 = vmax.f32 %v657, 0.0
      %v786 = vmax.f32 %v658, 0.0
      %v787 = vmax.f32 %v659, 0.0
      %v788 = vmax.f32 %v660, 0.0
      %v789 = vmax.f32 %v661, 0.0
      %v790 = vmax.f32 %v662, 0.0
      %v791 = vmax.f32 %v663, 0.0
      %v792 = vmax.f32 %v664, 0.0
      %v793 = vmax.f32 %v665, 0.0
      %v794 = vmax.f32 %v666, 0.0
      %v795 = vmax.f32 %v667, 0.0
      %v796 = vmax.f32 %v668, 0.0
      %v797 = vmax.f32 %v669, 0.0
      %v798 = vmax.f32 %v670, 0.0
      %v799 = vmax.f32 %v671, 0.0
      %v800 = vmax.f32 %v672, 0.0
      %v801 = vmax.f32 %v673, 0.0
      %v802 = vmax.f32 %v674, 0.0
      %v803 = vmax.f32 %v675, 0.0
      %v804 = vmax.f32 %v676, 0.0
      %v805 = vmax.f32 %v677, 0.0
      %v806 = vmax.f32 %v678, 0.0
      %v807 = vmax.f32 %v679, 0.0
      %v808 = vmax.f32 %v680, 0.0
      %v809 = vmax.f32 %v681, 0.0
      %v810 = vmax.f32 %v682, 0.0
      %v811 = vmax.f32 %v683, 0.0
      %v812 = vmax.f32 %v684, 0.0
      %v813 = vmax.f32 %v685, 0.0
      %v814 = vmax.f32 %v686, 0.0
      %v815 = vmax.f32 %v687, 0.0
      %v816 = vmax.f32 %v688, 0.0
      %v817 = vmax.f32 %v689, 0.0
      %v818 = vmax.f32 %v690, 0.0
      %v819 = vmax.f32 %v691, 0.0
      %v820 = vmax.f32 %v692, 0.0
      %v821 = vmax.f32 %v693, 0.0
      %v822 = vmax.f32 %v694, 0.0
      %v823 = vmax.f32 %v695, 0.0
      %v824 = vmax.f32 %v696, 0.0
      %v825 = vmax.f32 %v697, 0.0
      %v826 = vmax.f32 %v698, 0.0
      %v827 = vmax.f32 %v699, 0.0
      %v828 = vmax.f32 %v700, 0.0
      %v829 = vmax.f32 %v701, 0.0
      %v830 = vmax.f32 %v702, 0.0
      %v831 = vmax.f32 %v703, 0.0
      %v832 = vmax.f32 %v704, 0.0
      %v833 = vmax.f32 %v705, 0.0
      %v834 = vmax.f32 %v706, 0.0
      %v835 = vmax.f32 %v707, 0.0
      %v836 = vmax.f32 %v708, 0.0
      %v837 = vmax.f32 %v709, 0.0
      %v838 = vmax.f32 %v710, 0.0
      %v839 = vmax.f32 %v711, 0.0
      %v840 = vmax.f32 %v712, 0.0
      %v841 = vmax.f32 %v713, 0.0
      %v842 = vmax.f32 %v714, 0.0
      %v843 = vmax.f32 %v715, 0.0
      %v844 = vmax.f32 %v716, 0.0
      %v845 = vmax.f32 %v717, 0.0
      %v846 = vmax.f32 %v718, 0.0
      %v847 = vmax.f32 %v719, 0.0
      %v848 = vmax.f32 %v720, 0.0
      %v849 = vmax.f32 %v721, 0.0
      %v850 = vmax.f32 %v722, 0.0
      %v851 = vmax.f32 %v723, 0.0
      %v852 = vmax.f32 %v724, 0.0
      %v853 = vmax.f32 %v725, 0.0
      %v854 = vmax.f32 %v726, 0.0
      %v855 = vmax.f32 %v727, 0.0
      %v856 = vpack.c.bf16 %v729, %v728
      %v857 = vpack.c.bf16 %v731, %v730
      %v858 = vpack.c.bf16 %v733, %v732
      %v859 = vpack.c.bf16 %v735, %v734
      %v860 = vpack.c.bf16 %v737, %v736
      %v861 = vpack.c.bf16 %v739, %v738
      %v862 = vpack.c.bf16 %v741, %v740
      %v863 = vpack.c.bf16 %v743, %v742
      %v864 = vpack.c.bf16 %v745, %v744
      %v865 = vpack.c.bf16 %v747, %v746
      %v866 = vpack.c.bf16 %v749, %v748
      %v867 = vpack.c.bf16 %v751, %v750
      %v868 = vpack.c.bf16 %v753, %v752
      %v869 = vpack.c.bf16 %v755, %v754
      %v870 = vpack.c.bf16 %v757, %v756
      %v871 = vpack.c.bf16 %v759, %v758
      %v872 = vpack.c.bf16 %v761, %v760
      %v873 = vpack.c.bf16 %v763, %v762
      %v874 = vpack.c.bf16 %v765, %v764
      %v875 = vpack.c.bf16 %v767, %v766
      %v876 = vpack.c.bf16 %v769, %v768
      %v877 = vpack.c.bf16 %v771, %v770
      %v878 = vpack.c.bf16 %v773, %v772
      %v879 = vpack.c.bf16 %v775, %v774
      %v880 = vpack.c.bf16 %v777, %v776
      %v881 = vpack.c.bf16 %v779, %v778
      %v882 = vpack.c.bf16 %v781, %v780
      %v883 = vpack.c.bf16 %v783, %v782
      %v884 = vpack.c.bf16 %v785, %v784
      %v885 = vpack.c.bf16 %v787, %v786
      %v886 = vpack.c.bf16 %v789, %v788
      %v887 = vpack.c.bf16 %v791, %v790
      %v888 = vpack.c.bf16 %v793, %v792
      %v889 = vpack.c.bf16 %v795, %v794
      %v890 = vpack.c.bf16 %v797, %v796
      %v891 = vpack.c.bf16 %v799, %v798
      %v892 = vpack.c.bf16 %v801, %v800
      %v893 = vpack.c.bf16 %v803, %v802
      %v894 = vpack.c.bf16 %v805, %v804
      %v895 = vpack.c.bf16 %v807, %v806
      %v896 = vpack.c.bf16 %v809, %v808
      %v897 = vpack.c.bf16 %v811, %v810
      %v898 = vpack.c.bf16 %v813, %v812
      %v899 = vpack.c.bf16 %v815, %v814
      %v900 = vpack.c.bf16 %v817, %v816
      %v901 = vpack.c.bf16 %v819, %v818
      %v902 = vpack.c.bf16 %v821, %v820
      %v903 = vpack.c.bf16 %v823, %v822
      %v904 = vpack.c.bf16 %v825, %v824
      %v905 = vpack.c.bf16 %v827, %v826
      %v906 = vpack.c.bf16 %v829, %v828
      %v907 = vpack.c.bf16 %v831, %v830
      %v908 = vpack.c.bf16 %v833, %v832
      %v909 = vpack.c.bf16 %v835, %v834
      %v910 = vpack.c.bf16 %v837, %v836
      %v911 = vpack.c.bf16 %v839, %v838
      %v912 = vpack.c.bf16 %v841, %v840
      %v913 = vpack.c.bf16 %v843, %v842
      %v914 = vpack.c.bf16 %v845, %v844
      %v915 = vpack.c.bf16 %v847, %v846
      %v916 = vpack.c.bf16 %v849, %v848
      %v917 = vpack.c.bf16 %v851, %v850
      %v918 = vpack.c.bf16 %v853, %v852
      %v919 = vpack.c.bf16 %v855, %v854
      %v920 = vld [vmem:[%s3] sm:$0xf]
      %v921 = vld [vmem:[%s3 + $0x4] sm:$0xf]
      %v924 = vunpack.c.l.b16 %v920
      %v925 = vunpack.c.l.b16 %v921
      %v926 = vpack.c.b16 %v925, %v924
      %vm928 = vcmask 130048
      %v930 = vsel %vm928, %v856, 0
      %v933 = vsel %vm928, %v857, 0
      %v936 = vsel %vm928, %v858, 0
      %v939 = vsel %vm928, %v859, 0
      %v942 = vsel %vm928, %v860, 0
      %v945 = vsel %vm928, %v861, 0
      %v948 = vsel %vm928, %v862, 0
      %v951 = vsel %vm928, %v863, 0
      %v954 = vsel %vm928, %v864, 0
      %v957 = vsel %vm928, %v865, 0
      %v960 = vsel %vm928, %v866, 0
      %v963 = vsel %vm928, %v867, 0
      %v966 = vsel %vm928, %v868, 0
      %v969 = vsel %vm928, %v869, 0
      %v972 = vsel %vm928, %v870, 0
      %v975 = vsel %vm928, %v871, 0
      %v978 = vsel %vm928, %v872, 0
      %v981 = vsel %vm928, %v873, 0
      %v984 = vsel %vm928, %v874, 0
      %v987 = vsel %vm928, %v875, 0
      %v990 = vsel %vm928, %v876, 0
      %v993 = vsel %vm928, %v877, 0
      %v996 = vsel %vm928, %v878, 0
      %v999 = vsel %vm928, %v879, 0
      %v1002 = vsel %vm928, %v880, 0
      %v1005 = vsel %vm928, %v881, 0
      %v1008 = vsel %vm928, %v882, 0
      %v1011 = vsel %vm928, %v883, 0
      %v1014 = vsel %vm928, %v884, 0
      %v1017 = vsel %vm928, %v885, 0
      %v1020 = vsel %vm928, %v886, 0
      %v1023 = vsel %vm928, %v887, 0
      %v1026 = vsel %vm928, %v888, 0
      %v1029 = vsel %vm928, %v889, 0
      %v1032 = vsel %vm928, %v890, 0
      %v1035 = vsel %vm928, %v891, 0
      %v1038 = vsel %vm928, %v892, 0
      %v1041 = vsel %vm928, %v893, 0
      %v1044 = vsel %vm928, %v894, 0
      %v1047 = vsel %vm928, %v895, 0
      %v1050 = vsel %vm928, %v896, 0
      %v1053 = vsel %vm928, %v897, 0
      %v1056 = vsel %vm928, %v898, 0
      %v1059 = vsel %vm928, %v899, 0
      %v1062 = vsel %vm928, %v900, 0
      %v1065 = vsel %vm928, %v901, 0
      %v1068 = vsel %vm928, %v902, 0
      %v1071 = vsel %vm928, %v903, 0
      %v1074 = vsel %vm928, %v904, 0
      %v1077 = vsel %vm928, %v905, 0
      %v1080 = vsel %vm928, %v906, 0
      %v1083 = vsel %vm928, %v907, 0
      %v1086 = vsel %vm928, %v908, 0
      %v1089 = vsel %vm928, %v909, 0
      %v1092 = vsel %vm928, %v910, 0
      %v1095 = vsel %vm928, %v911, 0
      %v1098 = vsel %vm928, %v912, 0
      %v1101 = vsel %vm928, %v913, 0
      %v1104 = vsel %vm928, %v914, 0
      %v1107 = vsel %vm928, %v915, 0
      %v1110 = vsel %vm928, %v916, 0
      %v1113 = vsel %vm928, %v917, 0
      %v1116 = vsel %vm928, %v918, 0
      %v1119 = vsel %vm928, %v919, 0
      %1121 = vmatprep.subr.bf16.mxu0 0
      %1122 = vmatpush1.bf16.msra.mxu0 0
      %1123 = vmatprep.subr.bf16.mxu0 0
      %1124 = vmatpush1.bf16.msra.mxu0 0
      %1125 = vmatprep.subr.bf16.mxu0 0
      %1126 = vmatpush1.bf16.msra.mxu0 0
      %1127 = vmatprep.subr.bf16.mxu0 0
      %1128 = vmatpush1.bf16.msra.mxu0 0
      %1129 = vmatprep.subr.bf16.mxu0 0
      %1130 = vmatpush1.bf16.msra.mxu0 0
      %1131 = vmatprep.subr.bf16.mxu0 0
      %1132 = vmatpush1.bf16.msra.mxu0 0
      %1133 = vmatprep.subr.bf16.mxu0 0
      %1134 = vmatpush1.bf16.msra.mxu0 0
      %1135 = vmatprep.subr.bf16.mxu0 0
      %1136 = vmatpush1.bf16.msra.mxu0 %v926
      %1137 = vmatprep.subr.bf16.mxu0 0
      %1138 = vmatpush2.bf16.msra.mxu0 0
      %1139 = vmatprep.subr.bf16.mxu0 0
      %1140 = vmatpush2.bf16.msra.mxu0 0
      %1141 = vmatprep.subr.bf16.mxu0 0
      %1142 = vmatpush2.bf16.msra.mxu0 0
      %1143 = vmatprep.subr.bf16.mxu0 0
      %1144 = vmatpush2.bf16.msra.mxu0 0
      %1145 = vmatprep.subr.bf16.mxu0 0
      %1146 = vmatpush2.bf16.msra.mxu0 0
      %1147 = vmatprep.subr.bf16.mxu0 0
      %1148 = vmatpush2.bf16.msra.mxu0 0
      %1149 = vmatprep.subr.bf16.mxu0 0
      %1150 = vmatpush2.bf16.msra.mxu0 0
      %1151 = vmatprep.subr.bf16.mxu0 0
      %1152 = vmatpush2.bf16.msra.mxu0 0
      %1153 = vmatprep.mubr.bf16.mxu0 0
      %1154 = vmatmul.mubr.bf16.gmra.mxu0 %v930
      %v1155 = vpop.f32.mrf.mxu0
      %v1156 = vadd.f32 0.0, %v1155
      %v1157 = vpop.f32.mrf.mxu0
      %v1158 = vpop.f32.mrf.mxu0
      %v1159 = vadd.f32 0.0, %v1158
      %v1160 = vpop.f32.mrf.mxu0
      %1161 = vmatprep.mubr.bf16.mxu0 0
      %1162 = vmatmul.mubr.bf16.gmra.mxu0 %v933
      %v1163 = vpop.f32.mrf.mxu0
      %v1164 = vadd.f32 0.0, %v1163
      %v1165 = vpop.f32.mrf.mxu0
      %v1166 = vpop.f32.mrf.mxu0
      %v1167 = vadd.f32 0.0, %v1166
      %v1168 = vpop.f32.mrf.mxu0
      %1169 = vmatprep.mubr.bf16.mxu0 0
      %1170 = vmatmul.mubr.bf16.gmra.mxu0 %v936
      %v1171 = vpop.f32.mrf.mxu0
      %v1172 = vadd.f32 0.0, %v1171
      %v1173 = vpop.f32.mrf.mxu0
      %v1174 = vpop.f32.mrf.mxu0
      %v1175 = vadd.f32 0.0, %v1174
      %v1176 = vpop.f32.mrf.mxu0
      %1177 = vmatprep.mubr.bf16.mxu0 0
      %1178 = vmatmul.mubr.bf16.gmra.mxu0 %v939
      %v1179 = vpop.f32.mrf.mxu0
      %v1180 = vadd.f32 0.0, %v1179
      %v1181 = vpop.f32.mrf.mxu0
      %v1182 = vpop.f32.mrf.mxu0
      %v1183 = vadd.f32 0.0, %v1182
      %v1184 = vpop.f32.mrf.mxu0
      %1185 = vmatprep.mubr.bf16.mxu0 0
      %1186 = vmatmul.mubr.bf16.gmra.mxu0 %v942
      %v1187 = vpop.f32.mrf.mxu0
      %v1188 = vadd.f32 0.0, %v1187
      %v1189 = vpop.f32.mrf.mxu0
      %v1190 = vpop.f32.mrf.mxu0
      %v1191 = vadd.f32 0.0, %v1190
      %v1192 = vpop.f32.mrf.mxu0
      %1193 = vmatprep.mubr.bf16.mxu0 0
      %1194 = vmatmul.mubr.bf16.gmra.mxu0 %v945
      %v1195 = vpop.f32.mrf.mxu0
      %v1196 = vadd.f32 0.0, %v1195
      %v1197 = vpop.f32.mrf.mxu0
      %v1198 = vpop.f32.mrf.mxu0
      %v1199 = vadd.f32 0.0, %v1198
      %v1200 = vpop.f32.mrf.mxu0
      %1201 = vmatprep.mubr.bf16.mxu0 0
      %1202 = vmatmul.mubr.bf16.gmra.mxu0 %v948
      %v1203 = vpop.f32.mrf.mxu0
      %v1204 = vadd.f32 0.0, %v1203
      %v1205 = vpop.f32.mrf.mxu0
      %v1206 = vpop.f32.mrf.mxu0
      %v1207 = vadd.f32 0.0, %v1206
      %v1208 = vpop.f32.mrf.mxu0
      %1209 = vmatprep.mubr.bf16.mxu0 0
      %1210 = vmatmul.mubr.bf16.gmra.mxu0 %v951
      %v1211 = vpop.f32.mrf.mxu0
      %v1212 = vadd.f32 0.0, %v1211
      %v1213 = vpop.f32.mrf.mxu0
      %v1214 = vpop.f32.mrf.mxu0
      %v1215 = vadd.f32 0.0, %v1214
      %v1216 = vpop.f32.mrf.mxu0
      %1217 = vmatprep.mubr.bf16.mxu0 0
      %1218 = vmatmul.mubr.bf16.gmra.mxu0 %v954
      %v1219 = vpop.f32.mrf.mxu0
      %v1220 = vadd.f32 0.0, %v1219
      %v1221 = vpop.f32.mrf.mxu0
      %v1222 = vpop.f32.mrf.mxu0
      %v1223 = vadd.f32 0.0, %v1222
      %v1224 = vpop.f32.mrf.mxu0
      %1225 = vmatprep.mubr.bf16.mxu0 0
      %1226 = vmatmul.mubr.bf16.gmra.mxu0 %v957
      %v1227 = vpop.f32.mrf.mxu0
      %v1228 = vadd.f32 0.0, %v1227
      %v1229 = vpop.f32.mrf.mxu0
      %v1230 = vpop.f32.mrf.mxu0
      %v1231 = vadd.f32 0.0, %v1230
      %v1232 = vpop.f32.mrf.mxu0
      %1233 = vmatprep.mubr.bf16.mxu0 0
      %1234 = vmatmul.mubr.bf16.gmra.mxu0 %v960
      %v1235 = vpop.f32.mrf.mxu0
      %v1236 = vadd.f32 0.0, %v1235
      %v1237 = vpop.f32.mrf.mxu0
      %v1238 = vpop.f32.mrf.mxu0
      %v1239 = vadd.f32 0.0, %v1238
      %v1240 = vpop.f32.mrf.mxu0
      %1241 = vmatprep.mubr.bf16.mxu0 0
      %1242 = vmatmul.mubr.bf16.gmra.mxu0 %v963
      %v1243 = vpop.f32.mrf.mxu0
      %v1244 = vadd.f32 0.0, %v1243
      %v1245 = vpop.f32.mrf.mxu0
      %v1246 = vpop.f32.mrf.mxu0
      %v1247 = vadd.f32 0.0, %v1246
      %v1248 = vpop.f32.mrf.mxu0
      %1249 = vmatprep.mubr.bf16.mxu0 0
      %1250 = vmatmul.mubr.bf16.gmra.mxu0 %v966
      %v1251 = vpop.f32.mrf.mxu0
      %v1252 = vadd.f32 0.0, %v1251
      %v1253 = vpop.f32.mrf.mxu0
      %v1254 = vpop.f32.mrf.mxu0
      %v1255 = vadd.f32 0.0, %v1254
      %v1256 = vpop.f32.mrf.mxu0
      %1257 = vmatprep.mubr.bf16.mxu0 0
      %1258 = vmatmul.mubr.bf16.gmra.mxu0 %v969
      %v1259 = vpop.f32.mrf.mxu0
      %v1260 = vadd.f32 0.0, %v1259
      %v1261 = vpop.f32.mrf.mxu0
      %v1262 = vpop.f32.mrf.mxu0
      %v1263 = vadd.f32 0.0, %v1262
      %v1264 = vpop.f32.mrf.mxu0
      %1265 = vmatprep.mubr.bf16.mxu0 0
      %1266 = vmatmul.mubr.bf16.gmra.mxu0 %v972
      %v1267 = vpop.f32.mrf.mxu0
      %v1268 = vadd.f32 0.0, %v1267
      %v1269 = vpop.f32.mrf.mxu0
      %v1270 = vpop.f32.mrf.mxu0
      %v1271 = vadd.f32 0.0, %v1270
      %v1272 = vpop.f32.mrf.mxu0
      %1273 = vmatprep.mubr.bf16.mxu0 0
      %1274 = vmatmul.mubr.bf16.gmra.mxu0 %v975
      %v1275 = vpop.f32.mrf.mxu0
      %v1276 = vadd.f32 0.0, %v1275
      %v1277 = vpop.f32.mrf.mxu0
      %v1278 = vpop.f32.mrf.mxu0
      %v1279 = vadd.f32 0.0, %v1278
      %v1280 = vpop.f32.mrf.mxu0
      %1281 = vmatprep.mubr.bf16.mxu0 0
      %1282 = vmatmul.mubr.bf16.gmra.mxu0 %v978
      %v1283 = vpop.f32.mrf.mxu0
      %v1284 = vadd.f32 0.0, %v1283
      %v1285 = vpop.f32.mrf.mxu0
      %v1286 = vpop.f32.mrf.mxu0
      %v1287 = vadd.f32 0.0, %v1286
      %v1288 = vpop.f32.mrf.mxu0
      %1289 = vmatprep.mubr.bf16.mxu0 0
      %1290 = vmatmul.mubr.bf16.gmra.mxu0 %v981
      %v1291 = vpop.f32.mrf.mxu0
      %v1292 = vadd.f32 0.0, %v1291
      %v1293 = vpop.f32.mrf.mxu0
      %v1294 = vpop.f32.mrf.mxu0
      %v1295 = vadd.f32 0.0, %v1294
      %v1296 = vpop.f32.mrf.mxu0
      %1297 = vmatprep.mubr.bf16.mxu0 0
      %1298 = vmatmul.mubr.bf16.gmra.mxu0 %v984
      %v1299 = vpop.f32.mrf.mxu0
      %v1300 = vadd.f32 0.0, %v1299
      %v1301 = vpop.f32.mrf.mxu0
      %v1302 = vpop.f32.mrf.mxu0
      %v1303 = vadd.f32 0.0, %v1302
      %v1304 = vpop.f32.mrf.mxu0
      %1305 = vmatprep.mubr.bf16.mxu0 0
      %1306 = vmatmul.mubr.bf16.gmra.mxu0 %v987
      %v1307 = vpop.f32.mrf.mxu0
      %v1308 = vadd.f32 0.0, %v1307
      %v1309 = vpop.f32.mrf.mxu0
      %v1310 = vpop.f32.mrf.mxu0
      %v1311 = vadd.f32 0.0, %v1310
      %v1312 = vpop.f32.mrf.mxu0
      %1313 = vmatprep.mubr.bf16.mxu0 0
      %1314 = vmatmul.mubr.bf16.gmra.mxu0 %v990
      %v1315 = vpop.f32.mrf.mxu0
      %v1316 = vadd.f32 0.0, %v1315
      %v1317 = vpop.f32.mrf.mxu0
      %v1318 = vpop.f32.mrf.mxu0
      %v1319 = vadd.f32 0.0, %v1318
      %v1320 = vpop.f32.mrf.mxu0
      %1321 = vmatprep.mubr.bf16.mxu0 0
      %1322 = vmatmul.mubr.bf16.gmra.mxu0 %v993
      %v1323 = vpop.f32.mrf.mxu0
      %v1324 = vadd.f32 0.0, %v1323
      %v1325 = vpop.f32.mrf.mxu0
      %v1326 = vpop.f32.mrf.mxu0
      %v1327 = vadd.f32 0.0, %v1326
      %v1328 = vpop.f32.mrf.mxu0
      %1329 = vmatprep.mubr.bf16.mxu0 0
      %1330 = vmatmul.mubr.bf16.gmra.mxu0 %v996
      %v1331 = vpop.f32.mrf.mxu0
      %v1332 = vadd.f32 0.0, %v1331
      %v1333 = vpop.f32.mrf.mxu0
      %v1334 = vpop.f32.mrf.mxu0
      %v1335 = vadd.f32 0.0, %v1334
      %v1336 = vpop.f32.mrf.mxu0
      %1337 = vmatprep.mubr.bf16.mxu0 0
      %1338 = vmatmul.mubr.bf16.gmra.mxu0 %v999
      %v1339 = vpop.f32.mrf.mxu0
      %v1340 = vadd.f32 0.0, %v1339
      %v1341 = vpop.f32.mrf.mxu0
      %v1342 = vpop.f32.mrf.mxu0
      %v1343 = vadd.f32 0.0, %v1342
      %v1344 = vpop.f32.mrf.mxu0
      %1345 = vmatprep.mubr.bf16.mxu0 0
      %1346 = vmatmul.mubr.bf16.gmra.mxu0 %v1002
      %v1347 = vpop.f32.mrf.mxu0
      %v1348 = vadd.f32 0.0, %v1347
      %v1349 = vpop.f32.mrf.mxu0
      %v1350 = vpop.f32.mrf.mxu0
      %v1351 = vadd.f32 0.0, %v1350
      %v1352 = vpop.f32.mrf.mxu0
      %1353 = vmatprep.mubr.bf16.mxu0 0
      %1354 = vmatmul.mubr.bf16.gmra.mxu0 %v1005
      %v1355 = vpop.f32.mrf.mxu0
      %v1356 = vadd.f32 0.0, %v1355
      %v1357 = vpop.f32.mrf.mxu0
      %v1358 = vpop.f32.mrf.mxu0
      %v1359 = vadd.f32 0.0, %v1358
      %v1360 = vpop.f32.mrf.mxu0
      %1361 = vmatprep.mubr.bf16.mxu0 0
      %1362 = vmatmul.mubr.bf16.gmra.mxu0 %v1008
      %v1363 = vpop.f32.mrf.mxu0
      %v1364 = vadd.f32 0.0, %v1363
      %v1365 = vpop.f32.mrf.mxu0
      %v1366 = vpop.f32.mrf.mxu0
      %v1367 = vadd.f32 0.0, %v1366
      %v1368 = vpop.f32.mrf.mxu0
      %1369 = vmatprep.mubr.bf16.mxu0 0
      %1370 = vmatmul.mubr.bf16.gmra.mxu0 %v1011
      %v1371 = vpop.f32.mrf.mxu0
      %v1372 = vadd.f32 0.0, %v1371
      %v1373 = vpop.f32.mrf.mxu0
      %v1374 = vpop.f32.mrf.mxu0
      %v1375 = vadd.f32 0.0, %v1374
      %v1376 = vpop.f32.mrf.mxu0
      %1377 = vmatprep.mubr.bf16.mxu0 0
      %1378 = vmatmul.mubr.bf16.gmra.mxu0 %v1014
      %v1379 = vpop.f32.mrf.mxu0
      %v1380 = vadd.f32 0.0, %v1379
      %v1381 = vpop.f32.mrf.mxu0
      %v1382 = vpop.f32.mrf.mxu0
      %v1383 = vadd.f32 0.0, %v1382
      %v1384 = vpop.f32.mrf.mxu0
      %1385 = vmatprep.mubr.bf16.mxu0 0
      %1386 = vmatmul.mubr.bf16.gmra.mxu0 %v1017
      %v1387 = vpop.f32.mrf.mxu0
      %v1388 = vadd.f32 0.0, %v1387
      %v1389 = vpop.f32.mrf.mxu0
      %v1390 = vpop.f32.mrf.mxu0
      %v1391 = vadd.f32 0.0, %v1390
      %v1392 = vpop.f32.mrf.mxu0
      %1393 = vmatprep.mubr.bf16.mxu0 0
      %1394 = vmatmul.mubr.bf16.gmra.mxu0 %v1020
      %v1395 = vpop.f32.mrf.mxu0
      %v1396 = vadd.f32 0.0, %v1395
      %v1397 = vpop.f32.mrf.mxu0
      %v1398 = vpop.f32.mrf.mxu0
      %v1399 = vadd.f32 0.0, %v1398
      %v1400 = vpop.f32.mrf.mxu0
      %1401 = vmatprep.mubr.bf16.mxu0 0
      %1402 = vmatmul.mubr.bf16.gmra.mxu0 %v1023
      %v1403 = vpop.f32.mrf.mxu0
      %v1404 = vadd.f32 0.0, %v1403
      %v1405 = vpop.f32.mrf.mxu0
      %v1406 = vpop.f32.mrf.mxu0
      %v1407 = vadd.f32 0.0, %v1406
      %v1408 = vpop.f32.mrf.mxu0
      %1409 = vmatprep.mubr.bf16.mxu0 0
      %1410 = vmatmul.mubr.bf16.gmra.mxu0 %v1026
      %v1411 = vpop.f32.mrf.mxu0
      %v1412 = vadd.f32 0.0, %v1411
      %v1413 = vpop.f32.mrf.mxu0
      %v1414 = vpop.f32.mrf.mxu0
      %v1415 = vadd.f32 0.0, %v1414
      %v1416 = vpop.f32.mrf.mxu0
      %1417 = vmatprep.mubr.bf16.mxu0 0
      %1418 = vmatmul.mubr.bf16.gmra.mxu0 %v1029
      %v1419 = vpop.f32.mrf.mxu0
      %v1420 = vadd.f32 0.0, %v1419
      %v1421 = vpop.f32.mrf.mxu0
      %v1422 = vpop.f32.mrf.mxu0
      %v1423 = vadd.f32 0.0, %v1422
      %v1424 = vpop.f32.mrf.mxu0
      %1425 = vmatprep.mubr.bf16.mxu0 0
      %1426 = vmatmul.mubr.bf16.gmra.mxu0 %v1032
      %v1427 = vpop.f32.mrf.mxu0
      %v1428 = vadd.f32 0.0, %v1427
      %v1429 = vpop.f32.mrf.mxu0
      %v1430 = vpop.f32.mrf.mxu0
      %v1431 = vadd.f32 0.0, %v1430
      %v1432 = vpop.f32.mrf.mxu0
      %1433 = vmatprep.mubr.bf16.mxu0 0
      %1434 = vmatmul.mubr.bf16.gmra.mxu0 %v1035
      %v1435 = vpop.f32.mrf.mxu0
      %v1436 = vadd.f32 0.0, %v1435
      %v1437 = vpop.f32.mrf.mxu0
      %v1438 = vpop.f32.mrf.mxu0
      %v1439 = vadd.f32 0.0, %v1438
      %v1440 = vpop.f32.mrf.mxu0
      %1441 = vmatprep.mubr.bf16.mxu0 0
      %1442 = vmatmul.mubr.bf16.gmra.mxu0 %v1038
      %v1443 = vpop.f32.mrf.mxu0
      %v1444 = vadd.f32 0.0, %v1443
      %v1445 = vpop.f32.mrf.mxu0
      %v1446 = vpop.f32.mrf.mxu0
      %v1447 = vadd.f32 0.0, %v1446
      %v1448 = vpop.f32.mrf.mxu0
      %1449 = vmatprep.mubr.bf16.mxu0 0
      %1450 = vmatmul.mubr.bf16.gmra.mxu0 %v1041
      %v1451 = vpop.f32.mrf.mxu0
      %v1452 = vadd.f32 0.0, %v1451
      %v1453 = vpop.f32.mrf.mxu0
      %v1454 = vpop.f32.mrf.mxu0
      %v1455 = vadd.f32 0.0, %v1454
      %v1456 = vpop.f32.mrf.mxu0
      %1457 = vmatprep.mubr.bf16.mxu0 0
      %1458 = vmatmul.mubr.bf16.gmra.mxu0 %v1044
      %v1459 = vpop.f32.mrf.mxu0
      %v1460 = vadd.f32 0.0, %v1459
      %v1461 = vpop.f32.mrf.mxu0
      %v1462 = vpop.f32.mrf.mxu0
      %v1463 = vadd.f32 0.0, %v1462
      %v1464 = vpop.f32.mrf.mxu0
      %1465 = vmatprep.mubr.bf16.mxu0 0
      %1466 = vmatmul.mubr.bf16.gmra.mxu0 %v1047
      %v1467 = vpop.f32.mrf.mxu0
      %v1468 = vadd.f32 0.0, %v1467
      %v1469 = vpop.f32.mrf.mxu0
      %v1470 = vpop.f32.mrf.mxu0
      %v1471 = vadd.f32 0.0, %v1470
      %v1472 = vpop.f32.mrf.mxu0
      %1473 = vmatprep.mubr.bf16.mxu0 0
      %1474 = vmatmul.mubr.bf16.gmra.mxu0 %v1050
      %v1475 = vpop.f32.mrf.mxu0
      %v1476 = vadd.f32 0.0, %v1475
      %v1477 = vpop.f32.mrf.mxu0
      %v1478 = vpop.f32.mrf.mxu0
      %v1479 = vadd.f32 0.0, %v1478
      %v1480 = vpop.f32.mrf.mxu0
      %1481 = vmatprep.mubr.bf16.mxu0 0
      %1482 = vmatmul.mubr.bf16.gmra.mxu0 %v1053
      %v1483 = vpop.f32.mrf.mxu0
      %v1484 = vadd.f32 0.0, %v1483
      %v1485 = vpop.f32.mrf.mxu0
      %v1486 = vpop.f32.mrf.mxu0
      %v1487 = vadd.f32 0.0, %v1486
      %v1488 = vpop.f32.mrf.mxu0
      %1489 = vmatprep.mubr.bf16.mxu0 0
      %1490 = vmatmul.mubr.bf16.gmra.mxu0 %v1056
      %v1491 = vpop.f32.mrf.mxu0
      %v1492 = vadd.f32 0.0, %v1491
      %v1493 = vpop.f32.mrf.mxu0
      %v1494 = vpop.f32.mrf.mxu0
      %v1495 = vadd.f32 0.0, %v1494
      %v1496 = vpop.f32.mrf.mxu0
      %1497 = vmatprep.mubr.bf16.mxu0 0
      %1498 = vmatmul.mubr.bf16.gmra.mxu0 %v1059
      %v1499 = vpop.f32.mrf.mxu0
      %v1500 = vadd.f32 0.0, %v1499
      %v1501 = vpop.f32.mrf.mxu0
      %v1502 = vpop.f32.mrf.mxu0
      %v1503 = vadd.f32 0.0, %v1502
      %v1504 = vpop.f32.mrf.mxu0
      %1505 = vmatprep.mubr.bf16.mxu0 0
      %1506 = vmatmul.mubr.bf16.gmra.mxu0 %v1062
      %v1507 = vpop.f32.mrf.mxu0
      %v1508 = vadd.f32 0.0, %v1507
      %v1509 = vpop.f32.mrf.mxu0
      %v1510 = vpop.f32.mrf.mxu0
      %v1511 = vadd.f32 0.0, %v1510
      %v1512 = vpop.f32.mrf.mxu0
      %1513 = vmatprep.mubr.bf16.mxu0 0
      %1514 = vmatmul.mubr.bf16.gmra.mxu0 %v1065
      %v1515 = vpop.f32.mrf.mxu0
      %v1516 = vadd.f32 0.0, %v1515
      %v1517 = vpop.f32.mrf.mxu0
      %v1518 = vpop.f32.mrf.mxu0
      %v1519 = vadd.f32 0.0, %v1518
      %v1520 = vpop.f32.mrf.mxu0
      %1521 = vmatprep.mubr.bf16.mxu0 0
      %1522 = vmatmul.mubr.bf16.gmra.mxu0 %v1068
      %v1523 = vpop.f32.mrf.mxu0
      %v1524 = vadd.f32 0.0, %v1523
      %v1525 = vpop.f32.mrf.mxu0
      %v1526 = vpop.f32.mrf.mxu0
      %v1527 = vadd.f32 0.0, %v1526
      %v1528 = vpop.f32.mrf.mxu0
      %1529 = vmatprep.mubr.bf16.mxu0 0
      %1530 = vmatmul.mubr.bf16.gmra.mxu0 %v1071
      %v1531 = vpop.f32.mrf.mxu0
      %v1532 = vadd.f32 0.0, %v1531
      %v1533 = vpop.f32.mrf.mxu0
      %v1534 = vpop.f32.mrf.mxu0
      %v1535 = vadd.f32 0.0, %v1534
      %v1536 = vpop.f32.mrf.mxu0
      %1537 = vmatprep.mubr.bf16.mxu0 0
      %1538 = vmatmul.mubr.bf16.gmra.mxu0 %v1074
      %v1539 = vpop.f32.mrf.mxu0
      %v1540 = vadd.f32 0.0, %v1539
      %v1541 = vpop.f32.mrf.mxu0
      %v1542 = vpop.f32.mrf.mxu0
      %v1543 = vadd.f32 0.0, %v1542
      %v1544 = vpop.f32.mrf.mxu0
      %1545 = vmatprep.mubr.bf16.mxu0 0
      %1546 = vmatmul.mubr.bf16.gmra.mxu0 %v1077
      %v1547 = vpop.f32.mrf.mxu0
      %v1548 = vadd.f32 0.0, %v1547
      %v1549 = vpop.f32.mrf.mxu0
      %v1550 = vpop.f32.mrf.mxu0
      %v1551 = vadd.f32 0.0, %v1550
      %v1552 = vpop.f32.mrf.mxu0
      %1553 = vmatprep.mubr.bf16.mxu0 0
      %1554 = vmatmul.mubr.bf16.gmra.mxu0 %v1080
      %v1555 = vpop.f32.mrf.mxu0
      %v1556 = vadd.f32 0.0, %v1555
      %v1557 = vpop.f32.mrf.mxu0
      %v1558 = vpop.f32.mrf.mxu0
      %v1559 = vadd.f32 0.0, %v1558
      %v1560 = vpop.f32.mrf.mxu0
      %1561 = vmatprep.mubr.bf16.mxu0 0
      %1562 = vmatmul.mubr.bf16.gmra.mxu0 %v1083
      %v1563 = vpop.f32.mrf.mxu0
      %v1564 = vadd.f32 0.0, %v1563
      %v1565 = vpop.f32.mrf.mxu0
      %v1566 = vpop.f32.mrf.mxu0
      %v1567 = vadd.f32 0.0, %v1566
      %v1568 = vpop.f32.mrf.mxu0
      %1569 = vmatprep.mubr.bf16.mxu0 0
      %1570 = vmatmul.mubr.bf16.gmra.mxu0 %v1086
      %v1571 = vpop.f32.mrf.mxu0
      %v1572 = vadd.f32 0.0, %v1571
      %v1573 = vpop.f32.mrf.mxu0
      %v1574 = vpop.f32.mrf.mxu0
      %v1575 = vadd.f32 0.0, %v1574
      %v1576 = vpop.f32.mrf.mxu0
      %1577 = vmatprep.mubr.bf16.mxu0 0
      %1578 = vmatmul.mubr.bf16.gmra.mxu0 %v1089
      %v1579 = vpop.f32.mrf.mxu0
      %v1580 = vadd.f32 0.0, %v1579
      %v1581 = vpop.f32.mrf.mxu0
      %v1582 = vpop.f32.mrf.mxu0
      %v1583 = vadd.f32 0.0, %v1582
      %v1584 = vpop.f32.mrf.mxu0
      %1585 = vmatprep.mubr.bf16.mxu0 0
      %1586 = vmatmul.mubr.bf16.gmra.mxu0 %v1092
      %v1587 = vpop.f32.mrf.mxu0
      %v1588 = vadd.f32 0.0, %v1587
      %v1589 = vpop.f32.mrf.mxu0
      %v1590 = vpop.f32.mrf.mxu0
      %v1591 = vadd.f32 0.0, %v1590
      %v1592 = vpop.f32.mrf.mxu0
      %1593 = vmatprep.mubr.bf16.mxu0 0
      %1594 = vmatmul.mubr.bf16.gmra.mxu0 %v1095
      %v1595 = vpop.f32.mrf.mxu0
      %v1596 = vadd.f32 0.0, %v1595
      %v1597 = vpop.f32.mrf.mxu0
      %v1598 = vpop.f32.mrf.mxu0
      %v1599 = vadd.f32 0.0, %v1598
      %v1600 = vpop.f32.mrf.mxu0
      %1601 = vmatprep.mubr.bf16.mxu0 0
      %1602 = vmatmul.mubr.bf16.gmra.mxu0 %v1098
      %v1603 = vpop.f32.mrf.mxu0
      %v1604 = vadd.f32 0.0, %v1603
      %v1605 = vpop.f32.mrf.mxu0
      %v1606 = vpop.f32.mrf.mxu0
      %v1607 = vadd.f32 0.0, %v1606
      %v1608 = vpop.f32.mrf.mxu0
      %1609 = vmatprep.mubr.bf16.mxu0 0
      %1610 = vmatmul.mubr.bf16.gmra.mxu0 %v1101
      %v1611 = vpop.f32.mrf.mxu0
      %v1612 = vadd.f32 0.0, %v1611
      %v1613 = vpop.f32.mrf.mxu0
      %v1614 = vpop.f32.mrf.mxu0
      %v1615 = vadd.f32 0.0, %v1614
      %v1616 = vpop.f32.mrf.mxu0
      %1617 = vmatprep.mubr.bf16.mxu0 0
      %1618 = vmatmul.mubr.bf16.gmra.mxu0 %v1104
      %v1619 = vpop.f32.mrf.mxu0
      %v1620 = vadd.f32 0.0, %v1619
      %v1621 = vpop.f32.mrf.mxu0
      %v1622 = vpop.f32.mrf.mxu0
      %v1623 = vadd.f32 0.0, %v1622
      %v1624 = vpop.f32.mrf.mxu0
      %1625 = vmatprep.mubr.bf16.mxu0 0
      %1626 = vmatmul.mubr.bf16.gmra.mxu0 %v1107
      %v1627 = vpop.f32.mrf.mxu0
      %v1628 = vadd.f32 0.0, %v1627
      %v1629 = vpop.f32.mrf.mxu0
      %v1630 = vpop.f32.mrf.mxu0
      %v1631 = vadd.f32 0.0, %v1630
      %v1632 = vpop.f32.mrf.mxu0
      %1633 = vmatprep.mubr.bf16.mxu0 0
      %1634 = vmatmul.mubr.bf16.gmra.mxu0 %v1110
      %v1635 = vpop.f32.mrf.mxu0
      %v1636 = vadd.f32 0.0, %v1635
      %v1637 = vpop.f32.mrf.mxu0
      %v1638 = vpop.f32.mrf.mxu0
      %v1639 = vadd.f32 0.0, %v1638
      %v1640 = vpop.f32.mrf.mxu0
      %1641 = vmatprep.mubr.bf16.mxu0 0
      %1642 = vmatmul.mubr.bf16.gmra.mxu0 %v1113
      %v1643 = vpop.f32.mrf.mxu0
      %v1644 = vadd.f32 0.0, %v1643
      %v1645 = vpop.f32.mrf.mxu0
      %v1646 = vpop.f32.mrf.mxu0
      %v1647 = vadd.f32 0.0, %v1646
      %v1648 = vpop.f32.mrf.mxu0
      %1649 = vmatprep.mubr.bf16.mxu0 0
      %1650 = vmatmul.mubr.bf16.gmra.mxu0 %v1116
      %v1651 = vpop.f32.mrf.mxu0
      %v1652 = vadd.f32 0.0, %v1651
      %v1653 = vpop.f32.mrf.mxu0
      %v1654 = vpop.f32.mrf.mxu0
      %v1655 = vadd.f32 0.0, %v1654
      %v1656 = vpop.f32.mrf.mxu0
      %1657 = vmatprep.mubr.bf16.mxu0 0
      %1658 = vmatmul.mubr.bf16.gmra.mxu0 %v1119
      %v1659 = vpop.f32.mrf.mxu0
      %v1660 = vadd.f32 0.0, %v1659
      %v1661 = vpop.f32.mrf.mxu0
      %v1662 = vpop.f32.mrf.mxu0
      %v1663 = vadd.f32 0.0, %v1662
      %v1664 = vpop.f32.mrf.mxu0
      %1665 = vdwg.mxu0
      %1666 = vst [vmem:[%s199] sm:$0xff] %v1156
      %1667 = vst [vmem:[%s199 + $0x8] sm:$0xff] %v1159
      %1668 = vst [vmem:[%s199 + $0x10] sm:$0xff] %v1164
      %1669 = vst [vmem:[%s199 + $0x18] sm:$0xff] %v1167
      %1670 = vst [vmem:[%s199 + $0x20] sm:$0xff] %v1172
      %1671 = vst [vmem:[%s199 + $0x28] sm:$0xff] %v1175
      %1672 = vst [vmem:[%s199 + $0x30] sm:$0xff] %v1180
      %1673 = vst [vmem:[%s199 + $0x38] sm:$0xff] %v1183
      %1674 = vst [vmem:[%s199 + $0x40] sm:$0xff] %v1188
      %1675 = vst [vmem:[%s199 + $0x48] sm:$0xff] %v1191
      %1676 = vst [vmem:[%s199 + $0x50] sm:$0xff] %v1196
      %1677 = vst [vmem:[%s199 + $0x58] sm:$0xff] %v1199
      %1678 = vst [vmem:[%s199 + $0x60] sm:$0xff] %v1204
      %1679 = vst [vmem:[%s199 + $0x68] sm:$0xff] %v1207
      %1680 = vst [vmem:[%s199 + $0x70] sm:$0xff] %v1212
      %1681 = vst [vmem:[%s199 + $0x78] sm:$0xff] %v1215
      %1682 = vst [vmem:[%s199 + $0x80] sm:$0xff] %v1220
      %1683 = vst [vmem:[%s199 + $0x88] sm:$0xff] %v1223
      %1684 = vst [vmem:[%s199 + $0x90] sm:$0xff] %v1228
      %1685 = vst [vmem:[%s199 + $0x98] sm:$0xff] %v1231
      %1686 = vst [vmem:[%s199 + $0xa0] sm:$0xff] %v1236
      %1687 = vst [vmem:[%s199 + $0xa8] sm:$0xff] %v1239
      %1688 = vst [vmem:[%s199 + $0xb0] sm:$0xff] %v1244
      %1689 = vst [vmem:[%s199 + $0xb8] sm:$0xff] %v1247
      %1690 = vst [vmem:[%s199 + $0xc0] sm:$0xff] %v1252
      %1691 = vst [vmem:[%s199 + $0xc8] sm:$0xff] %v1255
      %1692 = vst [vmem:[%s199 + $0xd0] sm:$0xff] %v1260
      %1693 = vst [vmem:[%s199 + $0xd8] sm:$0xff] %v1263
      %1694 = vst [vmem:[%s199 + $0xe0] sm:$0xff] %v1268
      %1695 = vst [vmem:[%s199 + $0xe8] sm:$0xff] %v1271
      %1696 = vst [vmem:[%s199 + $0xf0] sm:$0xff] %v1276
      %1697 = vst [vmem:[%s199 + $0xf8] sm:$0xff] %v1279
      %1698 = vst [vmem:[%s199 + $0x100] sm:$0xff] %v1284
      %1699 = vst [vmem:[%s199 + $0x108] sm:$0xff] %v1287
      %1700 = vst [vmem:[%s199 + $0x110] sm:$0xff] %v1292
      %1701 = vst [vmem:[%s199 + $0x118] sm:$0xff] %v1295
      %1702 = vst [vmem:[%s199 + $0x120] sm:$0xff] %v1300
      %1703 = vst [vmem:[%s199 + $0x128] sm:$0xff] %v1303
      %1704 = vst [vmem:[%s199 + $0x130] sm:$0xff] %v1308
      %1705 = vst [vmem:[%s199 + $0x138] sm:$0xff] %v1311
      %1706 = vst [vmem:[%s199 + $0x140] sm:$0xff] %v1316
      %1707 = vst [vmem:[%s199 + $0x148] sm:$0xff] %v1319
      %1708 = vst [vmem:[%s199 + $0x150] sm:$0xff] %v1324
      %1709 = vst [vmem:[%s199 + $0x158] sm:$0xff] %v1327
      %1710 = vst [vmem:[%s199 + $0x160] sm:$0xff] %v1332
      %1711 = vst [vmem:[%s199 + $0x168] sm:$0xff] %v1335
      %1712 = vst [vmem:[%s199 + $0x170] sm:$0xff] %v1340
      %1713 = vst [vmem:[%s199 + $0x178] sm:$0xff] %v1343
      %1714 = vst [vmem:[%s199 + $0x180] sm:$0xff] %v1348
      %1715 = vst [vmem:[%s199 + $0x188] sm:$0xff] %v1351
      %1716 = vst [vmem:[%s199 + $0x190] sm:$0xff] %v1356
      %1717 = vst [vmem:[%s199 + $0x198] sm:$0xff] %v1359
      %1718 = vst [vmem:[%s199 + $0x1a0] sm:$0xff] %v1364
      %1719 = vst [vmem:[%s199 + $0x1a8] sm:$0xff] %v1367
      %1720 = vst [vmem:[%s199 + $0x1b0] sm:$0xff] %v1372
      %1721 = vst [vmem:[%s199 + $0x1b8] sm:$0xff] %v1375
      %1722 = vst [vmem:[%s199 + $0x1c0] sm:$0xff] %v1380
      %1723 = vst [vmem:[%s199 + $0x1c8] sm:$0xff] %v1383
      %1724 = vst [vmem:[%s199 + $0x1d0] sm:$0xff] %v1388
      %1725 = vst [vmem:[%s199 + $0x1d8] sm:$0xff] %v1391
      %1726 = vst [vmem:[%s199 + $0x1e0] sm:$0xff] %v1396
      %1727 = vst [vmem:[%s199 + $0x1e8] sm:$0xff] %v1399
      %1728 = vst [vmem:[%s199 + $0x1f0] sm:$0xff] %v1404
      %1729 = vst [vmem:[%s199 + $0x1f8] sm:$0xff] %v1407
      %1730 = vst [vmem:[%s199 + $0x200] sm:$0xff] %v1412
      %1731 = vst [vmem:[%s199 + $0x208] sm:$0xff] %v1415
      %1732 = vst [vmem:[%s199 + $0x210] sm:$0xff] %v1420
      %1733 = vst [vmem:[%s199 + $0x218] sm:$0xff] %v1423
      %1734 = vst [vmem:[%s199 + $0x220] sm:$0xff] %v1428
      %1735 = vst [vmem:[%s199 + $0x228] sm:$0xff] %v1431
      %1736 = vst [vmem:[%s199 + $0x230] sm:$0xff] %v1436
      %1737 = vst [vmem:[%s199 + $0x238] sm:$0xff] %v1439
      %1738 = vst [vmem:[%s199 + $0x240] sm:$0xff] %v1444
      %1739 = vst [vmem:[%s199 + $0x248] sm:$0xff] %v1447
      %1740 = vst [vmem:[%s199 + $0x250] sm:$0xff] %v1452
      %1741 = vst [vmem:[%s199 + $0x258] sm:$0xff] %v1455
      %1742 = vst [vmem:[%s199 + $0x260] sm:$0xff] %v1460
      %1743 = vst [vmem:[%s199 + $0x268] sm:$0xff] %v1463
      %1744 = vst [vmem:[%s199 + $0x270] sm:$0xff] %v1468
      %1745 = vst [vmem:[%s199 + $0x278] sm:$0xff] %v1471
      %1746 = vst [vmem:[%s199 + $0x280] sm:$0xff] %v1476
      %1747 = vst [vmem:[%s199 + $0x288] sm:$0xff] %v1479
      %1748 = vst [vmem:[%s199 + $0x290] sm:$0xff] %v1484
      %1749 = vst [vmem:[%s199 + $0x298] sm:$0xff] %v1487
      %1750 = vst [vmem:[%s199 + $0x2a0] sm:$0xff] %v1492
      %1751 = vst [vmem:[%s199 + $0x2a8] sm:$0xff] %v1495
      %1752 = vst [vmem:[%s199 + $0x2b0] sm:$0xff] %v1500
      %1753 = vst [vmem:[%s199 + $0x2b8] sm:$0xff] %v1503
      %1754 = vst [vmem:[%s199 + $0x2c0] sm:$0xff] %v1508
      %1755 = vst [vmem:[%s199 + $0x2c8] sm:$0xff] %v1511
      %1756 = vst [vmem:[%s199 + $0x2d0] sm:$0xff] %v1516
      %1757 = vst [vmem:[%s199 + $0x2d8] sm:$0xff] %v1519
      %1758 = vst [vmem:[%s199 + $0x2e0] sm:$0xff] %v1524
      %1759 = vst [vmem:[%s199 + $0x2e8] sm:$0xff] %v1527
      %1760 = vst [vmem:[%s199 + $0x2f0] sm:$0xff] %v1532
      %1761 = vst [vmem:[%s199 + $0x2f8] sm:$0xff] %v1535
      %1762 = vst [vmem:[%s199 + $0x300] sm:$0xff] %v1540
      %1763 = vst [vmem:[%s199 + $0x308] sm:$0xff] %v1543
      %1764 = vst [vmem:[%s199 + $0x310] sm:$0xff] %v1548
      %1765 = vst [vmem:[%s199 + $0x318] sm:$0xff] %v1551
      %1766 = vst [vmem:[%s199 + $0x320] sm:$0xff] %v1556
      %1767 = vst [vmem:[%s199 + $0x328] sm:$0xff] %v1559
      %1768 = vst [vmem:[%s199 + $0x330] sm:$0xff] %v1564
      %1769 = vst [vmem:[%s199 + $0x338] sm:$0xff] %v1567
      %1770 = vst [vmem:[%s199 + $0x340] sm:$0xff] %v1572
      %1771 = vst [vmem:[%s199 + $0x348] sm:$0xff] %v1575
      %1772 = vst [vmem:[%s199 + $0x350] sm:$0xff] %v1580
      %1773 = vst [vmem:[%s199 + $0x358] sm:$0xff] %v1583
      %1774 = vst [vmem:[%s199 + $0x360] sm:$0xff] %v1588
      %1775 = vst [vmem:[%s199 + $0x368] sm:$0xff] %v1591
      %1776 = vst [vmem:[%s199 + $0x370] sm:$0xff] %v1596
      %1777 = vst [vmem:[%s199 + $0x378] sm:$0xff] %v1599
      %1778 = vst [vmem:[%s199 + $0x380] sm:$0xff] %v1604
      %1779 = vst [vmem:[%s199 + $0x388] sm:$0xff] %v1607
      %1780 = vst [vmem:[%s199 + $0x390] sm:$0xff] %v1612
      %1781 = vst [vmem:[%s199 + $0x398] sm:$0xff] %v1615
      %1782 = vst [vmem:[%s199 + $0x3a0] sm:$0xff] %v1620
      %1783 = vst [vmem:[%s199 + $0x3a8] sm:$0xff] %v1623
      %1784 = vst [vmem:[%s199 + $0x3b0] sm:$0xff] %v1628
      %1785 = vst [vmem:[%s199 + $0x3b8] sm:$0xff] %v1631
      %1786 = vst [vmem:[%s199 + $0x3c0] sm:$0xff] %v1636
      %1787 = vst [vmem:[%s199 + $0x3c8] sm:$0xff] %v1639
      %1788 = vst [vmem:[%s199 + $0x3d0] sm:$0xff] %v1644
      %1789 = vst [vmem:[%s199 + $0x3d8] sm:$0xff] %v1647
      %1790 = vst [vmem:[%s199 + $0x3e0] sm:$0xff] %v1652
      %1791 = vst [vmem:[%s199 + $0x3e8] sm:$0xff] %v1655
      %1792 = vst [vmem:[%s199 + $0x3f0] sm:$0xff] %v1660
      %1793 = vst [vmem:[%s199 + $0x3f8] sm:$0xff] %v1663
      %s1794 = smul.u32 128, %s15
      %p1795 = scmp.lt.s32.totalorder %s1794, 255
      %s1796 = scalar_select %p1795, %s1794, 255
      %s1797 = smul.addr %s1796, 8
      %s1798 = scalar_lea.vmem %s4, %s1797
      // Predicated region
      $region37: #{generator_forward.18} parent=35 // pred_check
        %p1799 = pneg %p122
      $region38: #{generator_forward.18} parent=35 // pred_check_branch
        %1801 = sbr.rel (%p1799) target = $region40
      $region39: #{generator_forward.18} parent=35 // pred_region
        %s1802 = smul.u32 128, %s15
      $region40: #{generator_forward.18} parent=35 // pred_fallthru
        _
    $region36: #{generator_forward.18} parent=5 // pred_fallthru
      _
    %p1803 = scmp.le.s32.totalorder 2, %s10
    // Predicated region
    $region41: #{generator_forward.18} parent=5 // pred_check
      %p1804 = pneg %p1803
    $region42: #{generator_forward.18} parent=5 // pred_check_branch
      %1806 = sbr.rel (%p1804) target = $region44
    $region43: #{generator_forward.18} parent=5 // pred_region
      %s1807 = ssub.s32 %s10, 2
      // Predicated region
      $region45: #{generator_forward.18} parent=43 // pred_check
        %p1808 = pneg %p128
      $region46: #{generator_forward.18} parent=43 // pred_check_branch
        %1810 = sbr.rel (%p1808) target = $region48
      $region47: #{generator_forward.18} parent=43 // pred_region
        %s1811 = smul.u32 128, %s16
        %p1812 = scmp.lt.s32.totalorder %s1811, 255
        %s1813 = scalar_select %p1812, %s1811, 255
        %s1814 = smul.addr %s1813, 8
        %s1815 = scalar_lea.vmem %s4, %s1814
      $region48: #{generator_forward.18} parent=43 // pred_fallthru
        _
    $region44: #{generator_forward.18} parent=5 // pred_fallthru
      _
  $region6: #{generator_forward.18} parent=0 // loop_footer
    %s14 = sadd.s32 1, %s10
  $region7: #{generator_forward.18} parent=0 // loop_footer_branch
    %9 = sbr.rel target = $region3
  $region8: #{generator_forward.18} parent=0 // loop_exit
    _

// kernel: generator_forward.19
$region0: #{generator_forward.19}
  #allocation0 [shape = 'u32[]', space=smem, size = 0x4, offset = 0x4, fixed_abs, tag = 'smem constant byte address 0x4 - core index']
  #allocation1 [shape = 'u32[144,128]{1,0:T(1,128)}', space=vmem, size = 0x12000, scoped, tag = 'internal scratch']
  %s0 = inlined_call_operand.vmem [shape: f32[192,128], index: 0, kind: input, shape index: {}]
  %s1 = inlined_call_operand.vmem [shape: f32[192,128], index: 1, kind: output, shape index: {}]
  %s2 = sld [smem:[#allocation0]]
  $region14: #{generator_forward.19} parent=0
    _
  %s4 = ssub.s32 1, %s2
  %s5 = scalar_select 0, %s4, %s2
  // Predicated region
  $region2: #{generator_forward.19} parent=0 // pred_check
    _
  $region3: #{generator_forward.19} parent=0 // pred_check_branch
    %7 = sbr.rel (0) target = $region5
  $region4: #{generator_forward.19} parent=0 // pred_region
    _
  $region5: #{generator_forward.19} parent=0 // pred_fallthru
    _
  %v8 = vld [vmem:[%s0] sm:$0xff]
  %v9 = vld [vmem:[%s0 + $0x8] sm:$0xff]
  %v10 = vld [vmem:[%s0 + $0x10] sm:$0xff]
  %v11 = vld [vmem:[%s0 + $0x18] sm:$0xff]
  %v12 = vld [vmem:[%s0 + $0x20] sm:$0xff]
  %v13 = vld [vmem:[%s0 + $0x28] sm:$0xff]
  %v14 = vld [vmem:[%s0 + $0x30] sm:$0xff]
  %v15 = vld [vmem:[%s0 + $0x38] sm:$0xff]
  %v16 = vld [vmem:[%s0 + $0x40] sm:$0xff]
  %v17 = vld [vmem:[%s0 + $0x48] sm:$0xff]
  %v18 = vld [vmem:[%s0 + $0x50] sm:$0xff]
  %v19 = vld [vmem:[%s0 + $0x58] sm:$0xff]
  %v20 = vld [vmem:[%s0 + $0x60] sm:$0xff]
  %v21 = vld [vmem:[%s0 + $0x68] sm:$0xff]
  %v22 = vld [vmem:[%s0 + $0x70] sm:$0xff]
  %v23 = vld [vmem:[%s0 + $0x78] sm:$0xff]
  %v24 = vld [vmem:[%s0 + $0x80] sm:$0xff]
  %v25 = vld [vmem:[%s0 + $0x88] sm:$0xff]
  %v26 = vld [vmem:[%s0 + $0x90] sm:$0xff]
  %v27 = vld [vmem:[%s0 + $0x98] sm:$0xff]
  %v28 = vld [vmem:[%s0 + $0xa0] sm:$0xff]
  %v29 = vld [vmem:[%s0 + $0xa8] sm:$0xff]
  %v30 = vld [vmem:[%s0 + $0xb0] sm:$0xff]
  %v31 = vld [vmem:[%s0 + $0xb8] sm:$0xff]
  %v32 = vtanh.pop %v8
  %v33 = vtanh.pop %v9
  %v34 = vtanh.pop %v10
  %v35 = vtanh.pop %v11
  %v36 = vtanh.pop %v12
  %v37 = vtanh.pop %v13
  %v38 = vtanh.pop %v14
  %v39 = vtanh.pop %v15
  %v40 = vtanh.pop %v16
  %v41 = vtanh.pop %v17
  %v42 = vtanh.pop %v18
  %v43 = vtanh.pop %v19
  %v44 = vtanh.pop %v20
  %v45 = vtanh.pop %v21
  %v46 = vtanh.pop %v22
  %v47 = vtanh.pop %v23
  %v48 = vtanh.pop %v24
  %v49 = vtanh.pop %v25
  %v50 = vtanh.pop %v26
  %v51 = vtanh.pop %v27
  %v52 = vtanh.pop %v28
  %v53 = vtanh.pop %v29
  %v54 = vtanh.pop %v30
  %v55 = vtanh.pop %v31
  %56 = vst [vmem:[%s1] sm:$0xff] %v32
  %57 = vst [vmem:[%s1 + $0x8] sm:$0xff] %v33
  %58 = vst [vmem:[%s1 + $0x10] sm:$0xff] %v34
  %59 = vst [vmem:[%s1 + $0x18] sm:$0xff] %v35
  %60 = vst [vmem:[%s1 + $0x20] sm:$0xff] %v36
  %61 = vst [vmem:[%s1 + $0x28] sm:$0xff] %v37
  %62 = vst [vmem:[%s1 + $0x30] sm:$0xff] %v38
  %63 = vst [vmem:[%s1 + $0x38] sm:$0xff] %v39
  %64 = vst [vmem:[%s1 + $0x40] sm:$0xff] %v40
  %65 = vst [vmem:[%s1 + $0x48] sm:$0xff] %v41
  %66 = vst [vmem:[%s1 + $0x50] sm:$0xff] %v42
  %67 = vst [vmem:[%s1 + $0x58] sm:$0xff] %v43
  %68 = vst [vmem:[%s1 + $0x60] sm:$0xff] %v44
  %69 = vst [vmem:[%s1 + $0x68] sm:$0xff] %v45
  %70 = vst [vmem:[%s1 + $0x70] sm:$0xff] %v46
  %71 = vst [vmem:[%s1 + $0x78] sm:$0xff] %v47
  %72 = vst [vmem:[%s1 + $0x80] sm:$0xff] %v48
  %73 = vst [vmem:[%s1 + $0x88] sm:$0xff] %v49
  %74 = vst [vmem:[%s1 + $0x90] sm:$0xff] %v50
  %75 = vst [vmem:[%s1 + $0x98] sm:$0xff] %v51
  %76 = vst [vmem:[%s1 + $0xa0] sm:$0xff] %v52
  %77 = vst [vmem:[%s1 + $0xa8] sm:$0xff] %v53
  %78 = vst [vmem:[%s1 + $0xb0] sm:$0xff] %v54
  %79 = vst [vmem:[%s1 + $0xb8] sm:$0xff] %v55
  // Predicated region
  $region6: #{generator_forward.19} parent=0 // pred_check
    _
  $region7: #{generator_forward.19} parent=0 // pred_check_branch
    %81 = sbr.rel (0) target = $region9
  $region8: #{generator_forward.19} parent=0 // pred_region
    _
  $region9: #{generator_forward.19} parent=0 // pred_fallthru
    _
  // Predicated region
  $region10: #{generator_forward.19} parent=0 // pred_check
    _
  $region11: #{generator_forward.19} parent=0 // pred_check_branch
    %83 = sbr.rel (0) target = $region13
  $region12: #{generator_forward.19} parent=0 // pred_region
    _
  $region13: #{generator_forward.19} parent=0 // pred_fallthru
    _

</llo_original>
